<compile_context>
chip_gen: v7x
topology: tpu7x:2x2x1
jax: 0.10.0
libtpu: 0.0.40
codegen_flags: <defaults>
</compile_context>

<pallas_src>
import jax
import jax.numpy as jnp
from jax import lax
from jax.experimental import pallas as pl
from jax.experimental.pallas import tpu as pltpu


# Image interior starts at this (bf16 sublane-tile aligned) column inside the padded VMEM
# scratch, so interior *stores* are tile-aligned; tap *reads* use offsets {15, 16, 17}.
_W_OFF = 16


# ----------------------------------------------------------------------------
# Zero only the halo strips that the 3x3 taps actually read (not the full scratch).
# ----------------------------------------------------------------------------
def _zero_halo(ref, h, w):
    wp, c, dt = ref.shape[1], ref.shape[2], ref.dtype
    ref[0:1, :, :] = jnp.zeros((1, wp, c), dt)                       # top pad row
    ref[h + 1:h + 2, :, :] = jnp.zeros((1, wp, c), dt)               # bottom pad row
    ref[:, 0:_W_OFF, :] = jnp.zeros((h + 2, _W_OFF, c), dt)          # left strip (col 15)
    ref[:, _W_OFF + w:wp, :] = jnp.zeros((h + 2, wp - _W_OFF - w, c), dt)  # right strip


# ----------------------------------------------------------------------------
# In-kernel 3x3 conv from a zero-padded bf16 VMEM scratch ref.
# row_stride=2 keeps only even output rows (leading-dim reshape + static slice: no
# strided accesses, no sublane relayout -> cheap and safe).
# ----------------------------------------------------------------------------
def _conv3x3(src_ref, w_ref, scale_ref, bias_ref, h, w, row_stride=1):
    cin = src_ref.shape[-1]
    cout = w_ref.shape[-1]
    h_out = h // row_stride
    acc = jnp.zeros((h_out * w, cout), jnp.float32)
    for dy in range(3):                       # static unroll: 9 tap matmuls on the MXU
        for dx in range(3):
            c0 = _W_OFF - 1 + dx
            tap = src_ref[dy:dy + h, c0:c0 + w, :]        # (h, w, cin) bf16 VMEM read
            if row_stride == 2:
                # even output rows use padded rows {dy, dy+2, ...}
                tap = tap.reshape(h_out, 2, w, cin)[:, 0]
            tap = tap.reshape(h_out * w, cin)
            acc = acc + jnp.dot(tap, w_ref[3 * dy + dx],
                                preferred_element_type=jnp.float32)
    out = acc * scale_ref[0] + bias_ref[0]    # folded BN (+ conv bias), f32
    return jnp.maximum(out, 0.0)              # ReLU


# ----------------------------------------------------------------------------
# Fused kernel: conv1 -> conv2 -> conv3 (even rows), intermediates never leave VMEM.
# ----------------------------------------------------------------------------
def _downsample_fused_kernel(x_ref, w1_ref, s1_ref, b1_ref,
                             w2_ref, s2_ref, b2_ref,
                             w3_ref, s3_ref, b3_ref,
                             o_ref,
                             xp_ref, a1_ref, a2_ref):
    _, h, w, _ = x_ref.shape
    cout = o_ref.shape[-1]
    h2 = h // 2

    # Re-zero halo strips every step: cheap, and correct under "parallel" megacore
    # sharding (a core might never execute grid step 0, so one-time init is unsafe).
    _zero_halo(xp_ref, h, w)
    _zero_halo(a1_ref, h, w)
    _zero_halo(a2_ref, h, w)

    # Stage the bf16 input into the padded bf16 scratch (tile-aligned interior store).
    xp_ref[1:h + 1, _W_OFF:_W_OFF + w, :] = x_ref[0]

    y1 = _conv3x3(xp_ref, w1_ref, s1_ref, b1_ref, h, w)
    a1_ref[1:h + 1, _W_OFF:_W_OFF + w, :] = y1.reshape(h, w, cout).astype(a1_ref.dtype)

    y2 = _conv3x3(a1_ref, w2_ref, s2_ref, b2_ref, h, w)
    a2_ref[1:h + 1, _W_OFF:_W_OFF + w, :] = y2.reshape(h, w, cout).astype(a2_ref.dtype)

    # Stride-2 conv: even output rows computed here; even columns kept by the wrapper
    # (mathematically identical to the stride-2, padding-1 conv).
    y3 = _conv3x3(a2_ref, w3_ref, s3_ref, b3_ref, h, w, row_stride=2)
    o_ref[0] = y3.reshape(h2, w, cout).astype(o_ref.dtype)


# ----------------------------------------------------------------------------
# Wrapper: NCHW in / NCHW out (matching the PyTorch module), one pallas_call total.
# ----------------------------------------------------------------------------
def _weights_for_kernel(p, cout):
    wk = p["w"].astype(jnp.bfloat16).reshape(9, p["w"].shape[2], cout)   # (9, cin, cout)
    s = p["scale"].reshape(1, cout).astype(jnp.float32)
    b = p["bias"].reshape(1, cout).astype(jnp.float32)
    return wk, s, b


@jax.jit
def downsample_layer_forward(params, x_nchw):
    x = jnp.transpose(x_nchw, (0, 2, 3, 1)).astype(jnp.bfloat16)   # NCHW -> NHWC, bf16
    n, h, w, cin = x.shape
    assert h % 2 == 0, "kernel assumes even input height"
    cout = params["conv1"]["w"].shape[-1]
    h2 = h // 2

    w1, s1, b1 = _weights_for_kernel(params["conv1"], cout)
    w2, s2, b2 = _weights_for_kernel(params["conv2"], cout)
    w3, s3, b3 = _weights_for_kernel(params["conv3"], cout)

    wp = w + 2 * _W_OFF   # padded scratch width (aligned interior + zero halo)

    half_rows = pl.pallas_call(
        _downsample_fused_kernel,
        out_shape=jax.ShapeDtypeStruct((n, h2, w, cout), jnp.float32),
        grid_spec=pltpu.PrefetchScalarGridSpec(
            num_scalar_prefetch=0,
            grid=(n,),
            in_specs=[
                pl.BlockSpec((1, h, w, cin), lambda b: (b, 0, 0, 0)),
                pl.BlockSpec((9, cin, cout), lambda b: (0, 0, 0)),
                pl.BlockSpec((1, cout), lambda b: (0, 0)),
                pl.BlockSpec((1, cout), lambda b: (0, 0)),
                pl.BlockSpec((9, cout, cout), lambda b: (0, 0, 0)),
                pl.BlockSpec((1, cout), lambda b: (0, 0)),
                pl.BlockSpec((1, cout), lambda b: (0, 0)),
                pl.BlockSpec((9, cout, cout), lambda b: (0, 0, 0)),
                pl.BlockSpec((1, cout), lambda b: (0, 0)),
                pl.BlockSpec((1, cout), lambda b: (0, 0)),
            ],
            out_specs=pl.BlockSpec((1, h2, w, cout), lambda b: (b, 0, 0, 0)),
            scratch_shapes=[
                pltpu.VMEM((h + 2, wp, cin), jnp.bfloat16),    # padded input
                pltpu.VMEM((h + 2, wp, cout), jnp.bfloat16),   # padded conv1 output
                pltpu.VMEM((h + 2, wp, cout), jnp.bfloat16),   # padded conv2 output
            ],
        ),
        compiler_params=pltpu.CompilerParams(
            dimension_semantics=("parallel",),
            vmem_limit_bytes=32 * 1024 * 1024,
        ),
    )(x, w1, s1, b1, w2, s2, b2, w3, s3, b3)

    y = half_rows[:, :, ::2, :]                  # even columns -> exact stride-2 output
    return jnp.transpose(y, (0, 3, 1, 2))        # NHWC -> NCHW


# ----------------------------------------------------------------------------
# Deterministic parameter construction (shapes from the PyTorch __init__);
# BatchNorm (inference mode) folded into per-channel scale/bias with the conv bias.
# ----------------------------------------------------------------------------
def _init_conv_bn(key, cin, cout):
    kw, kb, kg, kbe, km, kv = jax.random.split(key, 6)
    fan_in = cin * 9
    bound = 1.0 / (fan_in ** 0.5)
    w = jax.random.uniform(kw, (3, 3, cin, cout), jnp.float32, -bound, bound)  # HWIO
    b = jax.random.uniform(kb, (cout,), jnp.float32, -bound, bound)
    gamma = 1.0 + 0.1 * jax.random.normal(kg, (cout,), jnp.float32)
    beta = 0.1 * jax.random.normal(kbe, (cout,), jnp.float32)
    run_mean = 0.1 * jax.random.normal(km, (cout,), jnp.float32)
    run_var = 1.0 + 0.1 * jax.random.uniform(kv, (cout,), jnp.float32)
    eps = 1e-5
    scale = gamma / jnp.sqrt(run_var + eps)
    bias_eff = (b - run_mean) * scale + beta
    return {"w": w, "scale": scale, "bias": bias_eff}


def init_downsample_layer(key, in_ch, out_ch):
    k1, k2, k3 = jax.random.split(key, 3)
    return {
        "conv1": _init_conv_bn(k1, in_ch, out_ch),
        "conv2": _init_conv_bn(k2, out_ch, out_ch),
        "conv3": _init_conv_bn(k3, out_ch, out_ch),  # stride-2 downsample conv
    }


# ----------------------------------------------------------------------------
# Pure-JAX reference (lax conv, same bf16 operand rounding + f32 accumulation).
# ----------------------------------------------------------------------------
def _ref_forward(params, x_nchw):
    x = jnp.transpose(x_nchw, (0, 2, 3, 1))
    for name, stride in (("conv1", 1), ("conv2", 1), ("conv3", 2)):
        p = params[name]
        y = lax.conv_general_dilated(
            x.astype(jnp.bfloat16), p["w"].astype(jnp.bfloat16),
            window_strides=(stride, stride), padding=((1, 1), (1, 1)),
            dimension_numbers=("NHWC", "HWIO", "NHWC"),
            preferred_element_type=jnp.float32)
        x = jnp.maximum(y * p["scale"] + p["bias"], 0.0)
    return jnp.transpose(x, (0, 3, 1, 2))


if __name__ == "__main__":
    key = jax.random.PRNGKey(0)
    k_param, k_x = jax.random.split(key)

    N, IN_CH, OUT_CH, H, W = 2, 4, 8, 16, 16
    params = init_downsample_layer(k_param, IN_CH, OUT_CH)
    x = jax.random.normal(k_x, (N, IN_CH, H, W), jnp.float32)   # NCHW, like PyTorch

    out = jax.block_until_ready(downsample_layer_forward(params, x))
    assert out.shape == (N, OUT_CH, H // 2, W // 2), out.shape

    ref = jax.block_until_ready(_ref_forward(params, x))
    max_err = float(jnp.max(jnp.abs(out - ref)))
    assert max_err < 2e-2, max_err

    print("KERNEL_OK")
</pallas_src>

<mosaic_0001>
module attributes {stable_mosaic.version = 11 : i64} {
  func.func @_downsample_fused_kernel(%arg0: i32, %arg1: memref<1x16x16x4xbf16, #tpu.memory_space<vmem>>, %arg2: memref<9x4x8xbf16, #tpu.memory_space<vmem>>, %arg3: memref<1x8xf32, #tpu.memory_space<vmem>>, %arg4: memref<1x8xf32, #tpu.memory_space<vmem>>, %arg5: memref<9x8x8xbf16, #tpu.memory_space<vmem>>, %arg6: memref<1x8xf32, #tpu.memory_space<vmem>>, %arg7: memref<1x8xf32, #tpu.memory_space<vmem>>, %arg8: memref<9x8x8xbf16, #tpu.memory_space<vmem>>, %arg9: memref<1x8xf32, #tpu.memory_space<vmem>>, %arg10: memref<1x8xf32, #tpu.memory_space<vmem>>, %arg11: memref<1x8x16x8xf32, #tpu.memory_space<vmem>>, %arg12: memref<18x48x4xbf16, #tpu.memory_space<vmem>>, %arg13: memref<18x48x8xbf16, #tpu.memory_space<vmem>>, %arg14: memref<18x48x8xbf16, #tpu.memory_space<vmem>>) attributes {dimension_semantics = [#tpu.dimension_semantics<parallel>], iteration_bounds = array<i64: 2>, scalar_prefetch = 0 : i64, scratch_operands = 3 : i64, tpu.core_type = #tpu.core_type<tc>, window_params = [{transform_indices = @transform_0, window_bounds = array<i64: 1, 16, 16, 4>}, {pipeline_mode = #tpu.pipeline_mode<synchronous>, transform_indices = @transform_1, window_bounds = array<i64: 9, 4, 8>}, {pipeline_mode = #tpu.pipeline_mode<synchronous>, transform_indices = @transform_2, window_bounds = array<i64: 1, 8>}, {pipeline_mode = #tpu.pipeline_mode<synchronous>, transform_indices = @transform_3, window_bounds = array<i64: 1, 8>}, {pipeline_mode = #tpu.pipeline_mode<synchronous>, transform_indices = @transform_4, window_bounds = array<i64: 9, 8, 8>}, {pipeline_mode = #tpu.pipeline_mode<synchronous>, transform_indices = @transform_5, window_bounds = array<i64: 1, 8>}, {pipeline_mode = #tpu.pipeline_mode<synchronous>, transform_indices = @transform_6, window_bounds = array<i64: 1, 8>}, {pipeline_mode = #tpu.pipeline_mode<synchronous>, transform_indices = @transform_7, window_bounds = array<i64: 9, 8, 8>}, {pipeline_mode = #tpu.pipeline_mode<synchronous>, transform_indices = @transform_8, window_bounds = array<i64: 1, 8>}, {pipeline_mode = #tpu.pipeline_mode<synchronous>, transform_indices = @transform_9, window_bounds = array<i64: 1, 8>}, {transform_indices = @transform_10, window_bounds = array<i64: 1, 8, 16, 8>}]} {
    %cst = arith.constant 0.000000e+00 : bf16
    %0 = vector.broadcast %cst : bf16 to vector<1x48x4xbf16>
    %c0 = arith.constant 0 : index
    %c0_0 = arith.constant 0 : index
    %c0_1 = arith.constant 0 : index
    %1 = vector.load %arg12[%c0, %c0_0, %c0_1] : memref<18x48x4xbf16, #tpu.memory_space<vmem>>, vector<1x48x4xbf16>
    tpu.vector_store %arg12[%c0, %c0_0, %c0_1], %0 {strides = array<i32>} : memref<18x48x4xbf16, #tpu.memory_space<vmem>>, vector<1x48x4xbf16>,
    %cst_2 = arith.constant 0.000000e+00 : bf16
    %2 = vector.broadcast %cst_2 : bf16 to vector<1x48x4xbf16>
    %c17 = arith.constant 17 : index
    %c0_3 = arith.constant 0 : index
    %c0_4 = arith.constant 0 : index
    %3 = vector.load %arg12[%c17, %c0_3, %c0_4] : memref<18x48x4xbf16, #tpu.memory_space<vmem>>, vector<1x48x4xbf16>
    tpu.vector_store %arg12[%c17, %c0_3, %c0_4], %2 {strides = array<i32>} : memref<18x48x4xbf16, #tpu.memory_space<vmem>>, vector<1x48x4xbf16>,
    %cst_5 = arith.constant 0.000000e+00 : bf16
    %4 = vector.broadcast %cst_5 : bf16 to vector<18x16x4xbf16>
    %c0_6 = arith.constant 0 : index
    %c0_7 = arith.constant 0 : index
    %c0_8 = arith.constant 0 : index
    %5 = vector.load %arg12[%c0_6, %c0_7, %c0_8] : memref<18x48x4xbf16, #tpu.memory_space<vmem>>, vector<18x16x4xbf16>
    tpu.vector_store %arg12[%c0_6, %c0_7, %c0_8], %4 {strides = array<i32>} : memref<18x48x4xbf16, #tpu.memory_space<vmem>>, vector<18x16x4xbf16>,
    %cst_9 = arith.constant 0.000000e+00 : bf16
    %6 = vector.broadcast %cst_9 : bf16 to vector<18x16x4xbf16>
    %c0_10 = arith.constant 0 : index
    %c32 = arith.constant 32 : index
    %c0_11 = arith.constant 0 : index
    %7 = vector.load %arg12[%c0_10, %c32, %c0_11] : memref<18x48x4xbf16, #tpu.memory_space<vmem>>, vector<18x16x4xbf16>
    tpu.vector_store %arg12[%c0_10, %c32, %c0_11], %6 {strides = array<i32>} : memref<18x48x4xbf16, #tpu.memory_space<vmem>>, vector<18x16x4xbf16>,
    %cst_12 = arith.constant 0.000000e+00 : bf16
    %8 = vector.broadcast %cst_12 : bf16 to vector<1x48x8xbf16>
    %c0_13 = arith.constant 0 : index
    %c0_14 = arith.constant 0 : index
    %c0_15 = arith.constant 0 : index
    %9 = vector.load %arg13[%c0_13, %c0_14, %c0_15] : memref<18x48x8xbf16, #tpu.memory_space<vmem>>, vector<1x48x8xbf16>
    tpu.vector_store %arg13[%c0_13, %c0_14, %c0_15], %8 {strides = array<i32>} : memref<18x48x8xbf16, #tpu.memory_space<vmem>>, vector<1x48x8xbf16>,
    %cst_16 = arith.constant 0.000000e+00 : bf16
    %10 = vector.broadcast %cst_16 : bf16 to vector<1x48x8xbf16>
    %c17_17 = arith.constant 17 : index
    %c0_18 = arith.constant 0 : index
    %c0_19 = arith.constant 0 : index
    %11 = vector.load %arg13[%c17_17, %c0_18, %c0_19] : memref<18x48x8xbf16, #tpu.memory_space<vmem>>, vector<1x48x8xbf16>
    tpu.vector_store %arg13[%c17_17, %c0_18, %c0_19], %10 {strides = array<i32>} : memref<18x48x8xbf16, #tpu.memory_space<vmem>>, vector<1x48x8xbf16>,
    %cst_20 = arith.constant 0.000000e+00 : bf16
    %12 = vector.broadcast %cst_20 : bf16 to vector<18x16x8xbf16>
    %c0_21 = arith.constant 0 : index
    %c0_22 = arith.constant 0 : index
    %c0_23 = arith.constant 0 : index
    %13 = vector.load %arg13[%c0_21, %c0_22, %c0_23] : memref<18x48x8xbf16, #tpu.memory_space<vmem>>, vector<18x16x8xbf16>
    tpu.vector_store %arg13[%c0_21, %c0_22, %c0_23], %12 {strides = array<i32>} : memref<18x48x8xbf16, #tpu.memory_space<vmem>>, vector<18x16x8xbf16>,
    %cst_24 = arith.constant 0.000000e+00 : bf16
    %14 = vector.broadcast %cst_24 : bf16 to vector<18x16x8xbf16>
    %c0_25 = arith.constant 0 : index
    %c32_26 = arith.constant 32 : index
    %c0_27 = arith.constant 0 : index
    %15 = vector.load %arg13[%c0_25, %c32_26, %c0_27] : memref<18x48x8xbf16, #tpu.memory_space<vmem>>, vector<18x16x8xbf16>
    tpu.vector_store %arg13[%c0_25, %c32_26, %c0_27], %14 {strides = array<i32>} : memref<18x48x8xbf16, #tpu.memory_space<vmem>>, vector<18x16x8xbf16>,
    %cst_28 = arith.constant 0.000000e+00 : bf16
    %16 = vector.broadcast %cst_28 : bf16 to vector<1x48x8xbf16>
    %c0_29 = arith.constant 0 : index
    %c0_30 = arith.constant 0 : index
    %c0_31 = arith.constant 0 : index
    %17 = vector.load %arg14[%c0_29, %c0_30, %c0_31] : memref<18x48x8xbf16, #tpu.memory_space<vmem>>, vector<1x48x8xbf16>
    tpu.vector_store %arg14[%c0_29, %c0_30, %c0_31], %16 {strides = array<i32>} : memref<18x48x8xbf16, #tpu.memory_space<vmem>>, vector<1x48x8xbf16>,
    %cst_32 = arith.constant 0.000000e+00 : bf16
    %18 = vector.broadcast %cst_32 : bf16 to vector<1x48x8xbf16>
    %c17_33 = arith.constant 17 : index
    %c0_34 = arith.constant 0 : index
    %c0_35 = arith.constant 0 : index
    %19 = vector.load %arg14[%c17_33, %c0_34, %c0_35] : memref<18x48x8xbf16, #tpu.memory_space<vmem>>, vector<1x48x8xbf16>
    tpu.vector_store %arg14[%c17_33, %c0_34, %c0_35], %18 {strides = array<i32>} : memref<18x48x8xbf16, #tpu.memory_space<vmem>>, vector<1x48x8xbf16>,
    %cst_36 = arith.constant 0.000000e+00 : bf16
    %20 = vector.broadcast %cst_36 : bf16 to vector<18x16x8xbf16>
    %c0_37 = arith.constant 0 : index
    %c0_38 = arith.constant 0 : index
    %c0_39 = arith.constant 0 : index
    %21 = vector.load %arg14[%c0_37, %c0_38, %c0_39] : memref<18x48x8xbf16, #tpu.memory_space<vmem>>, vector<18x16x8xbf16>
    tpu.vector_store %arg14[%c0_37, %c0_38, %c0_39], %20 {strides = array<i32>} : memref<18x48x8xbf16, #tpu.memory_space<vmem>>, vector<18x16x8xbf16>,
    %cst_40 = arith.constant 0.000000e+00 : bf16
    %22 = vector.broadcast %cst_40 : bf16 to vector<18x16x8xbf16>
    %c0_41 = arith.constant 0 : index
    %c32_42 = arith.constant 32 : index
    %c0_43 = arith.constant 0 : index
    %23 = vector.load %arg14[%c0_41, %c32_42, %c0_43] : memref<18x48x8xbf16, #tpu.memory_space<vmem>>, vector<18x16x8xbf16>
    tpu.vector_store %arg14[%c0_41, %c32_42, %c0_43], %22 {strides = array<i32>} : memref<18x48x8xbf16, #tpu.memory_space<vmem>>, vector<18x16x8xbf16>,
    %c0_44 = arith.constant 0 : index
    %c0_45 = arith.constant 0 : index
    %c0_46 = arith.constant 0 : index
    %c0_47 = arith.constant 0 : index
    %24 = vector.load %arg1[%c0_44, %c0_45, %c0_46, %c0_47] : memref<1x16x16x4xbf16, #tpu.memory_space<vmem>>, vector<1x16x16x4xbf16>
    %25 = vector.shape_cast %24 : vector<1x16x16x4xbf16> to vector<16x16x4xbf16>
    %c1 = arith.constant 1 : index
    %c16 = arith.constant 16 : index
    %c0_48 = arith.constant 0 : index
    %26 = vector.load %arg12[%c1, %c16, %c0_48] : memref<18x48x4xbf16, #tpu.memory_space<vmem>>, vector<16x16x4xbf16>
    tpu.vector_store %arg12[%c1, %c16, %c0_48], %25 {strides = array<i32>} : memref<18x48x4xbf16, #tpu.memory_space<vmem>>, vector<16x16x4xbf16>,
    %cst_49 = arith.constant 0.000000e+00 : f32
    %27 = vector.broadcast %cst_49 : f32 to vector<256x8xf32>
    %c0_50 = arith.constant 0 : index
    %c15 = arith.constant 15 : index
    %c0_51 = arith.constant 0 : index
    %28 = vector.load %arg12[%c0_50, %c15, %c0_51] : memref<18x48x4xbf16, #tpu.memory_space<vmem>>, vector<16x16x4xbf16>
    %29 = vector.shape_cast %28 : vector<16x16x4xbf16> to vector<256x4xbf16>
    %c0_52 = arith.constant 0 : index
    %c0_53 = arith.constant 0 : index
    %c0_54 = arith.constant 0 : index
    %30 = vector.load %arg2[%c0_52, %c0_53, %c0_54] : memref<9x4x8xbf16, #tpu.memory_space<vmem>>, vector<1x4x8xbf16>
    %31 = vector.shape_cast %30 : vector<1x4x8xbf16> to vector<4x8xbf16>
    %cst_55 = arith.constant dense<0.000000e+00> : vector<256x8xf32>
    %32 = tpu.matmul %29, %31, %cst_55 {dimension_numbers = #tpu.dot_dimension_numbers<[1], [0], [0], [1], [0, 0, 1, 1], [], []>} : vector<256x4xbf16>, vector<4x8xbf16>, vector<256x8xf32> -> vector<256x8xf32>
    %33 = arith.addf %27, %32 : vector<256x8xf32>
    %c0_56 = arith.constant 0 : index
    %c16_57 = arith.constant 16 : index
    %c0_58 = arith.constant 0 : index
    %34 = vector.load %arg12[%c0_56, %c16_57, %c0_58] : memref<18x48x4xbf16, #tpu.memory_space<vmem>>, vector<16x16x4xbf16>
    %35 = vector.shape_cast %34 : vector<16x16x4xbf16> to vector<256x4xbf16>
    %c1_59 = arith.constant 1 : index
    %c0_60 = arith.constant 0 : index
    %c0_61 = arith.constant 0 : index
    %36 = vector.load %arg2[%c1_59, %c0_60, %c0_61] : memref<9x4x8xbf16, #tpu.memory_space<vmem>>, vector<1x4x8xbf16>
    %37 = vector.shape_cast %36 : vector<1x4x8xbf16> to vector<4x8xbf16>
    %cst_62 = arith.constant dense<0.000000e+00> : vector<256x8xf32>
    %38 = tpu.matmul %35, %37, %cst_62 {dimension_numbers = #tpu.dot_dimension_numbers<[1], [0], [0], [1], [0, 0, 1, 1], [], []>} : vector<256x4xbf16>, vector<4x8xbf16>, vector<256x8xf32> -> vector<256x8xf32>
    %39 = arith.addf %33, %38 : vector<256x8xf32>
    %c0_63 = arith.constant 0 : index
    %c17_64 = arith.constant 17 : index
    %c0_65 = arith.constant 0 : index
    %40 = vector.load %arg12[%c0_63, %c17_64, %c0_65] : memref<18x48x4xbf16, #tpu.memory_space<vmem>>, vector<16x16x4xbf16>
    %41 = vector.shape_cast %40 : vector<16x16x4xbf16> to vector<256x4xbf16>
    %c2 = arith.constant 2 : index
    %c0_66 = arith.constant 0 : index
    %c0_67 = arith.constant 0 : index
    %42 = vector.load %arg2[%c2, %c0_66, %c0_67] : memref<9x4x8xbf16, #tpu.memory_space<vmem>>, vector<1x4x8xbf16>
    %43 = vector.shape_cast %42 : vector<1x4x8xbf16> to vector<4x8xbf16>
    %cst_68 = arith.constant dense<0.000000e+00> : vector<256x8xf32>
    %44 = tpu.matmul %41, %43, %cst_68 {dimension_numbers = #tpu.dot_dimension_numbers<[1], [0], [0], [1], [0, 0, 1, 1], [], []>} : vector<256x4xbf16>, vector<4x8xbf16>, vector<256x8xf32> -> vector<256x8xf32>
    %45 = arith.addf %39, %44 : vector<256x8xf32>
    %c1_69 = arith.constant 1 : index
    %c15_70 = arith.constant 15 : index
    %c0_71 = arith.constant 0 : index
    %46 = vector.load %arg12[%c1_69, %c15_70, %c0_71] : memref<18x48x4xbf16, #tpu.memory_space<vmem>>, vector<16x16x4xbf16>
    %47 = vector.shape_cast %46 : vector<16x16x4xbf16> to vector<256x4xbf16>
    %c3 = arith.constant 3 : index
    %c0_72 = arith.constant 0 : index
    %c0_73 = arith.constant 0 : index
    %48 = vector.load %arg2[%c3, %c0_72, %c0_73] : memref<9x4x8xbf16, #tpu.memory_space<vmem>>, vector<1x4x8xbf16>
    %49 = vector.shape_cast %48 : vector<1x4x8xbf16> to vector<4x8xbf16>
    %cst_74 = arith.constant dense<0.000000e+00> : vector<256x8xf32>
    %50 = tpu.matmul %47, %49, %cst_74 {dimension_numbers = #tpu.dot_dimension_numbers<[1], [0], [0], [1], [0, 0, 1, 1], [], []>} : vector<256x4xbf16>, vector<4x8xbf16>, vector<256x8xf32> -> vector<256x8xf32>
    %51 = arith.addf %45, %50 : vector<256x8xf32>
    %c1_75 = arith.constant 1 : index
    %c16_76 = arith.constant 16 : index
    %c0_77 = arith.constant 0 : index
    %52 = vector.load %arg12[%c1_75, %c16_76, %c0_77] : memref<18x48x4xbf16, #tpu.memory_space<vmem>>, vector<16x16x4xbf16>
    %53 = vector.shape_cast %52 : vector<16x16x4xbf16> to vector<256x4xbf16>
    %c4 = arith.constant 4 : index
    %c0_78 = arith.constant 0 : index
    %c0_79 = arith.constant 0 : index
    %54 = vector.load %arg2[%c4, %c0_78, %c0_79] : memref<9x4x8xbf16, #tpu.memory_space<vmem>>, vector<1x4x8xbf16>
    %55 = vector.shape_cast %54 : vector<1x4x8xbf16> to vector<4x8xbf16>
    %cst_80 = arith.constant dense<0.000000e+00> : vector<256x8xf32>
    %56 = tpu.matmul %53, %55, %cst_80 {dimension_numbers = #tpu.dot_dimension_numbers<[1], [0], [0], [1], [0, 0, 1, 1], [], []>} : vector<256x4xbf16>, vector<4x8xbf16>, vector<256x8xf32> -> vector<256x8xf32>
    %57 = arith.addf %51, %56 : vector<256x8xf32>
    %c1_81 = arith.constant 1 : index
    %c17_82 = arith.constant 17 : index
    %c0_83 = arith.constant 0 : index
    %58 = vector.load %arg12[%c1_81, %c17_82, %c0_83] : memref<18x48x4xbf16, #tpu.memory_space<vmem>>, vector<16x16x4xbf16>
    %59 = vector.shape_cast %58 : vector<16x16x4xbf16> to vector<256x4xbf16>
    %c5 = arith.constant 5 : index
    %c0_84 = arith.constant 0 : index
    %c0_85 = arith.constant 0 : index
    %60 = vector.load %arg2[%c5, %c0_84, %c0_85] : memref<9x4x8xbf16, #tpu.memory_space<vmem>>, vector<1x4x8xbf16>
    %61 = vector.shape_cast %60 : vector<1x4x8xbf16> to vector<4x8xbf16>
    %cst_86 = arith.constant dense<0.000000e+00> : vector<256x8xf32>
    %62 = tpu.matmul %59, %61, %cst_86 {dimension_numbers = #tpu.dot_dimension_numbers<[1], [0], [0], [1], [0, 0, 1, 1], [], []>} : vector<256x4xbf16>, vector<4x8xbf16>, vector<256x8xf32> -> vector<256x8xf32>
    %63 = arith.addf %57, %62 : vector<256x8xf32>
    %c2_87 = arith.constant 2 : index
    %c15_88 = arith.constant 15 : index
    %c0_89 = arith.constant 0 : index
    %64 = vector.load %arg12[%c2_87, %c15_88, %c0_89] : memref<18x48x4xbf16, #tpu.memory_space<vmem>>, vector<16x16x4xbf16>
    %65 = vector.shape_cast %64 : vector<16x16x4xbf16> to vector<256x4xbf16>
    %c6 = arith.constant 6 : index
    %c0_90 = arith.constant 0 : index
    %c0_91 = arith.constant 0 : index
    %66 = vector.load %arg2[%c6, %c0_90, %c0_91] : memref<9x4x8xbf16, #tpu.memory_space<vmem>>, vector<1x4x8xbf16>
    %67 = vector.shape_cast %66 : vector<1x4x8xbf16> to vector<4x8xbf16>
    %cst_92 = arith.constant dense<0.000000e+00> : vector<256x8xf32>
    %68 = tpu.matmul %65, %67, %cst_92 {dimension_numbers = #tpu.dot_dimension_numbers<[1], [0], [0], [1], [0, 0, 1, 1], [], []>} : vector<256x4xbf16>, vector<4x8xbf16>, vector<256x8xf32> -> vector<256x8xf32>
    %69 = arith.addf %63, %68 : vector<256x8xf32>
    %c2_93 = arith.constant 2 : index
    %c16_94 = arith.constant 16 : index
    %c0_95 = arith.constant 0 : index
    %70 = vector.load %arg12[%c2_93, %c16_94, %c0_95] : memref<18x48x4xbf16, #tpu.memory_space<vmem>>, vector<16x16x4xbf16>
    %71 = vector.shape_cast %70 : vector<16x16x4xbf16> to vector<256x4xbf16>
    %c7 = arith.constant 7 : index
    %c0_96 = arith.constant 0 : index
    %c0_97 = arith.constant 0 : index
    %72 = vector.load %arg2[%c7, %c0_96, %c0_97] : memref<9x4x8xbf16, #tpu.memory_space<vmem>>, vector<1x4x8xbf16>
    %73 = vector.shape_cast %72 : vector<1x4x8xbf16> to vector<4x8xbf16>
    %cst_98 = arith.constant dense<0.000000e+00> : vector<256x8xf32>
    %74 = tpu.matmul %71, %73, %cst_98 {dimension_numbers = #tpu.dot_dimension_numbers<[1], [0], [0], [1], [0, 0, 1, 1], [], []>} : vector<256x4xbf16>, vector<4x8xbf16>, vector<256x8xf32> -> vector<256x8xf32>
    %75 = arith.addf %69, %74 : vector<256x8xf32>
    %c2_99 = arith.constant 2 : index
    %c17_100 = arith.constant 17 : index
    %c0_101 = arith.constant 0 : index
    %76 = vector.load %arg12[%c2_99, %c17_100, %c0_101] : memref<18x48x4xbf16, #tpu.memory_space<vmem>>, vector<16x16x4xbf16>
    %77 = vector.shape_cast %76 : vector<16x16x4xbf16> to vector<256x4xbf16>
    %c8 = arith.constant 8 : index
    %c0_102 = arith.constant 0 : index
    %c0_103 = arith.constant 0 : index
    %78 = vector.load %arg2[%c8, %c0_102, %c0_103] : memref<9x4x8xbf16, #tpu.memory_space<vmem>>, vector<1x4x8xbf16>
    %79 = vector.shape_cast %78 : vector<1x4x8xbf16> to vector<4x8xbf16>
    %cst_104 = arith.constant dense<0.000000e+00> : vector<256x8xf32>
    %80 = tpu.matmul %77, %79, %cst_104 {dimension_numbers = #tpu.dot_dimension_numbers<[1], [0], [0], [1], [0, 0, 1, 1], [], []>} : vector<256x4xbf16>, vector<4x8xbf16>, vector<256x8xf32> -> vector<256x8xf32>
    %81 = arith.addf %75, %80 : vector<256x8xf32>
    %c0_105 = arith.constant 0 : index
    %c0_106 = arith.constant 0 : index
    %82 = vector.load %arg3[%c0_105, %c0_106] : memref<1x8xf32, #tpu.memory_space<vmem>>, vector<1x8xf32>
    %83 = vector.shape_cast %82 : vector<1x8xf32> to vector<8xf32>
    %84 = vector.shape_cast %83 : vector<8xf32> to vector<1x8xf32>
    %85 = vector.broadcast %84 : vector<1x8xf32> to vector<256x8xf32>
    %86 = arith.mulf %81, %85 : vector<256x8xf32>
    %c0_107 = arith.constant 0 : index
    %c0_108 = arith.constant 0 : index
    %87 = vector.load %arg4[%c0_107, %c0_108] : memref<1x8xf32, #tpu.memory_space<vmem>>, vector<1x8xf32>
    %88 = vector.shape_cast %87 : vector<1x8xf32> to vector<8xf32>
    %89 = vector.shape_cast %88 : vector<8xf32> to vector<1x8xf32>
    %90 = vector.broadcast %89 : vector<1x8xf32> to vector<256x8xf32>
    %91 = arith.addf %86, %90 : vector<256x8xf32>
    %cst_109 = arith.constant 0.000000e+00 : f32
    %92 = vector.broadcast %cst_109 : f32 to vector<256x8xf32>
    %93 = arith.maximumf %91, %92 : vector<256x8xf32>
    %94 = vector.shape_cast %93 : vector<256x8xf32> to vector<16x16x8xf32>
    %95 = arith.truncf %94 : vector<16x16x8xf32> to vector<16x16x8xbf16>
    %c1_110 = arith.constant 1 : index
    %c16_111 = arith.constant 16 : index
    %c0_112 = arith.constant 0 : index
    %96 = vector.load %arg13[%c1_110, %c16_111, %c0_112] : memref<18x48x8xbf16, #tpu.memory_space<vmem>>, vector<16x16x8xbf16>
    tpu.vector_store %arg13[%c1_110, %c16_111, %c0_112], %95 {strides = array<i32>} : memref<18x48x8xbf16, #tpu.memory_space<vmem>>, vector<16x16x8xbf16>,
    %cst_113 = arith.constant 0.000000e+00 : f32
    %97 = vector.broadcast %cst_113 : f32 to vector<256x8xf32>
    %c0_114 = arith.constant 0 : index
    %c15_115 = arith.constant 15 : index
    %c0_116 = arith.constant 0 : index
    %98 = vector.load %arg13[%c0_114, %c15_115, %c0_116] : memref<18x48x8xbf16, #tpu.memory_space<vmem>>, vector<16x16x8xbf16>
    %99 = vector.shape_cast %98 : vector<16x16x8xbf16> to vector<256x8xbf16>
    %c0_117 = arith.constant 0 : index
    %c0_118 = arith.constant 0 : index
    %c0_119 = arith.constant 0 : index
    %100 = vector.load %arg5[%c0_117, %c0_118, %c0_119] : memref<9x8x8xbf16, #tpu.memory_space<vmem>>, vector<1x8x8xbf16>
    %101 = vector.shape_cast %100 : vector<1x8x8xbf16> to vector<8x8xbf16>
    %cst_120 = arith.constant dense<0.000000e+00> : vector<256x8xf32>
    %102 = tpu.matmul %99, %101, %cst_120 {dimension_numbers = #tpu.dot_dimension_numbers<[1], [0], [0], [1], [0, 0, 1, 1], [], []>} : vector<256x8xbf16>, vector<8x8xbf16>, vector<256x8xf32> -> vector<256x8xf32>
    %103 = arith.addf %97, %102 : vector<256x8xf32>
    %c0_121 = arith.constant 0 : index
    %c16_122 = arith.constant 16 : index
    %c0_123 = arith.constant 0 : index
    %104 = vector.load %arg13[%c0_121, %c16_122, %c0_123] : memref<18x48x8xbf16, #tpu.memory_space<vmem>>, vector<16x16x8xbf16>
    %105 = vector.shape_cast %104 : vector<16x16x8xbf16> to vector<256x8xbf16>
    %c1_124 = arith.constant 1 : index
    %c0_125 = arith.constant 0 : index
    %c0_126 = arith.constant 0 : index
    %106 = vector.load %arg5[%c1_124, %c0_125, %c0_126] : memref<9x8x8xbf16, #tpu.memory_space<vmem>>, vector<1x8x8xbf16>
    %107 = vector.shape_cast %106 : vector<1x8x8xbf16> to vector<8x8xbf16>
    %cst_127 = arith.constant dense<0.000000e+00> : vector<256x8xf32>
    %108 = tpu.matmul %105, %107, %cst_127 {dimension_numbers = #tpu.dot_dimension_numbers<[1], [0], [0], [1], [0, 0, 1, 1], [], []>} : vector<256x8xbf16>, vector<8x8xbf16>, vector<256x8xf32> -> vector<256x8xf32>
    %109 = arith.addf %103, %108 : vector<256x8xf32>
    %c0_128 = arith.constant 0 : index
    %c17_129 = arith.constant 17 : index
    %c0_130 = arith.constant 0 : index
    %110 = vector.load %arg13[%c0_128, %c17_129, %c0_130] : memref<18x48x8xbf16, #tpu.memory_space<vmem>>, vector<16x16x8xbf16>
    %111 = vector.shape_cast %110 : vector<16x16x8xbf16> to vector<256x8xbf16>
    %c2_131 = arith.constant 2 : index
    %c0_132 = arith.constant 0 : index
    %c0_133 = arith.constant 0 : index
    %112 = vector.load %arg5[%c2_131, %c0_132, %c0_133] : memref<9x8x8xbf16, #tpu.memory_space<vmem>>, vector<1x8x8xbf16>
    %113 = vector.shape_cast %112 : vector<1x8x8xbf16> to vector<8x8xbf16>
    %cst_134 = arith.constant dense<0.000000e+00> : vector<256x8xf32>
    %114 = tpu.matmul %111, %113, %cst_134 {dimension_numbers = #tpu.dot_dimension_numbers<[1], [0], [0], [1], [0, 0, 1, 1], [], []>} : vector<256x8xbf16>, vector<8x8xbf16>, vector<256x8xf32> -> vector<256x8xf32>
    %115 = arith.addf %109, %114 : vector<256x8xf32>
    %c1_135 = arith.constant 1 : index
    %c15_136 = arith.constant 15 : index
    %c0_137 = arith.constant 0 : index
    %116 = vector.load %arg13[%c1_135, %c15_136, %c0_137] : memref<18x48x8xbf16, #tpu.memory_space<vmem>>, vector<16x16x8xbf16>
    %117 = vector.shape_cast %116 : vector<16x16x8xbf16> to vector<256x8xbf16>
    %c3_138 = arith.constant 3 : index
    %c0_139 = arith.constant 0 : index
    %c0_140 = arith.constant 0 : index
    %118 = vector.load %arg5[%c3_138, %c0_139, %c0_140] : memref<9x8x8xbf16, #tpu.memory_space<vmem>>, vector<1x8x8xbf16>
    %119 = vector.shape_cast %118 : vector<1x8x8xbf16> to vector<8x8xbf16>
    %cst_141 = arith.constant dense<0.000000e+00> : vector<256x8xf32>
    %120 = tpu.matmul %117, %119, %cst_141 {dimension_numbers = #tpu.dot_dimension_numbers<[1], [0], [0], [1], [0, 0, 1, 1], [], []>} : vector<256x8xbf16>, vector<8x8xbf16>, vector<256x8xf32> -> vector<256x8xf32>
    %121 = arith.addf %115, %120 : vector<256x8xf32>
    %c1_142 = arith.constant 1 : index
    %c16_143 = arith.constant 16 : index
    %c0_144 = arith.constant 0 : index
    %122 = vector.load %arg13[%c1_142, %c16_143, %c0_144] : memref<18x48x8xbf16, #tpu.memory_space<vmem>>, vector<16x16x8xbf16>
    %123 = vector.shape_cast %122 : vector<16x16x8xbf16> to vector<256x8xbf16>
    %c4_145 = arith.constant 4 : index
    %c0_146 = arith.constant 0 : index
    %c0_147 = arith.constant 0 : index
    %124 = vector.load %arg5[%c4_145, %c0_146, %c0_147] : memref<9x8x8xbf16, #tpu.memory_space<vmem>>, vector<1x8x8xbf16>
    %125 = vector.shape_cast %124 : vector<1x8x8xbf16> to vector<8x8xbf16>
    %cst_148 = arith.constant dense<0.000000e+00> : vector<256x8xf32>
    %126 = tpu.matmul %123, %125, %cst_148 {dimension_numbers = #tpu.dot_dimension_numbers<[1], [0], [0], [1], [0, 0, 1, 1], [], []>} : vector<256x8xbf16>, vector<8x8xbf16>, vector<256x8xf32> -> vector<256x8xf32>
    %127 = arith.addf %121, %126 : vector<256x8xf32>
    %c1_149 = arith.constant 1 : index
    %c17_150 = arith.constant 17 : index
    %c0_151 = arith.constant 0 : index
    %128 = vector.load %arg13[%c1_149, %c17_150, %c0_151] : memref<18x48x8xbf16, #tpu.memory_space<vmem>>, vector<16x16x8xbf16>
    %129 = vector.shape_cast %128 : vector<16x16x8xbf16> to vector<256x8xbf16>
    %c5_152 = arith.constant 5 : index
    %c0_153 = arith.constant 0 : index
    %c0_154 = arith.constant 0 : index
    %130 = vector.load %arg5[%c5_152, %c0_153, %c0_154] : memref<9x8x8xbf16, #tpu.memory_space<vmem>>, vector<1x8x8xbf16>
    %131 = vector.shape_cast %130 : vector<1x8x8xbf16> to vector<8x8xbf16>
    %cst_155 = arith.constant dense<0.000000e+00> : vector<256x8xf32>
    %132 = tpu.matmul %129, %131, %cst_155 {dimension_numbers = #tpu.dot_dimension_numbers<[1], [0], [0], [1], [0, 0, 1, 1], [], []>} : vector<256x8xbf16>, vector<8x8xbf16>, vector<256x8xf32> -> vector<256x8xf32>
    %133 = arith.addf %127, %132 : vector<256x8xf32>
    %c2_156 = arith.constant 2 : index
    %c15_157 = arith.constant 15 : index
    %c0_158 = arith.constant 0 : index
    %134 = vector.load %arg13[%c2_156, %c15_157, %c0_158] : memref<18x48x8xbf16, #tpu.memory_space<vmem>>, vector<16x16x8xbf16>
    %135 = vector.shape_cast %134 : vector<16x16x8xbf16> to vector<256x8xbf16>
    %c6_159 = arith.constant 6 : index
    %c0_160 = arith.constant 0 : index
    %c0_161 = arith.constant 0 : index
    %136 = vector.load %arg5[%c6_159, %c0_160, %c0_161] : memref<9x8x8xbf16, #tpu.memory_space<vmem>>, vector<1x8x8xbf16>
    %137 = vector.shape_cast %136 : vector<1x8x8xbf16> to vector<8x8xbf16>
    %cst_162 = arith.constant dense<0.000000e+00> : vector<256x8xf32>
    %138 = tpu.matmul %135, %137, %cst_162 {dimension_numbers = #tpu.dot_dimension_numbers<[1], [0], [0], [1], [0, 0, 1, 1], [], []>} : vector<256x8xbf16>, vector<8x8xbf16>, vector<256x8xf32> -> vector<256x8xf32>
    %139 = arith.addf %133, %138 : vector<256x8xf32>
    %c2_163 = arith.constant 2 : index
    %c16_164 = arith.constant 16 : index
    %c0_165 = arith.constant 0 : index
    %140 = vector.load %arg13[%c2_163, %c16_164, %c0_165] : memref<18x48x8xbf16, #tpu.memory_space<vmem>>, vector<16x16x8xbf16>
    %141 = vector.shape_cast %140 : vector<16x16x8xbf16> to vector<256x8xbf16>
    %c7_166 = arith.constant 7 : index
    %c0_167 = arith.constant 0 : index
    %c0_168 = arith.constant 0 : index
    %142 = vector.load %arg5[%c7_166, %c0_167, %c0_168] : memref<9x8x8xbf16, #tpu.memory_space<vmem>>, vector<1x8x8xbf16>
    %143 = vector.shape_cast %142 : vector<1x8x8xbf16> to vector<8x8xbf16>
    %cst_169 = arith.constant dense<0.000000e+00> : vector<256x8xf32>
    %144 = tpu.matmul %141, %143, %cst_169 {dimension_numbers = #tpu.dot_dimension_numbers<[1], [0], [0], [1], [0, 0, 1, 1], [], []>} : vector<256x8xbf16>, vector<8x8xbf16>, vector<256x8xf32> -> vector<256x8xf32>
    %145 = arith.addf %139, %144 : vector<256x8xf32>
    %c2_170 = arith.constant 2 : index
    %c17_171 = arith.constant 17 : index
    %c0_172 = arith.constant 0 : index
    %146 = vector.load %arg13[%c2_170, %c17_171, %c0_172] : memref<18x48x8xbf16, #tpu.memory_space<vmem>>, vector<16x16x8xbf16>
    %147 = vector.shape_cast %146 : vector<16x16x8xbf16> to vector<256x8xbf16>
    %c8_173 = arith.constant 8 : index
    %c0_174 = arith.constant 0 : index
    %c0_175 = arith.constant 0 : index
    %148 = vector.load %arg5[%c8_173, %c0_174, %c0_175] : memref<9x8x8xbf16, #tpu.memory_space<vmem>>, vector<1x8x8xbf16>
    %149 = vector.shape_cast %148 : vector<1x8x8xbf16> to vector<8x8xbf16>
    %cst_176 = arith.constant dense<0.000000e+00> : vector<256x8xf32>
    %150 = tpu.matmul %147, %149, %cst_176 {dimension_numbers = #tpu.dot_dimension_numbers<[1], [0], [0], [1], [0, 0, 1, 1], [], []>} : vector<256x8xbf16>, vector<8x8xbf16>, vector<256x8xf32> -> vector<256x8xf32>
    %151 = arith.addf %145, %150 : vector<256x8xf32>
    %c0_177 = arith.constant 0 : index
    %c0_178 = arith.constant 0 : index
    %152 = vector.load %arg6[%c0_177, %c0_178] : memref<1x8xf32, #tpu.memory_space<vmem>>, vector<1x8xf32>
    %153 = vector.shape_cast %152 : vector<1x8xf32> to vector<8xf32>
    %154 = vector.shape_cast %153 : vector<8xf32> to vector<1x8xf32>
    %155 = vector.broadcast %154 : vector<1x8xf32> to vector<256x8xf32>
    %156 = arith.mulf %151, %155 : vector<256x8xf32>
    %c0_179 = arith.constant 0 : index
    %c0_180 = arith.constant 0 : index
    %157 = vector.load %arg7[%c0_179, %c0_180] : memref<1x8xf32, #tpu.memory_space<vmem>>, vector<1x8xf32>
    %158 = vector.shape_cast %157 : vector<1x8xf32> to vector<8xf32>
    %159 = vector.shape_cast %158 : vector<8xf32> to vector<1x8xf32>
    %160 = vector.broadcast %159 : vector<1x8xf32> to vector<256x8xf32>
    %161 = arith.addf %156, %160 : vector<256x8xf32>
    %cst_181 = arith.constant 0.000000e+00 : f32
    %162 = vector.broadcast %cst_181 : f32 to vector<256x8xf32>
    %163 = arith.maximumf %161, %162 : vector<256x8xf32>
    %164 = vector.shape_cast %163 : vector<256x8xf32> to vector<16x16x8xf32>
    %165 = arith.truncf %164 : vector<16x16x8xf32> to vector<16x16x8xbf16>
    %c1_182 = arith.constant 1 : index
    %c16_183 = arith.constant 16 : index
    %c0_184 = arith.constant 0 : index
    %166 = vector.load %arg14[%c1_182, %c16_183, %c0_184] : memref<18x48x8xbf16, #tpu.memory_space<vmem>>, vector<16x16x8xbf16>
    tpu.vector_store %arg14[%c1_182, %c16_183, %c0_184], %165 {strides = array<i32>} : memref<18x48x8xbf16, #tpu.memory_space<vmem>>, vector<16x16x8xbf16>,
    %cst_185 = arith.constant 0.000000e+00 : f32
    %167 = vector.broadcast %cst_185 : f32 to vector<128x8xf32>
    %c0_186 = arith.constant 0 : index
    %c15_187 = arith.constant 15 : index
    %c0_188 = arith.constant 0 : index
    %168 = vector.load %arg14[%c0_186, %c15_187, %c0_188] : memref<18x48x8xbf16, #tpu.memory_space<vmem>>, vector<16x16x8xbf16>
    %169 = vector.shape_cast %168 : vector<16x16x8xbf16> to vector<8x2x16x8xbf16>
    %170 = vector.extract_strided_slice %169 {offsets = [0, 0, 0, 0], sizes = [8, 1, 16, 8], strides = [1, 1, 1, 1]} : vector<8x2x16x8xbf16> to vector<8x1x16x8xbf16>
    %171 = vector.shape_cast %170 : vector<8x1x16x8xbf16> to vector<8x16x8xbf16>
    %172 = vector.shape_cast %171 : vector<8x16x8xbf16> to vector<128x8xbf16>
    %c0_189 = arith.constant 0 : index
    %c0_190 = arith.constant 0 : index
    %c0_191 = arith.constant 0 : index
    %173 = vector.load %arg8[%c0_189, %c0_190, %c0_191] : memref<9x8x8xbf16, #tpu.memory_space<vmem>>, vector<1x8x8xbf16>
    %174 = vector.shape_cast %173 : vector<1x8x8xbf16> to vector<8x8xbf16>
    %cst_192 = arith.constant dense<0.000000e+00> : vector<128x8xf32>
    %175 = tpu.matmul %172, %174, %cst_192 {dimension_numbers = #tpu.dot_dimension_numbers<[1], [0], [0], [1], [0, 0, 1, 1], [], []>} : vector<128x8xbf16>, vector<8x8xbf16>, vector<128x8xf32> -> vector<128x8xf32>
    %176 = arith.addf %167, %175 : vector<128x8xf32>
    %c0_193 = arith.constant 0 : index
    %c16_194 = arith.constant 16 : index
    %c0_195 = arith.constant 0 : index
    %177 = vector.load %arg14[%c0_193, %c16_194, %c0_195] : memref<18x48x8xbf16, #tpu.memory_space<vmem>>, vector<16x16x8xbf16>
    %178 = vector.shape_cast %177 : vector<16x16x8xbf16> to vector<8x2x16x8xbf16>
    %179 = vector.extract_strided_slice %178 {offsets = [0, 0, 0, 0], sizes = [8, 1, 16, 8], strides = [1, 1, 1, 1]} : vector<8x2x16x8xbf16> to vector<8x1x16x8xbf16>
    %180 = vector.shape_cast %179 : vector<8x1x16x8xbf16> to vector<8x16x8xbf16>
    %181 = vector.shape_cast %180 : vector<8x16x8xbf16> to vector<128x8xbf16>
    %c1_196 = arith.constant 1 : index
    %c0_197 = arith.constant 0 : index
    %c0_198 = arith.constant 0 : index
    %182 = vector.load %arg8[%c1_196, %c0_197, %c0_198] : memref<9x8x8xbf16, #tpu.memory_space<vmem>>, vector<1x8x8xbf16>
    %183 = vector.shape_cast %182 : vector<1x8x8xbf16> to vector<8x8xbf16>
    %cst_199 = arith.constant dense<0.000000e+00> : vector<128x8xf32>
    %184 = tpu.matmul %181, %183, %cst_199 {dimension_numbers = #tpu.dot_dimension_numbers<[1], [0], [0], [1], [0, 0, 1, 1], [], []>} : vector<128x8xbf16>, vector<8x8xbf16>, vector<128x8xf32> -> vector<128x8xf32>
    %185 = arith.addf %176, %184 : vector<128x8xf32>
    %c0_200 = arith.constant 0 : index
    %c17_201 = arith.constant 17 : index
    %c0_202 = arith.constant 0 : index
    %186 = vector.load %arg14[%c0_200, %c17_201, %c0_202] : memref<18x48x8xbf16, #tpu.memory_space<vmem>>, vector<16x16x8xbf16>
    %187 = vector.shape_cast %186 : vector<16x16x8xbf16> to vector<8x2x16x8xbf16>
    %188 = vector.extract_strided_slice %187 {offsets = [0, 0, 0, 0], sizes = [8, 1, 16, 8], strides = [1, 1, 1, 1]} : vector<8x2x16x8xbf16> to vector<8x1x16x8xbf16>
    %189 = vector.shape_cast %188 : vector<8x1x16x8xbf16> to vector<8x16x8xbf16>
    %190 = vector.shape_cast %189 : vector<8x16x8xbf16> to vector<128x8xbf16>
    %c2_203 = arith.constant 2 : index
    %c0_204 = arith.constant 0 : index
    %c0_205 = arith.constant 0 : index
    %191 = vector.load %arg8[%c2_203, %c0_204, %c0_205] : memref<9x8x8xbf16, #tpu.memory_space<vmem>>, vector<1x8x8xbf16>
    %192 = vector.shape_cast %191 : vector<1x8x8xbf16> to vector<8x8xbf16>
    %cst_206 = arith.constant dense<0.000000e+00> : vector<128x8xf32>
    %193 = tpu.matmul %190, %192, %cst_206 {dimension_numbers = #tpu.dot_dimension_numbers<[1], [0], [0], [1], [0, 0, 1, 1], [], []>} : vector<128x8xbf16>, vector<8x8xbf16>, vector<128x8xf32> -> vector<128x8xf32>
    %194 = arith.addf %185, %193 : vector<128x8xf32>
    %c1_207 = arith.constant 1 : index
    %c15_208 = arith.constant 15 : index
    %c0_209 = arith.constant 0 : index
    %195 = vector.load %arg14[%c1_207, %c15_208, %c0_209] : memref<18x48x8xbf16, #tpu.memory_space<vmem>>, vector<16x16x8xbf16>
    %196 = vector.shape_cast %195 : vector<16x16x8xbf16> to vector<8x2x16x8xbf16>
    %197 = vector.extract_strided_slice %196 {offsets = [0, 0, 0, 0], sizes = [8, 1, 16, 8], strides = [1, 1, 1, 1]} : vector<8x2x16x8xbf16> to vector<8x1x16x8xbf16>
    %198 = vector.shape_cast %197 : vector<8x1x16x8xbf16> to vector<8x16x8xbf16>
    %199 = vector.shape_cast %198 : vector<8x16x8xbf16> to vector<128x8xbf16>
    %c3_210 = arith.constant 3 : index
    %c0_211 = arith.constant 0 : index
    %c0_212 = arith.constant 0 : index
    %200 = vector.load %arg8[%c3_210, %c0_211, %c0_212] : memref<9x8x8xbf16, #tpu.memory_space<vmem>>, vector<1x8x8xbf16>
    %201 = vector.shape_cast %200 : vector<1x8x8xbf16> to vector<8x8xbf16>
    %cst_213 = arith.constant dense<0.000000e+00> : vector<128x8xf32>
    %202 = tpu.matmul %199, %201, %cst_213 {dimension_numbers = #tpu.dot_dimension_numbers<[1], [0], [0], [1], [0, 0, 1, 1], [], []>} : vector<128x8xbf16>, vector<8x8xbf16>, vector<128x8xf32> -> vector<128x8xf32>
    %203 = arith.addf %194, %202 : vector<128x8xf32>
    %c1_214 = arith.constant 1 : index
    %c16_215 = arith.constant 16 : index
    %c0_216 = arith.constant 0 : index
    %204 = vector.load %arg14[%c1_214, %c16_215, %c0_216] : memref<18x48x8xbf16, #tpu.memory_space<vmem>>, vector<16x16x8xbf16>
    %205 = vector.shape_cast %204 : vector<16x16x8xbf16> to vector<8x2x16x8xbf16>
    %206 = vector.extract_strided_slice %205 {offsets = [0, 0, 0, 0], sizes = [8, 1, 16, 8], strides = [1, 1, 1, 1]} : vector<8x2x16x8xbf16> to vector<8x1x16x8xbf16>
    %207 = vector.shape_cast %206 : vector<8x1x16x8xbf16> to vector<8x16x8xbf16>
    %208 = vector.shape_cast %207 : vector<8x16x8xbf16> to vector<128x8xbf16>
    %c4_217 = arith.constant 4 : index
    %c0_218 = arith.constant 0 : index
    %c0_219 = arith.constant 0 : index
    %209 = vector.load %arg8[%c4_217, %c0_218, %c0_219] : memref<9x8x8xbf16, #tpu.memory_space<vmem>>, vector<1x8x8xbf16>
    %210 = vector.shape_cast %209 : vector<1x8x8xbf16> to vector<8x8xbf16>
    %cst_220 = arith.constant dense<0.000000e+00> : vector<128x8xf32>
    %211 = tpu.matmul %208, %210, %cst_220 {dimension_numbers = #tpu.dot_dimension_numbers<[1], [0], [0], [1], [0, 0, 1, 1], [], []>} : vector<128x8xbf16>, vector<8x8xbf16>, vector<128x8xf32> -> vector<128x8xf32>
    %212 = arith.addf %203, %211 : vector<128x8xf32>
    %c1_221 = arith.constant 1 : index
    %c17_222 = arith.constant 17 : index
    %c0_223 = arith.constant 0 : index
    %213 = vector.load %arg14[%c1_221, %c17_222, %c0_223] : memref<18x48x8xbf16, #tpu.memory_space<vmem>>, vector<16x16x8xbf16>
    %214 = vector.shape_cast %213 : vector<16x16x8xbf16> to vector<8x2x16x8xbf16>
    %215 = vector.extract_strided_slice %214 {offsets = [0, 0, 0, 0], sizes = [8, 1, 16, 8], strides = [1, 1, 1, 1]} : vector<8x2x16x8xbf16> to vector<8x1x16x8xbf16>
    %216 = vector.shape_cast %215 : vector<8x1x16x8xbf16> to vector<8x16x8xbf16>
    %217 = vector.shape_cast %216 : vector<8x16x8xbf16> to vector<128x8xbf16>
    %c5_224 = arith.constant 5 : index
    %c0_225 = arith.constant 0 : index
    %c0_226 = arith.constant 0 : index
    %218 = vector.load %arg8[%c5_224, %c0_225, %c0_226] : memref<9x8x8xbf16, #tpu.memory_space<vmem>>, vector<1x8x8xbf16>
    %219 = vector.shape_cast %218 : vector<1x8x8xbf16> to vector<8x8xbf16>
    %cst_227 = arith.constant dense<0.000000e+00> : vector<128x8xf32>
    %220 = tpu.matmul %217, %219, %cst_227 {dimension_numbers = #tpu.dot_dimension_numbers<[1], [0], [0], [1], [0, 0, 1, 1], [], []>} : vector<128x8xbf16>, vector<8x8xbf16>, vector<128x8xf32> -> vector<128x8xf32>
    %221 = arith.addf %212, %220 : vector<128x8xf32>
    %c2_228 = arith.constant 2 : index
    %c15_229 = arith.constant 15 : index
    %c0_230 = arith.constant 0 : index
    %222 = vector.load %arg14[%c2_228, %c15_229, %c0_230] : memref<18x48x8xbf16, #tpu.memory_space<vmem>>, vector<16x16x8xbf16>
    %223 = vector.shape_cast %222 : vector<16x16x8xbf16> to vector<8x2x16x8xbf16>
    %224 = vector.extract_strided_slice %223 {offsets = [0, 0, 0, 0], sizes = [8, 1, 16, 8], strides = [1, 1, 1, 1]} : vector<8x2x16x8xbf16> to vector<8x1x16x8xbf16>
    %225 = vector.shape_cast %224 : vector<8x1x16x8xbf16> to vector<8x16x8xbf16>
    %226 = vector.shape_cast %225 : vector<8x16x8xbf16> to vector<128x8xbf16>
    %c6_231 = arith.constant 6 : index
    %c0_232 = arith.constant 0 : index
    %c0_233 = arith.constant 0 : index
    %227 = vector.load %arg8[%c6_231, %c0_232, %c0_233] : memref<9x8x8xbf16, #tpu.memory_space<vmem>>, vector<1x8x8xbf16>
    %228 = vector.shape_cast %227 : vector<1x8x8xbf16> to vector<8x8xbf16>
    %cst_234 = arith.constant dense<0.000000e+00> : vector<128x8xf32>
    %229 = tpu.matmul %226, %228, %cst_234 {dimension_numbers = #tpu.dot_dimension_numbers<[1], [0], [0], [1], [0, 0, 1, 1], [], []>} : vector<128x8xbf16>, vector<8x8xbf16>, vector<128x8xf32> -> vector<128x8xf32>
    %230 = arith.addf %221, %229 : vector<128x8xf32>
    %c2_235 = arith.constant 2 : index
    %c16_236 = arith.constant 16 : index
    %c0_237 = arith.constant 0 : index
    %231 = vector.load %arg14[%c2_235, %c16_236, %c0_237] : memref<18x48x8xbf16, #tpu.memory_space<vmem>>, vector<16x16x8xbf16>
    %232 = vector.shape_cast %231 : vector<16x16x8xbf16> to vector<8x2x16x8xbf16>
    %233 = vector.extract_strided_slice %232 {offsets = [0, 0, 0, 0], sizes = [8, 1, 16, 8], strides = [1, 1, 1, 1]} : vector<8x2x16x8xbf16> to vector<8x1x16x8xbf16>
    %234 = vector.shape_cast %233 : vector<8x1x16x8xbf16> to vector<8x16x8xbf16>
    %235 = vector.shape_cast %234 : vector<8x16x8xbf16> to vector<128x8xbf16>
    %c7_238 = arith.constant 7 : index
    %c0_239 = arith.constant 0 : index
    %c0_240 = arith.constant 0 : index
    %236 = vector.load %arg8[%c7_238, %c0_239, %c0_240] : memref<9x8x8xbf16, #tpu.memory_space<vmem>>, vector<1x8x8xbf16>
    %237 = vector.shape_cast %236 : vector<1x8x8xbf16> to vector<8x8xbf16>
    %cst_241 = arith.constant dense<0.000000e+00> : vector<128x8xf32>
    %238 = tpu.matmul %235, %237, %cst_241 {dimension_numbers = #tpu.dot_dimension_numbers<[1], [0], [0], [1], [0, 0, 1, 1], [], []>} : vector<128x8xbf16>, vector<8x8xbf16>, vector<128x8xf32> -> vector<128x8xf32>
    %239 = arith.addf %230, %238 : vector<128x8xf32>
    %c2_242 = arith.constant 2 : index
    %c17_243 = arith.constant 17 : index
    %c0_244 = arith.constant 0 : index
    %240 = vector.load %arg14[%c2_242, %c17_243, %c0_244] : memref<18x48x8xbf16, #tpu.memory_space<vmem>>, vector<16x16x8xbf16>
    %241 = vector.shape_cast %240 : vector<16x16x8xbf16> to vector<8x2x16x8xbf16>
    %242 = vector.extract_strided_slice %241 {offsets = [0, 0, 0, 0], sizes = [8, 1, 16, 8], strides = [1, 1, 1, 1]} : vector<8x2x16x8xbf16> to vector<8x1x16x8xbf16>
    %243 = vector.shape_cast %242 : vector<8x1x16x8xbf16> to vector<8x16x8xbf16>
    %244 = vector.shape_cast %243 : vector<8x16x8xbf16> to vector<128x8xbf16>
    %c8_245 = arith.constant 8 : index
    %c0_246 = arith.constant 0 : index
    %c0_247 = arith.constant 0 : index
    %245 = vector.load %arg8[%c8_245, %c0_246, %c0_247] : memref<9x8x8xbf16, #tpu.memory_space<vmem>>, vector<1x8x8xbf16>
    %246 = vector.shape_cast %245 : vector<1x8x8xbf16> to vector<8x8xbf16>
    %cst_248 = arith.constant dense<0.000000e+00> : vector<128x8xf32>
    %247 = tpu.matmul %244, %246, %cst_248 {dimension_numbers = #tpu.dot_dimension_numbers<[1], [0], [0], [1], [0, 0, 1, 1], [], []>} : vector<128x8xbf16>, vector<8x8xbf16>, vector<128x8xf32> -> vector<128x8xf32>
    %248 = arith.addf %239, %247 : vector<128x8xf32>
    %c0_249 = arith.constant 0 : index
    %c0_250 = arith.constant 0 : index
    %249 = vector.load %arg9[%c0_249, %c0_250] : memref<1x8xf32, #tpu.memory_space<vmem>>, vector<1x8xf32>
    %250 = vector.shape_cast %249 : vector<1x8xf32> to vector<8xf32>
    %251 = vector.shape_cast %250 : vector<8xf32> to vector<1x8xf32>
    %252 = vector.broadcast %251 : vector<1x8xf32> to vector<128x8xf32>
    %253 = arith.mulf %248, %252 : vector<128x8xf32>
    %c0_251 = arith.constant 0 : index
    %c0_252 = arith.constant 0 : index
    %254 = vector.load %arg10[%c0_251, %c0_252] : memref<1x8xf32, #tpu.memory_space<vmem>>, vector<1x8xf32>
    %255 = vector.shape_cast %254 : vector<1x8xf32> to vector<8xf32>
    %256 = vector.shape_cast %255 : vector<8xf32> to vector<1x8xf32>
    %257 = vector.broadcast %256 : vector<1x8xf32> to vector<128x8xf32>
    %258 = arith.addf %253, %257 : vector<128x8xf32>
    %cst_253 = arith.constant 0.000000e+00 : f32
    %259 = vector.broadcast %cst_253 : f32 to vector<128x8xf32>
    %260 = arith.maximumf %258, %259 : vector<128x8xf32>
    %261 = vector.shape_cast %260 : vector<128x8xf32> to vector<8x16x8xf32>
    %c0_254 = arith.constant 0 : index
    %c0_255 = arith.constant 0 : index
    %c0_256 = arith.constant 0 : index
    %c0_257 = arith.constant 0 : index
    %262 = vector.load %arg11[%c0_254, %c0_255, %c0_256, %c0_257] : memref<1x8x16x8xf32, #tpu.memory_space<vmem>>, vector<1x8x16x8xf32>
    %263 = vector.shape_cast %262 : vector<1x8x16x8xf32> to vector<8x16x8xf32>
    %264 = vector.shape_cast %261 : vector<8x16x8xf32> to vector<1x8x16x8xf32>
    tpu.vector_store %arg11[%c0_254, %c0_255, %c0_256, %c0_257], %264 {strides = array<i32>} : memref<1x8x16x8xf32, #tpu.memory_space<vmem>>, vector<1x8x16x8xf32>,
    return
  }
  func.func @transform_0(%arg0: i32) -> (i32, i32, i32, i32) {
    %c0_i32 = arith.constant 0 : i32
    %c0_i32_0 = arith.constant 0 : i32
    %c0_i32_1 = arith.constant 0 : i32
    %c0_i32_2 = arith.constant 0 : i32
    return %arg0, %c0_i32, %c0_i32_0, %c0_i32_1 : i32, i32, i32, i32
  }
  func.func @transform_1(%arg0: i32) -> (i32, i32, i32) {
    %c0_i32 = arith.constant 0 : i32
    %c0_i32_0 = arith.constant 0 : i32
    %c0_i32_1 = arith.constant 0 : i32
    %c0_i32_2 = arith.constant 0 : i32
    return %c0_i32, %c0_i32_0, %c0_i32_1 : i32, i32, i32
  }
  func.func @transform_2(%arg0: i32) -> (i32, i32) {
    %c0_i32 = arith.constant 0 : i32
    %c0_i32_0 = arith.constant 0 : i32
    %c0_i32_1 = arith.constant 0 : i32
    return %c0_i32, %c0_i32_0 : i32, i32
  }
  func.func @transform_3(%arg0: i32) -> (i32, i32) {
    %c0_i32 = arith.constant 0 : i32
    %c0_i32_0 = arith.constant 0 : i32
    %c0_i32_1 = arith.constant 0 : i32
    return %c0_i32, %c0_i32_0 : i32, i32
  }
  func.func @transform_4(%arg0: i32) -> (i32, i32, i32) {
    %c0_i32 = arith.constant 0 : i32
    %c0_i32_0 = arith.constant 0 : i32
    %c0_i32_1 = arith.constant 0 : i32
    %c0_i32_2 = arith.constant 0 : i32
    return %c0_i32, %c0_i32_0, %c0_i32_1 : i32, i32, i32
  }
  func.func @transform_5(%arg0: i32) -> (i32, i32) {
    %c0_i32 = arith.constant 0 : i32
    %c0_i32_0 = arith.constant 0 : i32
    %c0_i32_1 = arith.constant 0 : i32
    return %c0_i32, %c0_i32_0 : i32, i32
  }
  func.func @transform_6(%arg0: i32) -> (i32, i32) {
    %c0_i32 = arith.constant 0 : i32
    %c0_i32_0 = arith.constant 0 : i32
    %c0_i32_1 = arith.constant 0 : i32
    return %c0_i32, %c0_i32_0 : i32, i32
  }
  func.func @transform_7(%arg0: i32) -> (i32, i32, i32) {
    %c0_i32 = arith.constant 0 : i32
    %c0_i32_0 = arith.constant 0 : i32
    %c0_i32_1 = arith.constant 0 : i32
    %c0_i32_2 = arith.constant 0 : i32
    return %c0_i32, %c0_i32_0, %c0_i32_1 : i32, i32, i32
  }
  func.func @transform_8(%arg0: i32) -> (i32, i32) {
    %c0_i32 = arith.constant 0 : i32
    %c0_i32_0 = arith.constant 0 : i32
    %c0_i32_1 = arith.constant 0 : i32
    return %c0_i32, %c0_i32_0 : i32, i32
  }
  func.func @transform_9(%arg0: i32) -> (i32, i32) {
    %c0_i32 = arith.constant 0 : i32
    %c0_i32_0 = arith.constant 0 : i32
    %c0_i32_1 = arith.constant 0 : i32
    return %c0_i32, %c0_i32_0 : i32, i32
  }
  func.func @transform_10(%arg0: i32) -> (i32, i32, i32, i32) {
    %c0_i32 = arith.constant 0 : i32
    %c0_i32_0 = arith.constant 0 : i32
    %c0_i32_1 = arith.constant 0 : i32
    %c0_i32_2 = arith.constant 0 : i32
    return %arg0, %c0_i32, %c0_i32_0, %c0_i32_1 : i32, i32, i32, i32
  }
}

</mosaic_0001>

<llo_original>
// kernel: downsample_layer_forward.1
$region0: #{downsample_layer_forward.1}
  #allocation0 [shape = 'u32[]', space=smem, size = 0x4, offset = 0x4, fixed_abs, tag = 'smem constant byte address 0x4 - core index']
  #allocation1 [shape = 'u32[144,128]{1,0:T(1,128)}', space=vmem, size = 0x12000, scoped, tag = 'internal scratch']
  #allocation2 [shape = 'bf16[18,48,4]{2,1,0:T(16,128)(2,1)}', space=vmem, size = 0x36000, scoped, tag = 'scratch operand']
  #allocation3 [shape = 'bf16[18,48,8]{2,1,0:T(16,128)(2,1)}', space=vmem, size = 0x36000, scoped, tag = 'scratch operand']
  #allocation4 [shape = 'bf16[18,48,8]{2,1,0:T(16,128)(2,1)}', space=vmem, size = 0x36000, scoped, tag = 'scratch operand']
  %s0 = inlined_call_operand.vmem [shape: bf16[2,16,16,4], index: 0, kind: input, shape index: {}]
  %s1 = inlined_call_operand.vmem [shape: bf16[9,4,8], index: 1, kind: input, shape index: {}]
  %s2 = inlined_call_operand.vmem [shape: f32[1,8], index: 2, kind: input, shape index: {}]
  %s3 = inlined_call_operand.vmem [shape: f32[1,8], index: 3, kind: input, shape index: {}]
  %s4 = inlined_call_operand.vmem [shape: bf16[9,8,8], index: 4, kind: input, shape index: {}]
  %s5 = inlined_call_operand.vmem [shape: f32[1,8], index: 5, kind: input, shape index: {}]
  %s6 = inlined_call_operand.vmem [shape: f32[1,8], index: 6, kind: input, shape index: {}]
  %s7 = inlined_call_operand.vmem [shape: bf16[9,8,8], index: 7, kind: input, shape index: {}]
  %s8 = inlined_call_operand.vmem [shape: f32[1,8], index: 8, kind: input, shape index: {}]
  %s9 = inlined_call_operand.vmem [shape: f32[1,8], index: 9, kind: input, shape index: {}]
  %s10 = inlined_call_operand.vmem [shape: f32[2,8,16,8], index: 10, kind: output, shape index: {}]
  %s11 = sld [smem:[#allocation0]]
  $region73: #{downsample_layer_forward.1} parent=0
    _
  %s13 = ssub.s32 1, %s11
  %s14 = scalar_select 0, %s13, %s11
  loop: start=0, step=1, limit=4
  $region2: #{downsample_layer_forward.1} parent=0 // loop_pre_header
    _
  $region3: #{downsample_layer_forward.1} parent=0 // loop_header
    %s16 = sphi 0, %s20
    %p17 = scmp.ge.s32.totalorder %s16, 4
    %s26 = sphi 0, %s28
    %s29 = sphi 0, %s26
    %s30 = sphi 0, %s29
    %s46 = sphi 0, %s30
    %s50 = sphi 0, %s50
    %s52 = sphi 0, %s50
    %s53 = sphi 0, %s52
    %s67 = sphi 0, %s53
    %s71 = sphi 0, %s71
    %s73 = sphi 0, %s71
    %s74 = sphi 0, %s73
    %s88 = sphi 0, %s74
    %s92 = sphi 0, %s92
    %s94 = sphi 0, %s92
    %s95 = sphi 0, %s94
    %s109 = sphi 0, %s95
    %s113 = sphi 0, %s113
    %s115 = sphi 0, %s113
    %s116 = sphi 0, %s115
    %s130 = sphi 0, %s116
    %s134 = sphi 0, %s134
    %s136 = sphi 0, %s134
    %s137 = sphi 0, %s136
    %s151 = sphi 0, %s137
    %s155 = sphi 0, %s155
    %s157 = sphi 0, %s155
    %s158 = sphi 0, %s157
    %s172 = sphi 0, %s158
    %s176 = sphi 0, %s176
    %s178 = sphi 0, %s176
    %s179 = sphi 0, %s178
    %s193 = sphi 0, %s179
    %s197 = sphi 0, %s197
    %s199 = sphi 0, %s197
    %s200 = sphi 0, %s199
    %s214 = sphi 0, %s200
    %s218 = sphi 0, %s218
    %s220 = sphi 0, %s218
    %s221 = sphi 0, %s220
    %s235 = sphi 0, %s221
    %s241 = sphi 0, %s243
    %s244 = sphi 0, %s241
    %s245 = sphi 0, %s244
    %s261 = sphi 0, %s245
  $region4: #{downsample_layer_forward.1} parent=0 // loop_header_branch
    %19 = sbr.rel (%p17) target = $region8
  $region5: #{downsample_layer_forward.1} parent=0 // loop_body
    %s21 = ssub.s32 %s16, 1
    %s22 = ssub.s32 %s16, 2
    %s23 = sadd.s32 %s16, 1
    %s24 = ssub.s32 %s16, %s23
    %p25 = scmp.eq.s32.totalorder %s24, 0
    %s27 = sadd.s32 %s26, 1
    %s28 = scalar_select %p25, %s26, %s27
    %p31 = pneg %p25
    %p32 = scmp.eq.s32.totalorder %s16, 1
    %p33 = por %p31, %p32
    %p34 = scmp.ne.s32.totalorder %s26, %s29
    %p35 = scmp.eq.s32.totalorder %s16, 0
    %p36 = por %p34, %p35
    %p37 = scmp.ne.s32.totalorder %s26, %s29
    %p38 = scmp.eq.s32.totalorder %s21, 1
    %p39 = por %p37, %p38
    %p40 = scmp.ne.s32.totalorder %s29, %s30
    %p41 = scmp.eq.s32.totalorder %s21, 0
    %p42 = por %p40, %p41
    %p43 = scmp.ne.s32.totalorder %s29, %s30
    %p44 = scmp.eq.s32.totalorder %s22, 1
    %p45 = por %p43, %p44
    %p47 = scmp.ne.s32.totalorder %s30, %s46
    %p48 = scmp.eq.s32.totalorder %s22, 0
    %p49 = por %p47, %p48
    %s51 = sadd.s32 %s50, 1
    %p54 = scmp.eq.s32.totalorder %s16, 1
    %p55 = scmp.ne.s32.totalorder %s50, %s52
    %p56 = scmp.eq.s32.totalorder %s16, 0
    %p57 = por %p55, %p56
    %p58 = scmp.ne.s32.totalorder %s50, %s52
    %p59 = scmp.eq.s32.totalorder %s21, 1
    %p60 = por %p58, %p59
    %p61 = scmp.ne.s32.totalorder %s52, %s53
    %p62 = scmp.eq.s32.totalorder %s21, 0
    %p63 = por %p61, %p62
    %p64 = scmp.ne.s32.totalorder %s52, %s53
    %p65 = scmp.eq.s32.totalorder %s22, 1
    %p66 = por %p64, %p65
    %p68 = scmp.ne.s32.totalorder %s53, %s67
    %p69 = scmp.eq.s32.totalorder %s22, 0
    %p70 = por %p68, %p69
    %s72 = sadd.s32 %s71, 1
    %p75 = scmp.eq.s32.totalorder %s16, 1
    %p76 = scmp.ne.s32.totalorder %s71, %s73
    %p77 = scmp.eq.s32.totalorder %s16, 0
    %p78 = por %p76, %p77
    %p79 = scmp.ne.s32.totalorder %s71, %s73
    %p80 = scmp.eq.s32.totalorder %s21, 1
    %p81 = por %p79, %p80
    %p82 = scmp.ne.s32.totalorder %s73, %s74
    %p83 = scmp.eq.s32.totalorder %s21, 0
    %p84 = por %p82, %p83
    %p85 = scmp.ne.s32.totalorder %s73, %s74
    %p86 = scmp.eq.s32.totalorder %s22, 1
    %p87 = por %p85, %p86
    %p89 = scmp.ne.s32.totalorder %s74, %s88
    %p90 = scmp.eq.s32.totalorder %s22, 0
    %p91 = por %p89, %p90
    %s93 = sadd.s32 %s92, 1
    %p96 = scmp.eq.s32.totalorder %s16, 1
    %p97 = scmp.ne.s32.totalorder %s92, %s94
    %p98 = scmp.eq.s32.totalorder %s16, 0
    %p99 = por %p97, %p98
    %p100 = scmp.ne.s32.totalorder %s92, %s94
    %p101 = scmp.eq.s32.totalorder %s21, 1
    %p102 = por %p100, %p101
    %p103 = scmp.ne.s32.totalorder %s94, %s95
    %p104 = scmp.eq.s32.totalorder %s21, 0
    %p105 = por %p103, %p104
    %p106 = scmp.ne.s32.totalorder %s94, %s95
    %p107 = scmp.eq.s32.totalorder %s22, 1
    %p108 = por %p106, %p107
    %p110 = scmp.ne.s32.totalorder %s95, %s109
    %p111 = scmp.eq.s32.totalorder %s22, 0
    %p112 = por %p110, %p111
    %s114 = sadd.s32 %s113, 1
    %p117 = scmp.eq.s32.totalorder %s16, 1
    %p118 = scmp.ne.s32.totalorder %s113, %s115
    %p119 = scmp.eq.s32.totalorder %s16, 0
    %p120 = por %p118, %p119
    %p121 = scmp.ne.s32.totalorder %s113, %s115
    %p122 = scmp.eq.s32.totalorder %s21, 1
    %p123 = por %p121, %p122
    %p124 = scmp.ne.s32.totalorder %s115, %s116
    %p125 = scmp.eq.s32.totalorder %s21, 0
    %p126 = por %p124, %p125
    %p127 = scmp.ne.s32.totalorder %s115, %s116
    %p128 = scmp.eq.s32.totalorder %s22, 1
    %p129 = por %p127, %p128
    %p131 = scmp.ne.s32.totalorder %s116, %s130
    %p132 = scmp.eq.s32.totalorder %s22, 0
    %p133 = por %p131, %p132
    %s135 = sadd.s32 %s134, 1
    %p138 = scmp.eq.s32.totalorder %s16, 1
    %p139 = scmp.ne.s32.totalorder %s134, %s136
    %p140 = scmp.eq.s32.totalorder %s16, 0
    %p141 = por %p139, %p140
    %p142 = scmp.ne.s32.totalorder %s134, %s136
    %p143 = scmp.eq.s32.totalorder %s21, 1
    %p144 = por %p142, %p143
    %p145 = scmp.ne.s32.totalorder %s136, %s137
    %p146 = scmp.eq.s32.totalorder %s21, 0
    %p147 = por %p145, %p146
    %p148 = scmp.ne.s32.totalorder %s136, %s137
    %p149 = scmp.eq.s32.totalorder %s22, 1
    %p150 = por %p148, %p149
    %p152 = scmp.ne.s32.totalorder %s137, %s151
    %p153 = scmp.eq.s32.totalorder %s22, 0
    %p154 = por %p152, %p153
    %s156 = sadd.s32 %s155, 1
    %p159 = scmp.eq.s32.totalorder %s16, 1
    %p160 = scmp.ne.s32.totalorder %s155, %s157
    %p161 = scmp.eq.s32.totalorder %s16, 0
    %p162 = por %p160, %p161
    %p163 = scmp.ne.s32.totalorder %s155, %s157
    %p164 = scmp.eq.s32.totalorder %s21, 1
    %p165 = por %p163, %p164
    %p166 = scmp.ne.s32.totalorder %s157, %s158
    %p167 = scmp.eq.s32.totalorder %s21, 0
    %p168 = por %p166, %p167
    %p169 = scmp.ne.s32.totalorder %s157, %s158
    %p170 = scmp.eq.s32.totalorder %s22, 1
    %p171 = por %p169, %p170
    %p173 = scmp.ne.s32.totalorder %s158, %s172
    %p174 = scmp.eq.s32.totalorder %s22, 0
    %p175 = por %p173, %p174
    %s177 = sadd.s32 %s176, 1
    %p180 = scmp.eq.s32.totalorder %s16, 1
    %p181 = scmp.ne.s32.totalorder %s176, %s178
    %p182 = scmp.eq.s32.totalorder %s16, 0
    %p183 = por %p181, %p182
    %p184 = scmp.ne.s32.totalorder %s176, %s178
    %p185 = scmp.eq.s32.totalorder %s21, 1
    %p186 = por %p184, %p185
    %p187 = scmp.ne.s32.totalorder %s178, %s179
    %p188 = scmp.eq.s32.totalorder %s21, 0
    %p189 = por %p187, %p188
    %p190 = scmp.ne.s32.totalorder %s178, %s179
    %p191 = scmp.eq.s32.totalorder %s22, 1
    %p192 = por %p190, %p191
    %p194 = scmp.ne.s32.totalorder %s179, %s193
    %p195 = scmp.eq.s32.totalorder %s22, 0
    %p196 = por %p194, %p195
    %s198 = sadd.s32 %s197, 1
    %p201 = scmp.eq.s32.totalorder %s16, 1
    %p202 = scmp.ne.s32.totalorder %s197, %s199
    %p203 = scmp.eq.s32.totalorder %s16, 0
    %p204 = por %p202, %p203
    %p205 = scmp.ne.s32.totalorder %s197, %s199
    %p206 = scmp.eq.s32.totalorder %s21, 1
    %p207 = por %p205, %p206
    %p208 = scmp.ne.s32.totalorder %s199, %s200
    %p209 = scmp.eq.s32.totalorder %s21, 0
    %p210 = por %p208, %p209
    %p211 = scmp.ne.s32.totalorder %s199, %s200
    %p212 = scmp.eq.s32.totalorder %s22, 1
    %p213 = por %p211, %p212
    %p215 = scmp.ne.s32.totalorder %s200, %s214
    %p216 = scmp.eq.s32.totalorder %s22, 0
    %p217 = por %p215, %p216
    %s219 = sadd.s32 %s218, 1
    %p222 = scmp.eq.s32.totalorder %s16, 1
    %p223 = scmp.ne.s32.totalorder %s218, %s220
    %p224 = scmp.eq.s32.totalorder %s16, 0
    %p225 = por %p223, %p224
    %p226 = scmp.ne.s32.totalorder %s218, %s220
    %p227 = scmp.eq.s32.totalorder %s21, 1
    %p228 = por %p226, %p227
    %p229 = scmp.ne.s32.totalorder %s220, %s221
    %p230 = scmp.eq.s32.totalorder %s21, 0
    %p231 = por %p229, %p230
    %p232 = scmp.ne.s32.totalorder %s220, %s221
    %p233 = scmp.eq.s32.totalorder %s22, 1
    %p234 = por %p232, %p233
    %p236 = scmp.ne.s32.totalorder %s221, %s235
    %p237 = scmp.eq.s32.totalorder %s22, 0
    %p238 = por %p236, %p237
    %s239 = ssub.s32 %s16, %s23
    %p240 = scmp.eq.s32.totalorder %s239, 0
    %s242 = sadd.s32 %s241, 1
    %s243 = scalar_select %p240, %s241, %s242
    %p246 = pneg %p240
    %p247 = scmp.eq.s32.totalorder %s16, 1
    %p248 = por %p246, %p247
    %p249 = scmp.ne.s32.totalorder %s241, %s244
    %p250 = scmp.eq.s32.totalorder %s16, 0
    %p251 = por %p249, %p250
    %p252 = scmp.ne.s32.totalorder %s241, %s244
    %p253 = scmp.eq.s32.totalorder %s21, 1
    %p254 = por %p252, %p253
    %p255 = scmp.ne.s32.totalorder %s244, %s245
    %p256 = scmp.eq.s32.totalorder %s21, 0
    %p257 = por %p255, %p256
    %p258 = scmp.ne.s32.totalorder %s244, %s245
    %p259 = scmp.eq.s32.totalorder %s22, 1
    %p260 = por %p258, %p259
    %p262 = scmp.ne.s32.totalorder %s245, %s261
    %p263 = scmp.eq.s32.totalorder %s22, 0
    %p264 = por %p262, %p263
    %p265 = scmp.le.s32.totalorder 1, %s16
    %p266 = scmp.lt.s32.totalorder %s16, 3
    %p267 = pnand %p265, %p266
    %p268 = pneg %p267
    // Predicated region
    $region9: #{downsample_layer_forward.1} parent=5 // pred_check
      _
    $region10: #{downsample_layer_forward.1} parent=5 // pred_check_branch
      %270 = sbr.rel (%p267) target = $region12
    $region11: #{downsample_layer_forward.1} parent=5 // pred_region
      %s271 = ssub.s32 %s16, 1
      // Predicated region
      $region13: #{downsample_layer_forward.1} parent=11 // pred_check
        %p272 = pneg %p63
      $region14: #{downsample_layer_forward.1} parent=11 // pred_check_branch
        %274 = sbr.rel (%p272) target = $region16
      $region15: #{downsample_layer_forward.1} parent=11 // pred_region
        _
      $region16: #{downsample_layer_forward.1} parent=11 // pred_fallthru
        _
      // Predicated region
      $region17: #{downsample_layer_forward.1} parent=11 // pred_check
        %p275 = pneg %p84
      $region18: #{downsample_layer_forward.1} parent=11 // pred_check_branch
        %277 = sbr.rel (%p275) target = $region20
      $region19: #{downsample_layer_forward.1} parent=11 // pred_region
        _
      $region20: #{downsample_layer_forward.1} parent=11 // pred_fallthru
        _
      // Predicated region
      $region21: #{downsample_layer_forward.1} parent=11 // pred_check
        %p278 = pneg %p105
      $region22: #{downsample_layer_forward.1} parent=11 // pred_check_branch
        %280 = sbr.rel (%p278) target = $region24
      $region23: #{downsample_layer_forward.1} parent=11 // pred_region
        _
      $region24: #{downsample_layer_forward.1} parent=11 // pred_fallthru
        _
      // Predicated region
      $region25: #{downsample_layer_forward.1} parent=11 // pred_check
        %p281 = pneg %p126
      $region26: #{downsample_layer_forward.1} parent=11 // pred_check_branch
        %283 = sbr.rel (%p281) target = $region28
      $region27: #{downsample_layer_forward.1} parent=11 // pred_region
        _
      $region28: #{downsample_layer_forward.1} parent=11 // pred_fallthru
        _
      // Predicated region
      $region29: #{downsample_layer_forward.1} parent=11 // pred_check
        %p284 = pneg %p147
      $region30: #{downsample_layer_forward.1} parent=11 // pred_check_branch
        %286 = sbr.rel (%p284) target = $region32
      $region31: #{downsample_layer_forward.1} parent=11 // pred_region
        _
      $region32: #{downsample_layer_forward.1} parent=11 // pred_fallthru
        _
      // Predicated region
      $region33: #{downsample_layer_forward.1} parent=11 // pred_check
        %p287 = pneg %p168
      $region34: #{downsample_layer_forward.1} parent=11 // pred_check_branch
        %289 = sbr.rel (%p287) target = $region36
      $region35: #{downsample_layer_forward.1} parent=11 // pred_region
        _
      $region36: #{downsample_layer_forward.1} parent=11 // pred_fallthru
        _
      // Predicated region
      $region37: #{downsample_layer_forward.1} parent=11 // pred_check
        %p290 = pneg %p189
      $region38: #{downsample_layer_forward.1} parent=11 // pred_check_branch
        %292 = sbr.rel (%p290) target = $region40
      $region39: #{downsample_layer_forward.1} parent=11 // pred_region
        _
      $region40: #{downsample_layer_forward.1} parent=11 // pred_fallthru
        _
      // Predicated region
      $region41: #{downsample_layer_forward.1} parent=11 // pred_check
        %p293 = pneg %p210
      $region42: #{downsample_layer_forward.1} parent=11 // pred_check_branch
        %295 = sbr.rel (%p293) target = $region44
      $region43: #{downsample_layer_forward.1} parent=11 // pred_region
        _
      $region44: #{downsample_layer_forward.1} parent=11 // pred_fallthru
        _
      // Predicated region
      $region45: #{downsample_layer_forward.1} parent=11 // pred_check
        %p296 = pneg %p231
      $region46: #{downsample_layer_forward.1} parent=11 // pred_check_branch
        %298 = sbr.rel (%p296) target = $region48
      $region47: #{downsample_layer_forward.1} parent=11 // pred_region
        _
      $region48: #{downsample_layer_forward.1} parent=11 // pred_fallthru
        _
    $region12: #{downsample_layer_forward.1} parent=5 // pred_fallthru
      _
    %p299 = scmp.lt.s32.totalorder %s16, 2
    // Predicated region
    $region49: #{downsample_layer_forward.1} parent=5 // pred_check
      %p300 = pneg %p299
    $region50: #{downsample_layer_forward.1} parent=5 // pred_check_branch
      %302 = sbr.rel (%p300) target = $region52
    $region51: #{downsample_layer_forward.1} parent=5 // pred_region
      // Predicated region
      $region53: #{downsample_layer_forward.1} parent=51 // pred_check
        %p303 = pneg %p36
      $region54: #{downsample_layer_forward.1} parent=51 // pred_check_branch
        %305 = sbr.rel (%p303) target = $region56
      $region55: #{downsample_layer_forward.1} parent=51 // pred_region
        %p306 = scmp.lt.s32.totalorder %s16, 1
        %s307 = scalar_select %p306, %s16, 1
        %s308 = smul.addr %s307, 32
        %s309 = smul.addr %s308, 4
        %s310 = scalar_lea.vmem %s0, %s309
      $region56: #{downsample_layer_forward.1} parent=51 // pred_fallthru
        _
    $region52: #{downsample_layer_forward.1} parent=5 // pred_fallthru
      _
    %p311 = scmp.le.s32.totalorder 1, %s16
    %p312 = scmp.lt.s32.totalorder %s16, 3
    %p313 = pnand %p311, %p312
    %p314 = pneg %p313
    // Predicated region
    $region57: #{downsample_layer_forward.1} parent=5 // pred_check
      _
    $region58: #{downsample_layer_forward.1} parent=5 // pred_check_branch
      %316 = sbr.rel (%p313) target = $region60
    $region59: #{downsample_layer_forward.1} parent=5 // pred_region
      %s317 = ssub.s32 %s16, 1
      %p318 = scmp.lt.s32.totalorder %s21, 1
      %s319 = scalar_select %p318, %s21, 1
      %s320 = smul.addr %s319, 32
      %s321 = smul.addr %s320, 4
      %s322 = scalar_lea.vmem %s0, %s321
      %p323 = pneg %p42
      %p324 = pneg %p39
      %p325 = pneg %p63
      %p326 = pneg %p60
      %p327 = pneg %p84
      %p328 = pneg %p81
      %p329 = pneg %p105
      %p330 = pneg %p102
      %p331 = pneg %p126
      %p332 = pneg %p123
      %p333 = pneg %p147
      %p334 = pneg %p144
      %p335 = pneg %p168
      %p336 = pneg %p165
      %p337 = pneg %p189
      %p338 = pneg %p186
      %p339 = pneg %p210
      %p340 = pneg %p207
      %p341 = pneg %p231
      %p342 = pneg %p228
      %p343 = pneg %p257
      %p344 = pneg %p254
      %p345 = scmp.lt.s32.totalorder %s21, 1
      %s346 = scalar_select %p345, %s21, 1
      %s347 = smul.addr %s346, 16
      %s348 = smul.addr %s347, 8
      %s349 = scalar_lea.vmem %s10, %s348
      %p350 = scmp.lt.s32.totalorder %s21, 1
      %s351 = scalar_select %p350, %s21, 1
      %s352 = smul.addr %s351, 32
      %s353 = smul.addr %s352, 4
      %s354 = scalar_lea.vmem %s0, %s353
      %p355 = scmp.lt.s32.totalorder %s21, 1
      %s356 = scalar_select %p355, %s21, 1
      %s357 = smul.addr %s356, 16
      %s358 = smul.addr %s357, 8
      %s359 = scalar_lea.vmem %s10, %s358
      %vm361 = vcmask 31744
      %362 = vst.msk [vmem:[#allocation2] sm:$0xff] %vm361, 0
      %363 = vst.msk [vmem:[#allocation2 + $0x8] sm:$0xff] %vm361, 0
      %364 = vst.msk [vmem:[#allocation2 + $0x10] sm:$0xff] %vm361, 0
      %s365 = scalar_lea.vmem [#allocation2], 408
      %366 = vst.msk [vmem:[%s365] sm:$0xff] %vm361, 0
      %367 = vst.msk [vmem:[%s365 + $0x8] sm:$0xff] %vm361, 0
      %368 = vst.msk [vmem:[%s365 + $0x10] sm:$0xff] %vm361, 0
      %369 = vst.msk [vmem:[#allocation2] sm:$0xff] %vm361, 0
      %370 = vst.msk [vmem:[#allocation2 + $0x18] sm:$0xff] %vm361, 0
      %371 = vst.msk [vmem:[#allocation2 + $0x30] sm:$0xff] %vm361, 0
      %372 = vst.msk [vmem:[#allocation2 + $0x48] sm:$0xff] %vm361, 0
      %373 = vst.msk [vmem:[#allocation2 + $0x60] sm:$0xff] %vm361, 0
      %374 = vst.msk [vmem:[#allocation2 + $0x78] sm:$0xff] %vm361, 0
      %375 = vst.msk [vmem:[#allocation2 + $0x90] sm:$0xff] %vm361, 0
      %376 = vst.msk [vmem:[#allocation2 + $0xa8] sm:$0xff] %vm361, 0
      %377 = vst.msk [vmem:[#allocation2 + $0xc0] sm:$0xff] %vm361, 0
      %378 = vst.msk [vmem:[#allocation2 + $0xd8] sm:$0xff] %vm361, 0
      %379 = vst.msk [vmem:[#allocation2 + $0xf0] sm:$0xff] %vm361, 0
      %380 = vst.msk [vmem:[#allocation2 + $0x108] sm:$0xff] %vm361, 0
      %381 = vst.msk [vmem:[#allocation2 + $0x120] sm:$0xff] %vm361, 0
      %382 = vst.msk [vmem:[#allocation2 + $0x138] sm:$0xff] %vm361, 0
      %383 = vst.msk [vmem:[#allocation2 + $0x150] sm:$0xff] %vm361, 0
      %384 = vst.msk [vmem:[#allocation2 + $0x168] sm:$0xff] %vm361, 0
      %385 = vst.msk [vmem:[#allocation2 + $0x180] sm:$0xff] %vm361, 0
      %386 = vst.msk [vmem:[#allocation2 + $0x198] sm:$0xff] %vm361, 0
      %387 = vst.msk [vmem:[#allocation2 + $0x10] sm:$0xff] %vm361, 0
      %388 = vst.msk [vmem:[#allocation2 + $0x28] sm:$0xff] %vm361, 0
      %389 = vst.msk [vmem:[#allocation2 + $0x40] sm:$0xff] %vm361, 0
      %390 = vst.msk [vmem:[#allocation2 + $0x58] sm:$0xff] %vm361, 0
      %391 = vst.msk [vmem:[#allocation2 + $0x70] sm:$0xff] %vm361, 0
      %392 = vst.msk [vmem:[#allocation2 + $0x88] sm:$0xff] %vm361, 0
      %393 = vst.msk [vmem:[#allocation2 + $0xa0] sm:$0xff] %vm361, 0
      %394 = vst.msk [vmem:[#allocation2 + $0xb8] sm:$0xff] %vm361, 0
      %395 = vst.msk [vmem:[#allocation2 + $0xd0] sm:$0xff] %vm361, 0
      %396 = vst.msk [vmem:[#allocation2 + $0xe8] sm:$0xff] %vm361, 0
      %397 = vst.msk [vmem:[#allocation2 + $0x100] sm:$0xff] %vm361, 0
      %398 = vst.msk [vmem:[#allocation2 + $0x118] sm:$0xff] %vm361, 0
      %399 = vst.msk [vmem:[#allocation2 + $0x130] sm:$0xff] %vm361, 0
      %400 = vst.msk [vmem:[#allocation2 + $0x148] sm:$0xff] %vm361, 0
      %401 = vst.msk [vmem:[#allocation2 + $0x160] sm:$0xff] %vm361, 0
      %402 = vst.msk [vmem:[#allocation2 + $0x178] sm:$0xff] %vm361, 0
      %403 = vst.msk [vmem:[#allocation2 + $0x190] sm:$0xff] %vm361, 0
      %404 = vst.msk [vmem:[#allocation2 + $0x1a8] sm:$0xff] %vm361, 0
      %vm405 = vcmask 64512
      %406 = vst.msk [vmem:[#allocation3] sm:$0xff] %vm405, 0
      %407 = vst.msk [vmem:[#allocation3 + $0x8] sm:$0xff] %vm405, 0
      %408 = vst.msk [vmem:[#allocation3 + $0x10] sm:$0xff] %vm405, 0
      %s409 = scalar_lea.vmem [#allocation3], 408
      %410 = vst.msk [vmem:[%s409] sm:$0xff] %vm405, 0
      %411 = vst.msk [vmem:[%s409 + $0x8] sm:$0xff] %vm405, 0
      %412 = vst.msk [vmem:[%s409 + $0x10] sm:$0xff] %vm405, 0
      %413 = vst.msk [vmem:[#allocation3] sm:$0xff] %vm405, 0
      %414 = vst.msk [vmem:[#allocation3 + $0x18] sm:$0xff] %vm405, 0
      %415 = vst.msk [vmem:[#allocation3 + $0x30] sm:$0xff] %vm405, 0
      %416 = vst.msk [vmem:[#allocation3 + $0x48] sm:$0xff] %vm405, 0
      %417 = vst.msk [vmem:[#allocation3 + $0x60] sm:$0xff] %vm405, 0
      %418 = vst.msk [vmem:[#allocation3 + $0x78] sm:$0xff] %vm405, 0
      %419 = vst.msk [vmem:[#allocation3 + $0x90] sm:$0xff] %vm405, 0
      %420 = vst.msk [vmem:[#allocation3 + $0xa8] sm:$0xff] %vm405, 0
      %421 = vst.msk [vmem:[#allocation3 + $0xc0] sm:$0xff] %vm405, 0
      %422 = vst.msk [vmem:[#allocation3 + $0xd8] sm:$0xff] %vm405, 0
      %423 = vst.msk [vmem:[#allocation3 + $0xf0] sm:$0xff] %vm405, 0
      %424 = vst.msk [vmem:[#allocation3 + $0x108] sm:$0xff] %vm405, 0
      %425 = vst.msk [vmem:[#allocation3 + $0x120] sm:$0xff] %vm405, 0
      %426 = vst.msk [vmem:[#allocation3 + $0x138] sm:$0xff] %vm405, 0
      %427 = vst.msk [vmem:[#allocation3 + $0x150] sm:$0xff] %vm405, 0
      %428 = vst.msk [vmem:[#allocation3 + $0x168] sm:$0xff] %vm405, 0
      %429 = vst.msk [vmem:[#allocation3 + $0x180] sm:$0xff] %vm405, 0
      %430 = vst.msk [vmem:[#allocation3 + $0x198] sm:$0xff] %vm405, 0
      %431 = vst.msk [vmem:[#allocation3 + $0x10] sm:$0xff] %vm405, 0
      %432 = vst.msk [vmem:[#allocation3 + $0x28] sm:$0xff] %vm405, 0
      %433 = vst.msk [vmem:[#allocation3 + $0x40] sm:$0xff] %vm405, 0
      %434 = vst.msk [vmem:[#allocation3 + $0x58] sm:$0xff] %vm405, 0
      %435 = vst.msk [vmem:[#allocation3 + $0x70] sm:$0xff] %vm405, 0
      %436 = vst.msk [vmem:[#allocation3 + $0x88] sm:$0xff] %vm405, 0
      %437 = vst.msk [vmem:[#allocation3 + $0xa0] sm:$0xff] %vm405, 0
      %438 = vst.msk [vmem:[#allocation3 + $0xb8] sm:$0xff] %vm405, 0
      %439 = vst.msk [vmem:[#allocation3 + $0xd0] sm:$0xff] %vm405, 0
      %440 = vst.msk [vmem:[#allocation3 + $0xe8] sm:$0xff] %vm405, 0
      %441 = vst.msk [vmem:[#allocation3 + $0x100] sm:$0xff] %vm405, 0
      %442 = vst.msk [vmem:[#allocation3 + $0x118] sm:$0xff] %vm405, 0
      %443 = vst.msk [vmem:[#allocation3 + $0x130] sm:$0xff] %vm405, 0
      %444 = vst.msk [vmem:[#allocation3 + $0x148] sm:$0xff] %vm405, 0
      %445 = vst.msk [vmem:[#allocation3 + $0x160] sm:$0xff] %vm405, 0
      %446 = vst.msk [vmem:[#allocation3 + $0x178] sm:$0xff] %vm405, 0
      %447 = vst.msk [vmem:[#allocation3 + $0x190] sm:$0xff] %vm405, 0
      %448 = vst.msk [vmem:[#allocation3 + $0x1a8] sm:$0xff] %vm405, 0
      %449 = vst.msk [vmem:[#allocation4] sm:$0xff] %vm405, 0
      %450 = vst.msk [vmem:[#allocation4 + $0x8] sm:$0xff] %vm405, 0
      %451 = vst.msk [vmem:[#allocation4 + $0x10] sm:$0xff] %vm405, 0
      %s452 = scalar_lea.vmem [#allocation4], 408
      %453 = vst.msk [vmem:[%s452] sm:$0xff] %vm405, 0
      %454 = vst.msk [vmem:[%s452 + $0x8] sm:$0xff] %vm405, 0
      %455 = vst.msk [vmem:[%s452 + $0x10] sm:$0xff] %vm405, 0
      %456 = vst.msk [vmem:[#allocation4] sm:$0xff] %vm405, 0
      %457 = vst.msk [vmem:[#allocation4 + $0x18] sm:$0xff] %vm405, 0
      %458 = vst.msk [vmem:[#allocation4 + $0x30] sm:$0xff] %vm405, 0
      %459 = vst.msk [vmem:[#allocation4 + $0x48] sm:$0xff] %vm405, 0
      %460 = vst.msk [vmem:[#allocation4 + $0x60] sm:$0xff] %vm405, 0
      %461 = vst.msk [vmem:[#allocation4 + $0x78] sm:$0xff] %vm405, 0
      %462 = vst.msk [vmem:[#allocation4 + $0x90] sm:$0xff] %vm405, 0
      %463 = vst.msk [vmem:[#allocation4 + $0xa8] sm:$0xff] %vm405, 0
      %464 = vst.msk [vmem:[#allocation4 + $0xc0] sm:$0xff] %vm405, 0
      %465 = vst.msk [vmem:[#allocation4 + $0xd8] sm:$0xff] %vm405, 0
      %466 = vst.msk [vmem:[#allocation4 + $0xf0] sm:$0xff] %vm405, 0
      %467 = vst.msk [vmem:[#allocation4 + $0x108] sm:$0xff] %vm405, 0
      %468 = vst.msk [vmem:[#allocation4 + $0x120] sm:$0xff] %vm405, 0
      %469 = vst.msk [vmem:[#allocation4 + $0x138] sm:$0xff] %vm405, 0
      %470 = vst.msk [vmem:[#allocation4 + $0x150] sm:$0xff] %vm405, 0
      %471 = vst.msk [vmem:[#allocation4 + $0x168] sm:$0xff] %vm405, 0
      %472 = vst.msk [vmem:[#allocation4 + $0x180] sm:$0xff] %vm405, 0
      %473 = vst.msk [vmem:[#allocation4 + $0x198] sm:$0xff] %vm405, 0
      %474 = vst.msk [vmem:[#allocation4 + $0x10] sm:$0xff] %vm405, 0
      %475 = vst.msk [vmem:[#allocation4 + $0x28] sm:$0xff] %vm405, 0
      %476 = vst.msk [vmem:[#allocation4 + $0x40] sm:$0xff] %vm405, 0
      %477 = vst.msk [vmem:[#allocation4 + $0x58] sm:$0xff] %vm405, 0
      %478 = vst.msk [vmem:[#allocation4 + $0x70] sm:$0xff] %vm405, 0
      %479 = vst.msk [vmem:[#allocation4 + $0x88] sm:$0xff] %vm405, 0
      %480 = vst.msk [vmem:[#allocation4 + $0xa0] sm:$0xff] %vm405, 0
      %481 = vst.msk [vmem:[#allocation4 + $0xb8] sm:$0xff] %vm405, 0
      %482 = vst.msk [vmem:[#allocation4 + $0xd0] sm:$0xff] %vm405, 0
      %483 = vst.msk [vmem:[#allocation4 + $0xe8] sm:$0xff] %vm405, 0
      %484 = vst.msk [vmem:[#allocation4 + $0x100] sm:$0xff] %vm405, 0
      %485 = vst.msk [vmem:[#allocation4 + $0x118] sm:$0xff] %vm405, 0
      %486 = vst.msk [vmem:[#allocation4 + $0x130] sm:$0xff] %vm405, 0
      %487 = vst.msk [vmem:[#allocation4 + $0x148] sm:$0xff] %vm405, 0
      %488 = vst.msk [vmem:[#allocation4 + $0x160] sm:$0xff] %vm405, 0
      %489 = vst.msk [vmem:[#allocation4 + $0x178] sm:$0xff] %vm405, 0
      %490 = vst.msk [vmem:[#allocation4 + $0x190] sm:$0xff] %vm405, 0
      %491 = vst.msk [vmem:[#allocation4 + $0x1a8] sm:$0xff] %vm405, 0
      %v492 = vld [vmem:[%s354] sm:$0xf]
      %v493 = vld [vmem:[%s354 + $0x4] sm:$0xf]
      %v494 = vld [vmem:[%s354 + $0x8] sm:$0xf]
      %v495 = vld [vmem:[%s354 + $0xc] sm:$0xf]
      %v496 = vld [vmem:[%s354 + $0x10] sm:$0xf]
      %v497 = vld [vmem:[%s354 + $0x14] sm:$0xf]
      %v498 = vld [vmem:[%s354 + $0x18] sm:$0xf]
      %v499 = vld [vmem:[%s354 + $0x1c] sm:$0xf]
      %v500 = vld [vmem:[%s354 + $0x20] sm:$0xf]
      %v501 = vld [vmem:[%s354 + $0x24] sm:$0xf]
      %v502 = vld [vmem:[%s354 + $0x28] sm:$0xf]
      %v503 = vld [vmem:[%s354 + $0x2c] sm:$0xf]
      %v504 = vld [vmem:[%s354 + $0x30] sm:$0xf]
      %v505 = vld [vmem:[%s354 + $0x34] sm:$0xf]
      %v506 = vld [vmem:[%s354 + $0x38] sm:$0xf]
      %v507 = vld [vmem:[%s354 + $0x3c] sm:$0xf]
      %v508 = vld [vmem:[%s354 + $0x40] sm:$0xf]
      %v509 = vld [vmem:[%s354 + $0x44] sm:$0xf]
      %v510 = vld [vmem:[%s354 + $0x48] sm:$0xf]
      %v511 = vld [vmem:[%s354 + $0x4c] sm:$0xf]
      %v512 = vld [vmem:[%s354 + $0x50] sm:$0xf]
      %v513 = vld [vmem:[%s354 + $0x54] sm:$0xf]
      %v514 = vld [vmem:[%s354 + $0x58] sm:$0xf]
      %v515 = vld [vmem:[%s354 + $0x5c] sm:$0xf]
      %v516 = vld [vmem:[%s354 + $0x60] sm:$0xf]
      %v517 = vld [vmem:[%s354 + $0x64] sm:$0xf]
      %v518 = vld [vmem:[%s354 + $0x68] sm:$0xf]
      %v519 = vld [vmem:[%s354 + $0x6c] sm:$0xf]
      %v520 = vld [vmem:[%s354 + $0x70] sm:$0xf]
      %v521 = vld [vmem:[%s354 + $0x74] sm:$0xf]
      %v522 = vld [vmem:[%s354 + $0x78] sm:$0xf]
      %v523 = vld [vmem:[%s354 + $0x7c] sm:$0xf]
      %v556 = vunpack.c.l.b16 %v492
      %v557 = vunpack.c.l.b16 %v493
      %v558 = vunpack.c.l.b16 %v494
      %v559 = vunpack.c.l.b16 %v495
      %v560 = vunpack.c.l.b16 %v496
      %v561 = vunpack.c.l.b16 %v497
      %v562 = vunpack.c.l.b16 %v498
      %v563 = vunpack.c.l.b16 %v499
      %v564 = vunpack.c.l.b16 %v500
      %v565 = vunpack.c.l.b16 %v501
      %v566 = vunpack.c.l.b16 %v502
      %v567 = vunpack.c.l.b16 %v503
      %v568 = vunpack.c.l.b16 %v504
      %v569 = vunpack.c.l.b16 %v505
      %v570 = vunpack.c.l.b16 %v506
      %v571 = vunpack.c.l.b16 %v507
      %v572 = vunpack.c.l.b16 %v508
      %v573 = vunpack.c.l.b16 %v509
      %v574 = vunpack.c.l.b16 %v510
      %v575 = vunpack.c.l.b16 %v511
      %v576 = vunpack.c.l.b16 %v512
      %v577 = vunpack.c.l.b16 %v513
      %v578 = vunpack.c.l.b16 %v514
      %v579 = vunpack.c.l.b16 %v515
      %v580 = vunpack.c.l.b16 %v516
      %v581 = vunpack.c.l.b16 %v517
      %v582 = vunpack.c.l.b16 %v518
      %v583 = vunpack.c.l.b16 %v519
      %v584 = vunpack.c.l.b16 %v520
      %v585 = vunpack.c.l.b16 %v521
      %v586 = vunpack.c.l.b16 %v522
      %v587 = vunpack.c.l.b16 %v523
      %v588 = vpack.c.b16 %v557, %v556
      %v589 = vpack.c.b16 %v559, %v558
      %v590 = vpack.c.b16 %v561, %v560
      %v591 = vpack.c.b16 %v563, %v562
      %v592 = vpack.c.b16 %v565, %v564
      %v593 = vpack.c.b16 %v567, %v566
      %v594 = vpack.c.b16 %v569, %v568
      %v595 = vpack.c.b16 %v571, %v570
      %v596 = vpack.c.b16 %v573, %v572
      %v597 = vpack.c.b16 %v575, %v574
      %v598 = vpack.c.b16 %v577, %v576
      %v599 = vpack.c.b16 %v579, %v578
      %v600 = vpack.c.b16 %v581, %v580
      %v601 = vpack.c.b16 %v583, %v582
      %v602 = vpack.c.b16 %v585, %v584
      %v603 = vpack.c.b16 %v587, %v586
      %s620 = scalar_lea.vmem [#allocation2], 24
      %621 = vst.msk [vmem:[%s620 + $0x8] sm:$0xff] %vm361, %v588
      %622 = vst.msk [vmem:[%s620 + $0x20] sm:$0xff] %vm361, %v589
      %623 = vst.msk [vmem:[%s620 + $0x38] sm:$0xff] %vm361, %v590
      %624 = vst.msk [vmem:[%s620 + $0x50] sm:$0xff] %vm361, %v591
      %625 = vst.msk [vmem:[%s620 + $0x68] sm:$0xff] %vm361, %v592
      %626 = vst.msk [vmem:[%s620 + $0x80] sm:$0xff] %vm361, %v593
      %627 = vst.msk [vmem:[%s620 + $0x98] sm:$0xff] %vm361, %v594
      %628 = vst.msk [vmem:[%s620 + $0xb0] sm:$0xff] %vm361, %v595
      %629 = vst.msk [vmem:[%s620 + $0xc8] sm:$0xff] %vm361, %v596
      %630 = vst.msk [vmem:[%s620 + $0xe0] sm:$0xff] %vm361, %v597
      %631 = vst.msk [vmem:[%s620 + $0xf8] sm:$0xff] %vm361, %v598
      %632 = vst.msk [vmem:[%s620 + $0x110] sm:$0xff] %vm361, %v599
      %633 = vst.msk [vmem:[%s620 + $0x128] sm:$0xff] %vm361, %v600
      %634 = vst.msk [vmem:[%s620 + $0x140] sm:$0xff] %vm361, %v601
      %635 = vst.msk [vmem:[%s620 + $0x158] sm:$0xff] %vm361, %v602
      %636 = vst.msk [vmem:[%s620 + $0x170] sm:$0xff] %vm361, %v603
      %v637 = vld [vmem:[#allocation2] sm:$0x80]
      %v638 = vld [vmem:[#allocation2 + $0x8] sm:$0xff]
      %v639 = vld [vmem:[#allocation2 + $0x18] sm:$0x80]
      %v640 = vld [vmem:[#allocation2 + $0x20] sm:$0xff]
      %v641 = vld [vmem:[#allocation2 + $0x30] sm:$0x80]
      %v642 = vld [vmem:[#allocation2 + $0x38] sm:$0xff]
      %v643 = vld [vmem:[#allocation2 + $0x48] sm:$0x80]
      %v644 = vld [vmem:[#allocation2 + $0x50] sm:$0xff]
      %v645 = vld [vmem:[#allocation2 + $0x60] sm:$0x80]
      %v646 = vld [vmem:[#allocation2 + $0x68] sm:$0xff]
      %v647 = vld [vmem:[#allocation2 + $0x78] sm:$0x80]
      %v648 = vld [vmem:[#allocation2 + $0x80] sm:$0xff]
      %v649 = vld [vmem:[#allocation2 + $0x90] sm:$0x80]
      %v650 = vld [vmem:[#allocation2 + $0x98] sm:$0xff]
      %v651 = vld [vmem:[#allocation2 + $0xa8] sm:$0x80]
      %v652 = vld [vmem:[#allocation2 + $0xb0] sm:$0xff]
      %v653 = vld [vmem:[#allocation2 + $0xc0] sm:$0x80]
      %v654 = vld [vmem:[#allocation2 + $0xc8] sm:$0xff]
      %v655 = vld [vmem:[#allocation2 + $0xd8] sm:$0x80]
      %v656 = vld [vmem:[#allocation2 + $0xe0] sm:$0xff]
      %v657 = vld [vmem:[#allocation2 + $0xf0] sm:$0x80]
      %v658 = vld [vmem:[#allocation2 + $0xf8] sm:$0xff]
      %v659 = vld [vmem:[#allocation2 + $0x108] sm:$0x80]
      %v660 = vld [vmem:[#allocation2 + $0x110] sm:$0xff]
      %v661 = vld [vmem:[#allocation2 + $0x120] sm:$0x80]
      %v662 = vld [vmem:[#allocation2 + $0x128] sm:$0xff]
      %v663 = vld [vmem:[#allocation2 + $0x138] sm:$0x80]
      %v664 = vld [vmem:[#allocation2 + $0x140] sm:$0xff]
      %v665 = vld [vmem:[#allocation2 + $0x150] sm:$0x80]
      %v666 = vld [vmem:[#allocation2 + $0x158] sm:$0xff]
      %v667 = vld [vmem:[#allocation2 + $0x168] sm:$0x80]
      %v668 = vld [vmem:[#allocation2 + $0x170] sm:$0xff]
      %vm669 = vsmask.f32 256
      %v671 = vshrl.u32 %v637, 16
      %v673 = vrot.slane %v671, 7
      %v675 = vshrl.u32 %v638, 16
      %v677 = vrot.slane %v675, 7
      %v678 = vshll.u32 %v638, 16
      %v680 = vor.u32 %v677, %v678
      %v681 = vsel %vm669, %v673, %v680
      %v683 = vshrl.u32 %v639, 16
      %v685 = vrot.slane %v683, 7
      %v687 = vshrl.u32 %v640, 16
      %v689 = vrot.slane %v687, 7
      %v690 = vshll.u32 %v640, 16
      %v692 = vor.u32 %v689, %v690
      %v693 = vsel %vm669, %v685, %v692
      %v695 = vshrl.u32 %v641, 16
      %v697 = vrot.slane %v695, 7
      %v699 = vshrl.u32 %v642, 16
      %v701 = vrot.slane %v699, 7
      %v702 = vshll.u32 %v642, 16
      %v704 = vor.u32 %v701, %v702
      %v705 = vsel %vm669, %v697, %v704
      %v707 = vshrl.u32 %v643, 16
      %v709 = vrot.slane %v707, 7
      %v711 = vshrl.u32 %v644, 16
      %v713 = vrot.slane %v711, 7
      %v714 = vshll.u32 %v644, 16
      %v716 = vor.u32 %v713, %v714
      %v717 = vsel %vm669, %v709, %v716
      %v719 = vshrl.u32 %v645, 16
      %v721 = vrot.slane %v719, 7
      %v723 = vshrl.u32 %v646, 16
      %v725 = vrot.slane %v723, 7
      %v726 = vshll.u32 %v646, 16
      %v728 = vor.u32 %v725, %v726
      %v729 = vsel %vm669, %v721, %v728
      %v731 = vshrl.u32 %v647, 16
      %v733 = vrot.slane %v731, 7
      %v735 = vshrl.u32 %v648, 16
      %v737 = vrot.slane %v735, 7
      %v738 = vshll.u32 %v648, 16
      %v740 = vor.u32 %v737, %v738
      %v741 = vsel %vm669, %v733, %v740
      %v743 = vshrl.u32 %v649, 16
      %v745 = vrot.slane %v743, 7
      %v747 = vshrl.u32 %v650, 16
      %v749 = vrot.slane %v747, 7
      %v750 = vshll.u32 %v650, 16
      %v752 = vor.u32 %v749, %v750
      %v753 = vsel %vm669, %v745, %v752
      %v755 = vshrl.u32 %v651, 16
      %v757 = vrot.slane %v755, 7
      %v759 = vshrl.u32 %v652, 16
      %v761 = vrot.slane %v759, 7
      %v762 = vshll.u32 %v652, 16
      %v764 = vor.u32 %v761, %v762
      %v765 = vsel %vm669, %v757, %v764
      %v767 = vshrl.u32 %v653, 16
      %v769 = vrot.slane %v767, 7
      %v771 = vshrl.u32 %v654, 16
      %v773 = vrot.slane %v771, 7
      %v774 = vshll.u32 %v654, 16
      %v776 = vor.u32 %v773, %v774
      %v777 = vsel %vm669, %v769, %v776
      %v779 = vshrl.u32 %v655, 16
      %v781 = vrot.slane %v779, 7
      %v783 = vshrl.u32 %v656, 16
      %v785 = vrot.slane %v783, 7
      %v786 = vshll.u32 %v656, 16
      %v788 = vor.u32 %v785, %v786
      %v789 = vsel %vm669, %v781, %v788
      %v791 = vshrl.u32 %v657, 16
      %v793 = vrot.slane %v791, 7
      %v795 = vshrl.u32 %v658, 16
      %v797 = vrot.slane %v795, 7
      %v798 = vshll.u32 %v658, 16
      %v800 = vor.u32 %v797, %v798
      %v801 = vsel %vm669, %v793, %v800
      %v803 = vshrl.u32 %v659, 16
      %v805 = vrot.slane %v803, 7
      %v807 = vshrl.u32 %v660, 16
      %v809 = vrot.slane %v807, 7
      %v810 = vshll.u32 %v660, 16
      %v812 = vor.u32 %v809, %v810
      %v813 = vsel %vm669, %v805, %v812
      %v815 = vshrl.u32 %v661, 16
      %v817 = vrot.slane %v815, 7
      %v819 = vshrl.u32 %v662, 16
      %v821 = vrot.slane %v819, 7
      %v822 = vshll.u32 %v662, 16
      %v824 = vor.u32 %v821, %v822
      %v825 = vsel %vm669, %v817, %v824
      %v827 = vshrl.u32 %v663, 16
      %v829 = vrot.slane %v827, 7
      %v831 = vshrl.u32 %v664, 16
      %v833 = vrot.slane %v831, 7
      %v834 = vshll.u32 %v664, 16
      %v836 = vor.u32 %v833, %v834
      %v837 = vsel %vm669, %v829, %v836
      %v839 = vshrl.u32 %v665, 16
      %v841 = vrot.slane %v839, 7
      %v843 = vshrl.u32 %v666, 16
      %v845 = vrot.slane %v843, 7
      %v846 = vshll.u32 %v666, 16
      %v848 = vor.u32 %v845, %v846
      %v849 = vsel %vm669, %v841, %v848
      %v851 = vshrl.u32 %v667, 16
      %v853 = vrot.slane %v851, 7
      %v855 = vshrl.u32 %v668, 16
      %v857 = vrot.slane %v855, 7
      %v858 = vshll.u32 %v668, 16
      %v860 = vor.u32 %v857, %v858
      %v861 = vsel %vm669, %v853, %v860
      %v862 = vld [vmem:[%s1] sm:$0x3]
      %s863 = scalar_lea.vmem %s1, 2
      %v864 = vld [vmem:[%s863] sm:$0x3]
      %v865 = vsel %vm361, %v638, 0
      %v867 = vsel %vm361, %v640, 0
      %v869 = vsel %vm361, %v642, 0
      %v871 = vsel %vm361, %v644, 0
      %v873 = vsel %vm361, %v646, 0
      %v875 = vsel %vm361, %v648, 0
      %v877 = vsel %vm361, %v650, 0
      %v879 = vsel %vm361, %v652, 0
      %v881 = vsel %vm361, %v654, 0
      %v883 = vsel %vm361, %v656, 0
      %v885 = vsel %vm361, %v658, 0
      %v887 = vsel %vm361, %v660, 0
      %v889 = vsel %vm361, %v662, 0
      %v891 = vsel %vm361, %v664, 0
      %v893 = vsel %vm361, %v666, 0
      %v895 = vsel %vm361, %v668, 0
      %vm897 = vcmask 1041408
      %v899 = vsel %vm897, %v864, 0
      %901 = vmatprep.subr.bf16.mxu0 0
      %902 = vmatpush1.bf16.msra.mxu0 %v899
      %903 = vmatprep.subr.bf16.mxu0 0
      %904 = vmatpush1.bf16.msra.mxu0 0
      %905 = vmatprep.subr.bf16.mxu0 0
      %906 = vmatpush1.bf16.msra.mxu0 0
      %907 = vmatprep.subr.bf16.mxu0 0
      %908 = vmatpush1.bf16.msra.mxu0 0
      %909 = vmatprep.subr.bf16.mxu0 0
      %910 = vmatpush1.bf16.msra.mxu0 0
      %911 = vmatprep.subr.bf16.mxu0 0
      %912 = vmatpush1.bf16.msra.mxu0 0
      %913 = vmatprep.subr.bf16.mxu0 0
      %914 = vmatpush1.bf16.msra.mxu0 0
      %915 = vmatprep.subr.bf16.mxu0 0
      %916 = vmatpush1.bf16.msra.mxu0 0
      %917 = vmatprep.subr.bf16.mxu0 0
      %918 = vmatpush1.bf16.msra.mxu0 0
      %919 = vmatprep.subr.bf16.mxu0 0
      %920 = vmatpush1.bf16.msra.mxu0 0
      %921 = vmatprep.subr.bf16.mxu0 0
      %922 = vmatpush1.bf16.msra.mxu0 0
      %923 = vmatprep.subr.bf16.mxu0 0
      %924 = vmatpush1.bf16.msra.mxu0 0
      %925 = vmatprep.subr.bf16.mxu0 0
      %926 = vmatpush1.bf16.msra.mxu0 0
      %927 = vmatprep.subr.bf16.mxu0 0
      %928 = vmatpush1.bf16.msra.mxu0 0
      %929 = vmatprep.subr.bf16.mxu0 0
      %930 = vmatpush1.bf16.msra.mxu0 0
      %931 = vmatprep.subr.bf16.mxu0 0
      %932 = vmatpush1.bf16.msra.mxu0 0
      %933 = vmatprep.mubr.bf16.mxu0 0
      %934 = vmatmul.mubr.bf16.gmra.mrb[0].mxu0 %v865
      %v935 = vpop.f32.mrb[0].mxu0
      %v936 = vadd.f32 0.0, %v935
      %v937 = vpop.f32.mrb[0].mxu0
      %v938 = vpop.f32.mrb[0].mxu0
      %v939 = vadd.f32 0.0, %v938
      %v940 = vpop.f32.mrb[0].mxu0
      %941 = vmatprep.mubr.bf16.mxu0 0
      %942 = vmatmul.mubr.bf16.gmra.mrb[0].mxu0 %v867
      %v943 = vpop.f32.mrb[0].mxu0
      %v944 = vadd.f32 0.0, %v943
      %v945 = vpop.f32.mrb[0].mxu0
      %v946 = vpop.f32.mrb[0].mxu0
      %v947 = vadd.f32 0.0, %v946
      %v948 = vpop.f32.mrb[0].mxu0
      %949 = vmatprep.mubr.bf16.mxu0 0
      %950 = vmatmul.mubr.bf16.gmra.mrb[0].mxu0 %v869
      %v951 = vpop.f32.mrb[0].mxu0
      %v952 = vadd.f32 0.0, %v951
      %v953 = vpop.f32.mrb[0].mxu0
      %v954 = vpop.f32.mrb[0].mxu0
      %v955 = vadd.f32 0.0, %v954
      %v956 = vpop.f32.mrb[0].mxu0
      %957 = vmatprep.mubr.bf16.mxu0 0
      %958 = vmatmul.mubr.bf16.gmra.mrb[0].mxu0 %v871
      %v959 = vpop.f32.mrb[0].mxu0
      %v960 = vadd.f32 0.0, %v959
      %v961 = vpop.f32.mrb[0].mxu0
      %v962 = vpop.f32.mrb[0].mxu0
      %v963 = vadd.f32 0.0, %v962
      %v964 = vpop.f32.mrb[0].mxu0
      %965 = vmatprep.mubr.bf16.mxu0 0
      %966 = vmatmul.mubr.bf16.gmra.mrb[0].mxu0 %v873
      %v967 = vpop.f32.mrb[0].mxu0
      %v968 = vadd.f32 0.0, %v967
      %v969 = vpop.f32.mrb[0].mxu0
      %v970 = vpop.f32.mrb[0].mxu0
      %v971 = vadd.f32 0.0, %v970
      %v972 = vpop.f32.mrb[0].mxu0
      %973 = vmatprep.mubr.bf16.mxu0 0
      %974 = vmatmul.mubr.bf16.gmra.mrb[0].mxu0 %v875
      %v975 = vpop.f32.mrb[0].mxu0
      %v976 = vadd.f32 0.0, %v975
      %v977 = vpop.f32.mrb[0].mxu0
      %v978 = vpop.f32.mrb[0].mxu0
      %v979 = vadd.f32 0.0, %v978
      %v980 = vpop.f32.mrb[0].mxu0
      %981 = vmatprep.mubr.bf16.mxu0 0
      %982 = vmatmul.mubr.bf16.gmra.mrb[0].mxu0 %v877
      %v983 = vpop.f32.mrb[0].mxu0
      %v984 = vadd.f32 0.0, %v983
      %v985 = vpop.f32.mrb[0].mxu0
      %v986 = vpop.f32.mrb[0].mxu0
      %v987 = vadd.f32 0.0, %v986
      %v988 = vpop.f32.mrb[0].mxu0
      %989 = vmatprep.mubr.bf16.mxu0 0
      %990 = vmatmul.mubr.bf16.gmra.mrb[0].mxu0 %v879
      %v991 = vpop.f32.mrb[0].mxu0
      %v992 = vadd.f32 0.0, %v991
      %v993 = vpop.f32.mrb[0].mxu0
      %v994 = vpop.f32.mrb[0].mxu0
      %v995 = vadd.f32 0.0, %v994
      %v996 = vpop.f32.mrb[0].mxu0
      %997 = vmatprep.mubr.bf16.mxu0 0
      %998 = vmatmul.mubr.bf16.gmra.mrb[0].mxu0 %v881
      %v999 = vpop.f32.mrb[0].mxu0
      %v1000 = vadd.f32 0.0, %v999
      %v1001 = vpop.f32.mrb[0].mxu0
      %v1002 = vpop.f32.mrb[0].mxu0
      %v1003 = vadd.f32 0.0, %v1002
      %v1004 = vpop.f32.mrb[0].mxu0
      %1005 = vmatprep.mubr.bf16.mxu0 0
      %1006 = vmatmul.mubr.bf16.gmra.mrb[0].mxu0 %v883
      %v1007 = vpop.f32.mrb[0].mxu0
      %v1008 = vadd.f32 0.0, %v1007
      %v1009 = vpop.f32.mrb[0].mxu0
      %v1010 = vpop.f32.mrb[0].mxu0
      %v1011 = vadd.f32 0.0, %v1010
      %v1012 = vpop.f32.mrb[0].mxu0
      %1013 = vmatprep.mubr.bf16.mxu0 0
      %1014 = vmatmul.mubr.bf16.gmra.mrb[0].mxu0 %v885
      %v1015 = vpop.f32.mrb[0].mxu0
      %v1016 = vadd.f32 0.0, %v1015
      %v1017 = vpop.f32.mrb[0].mxu0
      %v1018 = vpop.f32.mrb[0].mxu0
      %v1019 = vadd.f32 0.0, %v1018
      %v1020 = vpop.f32.mrb[0].mxu0
      %1021 = vmatprep.mubr.bf16.mxu0 0
      %1022 = vmatmul.mubr.bf16.gmra.mrb[0].mxu0 %v887
      %v1023 = vpop.f32.mrb[0].mxu0
      %v1024 = vadd.f32 0.0, %v1023
      %v1025 = vpop.f32.mrb[0].mxu0
      %v1026 = vpop.f32.mrb[0].mxu0
      %v1027 = vadd.f32 0.0, %v1026
      %v1028 = vpop.f32.mrb[0].mxu0
      %1029 = vmatprep.mubr.bf16.mxu0 0
      %1030 = vmatmul.mubr.bf16.gmra.mrb[0].mxu0 %v889
      %v1031 = vpop.f32.mrb[0].mxu0
      %v1032 = vadd.f32 0.0, %v1031
      %v1033 = vpop.f32.mrb[0].mxu0
      %v1034 = vpop.f32.mrb[0].mxu0
      %v1035 = vadd.f32 0.0, %v1034
      %v1036 = vpop.f32.mrb[0].mxu0
      %1037 = vmatprep.mubr.bf16.mxu0 0
      %1038 = vmatmul.mubr.bf16.gmra.mrb[0].mxu0 %v891
      %v1039 = vpop.f32.mrb[0].mxu0
      %v1040 = vadd.f32 0.0, %v1039
      %v1041 = vpop.f32.mrb[0].mxu0
      %v1042 = vpop.f32.mrb[0].mxu0
      %v1043 = vadd.f32 0.0, %v1042
      %v1044 = vpop.f32.mrb[0].mxu0
      %1045 = vmatprep.mubr.bf16.mxu0 0
      %1046 = vmatmul.mubr.bf16.gmra.mrb[0].mxu0 %v893
      %v1047 = vpop.f32.mrb[0].mxu0
      %v1048 = vadd.f32 0.0, %v1047
      %v1049 = vpop.f32.mrb[0].mxu0
      %v1050 = vpop.f32.mrb[0].mxu0
      %v1051 = vadd.f32 0.0, %v1050
      %v1052 = vpop.f32.mrb[0].mxu0
      %1053 = vmatprep.mubr.bf16.mxu0 0
      %1054 = vmatmul.mubr.bf16.gmra.mrb[0].mxu0 %v895
      %v1055 = vpop.f32.mrb[0].mxu0
      %v1056 = vadd.f32 0.0, %v1055
      %v1057 = vpop.f32.mrb[0].mxu0
      %v1058 = vpop.f32.mrb[0].mxu0
      %v1059 = vadd.f32 0.0, %v1058
      %v1060 = vpop.f32.mrb[0].mxu0
      %1061 = vdwg.mxu0
      %v1063 = vsel %vm361, %v681, 0
      %v1066 = vsel %vm361, %v693, 0
      %v1069 = vsel %vm361, %v705, 0
      %v1072 = vsel %vm361, %v717, 0
      %v1075 = vsel %vm361, %v729, 0
      %v1078 = vsel %vm361, %v741, 0
      %v1081 = vsel %vm361, %v753, 0
      %v1084 = vsel %vm361, %v765, 0
      %v1087 = vsel %vm361, %v777, 0
      %v1090 = vsel %vm361, %v789, 0
      %v1093 = vsel %vm361, %v801, 0
      %v1096 = vsel %vm361, %v813, 0
      %v1099 = vsel %vm361, %v825, 0
      %v1102 = vsel %vm361, %v837, 0
      %v1105 = vsel %vm361, %v849, 0
      %v1108 = vsel %vm361, %v861, 0
      %v1111 = vsel %vm897, %v862, 0
      %1113 = vmatprep.subr.bf16.mxu0 0
      %1114 = vmatpush1.bf16.msra.mxu0 %v1111
      %1115 = vmatprep.subr.bf16.mxu0 0
      %1116 = vmatpush1.bf16.msra.mxu0 0
      %1117 = vmatprep.subr.bf16.mxu0 0
      %1118 = vmatpush1.bf16.msra.mxu0 0
      %1119 = vmatprep.subr.bf16.mxu0 0
      %1120 = vmatpush1.bf16.msra.mxu0 0
      %1121 = vmatprep.subr.bf16.mxu0 0
      %1122 = vmatpush1.bf16.msra.mxu0 0
      %1123 = vmatprep.subr.bf16.mxu0 0
      %1124 = vmatpush1.bf16.msra.mxu0 0
      %1125 = vmatprep.subr.bf16.mxu0 0
      %1126 = vmatpush1.bf16.msra.mxu0 0
      %1127 = vmatprep.subr.bf16.mxu0 0
      %1128 = vmatpush1.bf16.msra.mxu0 0
      %1129 = vmatprep.subr.bf16.mxu0 0
      %1130 = vmatpush1.bf16.msra.mxu0 0
      %1131 = vmatprep.subr.bf16.mxu0 0
      %1132 = vmatpush1.bf16.msra.mxu0 0
      %1133 = vmatprep.subr.bf16.mxu0 0
      %1134 = vmatpush1.bf16.msra.mxu0 0
      %1135 = vmatprep.subr.bf16.mxu0 0
      %1136 = vmatpush1.bf16.msra.mxu0 0
      %1137 = vmatprep.subr.bf16.mxu0 0
      %1138 = vmatpush1.bf16.msra.mxu0 0
      %1139 = vmatprep.subr.bf16.mxu0 0
      %1140 = vmatpush1.bf16.msra.mxu0 0
      %1141 = vmatprep.subr.bf16.mxu0 0
      %1142 = vmatpush1.bf16.msra.mxu0 0
      %1143 = vmatprep.subr.bf16.mxu0 0
      %1144 = vmatpush1.bf16.msra.mxu0 0
      %1145 = vmatprep.mubr.bf16.mxu0 0
      %1146 = vmatmul.mubr.bf16.gmra.mrb[0].mxu0 %v1063
      %v1147 = vpop.f32.mrb[0].mxu0
      %v1148 = vadd.f32 %v936, %v1147
      %v1149 = vpop.f32.mrb[0].mxu0
      %v1150 = vpop.f32.mrb[0].mxu0
      %v1151 = vadd.f32 %v939, %v1150
      %v1152 = vpop.f32.mrb[0].mxu0
      %1153 = vmatprep.mubr.bf16.mxu0 0
      %1154 = vmatmul.mubr.bf16.gmra.mrb[0].mxu0 %v1066
      %v1155 = vpop.f32.mrb[0].mxu0
      %v1156 = vadd.f32 %v944, %v1155
      %v1157 = vpop.f32.mrb[0].mxu0
      %v1158 = vpop.f32.mrb[0].mxu0
      %v1159 = vadd.f32 %v947, %v1158
      %v1160 = vpop.f32.mrb[0].mxu0
      %1161 = vmatprep.mubr.bf16.mxu0 0
      %1162 = vmatmul.mubr.bf16.gmra.mrb[0].mxu0 %v1069
      %v1163 = vpop.f32.mrb[0].mxu0
      %v1164 = vadd.f32 %v952, %v1163
      %v1165 = vpop.f32.mrb[0].mxu0
      %v1166 = vpop.f32.mrb[0].mxu0
      %v1167 = vadd.f32 %v955, %v1166
      %v1168 = vpop.f32.mrb[0].mxu0
      %1169 = vmatprep.mubr.bf16.mxu0 0
      %1170 = vmatmul.mubr.bf16.gmra.mrb[0].mxu0 %v1072
      %v1171 = vpop.f32.mrb[0].mxu0
      %v1172 = vadd.f32 %v960, %v1171
      %v1173 = vpop.f32.mrb[0].mxu0
      %v1174 = vpop.f32.mrb[0].mxu0
      %v1175 = vadd.f32 %v963, %v1174
      %v1176 = vpop.f32.mrb[0].mxu0
      %1177 = vmatprep.mubr.bf16.mxu0 0
      %1178 = vmatmul.mubr.bf16.gmra.mrb[0].mxu0 %v1075
      %v1179 = vpop.f32.mrb[0].mxu0
      %v1180 = vadd.f32 %v968, %v1179
      %v1181 = vpop.f32.mrb[0].mxu0
      %v1182 = vpop.f32.mrb[0].mxu0
      %v1183 = vadd.f32 %v971, %v1182
      %v1184 = vpop.f32.mrb[0].mxu0
      %1185 = vmatprep.mubr.bf16.mxu0 0
      %1186 = vmatmul.mubr.bf16.gmra.mrb[0].mxu0 %v1078
      %v1187 = vpop.f32.mrb[0].mxu0
      %v1188 = vadd.f32 %v976, %v1187
      %v1189 = vpop.f32.mrb[0].mxu0
      %v1190 = vpop.f32.mrb[0].mxu0
      %v1191 = vadd.f32 %v979, %v1190
      %v1192 = vpop.f32.mrb[0].mxu0
      %1193 = vmatprep.mubr.bf16.mxu0 0
      %1194 = vmatmul.mubr.bf16.gmra.mrb[0].mxu0 %v1081
      %v1195 = vpop.f32.mrb[0].mxu0
      %v1196 = vadd.f32 %v984, %v1195
      %v1197 = vpop.f32.mrb[0].mxu0
      %v1198 = vpop.f32.mrb[0].mxu0
      %v1199 = vadd.f32 %v987, %v1198
      %v1200 = vpop.f32.mrb[0].mxu0
      %1201 = vmatprep.mubr.bf16.mxu0 0
      %1202 = vmatmul.mubr.bf16.gmra.mrb[0].mxu0 %v1084
      %v1203 = vpop.f32.mrb[0].mxu0
      %v1204 = vadd.f32 %v992, %v1203
      %v1205 = vpop.f32.mrb[0].mxu0
      %v1206 = vpop.f32.mrb[0].mxu0
      %v1207 = vadd.f32 %v995, %v1206
      %v1208 = vpop.f32.mrb[0].mxu0
      %1209 = vmatprep.mubr.bf16.mxu0 0
      %1210 = vmatmul.mubr.bf16.gmra.mrb[0].mxu0 %v1087
      %v1211 = vpop.f32.mrb[0].mxu0
      %v1212 = vadd.f32 %v1000, %v1211
      %v1213 = vpop.f32.mrb[0].mxu0
      %v1214 = vpop.f32.mrb[0].mxu0
      %v1215 = vadd.f32 %v1003, %v1214
      %v1216 = vpop.f32.mrb[0].mxu0
      %1217 = vmatprep.mubr.bf16.mxu0 0
      %1218 = vmatmul.mubr.bf16.gmra.mrb[0].mxu0 %v1090
      %v1219 = vpop.f32.mrb[0].mxu0
      %v1220 = vadd.f32 %v1008, %v1219
      %v1221 = vpop.f32.mrb[0].mxu0
      %v1222 = vpop.f32.mrb[0].mxu0
      %v1223 = vadd.f32 %v1011, %v1222
      %v1224 = vpop.f32.mrb[0].mxu0
      %1225 = vmatprep.mubr.bf16.mxu0 0
      %1226 = vmatmul.mubr.bf16.gmra.mrb[0].mxu0 %v1093
      %v1227 = vpop.f32.mrb[0].mxu0
      %v1228 = vadd.f32 %v1016, %v1227
      %v1229 = vpop.f32.mrb[0].mxu0
      %v1230 = vpop.f32.mrb[0].mxu0
      %v1231 = vadd.f32 %v1019, %v1230
      %v1232 = vpop.f32.mrb[0].mxu0
      %1233 = vmatprep.mubr.bf16.mxu0 0
      %1234 = vmatmul.mubr.bf16.gmra.mrb[0].mxu0 %v1096
      %v1235 = vpop.f32.mrb[0].mxu0
      %v1236 = vadd.f32 %v1024, %v1235
      %v1237 = vpop.f32.mrb[0].mxu0
      %v1238 = vpop.f32.mrb[0].mxu0
      %v1239 = vadd.f32 %v1027, %v1238
      %v1240 = vpop.f32.mrb[0].mxu0
      %1241 = vmatprep.mubr.bf16.mxu0 0
      %1242 = vmatmul.mubr.bf16.gmra.mrb[0].mxu0 %v1099
      %v1243 = vpop.f32.mrb[0].mxu0
      %v1244 = vadd.f32 %v1032, %v1243
      %v1245 = vpop.f32.mrb[0].mxu0
      %v1246 = vpop.f32.mrb[0].mxu0
      %v1247 = vadd.f32 %v1035, %v1246
      %v1248 = vpop.f32.mrb[0].mxu0
      %1249 = vmatprep.mubr.bf16.mxu0 0
      %1250 = vmatmul.mubr.bf16.gmra.mrb[0].mxu0 %v1102
      %v1251 = vpop.f32.mrb[0].mxu0
      %v1252 = vadd.f32 %v1040, %v1251
      %v1253 = vpop.f32.mrb[0].mxu0
      %v1254 = vpop.f32.mrb[0].mxu0
      %v1255 = vadd.f32 %v1043, %v1254
      %v1256 = vpop.f32.mrb[0].mxu0
      %1257 = vmatprep.mubr.bf16.mxu0 0
      %1258 = vmatmul.mubr.bf16.gmra.mrb[0].mxu0 %v1105
      %v1259 = vpop.f32.mrb[0].mxu0
      %v1260 = vadd.f32 %v1048, %v1259
      %v1261 = vpop.f32.mrb[0].mxu0
      %v1262 = vpop.f32.mrb[0].mxu0
      %v1263 = vadd.f32 %v1051, %v1262
      %v1264 = vpop.f32.mrb[0].mxu0
      %1265 = vmatprep.mubr.bf16.mxu0 0
      %1266 = vmatmul.mubr.bf16.gmra.mrb[0].mxu0 %v1108
      %v1267 = vpop.f32.mrb[0].mxu0
      %v1268 = vadd.f32 %v1056, %v1267
      %v1269 = vpop.f32.mrb[0].mxu0
      %v1270 = vpop.f32.mrb[0].mxu0
      %v1271 = vadd.f32 %v1059, %v1270
      %v1272 = vpop.f32.mrb[0].mxu0
      %1273 = vdwg.mxu0
      %v1274 = vld [vmem:[#allocation2 + $0x8] sm:$0xff]
      %v1275 = vld [vmem:[#allocation2 + $0x10] sm:$0x1]
      %v1276 = vld [vmem:[#allocation2 + $0x20] sm:$0xff]
      %v1277 = vld [vmem:[#allocation2 + $0x28] sm:$0x1]
      %v1278 = vld [vmem:[#allocation2 + $0x38] sm:$0xff]
      %v1279 = vld [vmem:[#allocation2 + $0x40] sm:$0x1]
      %v1280 = vld [vmem:[#allocation2 + $0x50] sm:$0xff]
      %v1281 = vld [vmem:[#allocation2 + $0x58] sm:$0x1]
      %v1282 = vld [vmem:[#allocation2 + $0x68] sm:$0xff]
      %v1283 = vld [vmem:[#allocation2 + $0x70] sm:$0x1]
      %v1284 = vld [vmem:[#allocation2 + $0x80] sm:$0xff]
      %v1285 = vld [vmem:[#allocation2 + $0x88] sm:$0x1]
      %v1286 = vld [vmem:[#allocation2 + $0x98] sm:$0xff]
      %v1287 = vld [vmem:[#allocation2 + $0xa0] sm:$0x1]
      %v1288 = vld [vmem:[#allocation2 + $0xb0] sm:$0xff]
      %v1289 = vld [vmem:[#allocation2 + $0xb8] sm:$0x1]
      %v1290 = vld [vmem:[#allocation2 + $0xc8] sm:$0xff]
      %v1291 = vld [vmem:[#allocation2 + $0xd0] sm:$0x1]
      %v1292 = vld [vmem:[#allocation2 + $0xe0] sm:$0xff]
      %v1293 = vld [vmem:[#allocation2 + $0xe8] sm:$0x1]
      %v1294 = vld [vmem:[#allocation2 + $0xf8] sm:$0xff]
      %v1295 = vld [vmem:[#allocation2 + $0x100] sm:$0x1]
      %v1296 = vld [vmem:[#allocation2 + $0x110] sm:$0xff]
      %v1297 = vld [vmem:[#allocation2 + $0x118] sm:$0x1]
      %v1298 = vld [vmem:[#allocation2 + $0x128] sm:$0xff]
      %v1299 = vld [vmem:[#allocation2 + $0x130] sm:$0x1]
      %v1300 = vld [vmem:[#allocation2 + $0x140] sm:$0xff]
      %v1301 = vld [vmem:[#allocation2 + $0x148] sm:$0x1]
      %v1302 = vld [vmem:[#allocation2 + $0x158] sm:$0xff]
      %v1303 = vld [vmem:[#allocation2 + $0x160] sm:$0x1]
      %v1304 = vld [vmem:[#allocation2 + $0x170] sm:$0xff]
      %v1305 = vld [vmem:[#allocation2 + $0x178] sm:$0x1]
      %vm1306 = vsmask.f32 7424
      %v1308 = vshrl.u32 %v1274, 16
      %v1310 = vshll.u32 %v1274, 16
      %v1312 = vrot.slane %v1310, 1
      %v1313 = vor.u32 %v1308, %v1312
      %v1315 = vshll.u32 %v1275, 16
      %v1317 = vrot.slane %v1315, 1
      %v1318 = vsel %vm1306, %v1313, %v1317
      %v1320 = vshrl.u32 %v1276, 16
      %v1322 = vshll.u32 %v1276, 16
      %v1324 = vrot.slane %v1322, 1
      %v1325 = vor.u32 %v1320, %v1324
      %v1327 = vshll.u32 %v1277, 16
      %v1329 = vrot.slane %v1327, 1
      %v1330 = vsel %vm1306, %v1325, %v1329
      %v1332 = vshrl.u32 %v1278, 16
      %v1334 = vshll.u32 %v1278, 16
      %v1336 = vrot.slane %v1334, 1
      %v1337 = vor.u32 %v1332, %v1336
      %v1339 = vshll.u32 %v1279, 16
      %v1341 = vrot.slane %v1339, 1
      %v1342 = vsel %vm1306, %v1337, %v1341
      %v1344 = vshrl.u32 %v1280, 16
      %v1346 = vshll.u32 %v1280, 16
      %v1348 = vrot.slane %v1346, 1
      %v1349 = vor.u32 %v1344, %v1348
      %v1351 = vshll.u32 %v1281, 16
      %v1353 = vrot.slane %v1351, 1
      %v1354 = vsel %vm1306, %v1349, %v1353
      %v1356 = vshrl.u32 %v1282, 16
      %v1358 = vshll.u32 %v1282, 16
      %v1360 = vrot.slane %v1358, 1
      %v1361 = vor.u32 %v1356, %v1360
      %v1363 = vshll.u32 %v1283, 16
      %v1365 = vrot.slane %v1363, 1
      %v1366 = vsel %vm1306, %v1361, %v1365
      %v1368 = vshrl.u32 %v1284, 16
      %v1370 = vshll.u32 %v1284, 16
      %v1372 = vrot.slane %v1370, 1
      %v1373 = vor.u32 %v1368, %v1372
      %v1375 = vshll.u32 %v1285, 16
      %v1377 = vrot.slane %v1375, 1
      %v1378 = vsel %vm1306, %v1373, %v1377
      %v1380 = vshrl.u32 %v1286, 16
      %v1382 = vshll.u32 %v1286, 16
      %v1384 = vrot.slane %v1382, 1
      %v1385 = vor.u32 %v1380, %v1384
      %v1387 = vshll.u32 %v1287, 16
      %v1389 = vrot.slane %v1387, 1
      %v1390 = vsel %vm1306, %v1385, %v1389
      %v1392 = vshrl.u32 %v1288, 16
      %v1394 = vshll.u32 %v1288, 16
      %v1396 = vrot.slane %v1394, 1
      %v1397 = vor.u32 %v1392, %v1396
      %v1399 = vshll.u32 %v1289, 16
      %v1401 = vrot.slane %v1399, 1
      %v1402 = vsel %vm1306, %v1397, %v1401
      %v1404 = vshrl.u32 %v1290, 16
      %v1406 = vshll.u32 %v1290, 16
      %v1408 = vrot.slane %v1406, 1
      %v1409 = vor.u32 %v1404, %v1408
      %v1411 = vshll.u32 %v1291, 16
      %v1413 = vrot.slane %v1411, 1
      %v1414 = vsel %vm1306, %v1409, %v1413
      %v1416 = vshrl.u32 %v1292, 16
      %v1418 = vshll.u32 %v1292, 16
      %v1420 = vrot.slane %v1418, 1
      %v1421 = vor.u32 %v1416, %v1420
      %v1423 = vshll.u32 %v1293, 16
      %v1425 = vrot.slane %v1423, 1
      %v1426 = vsel %vm1306, %v1421, %v1425
      %v1428 = vshrl.u32 %v1294, 16
      %v1430 = vshll.u32 %v1294, 16
      %v1432 = vrot.slane %v1430, 1
      %v1433 = vor.u32 %v1428, %v1432
      %v1435 = vshll.u32 %v1295, 16
      %v1437 = vrot.slane %v1435, 1
      %v1438 = vsel %vm1306, %v1433, %v1437
      %v1440 = vshrl.u32 %v1296, 16
      %v1442 = vshll.u32 %v1296, 16
      %v1444 = vrot.slane %v1442, 1
      %v1445 = vor.u32 %v1440, %v1444
      %v1447 = vshll.u32 %v1297, 16
      %v1449 = vrot.slane %v1447, 1
      %v1450 = vsel %vm1306, %v1445, %v1449
      %v1452 = vshrl.u32 %v1298, 16
      %v1454 = vshll.u32 %v1298, 16
      %v1456 = vrot.slane %v1454, 1
      %v1457 = vor.u32 %v1452, %v1456
      %v1459 = vshll.u32 %v1299, 16
      %v1461 = vrot.slane %v1459, 1
      %v1462 = vsel %vm1306, %v1457, %v1461
      %v1464 = vshrl.u32 %v1300, 16
      %v1466 = vshll.u32 %v1300, 16
      %v1468 = vrot.slane %v1466, 1
      %v1469 = vor.u32 %v1464, %v1468
      %v1471 = vshll.u32 %v1301, 16
      %v1473 = vrot.slane %v1471, 1
      %v1474 = vsel %vm1306, %v1469, %v1473
      %v1476 = vshrl.u32 %v1302, 16
      %v1478 = vshll.u32 %v1302, 16
      %v1480 = vrot.slane %v1478, 1
      %v1481 = vor.u32 %v1476, %v1480
      %v1483 = vshll.u32 %v1303, 16
      %v1485 = vrot.slane %v1483, 1
      %v1486 = vsel %vm1306, %v1481, %v1485
      %v1488 = vshrl.u32 %v1304, 16
      %v1490 = vshll.u32 %v1304, 16
      %v1492 = vrot.slane %v1490, 1
      %v1493 = vor.u32 %v1488, %v1492
      %v1495 = vshll.u32 %v1305, 16
      %v1497 = vrot.slane %v1495, 1
      %v1498 = vsel %vm1306, %v1493, %v1497
      %s1499 = scalar_lea.vmem %s1, 4
      %v1500 = vld [vmem:[%s1499] sm:$0x3]
      %v1502 = vsel %vm361, %v1318, 0
      %v1505 = vsel %vm361, %v1330, 0
      %v1508 = vsel %vm361, %v1342, 0
      %v1511 = vsel %vm361, %v1354, 0
      %v1514 = vsel %vm361, %v1366, 0
      %v1517 = vsel %vm361, %v1378, 0
      %v1520 = vsel %vm361, %v1390, 0
      %v1523 = vsel %vm361, %v1402, 0
      %v1526 = vsel %vm361, %v1414, 0
      %v1529 = vsel %vm361, %v1426, 0
      %v1532 = vsel %vm361, %v1438, 0
      %v1535 = vsel %vm361, %v1450, 0
      %v1538 = vsel %vm361, %v1462, 0
      %v1541 = vsel %vm361, %v1474, 0
      %v1544 = vsel %vm361, %v1486, 0
      %v1547 = vsel %vm361, %v1498, 0
      %v1550 = vsel %vm897, %v1500, 0
      %1552 = vmatprep.subr.bf16.mxu0 0
      %1553 = vmatpush1.bf16.msra.mxu0 %v1550
      %1554 = vmatprep.subr.bf16.mxu0 0
      %1555 = vmatpush1.bf16.msra.mxu0 0
      %1556 = vmatprep.subr.bf16.mxu0 0
      %1557 = vmatpush1.bf16.msra.mxu0 0
      %1558 = vmatprep.subr.bf16.mxu0 0
      %1559 = vmatpush1.bf16.msra.mxu0 0
      %1560 = vmatprep.subr.bf16.mxu0 0
      %1561 = vmatpush1.bf16.msra.mxu0 0
      %1562 = vmatprep.subr.bf16.mxu0 0
      %1563 = vmatpush1.bf16.msra.mxu0 0
      %1564 = vmatprep.subr.bf16.mxu0 0
      %1565 = vmatpush1.bf16.msra.mxu0 0
      %1566 = vmatprep.subr.bf16.mxu0 0
      %1567 = vmatpush1.bf16.msra.mxu0 0
      %1568 = vmatprep.subr.bf16.mxu0 0
      %1569 = vmatpush1.bf16.msra.mxu0 0
      %1570 = vmatprep.subr.bf16.mxu0 0
      %1571 = vmatpush1.bf16.msra.mxu0 0
      %1572 = vmatprep.subr.bf16.mxu0 0
      %1573 = vmatpush1.bf16.msra.mxu0 0
      %1574 = vmatprep.subr.bf16.mxu0 0
      %1575 = vmatpush1.bf16.msra.mxu0 0
      %1576 = vmatprep.subr.bf16.mxu0 0
      %1577 = vmatpush1.bf16.msra.mxu0 0
      %1578 = vmatprep.subr.bf16.mxu0 0
      %1579 = vmatpush1.bf16.msra.mxu0 0
      %1580 = vmatprep.subr.bf16.mxu0 0
      %1581 = vmatpush1.bf16.msra.mxu0 0
      %1582 = vmatprep.subr.bf16.mxu0 0
      %1583 = vmatpush1.bf16.msra.mxu0 0
      %1584 = vmatprep.mubr.bf16.mxu0 0
      %1585 = vmatmul.mubr.bf16.gmra.mrb[0].mxu0 %v1502
      %v1586 = vpop.f32.mrb[0].mxu0
      %v1587 = vadd.f32 0.0, %v1586
      %v1588 = vpop.f32.mrb[0].mxu0
      %v1589 = vpop.f32.mrb[0].mxu0
      %v1590 = vadd.f32 0.0, %v1589
      %v1591 = vpop.f32.mrb[0].mxu0
      %1592 = vmatprep.mubr.bf16.mxu0 0
      %1593 = vmatmul.mubr.bf16.gmra.mrb[0].mxu0 %v1505
      %v1594 = vpop.f32.mrb[0].mxu0
      %v1595 = vadd.f32 0.0, %v1594
      %v1596 = vpop.f32.mrb[0].mxu0
      %v1597 = vpop.f32.mrb[0].mxu0
      %v1598 = vadd.f32 0.0, %v1597
      %v1599 = vpop.f32.mrb[0].mxu0
      %1600 = vmatprep.mubr.bf16.mxu0 0
      %1601 = vmatmul.mubr.bf16.gmra.mrb[0].mxu0 %v1508
      %v1602 = vpop.f32.mrb[0].mxu0
      %v1603 = vadd.f32 0.0, %v1602
      %v1604 = vpop.f32.mrb[0].mxu0
      %v1605 = vpop.f32.mrb[0].mxu0
      %v1606 = vadd.f32 0.0, %v1605
      %v1607 = vpop.f32.mrb[0].mxu0
      %1608 = vmatprep.mubr.bf16.mxu0 0
      %1609 = vmatmul.mubr.bf16.gmra.mrb[0].mxu0 %v1511
      %v1610 = vpop.f32.mrb[0].mxu0
      %v1611 = vadd.f32 0.0, %v1610
      %v1612 = vpop.f32.mrb[0].mxu0
      %v1613 = vpop.f32.mrb[0].mxu0
      %v1614 = vadd.f32 0.0, %v1613
      %v1615 = vpop.f32.mrb[0].mxu0
      %1616 = vmatprep.mubr.bf16.mxu0 0
      %1617 = vmatmul.mubr.bf16.gmra.mrb[0].mxu0 %v1514
      %v1618 = vpop.f32.mrb[0].mxu0
      %v1619 = vadd.f32 0.0, %v1618
      %v1620 = vpop.f32.mrb[0].mxu0
      %v1621 = vpop.f32.mrb[0].mxu0
      %v1622 = vadd.f32 0.0, %v1621
      %v1623 = vpop.f32.mrb[0].mxu0
      %1624 = vmatprep.mubr.bf16.mxu0 0
      %1625 = vmatmul.mubr.bf16.gmra.mrb[0].mxu0 %v1517
      %v1626 = vpop.f32.mrb[0].mxu0
      %v1627 = vadd.f32 0.0, %v1626
      %v1628 = vpop.f32.mrb[0].mxu0
      %v1629 = vpop.f32.mrb[0].mxu0
      %v1630 = vadd.f32 0.0, %v1629
      %v1631 = vpop.f32.mrb[0].mxu0
      %1632 = vmatprep.mubr.bf16.mxu0 0
      %1633 = vmatmul.mubr.bf16.gmra.mrb[0].mxu0 %v1520
      %v1634 = vpop.f32.mrb[0].mxu0
      %v1635 = vadd.f32 0.0, %v1634
      %v1636 = vpop.f32.mrb[0].mxu0
      %v1637 = vpop.f32.mrb[0].mxu0
      %v1638 = vadd.f32 0.0, %v1637
      %v1639 = vpop.f32.mrb[0].mxu0
      %1640 = vmatprep.mubr.bf16.mxu0 0
      %1641 = vmatmul.mubr.bf16.gmra.mrb[0].mxu0 %v1523
      %v1642 = vpop.f32.mrb[0].mxu0
      %v1643 = vadd.f32 0.0, %v1642
      %v1644 = vpop.f32.mrb[0].mxu0
      %v1645 = vpop.f32.mrb[0].mxu0
      %v1646 = vadd.f32 0.0, %v1645
      %v1647 = vpop.f32.mrb[0].mxu0
      %1648 = vmatprep.mubr.bf16.mxu0 0
      %1649 = vmatmul.mubr.bf16.gmra.mrb[0].mxu0 %v1526
      %v1650 = vpop.f32.mrb[0].mxu0
      %v1651 = vadd.f32 0.0, %v1650
      %v1652 = vpop.f32.mrb[0].mxu0
      %v1653 = vpop.f32.mrb[0].mxu0
      %v1654 = vadd.f32 0.0, %v1653
      %v1655 = vpop.f32.mrb[0].mxu0
      %1656 = vmatprep.mubr.bf16.mxu0 0
      %1657 = vmatmul.mubr.bf16.gmra.mrb[0].mxu0 %v1529
      %v1658 = vpop.f32.mrb[0].mxu0
      %v1659 = vadd.f32 0.0, %v1658
      %v1660 = vpop.f32.mrb[0].mxu0
      %v1661 = vpop.f32.mrb[0].mxu0
      %v1662 = vadd.f32 0.0, %v1661
      %v1663 = vpop.f32.mrb[0].mxu0
      %1664 = vmatprep.mubr.bf16.mxu0 0
      %1665 = vmatmul.mubr.bf16.gmra.mrb[0].mxu0 %v1532
      %v1666 = vpop.f32.mrb[0].mxu0
      %v1667 = vadd.f32 0.0, %v1666
      %v1668 = vpop.f32.mrb[0].mxu0
      %v1669 = vpop.f32.mrb[0].mxu0
      %v1670 = vadd.f32 0.0, %v1669
      %v1671 = vpop.f32.mrb[0].mxu0
      %1672 = vmatprep.mubr.bf16.mxu0 0
      %1673 = vmatmul.mubr.bf16.gmra.mrb[0].mxu0 %v1535
      %v1674 = vpop.f32.mrb[0].mxu0
      %v1675 = vadd.f32 0.0, %v1674
      %v1676 = vpop.f32.mrb[0].mxu0
      %v1677 = vpop.f32.mrb[0].mxu0
      %v1678 = vadd.f32 0.0, %v1677
      %v1679 = vpop.f32.mrb[0].mxu0
      %1680 = vmatprep.mubr.bf16.mxu0 0
      %1681 = vmatmul.mubr.bf16.gmra.mrb[0].mxu0 %v1538
      %v1682 = vpop.f32.mrb[0].mxu0
      %v1683 = vadd.f32 0.0, %v1682
      %v1684 = vpop.f32.mrb[0].mxu0
      %v1685 = vpop.f32.mrb[0].mxu0
      %v1686 = vadd.f32 0.0, %v1685
      %v1687 = vpop.f32.mrb[0].mxu0
      %1688 = vmatprep.mubr.bf16.mxu0 0
      %1689 = vmatmul.mubr.bf16.gmra.mrb[0].mxu0 %v1541
      %v1690 = vpop.f32.mrb[0].mxu0
      %v1691 = vadd.f32 0.0, %v1690
      %v1692 = vpop.f32.mrb[0].mxu0
      %v1693 = vpop.f32.mrb[0].mxu0
      %v1694 = vadd.f32 0.0, %v1693
      %v1695 = vpop.f32.mrb[0].mxu0
      %1696 = vmatprep.mubr.bf16.mxu0 0
      %1697 = vmatmul.mubr.bf16.gmra.mrb[0].mxu0 %v1544
      %v1698 = vpop.f32.mrb[0].mxu0
      %v1699 = vadd.f32 0.0, %v1698
      %v1700 = vpop.f32.mrb[0].mxu0
      %v1701 = vpop.f32.mrb[0].mxu0
      %v1702 = vadd.f32 0.0, %v1701
      %v1703 = vpop.f32.mrb[0].mxu0
      %1704 = vmatprep.mubr.bf16.mxu0 0
      %1705 = vmatmul.mubr.bf16.gmra.mrb[0].mxu0 %v1547
      %v1706 = vpop.f32.mrb[0].mxu0
      %v1707 = vadd.f32 0.0, %v1706
      %v1708 = vpop.f32.mrb[0].mxu0
      %v1709 = vpop.f32.mrb[0].mxu0
      %v1710 = vadd.f32 0.0, %v1709
      %v1711 = vpop.f32.mrb[0].mxu0
      %1712 = vdwg.mxu0
      %v1713 = vadd.f32 %v1148, %v1587
      %v1714 = vadd.f32 %v1151, %v1590
      %v1715 = vadd.f32 %v1156, %v1595
      %v1716 = vadd.f32 %v1159, %v1598
      %v1717 = vadd.f32 %v1164, %v1603
      %v1718 = vadd.f32 %v1167, %v1606
      %v1719 = vadd.f32 %v1172, %v1611
      %v1720 = vadd.f32 %v1175, %v1614
      %v1721 = vadd.f32 %v1180, %v1619
      %v1722 = vadd.f32 %v1183, %v1622
      %v1723 = vadd.f32 %v1188, %v1627
      %v1724 = vadd.f32 %v1191, %v1630
      %v1725 = vadd.f32 %v1196, %v1635
      %v1726 = vadd.f32 %v1199, %v1638
      %v1727 = vadd.f32 %v1204, %v1643
      %v1728 = vadd.f32 %v1207, %v1646
      %v1729 = vadd.f32 %v1212, %v1651
      %v1730 = vadd.f32 %v1215, %v1654
      %v1731 = vadd.f32 %v1220, %v1659
      %v1732 = vadd.f32 %v1223, %v1662
      %v1733 = vadd.f32 %v1228, %v1667
      %v1734 = vadd.f32 %v1231, %v1670
      %v1735 = vadd.f32 %v1236, %v1675
      %v1736 = vadd.f32 %v1239, %v1678
      %v1737 = vadd.f32 %v1244, %v1683
      %v1738 = vadd.f32 %v1247, %v1686
      %v1739 = vadd.f32 %v1252, %v1691
      %v1740 = vadd.f32 %v1255, %v1694
      %v1741 = vadd.f32 %v1260, %v1699
      %v1742 = vadd.f32 %v1263, %v1702
      %v1743 = vadd.f32 %v1268, %v1707
      %v1744 = vadd.f32 %v1271, %v1710
      %v1745 = vld [vmem:[%s620] sm:$0x80]
      %v1746 = vld [vmem:[%s620 + $0x8] sm:$0xff]
      %v1747 = vld [vmem:[%s620 + $0x18] sm:$0x80]
      %v1748 = vld [vmem:[%s620 + $0x20] sm:$0xff]
      %v1749 = vld [vmem:[%s620 + $0x30] sm:$0x80]
      %v1750 = vld [vmem:[%s620 + $0x38] sm:$0xff]
      %v1751 = vld [vmem:[%s620 + $0x48] sm:$0x80]
      %v1752 = vld [vmem:[%s620 + $0x50] sm:$0xff]
      %v1753 = vld [vmem:[%s620 + $0x60] sm:$0x80]
      %v1754 = vld [vmem:[%s620 + $0x68] sm:$0xff]
      %v1755 = vld [vmem:[%s620 + $0x78] sm:$0x80]
      %v1756 = vld [vmem:[%s620 + $0x80] sm:$0xff]
      %v1757 = vld [vmem:[%s620 + $0x90] sm:$0x80]
      %v1758 = vld [vmem:[%s620 + $0x98] sm:$0xff]
      %v1759 = vld [vmem:[%s620 + $0xa8] sm:$0x80]
      %v1760 = vld [vmem:[%s620 + $0xb0] sm:$0xff]
      %v1761 = vld [vmem:[%s620 + $0xc0] sm:$0x80]
      %v1762 = vld [vmem:[%s620 + $0xc8] sm:$0xff]
      %v1763 = vld [vmem:[%s620 + $0xd8] sm:$0x80]
      %v1764 = vld [vmem:[%s620 + $0xe0] sm:$0xff]
      %v1765 = vld [vmem:[%s620 + $0xf0] sm:$0x80]
      %v1766 = vld [vmem:[%s620 + $0xf8] sm:$0xff]
      %v1767 = vld [vmem:[%s620 + $0x108] sm:$0x80]
      %v1768 = vld [vmem:[%s620 + $0x110] sm:$0xff]
      %v1769 = vld [vmem:[%s620 + $0x120] sm:$0x80]
      %v1770 = vld [vmem:[%s620 + $0x128] sm:$0xff]
      %v1771 = vld [vmem:[%s620 + $0x138] sm:$0x80]
      %v1772 = vld [vmem:[%s620 + $0x140] sm:$0xff]
      %v1773 = vld [vmem:[%s620 + $0x150] sm:$0x80]
      %v1774 = vld [vmem:[%s620 + $0x158] sm:$0xff]
      %v1775 = vld [vmem:[%s620 + $0x168] sm:$0x80]
      %v1776 = vld [vmem:[%s620 + $0x170] sm:$0xff]
      %v1778 = vshrl.u32 %v1745, 16
      %v1780 = vrot.slane %v1778, 7
      %v1782 = vshrl.u32 %v1746, 16
      %v1784 = vrot.slane %v1782, 7
      %v1785 = vshll.u32 %v1746, 16
      %v1787 = vor.u32 %v1784, %v1785
      %v1788 = vsel %vm669, %v1780, %v1787
      %v1790 = vshrl.u32 %v1747, 16
      %v1792 = vrot.slane %v1790, 7
      %v1794 = vshrl.u32 %v1748, 16
      %v1796 = vrot.slane %v1794, 7
      %v1797 = vshll.u32 %v1748, 16
      %v1799 = vor.u32 %v1796, %v1797
      %v1800 = vsel %vm669, %v1792, %v1799
      %v1802 = vshrl.u32 %v1749, 16
      %v1804 = vrot.slane %v1802, 7
      %v1806 = vshrl.u32 %v1750, 16
      %v1808 = vrot.slane %v1806, 7
      %v1809 = vshll.u32 %v1750, 16
      %v1811 = vor.u32 %v1808, %v1809
      %v1812 = vsel %vm669, %v1804, %v1811
      %v1814 = vshrl.u32 %v1751, 16
      %v1816 = vrot.slane %v1814, 7
      %v1818 = vshrl.u32 %v1752, 16
      %v1820 = vrot.slane %v1818, 7
      %v1821 = vshll.u32 %v1752, 16
      %v1823 = vor.u32 %v1820, %v1821
      %v1824 = vsel %vm669, %v1816, %v1823
      %v1826 = vshrl.u32 %v1753, 16
      %v1828 = vrot.slane %v1826, 7
      %v1830 = vshrl.u32 %v1754, 16
      %v1832 = vrot.slane %v1830, 7
      %v1833 = vshll.u32 %v1754, 16
      %v1835 = vor.u32 %v1832, %v1833
      %v1836 = vsel %vm669, %v1828, %v1835
      %v1838 = vshrl.u32 %v1755, 16
      %v1840 = vrot.slane %v1838, 7
      %v1842 = vshrl.u32 %v1756, 16
      %v1844 = vrot.slane %v1842, 7
      %v1845 = vshll.u32 %v1756, 16
      %v1847 = vor.u32 %v1844, %v1845
      %v1848 = vsel %vm669, %v1840, %v1847
      %v1850 = vshrl.u32 %v1757, 16
      %v1852 = vrot.slane %v1850, 7
      %v1854 = vshrl.u32 %v1758, 16
      %v1856 = vrot.slane %v1854, 7
      %v1857 = vshll.u32 %v1758, 16
      %v1859 = vor.u32 %v1856, %v1857
      %v1860 = vsel %vm669, %v1852, %v1859
      %v1862 = vshrl.u32 %v1759, 16
      %v1864 = vrot.slane %v1862, 7
      %v1866 = vshrl.u32 %v1760, 16
      %v1868 = vrot.slane %v1866, 7
      %v1869 = vshll.u32 %v1760, 16
      %v1871 = vor.u32 %v1868, %v1869
      %v1872 = vsel %vm669, %v1864, %v1871
      %v1874 = vshrl.u32 %v1761, 16
      %v1876 = vrot.slane %v1874, 7
      %v1878 = vshrl.u32 %v1762, 16
      %v1880 = vrot.slane %v1878, 7
      %v1881 = vshll.u32 %v1762, 16
      %v1883 = vor.u32 %v1880, %v1881
      %v1884 = vsel %vm669, %v1876, %v1883
      %v1886 = vshrl.u32 %v1763, 16
      %v1888 = vrot.slane %v1886, 7
      %v1890 = vshrl.u32 %v1764, 16
      %v1892 = vrot.slane %v1890, 7
      %v1893 = vshll.u32 %v1764, 16
      %v1895 = vor.u32 %v1892, %v1893
      %v1896 = vsel %vm669, %v1888, %v1895
      %v1898 = vshrl.u32 %v1765, 16
      %v1900 = vrot.slane %v1898, 7
      %v1902 = vshrl.u32 %v1766, 16
      %v1904 = vrot.slane %v1902, 7
      %v1905 = vshll.u32 %v1766, 16
      %v1907 = vor.u32 %v1904, %v1905
      %v1908 = vsel %vm669, %v1900, %v1907
      %v1910 = vshrl.u32 %v1767, 16
      %v1912 = vrot.slane %v1910, 7
      %v1914 = vshrl.u32 %v1768, 16
      %v1916 = vrot.slane %v1914, 7
      %v1917 = vshll.u32 %v1768, 16
      %v1919 = vor.u32 %v1916, %v1917
      %v1920 = vsel %vm669, %v1912, %v1919
      %v1922 = vshrl.u32 %v1769, 16
      %v1924 = vrot.slane %v1922, 7
      %v1926 = vshrl.u32 %v1770, 16
      %v1928 = vrot.slane %v1926, 7
      %v1929 = vshll.u32 %v1770, 16
      %v1931 = vor.u32 %v1928, %v1929
      %v1932 = vsel %vm669, %v1924, %v1931
      %v1934 = vshrl.u32 %v1771, 16
      %v1936 = vrot.slane %v1934, 7
      %v1938 = vshrl.u32 %v1772, 16
      %v1940 = vrot.slane %v1938, 7
      %v1941 = vshll.u32 %v1772, 16
      %v1943 = vor.u32 %v1940, %v1941
      %v1944 = vsel %vm669, %v1936, %v1943
      %v1946 = vshrl.u32 %v1773, 16
      %v1948 = vrot.slane %v1946, 7
      %v1950 = vshrl.u32 %v1774, 16
      %v1952 = vrot.slane %v1950, 7
      %v1953 = vshll.u32 %v1774, 16
      %v1955 = vor.u32 %v1952, %v1953
      %v1956 = vsel %vm669, %v1948, %v1955
      %v1958 = vshrl.u32 %v1775, 16
      %v1960 = vrot.slane %v1958, 7
      %v1962 = vshrl.u32 %v1776, 16
      %v1964 = vrot.slane %v1962, 7
      %v1965 = vshll.u32 %v1776, 16
      %v1967 = vor.u32 %v1964, %v1965
      %v1968 = vsel %vm669, %v1960, %v1967
      %s1969 = scalar_lea.vmem %s1, 6
      %v1970 = vld [vmem:[%s1969] sm:$0x3]
      %v1972 = vsel %vm361, %v1788, 0
      %v1975 = vsel %vm361, %v1800, 0
      %v1978 = vsel %vm361, %v1812, 0
      %v1981 = vsel %vm361, %v1824, 0
      %v1984 = vsel %vm361, %v1836, 0
      %v1987 = vsel %vm361, %v1848, 0
      %v1990 = vsel %vm361, %v1860, 0
      %v1993 = vsel %vm361, %v1872, 0
      %v1996 = vsel %vm361, %v1884, 0
      %v1999 = vsel %vm361, %v1896, 0
      %v2002 = vsel %vm361, %v1908, 0
      %v2005 = vsel %vm361, %v1920, 0
      %v2008 = vsel %vm361, %v1932, 0
      %v2011 = vsel %vm361, %v1944, 0
      %v2014 = vsel %vm361, %v1956, 0
      %v2017 = vsel %vm361, %v1968, 0
      %v2020 = vsel %vm897, %v1970, 0
      %2022 = vmatprep.subr.bf16.mxu0 0
      %2023 = vmatpush1.bf16.msra.mxu0 %v2020
      %2024 = vmatprep.subr.bf16.mxu0 0
      %2025 = vmatpush1.bf16.msra.mxu0 0
      %2026 = vmatprep.subr.bf16.mxu0 0
      %2027 = vmatpush1.bf16.msra.mxu0 0
      %2028 = vmatprep.subr.bf16.mxu0 0
      %2029 = vmatpush1.bf16.msra.mxu0 0
      %2030 = vmatprep.subr.bf16.mxu0 0
      %2031 = vmatpush1.bf16.msra.mxu0 0
      %2032 = vmatprep.subr.bf16.mxu0 0
      %2033 = vmatpush1.bf16.msra.mxu0 0
      %2034 = vmatprep.subr.bf16.mxu0 0
      %2035 = vmatpush1.bf16.msra.mxu0 0
      %2036 = vmatprep.subr.bf16.mxu0 0
      %2037 = vmatpush1.bf16.msra.mxu0 0
      %2038 = vmatprep.subr.bf16.mxu0 0
      %2039 = vmatpush1.bf16.msra.mxu0 0
      %2040 = vmatprep.subr.bf16.mxu0 0
      %2041 = vmatpush1.bf16.msra.mxu0 0
      %2042 = vmatprep.subr.bf16.mxu0 0
      %2043 = vmatpush1.bf16.msra.mxu0 0
      %2044 = vmatprep.subr.bf16.mxu0 0
      %2045 = vmatpush1.bf16.msra.mxu0 0
      %2046 = vmatprep.subr.bf16.mxu0 0
      %2047 = vmatpush1.bf16.msra.mxu0 0
      %2048 = vmatprep.subr.bf16.mxu0 0
      %2049 = vmatpush1.bf16.msra.mxu0 0
      %2050 = vmatprep.subr.bf16.mxu0 0
      %2051 = vmatpush1.bf16.msra.mxu0 0
      %2052 = vmatprep.subr.bf16.mxu0 0
      %2053 = vmatpush1.bf16.msra.mxu0 0
      %2054 = vmatprep.mubr.bf16.mxu0 0
      %2055 = vmatmul.mubr.bf16.gmra.mrb[0].mxu0 %v1972
      %v2056 = vpop.f32.mrb[0].mxu0
      %v2057 = vadd.f32 0.0, %v2056
      %v2058 = vpop.f32.mrb[0].mxu0
      %v2059 = vpop.f32.mrb[0].mxu0
      %v2060 = vadd.f32 0.0, %v2059
      %v2061 = vpop.f32.mrb[0].mxu0
      %2062 = vmatprep.mubr.bf16.mxu0 0
      %2063 = vmatmul.mubr.bf16.gmra.mrb[0].mxu0 %v1975
      %v2064 = vpop.f32.mrb[0].mxu0
      %v2065 = vadd.f32 0.0, %v2064
      %v2066 = vpop.f32.mrb[0].mxu0
      %v2067 = vpop.f32.mrb[0].mxu0
      %v2068 = vadd.f32 0.0, %v2067
      %v2069 = vpop.f32.mrb[0].mxu0
      %2070 = vmatprep.mubr.bf16.mxu0 0
      %2071 = vmatmul.mubr.bf16.gmra.mrb[0].mxu0 %v1978
      %v2072 = vpop.f32.mrb[0].mxu0
      %v2073 = vadd.f32 0.0, %v2072
      %v2074 = vpop.f32.mrb[0].mxu0
      %v2075 = vpop.f32.mrb[0].mxu0
      %v2076 = vadd.f32 0.0, %v2075
      %v2077 = vpop.f32.mrb[0].mxu0
      %2078 = vmatprep.mubr.bf16.mxu0 0
      %2079 = vmatmul.mubr.bf16.gmra.mrb[0].mxu0 %v1981
      %v2080 = vpop.f32.mrb[0].mxu0
      %v2081 = vadd.f32 0.0, %v2080
      %v2082 = vpop.f32.mrb[0].mxu0
      %v2083 = vpop.f32.mrb[0].mxu0
      %v2084 = vadd.f32 0.0, %v2083
      %v2085 = vpop.f32.mrb[0].mxu0
      %2086 = vmatprep.mubr.bf16.mxu0 0
      %2087 = vmatmul.mubr.bf16.gmra.mrb[0].mxu0 %v1984
      %v2088 = vpop.f32.mrb[0].mxu0
      %v2089 = vadd.f32 0.0, %v2088
      %v2090 = vpop.f32.mrb[0].mxu0
      %v2091 = vpop.f32.mrb[0].mxu0
      %v2092 = vadd.f32 0.0, %v2091
      %v2093 = vpop.f32.mrb[0].mxu0
      %2094 = vmatprep.mubr.bf16.mxu0 0
      %2095 = vmatmul.mubr.bf16.gmra.mrb[0].mxu0 %v1987
      %v2096 = vpop.f32.mrb[0].mxu0
      %v2097 = vadd.f32 0.0, %v2096
      %v2098 = vpop.f32.mrb[0].mxu0
      %v2099 = vpop.f32.mrb[0].mxu0
      %v2100 = vadd.f32 0.0, %v2099
      %v2101 = vpop.f32.mrb[0].mxu0
      %2102 = vmatprep.mubr.bf16.mxu0 0
      %2103 = vmatmul.mubr.bf16.gmra.mrb[0].mxu0 %v1990
      %v2104 = vpop.f32.mrb[0].mxu0
      %v2105 = vadd.f32 0.0, %v2104
      %v2106 = vpop.f32.mrb[0].mxu0
      %v2107 = vpop.f32.mrb[0].mxu0
      %v2108 = vadd.f32 0.0, %v2107
      %v2109 = vpop.f32.mrb[0].mxu0
      %2110 = vmatprep.mubr.bf16.mxu0 0
      %2111 = vmatmul.mubr.bf16.gmra.mrb[0].mxu0 %v1993
      %v2112 = vpop.f32.mrb[0].mxu0
      %v2113 = vadd.f32 0.0, %v2112
      %v2114 = vpop.f32.mrb[0].mxu0
      %v2115 = vpop.f32.mrb[0].mxu0
      %v2116 = vadd.f32 0.0, %v2115
      %v2117 = vpop.f32.mrb[0].mxu0
      %2118 = vmatprep.mubr.bf16.mxu0 0
      %2119 = vmatmul.mubr.bf16.gmra.mrb[0].mxu0 %v1996
      %v2120 = vpop.f32.mrb[0].mxu0
      %v2121 = vadd.f32 0.0, %v2120
      %v2122 = vpop.f32.mrb[0].mxu0
      %v2123 = vpop.f32.mrb[0].mxu0
      %v2124 = vadd.f32 0.0, %v2123
      %v2125 = vpop.f32.mrb[0].mxu0
      %2126 = vmatprep.mubr.bf16.mxu0 0
      %2127 = vmatmul.mubr.bf16.gmra.mrb[0].mxu0 %v1999
      %v2128 = vpop.f32.mrb[0].mxu0
      %v2129 = vadd.f32 0.0, %v2128
      %v2130 = vpop.f32.mrb[0].mxu0
      %v2131 = vpop.f32.mrb[0].mxu0
      %v2132 = vadd.f32 0.0, %v2131
      %v2133 = vpop.f32.mrb[0].mxu0
      %2134 = vmatprep.mubr.bf16.mxu0 0
      %2135 = vmatmul.mubr.bf16.gmra.mrb[0].mxu0 %v2002
      %v2136 = vpop.f32.mrb[0].mxu0
      %v2137 = vadd.f32 0.0, %v2136
      %v2138 = vpop.f32.mrb[0].mxu0
      %v2139 = vpop.f32.mrb[0].mxu0
      %v2140 = vadd.f32 0.0, %v2139
      %v2141 = vpop.f32.mrb[0].mxu0
      %2142 = vmatprep.mubr.bf16.mxu0 0
      %2143 = vmatmul.mubr.bf16.gmra.mrb[0].mxu0 %v2005
      %v2144 = vpop.f32.mrb[0].mxu0
      %v2145 = vadd.f32 0.0, %v2144
      %v2146 = vpop.f32.mrb[0].mxu0
      %v2147 = vpop.f32.mrb[0].mxu0
      %v2148 = vadd.f32 0.0, %v2147
      %v2149 = vpop.f32.mrb[0].mxu0
      %2150 = vmatprep.mubr.bf16.mxu0 0
      %2151 = vmatmul.mubr.bf16.gmra.mrb[0].mxu0 %v2008
      %v2152 = vpop.f32.mrb[0].mxu0
      %v2153 = vadd.f32 0.0, %v2152
      %v2154 = vpop.f32.mrb[0].mxu0
      %v2155 = vpop.f32.mrb[0].mxu0
      %v2156 = vadd.f32 0.0, %v2155
      %v2157 = vpop.f32.mrb[0].mxu0
      %2158 = vmatprep.mubr.bf16.mxu0 0
      %2159 = vmatmul.mubr.bf16.gmra.mrb[0].mxu0 %v2011
      %v2160 = vpop.f32.mrb[0].mxu0
      %v2161 = vadd.f32 0.0, %v2160
      %v2162 = vpop.f32.mrb[0].mxu0
      %v2163 = vpop.f32.mrb[0].mxu0
      %v2164 = vadd.f32 0.0, %v2163
      %v2165 = vpop.f32.mrb[0].mxu0
      %2166 = vmatprep.mubr.bf16.mxu0 0
      %2167 = vmatmul.mubr.bf16.gmra.mrb[0].mxu0 %v2014
      %v2168 = vpop.f32.mrb[0].mxu0
      %v2169 = vadd.f32 0.0, %v2168
      %v2170 = vpop.f32.mrb[0].mxu0
      %v2171 = vpop.f32.mrb[0].mxu0
      %v2172 = vadd.f32 0.0, %v2171
      %v2173 = vpop.f32.mrb[0].mxu0
      %2174 = vmatprep.mubr.bf16.mxu0 0
      %2175 = vmatmul.mubr.bf16.gmra.mrb[0].mxu0 %v2017
      %v2176 = vpop.f32.mrb[0].mxu0
      %v2177 = vadd.f32 0.0, %v2176
      %v2178 = vpop.f32.mrb[0].mxu0
      %v2179 = vpop.f32.mrb[0].mxu0
      %v2180 = vadd.f32 0.0, %v2179
      %v2181 = vpop.f32.mrb[0].mxu0
      %2182 = vdwg.mxu0
      %v2183 = vadd.f32 %v1713, %v2057
      %v2184 = vadd.f32 %v1714, %v2060
      %v2185 = vadd.f32 %v1715, %v2065
      %v2186 = vadd.f32 %v1716, %v2068
      %v2187 = vadd.f32 %v1717, %v2073
      %v2188 = vadd.f32 %v1718, %v2076
      %v2189 = vadd.f32 %v1719, %v2081
      %v2190 = vadd.f32 %v1720, %v2084
      %v2191 = vadd.f32 %v1721, %v2089
      %v2192 = vadd.f32 %v1722, %v2092
      %v2193 = vadd.f32 %v1723, %v2097
      %v2194 = vadd.f32 %v1724, %v2100
      %v2195 = vadd.f32 %v1725, %v2105
      %v2196 = vadd.f32 %v1726, %v2108
      %v2197 = vadd.f32 %v1727, %v2113
      %v2198 = vadd.f32 %v1728, %v2116
      %v2199 = vadd.f32 %v1729, %v2121
      %v2200 = vadd.f32 %v1730, %v2124
      %v2201 = vadd.f32 %v1731, %v2129
      %v2202 = vadd.f32 %v1732, %v2132
      %v2203 = vadd.f32 %v1733, %v2137
      %v2204 = vadd.f32 %v1734, %v2140
      %v2205 = vadd.f32 %v1735, %v2145
      %v2206 = vadd.f32 %v1736, %v2148
      %v2207 = vadd.f32 %v1737, %v2153
      %v2208 = vadd.f32 %v1738, %v2156
      %v2209 = vadd.f32 %v1739, %v2161
      %v2210 = vadd.f32 %v1740, %v2164
      %v2211 = vadd.f32 %v1741, %v2169
      %v2212 = vadd.f32 %v1742, %v2172
      %v2213 = vadd.f32 %v1743, %v2177
      %v2214 = vadd.f32 %v1744, %v2180
      %s2215 = scalar_lea.vmem %s1, 8
      %v2216 = vld [vmem:[%s2215] sm:$0x3]
      %v2217 = vsel %vm361, %v1746, 0
      %v2219 = vsel %vm361, %v1748, 0
      %v2221 = vsel %vm361, %v1750, 0
      %v2223 = vsel %vm361, %v1752, 0
      %v2225 = vsel %vm361, %v1754, 0
      %v2227 = vsel %vm361, %v1756, 0
      %v2229 = vsel %vm361, %v1758, 0
      %v2231 = vsel %vm361, %v1760, 0
      %v2233 = vsel %vm361, %v1762, 0
      %v2235 = vsel %vm361, %v1764, 0
      %v2237 = vsel %vm361, %v1766, 0
      %v2239 = vsel %vm361, %v1768, 0
      %v2241 = vsel %vm361, %v1770, 0
      %v2243 = vsel %vm361, %v1772, 0
      %v2245 = vsel %vm361, %v1774, 0
      %v2247 = vsel %vm361, %v1776, 0
      %v2250 = vsel %vm897, %v2216, 0
      %2252 = vmatprep.subr.bf16.mxu0 0
      %2253 = vmatpush1.bf16.msra.mxu0 %v2250
      %2254 = vmatprep.subr.bf16.mxu0 0
      %2255 = vmatpush1.bf16.msra.mxu0 0
      %2256 = vmatprep.subr.bf16.mxu0 0
      %2257 = vmatpush1.bf16.msra.mxu0 0
      %2258 = vmatprep.subr.bf16.mxu0 0
      %2259 = vmatpush1.bf16.msra.mxu0 0
      %2260 = vmatprep.subr.bf16.mxu0 0
      %2261 = vmatpush1.bf16.msra.mxu0 0
      %2262 = vmatprep.subr.bf16.mxu0 0
      %2263 = vmatpush1.bf16.msra.mxu0 0
      %2264 = vmatprep.subr.bf16.mxu0 0
      %2265 = vmatpush1.bf16.msra.mxu0 0
      %2266 = vmatprep.subr.bf16.mxu0 0
      %2267 = vmatpush1.bf16.msra.mxu0 0
      %2268 = vmatprep.subr.bf16.mxu0 0
      %2269 = vmatpush1.bf16.msra.mxu0 0
      %2270 = vmatprep.subr.bf16.mxu0 0
      %2271 = vmatpush1.bf16.msra.mxu0 0
      %2272 = vmatprep.subr.bf16.mxu0 0
      %2273 = vmatpush1.bf16.msra.mxu0 0
      %2274 = vmatprep.subr.bf16.mxu0 0
      %2275 = vmatpush1.bf16.msra.mxu0 0
      %2276 = vmatprep.subr.bf16.mxu0 0
      %2277 = vmatpush1.bf16.msra.mxu0 0
      %2278 = vmatprep.subr.bf16.mxu0 0
      %2279 = vmatpush1.bf16.msra.mxu0 0
      %2280 = vmatprep.subr.bf16.mxu0 0
      %2281 = vmatpush1.bf16.msra.mxu0 0
      %2282 = vmatprep.subr.bf16.mxu0 0
      %2283 = vmatpush1.bf16.msra.mxu0 0
      %2284 = vmatprep.mubr.bf16.mxu0 0
      %2285 = vmatmul.mubr.bf16.gmra.mrb[0].mxu0 %v2217
      %v2286 = vpop.f32.mrb[0].mxu0
      %v2287 = vadd.f32 0.0, %v2286
      %v2288 = vpop.f32.mrb[0].mxu0
      %v2289 = vpop.f32.mrb[0].mxu0
      %v2290 = vadd.f32 0.0, %v2289
      %v2291 = vpop.f32.mrb[0].mxu0
      %2292 = vmatprep.mubr.bf16.mxu0 0
      %2293 = vmatmul.mubr.bf16.gmra.mrb[0].mxu0 %v2219
      %v2294 = vpop.f32.mrb[0].mxu0
      %v2295 = vadd.f32 0.0, %v2294
      %v2296 = vpop.f32.mrb[0].mxu0
      %v2297 = vpop.f32.mrb[0].mxu0
      %v2298 = vadd.f32 0.0, %v2297
      %v2299 = vpop.f32.mrb[0].mxu0
      %2300 = vmatprep.mubr.bf16.mxu0 0
      %2301 = vmatmul.mubr.bf16.gmra.mrb[0].mxu0 %v2221
      %v2302 = vpop.f32.mrb[0].mxu0
      %v2303 = vadd.f32 0.0, %v2302
      %v2304 = vpop.f32.mrb[0].mxu0
      %v2305 = vpop.f32.mrb[0].mxu0
      %v2306 = vadd.f32 0.0, %v2305
      %v2307 = vpop.f32.mrb[0].mxu0
      %2308 = vmatprep.mubr.bf16.mxu0 0
      %2309 = vmatmul.mubr.bf16.gmra.mrb[0].mxu0 %v2223
      %v2310 = vpop.f32.mrb[0].mxu0
      %v2311 = vadd.f32 0.0, %v2310
      %v2312 = vpop.f32.mrb[0].mxu0
      %v2313 = vpop.f32.mrb[0].mxu0
      %v2314 = vadd.f32 0.0, %v2313
      %v2315 = vpop.f32.mrb[0].mxu0
      %2316 = vmatprep.mubr.bf16.mxu0 0
      %2317 = vmatmul.mubr.bf16.gmra.mrb[0].mxu0 %v2225
      %v2318 = vpop.f32.mrb[0].mxu0
      %v2319 = vadd.f32 0.0, %v2318
      %v2320 = vpop.f32.mrb[0].mxu0
      %v2321 = vpop.f32.mrb[0].mxu0
      %v2322 = vadd.f32 0.0, %v2321
      %v2323 = vpop.f32.mrb[0].mxu0
      %2324 = vmatprep.mubr.bf16.mxu0 0
      %2325 = vmatmul.mubr.bf16.gmra.mrb[0].mxu0 %v2227
      %v2326 = vpop.f32.mrb[0].mxu0
      %v2327 = vadd.f32 0.0, %v2326
      %v2328 = vpop.f32.mrb[0].mxu0
      %v2329 = vpop.f32.mrb[0].mxu0
      %v2330 = vadd.f32 0.0, %v2329
      %v2331 = vpop.f32.mrb[0].mxu0
      %2332 = vmatprep.mubr.bf16.mxu0 0
      %2333 = vmatmul.mubr.bf16.gmra.mrb[0].mxu0 %v2229
      %v2334 = vpop.f32.mrb[0].mxu0
      %v2335 = vadd.f32 0.0, %v2334
      %v2336 = vpop.f32.mrb[0].mxu0
      %v2337 = vpop.f32.mrb[0].mxu0
      %v2338 = vadd.f32 0.0, %v2337
      %v2339 = vpop.f32.mrb[0].mxu0
      %2340 = vmatprep.mubr.bf16.mxu0 0
      %2341 = vmatmul.mubr.bf16.gmra.mrb[0].mxu0 %v2231
      %v2342 = vpop.f32.mrb[0].mxu0
      %v2343 = vadd.f32 0.0, %v2342
      %v2344 = vpop.f32.mrb[0].mxu0
      %v2345 = vpop.f32.mrb[0].mxu0
      %v2346 = vadd.f32 0.0, %v2345
      %v2347 = vpop.f32.mrb[0].mxu0
      %2348 = vmatprep.mubr.bf16.mxu0 0
      %2349 = vmatmul.mubr.bf16.gmra.mrb[0].mxu0 %v2233
      %v2350 = vpop.f32.mrb[0].mxu0
      %v2351 = vadd.f32 0.0, %v2350
      %v2352 = vpop.f32.mrb[0].mxu0
      %v2353 = vpop.f32.mrb[0].mxu0
      %v2354 = vadd.f32 0.0, %v2353
      %v2355 = vpop.f32.mrb[0].mxu0
      %2356 = vmatprep.mubr.bf16.mxu0 0
      %2357 = vmatmul.mubr.bf16.gmra.mrb[0].mxu0 %v2235
      %v2358 = vpop.f32.mrb[0].mxu0
      %v2359 = vadd.f32 0.0, %v2358
      %v2360 = vpop.f32.mrb[0].mxu0
      %v2361 = vpop.f32.mrb[0].mxu0
      %v2362 = vadd.f32 0.0, %v2361
      %v2363 = vpop.f32.mrb[0].mxu0
      %2364 = vmatprep.mubr.bf16.mxu0 0
      %2365 = vmatmul.mubr.bf16.gmra.mrb[0].mxu0 %v2237
      %v2366 = vpop.f32.mrb[0].mxu0
      %v2367 = vadd.f32 0.0, %v2366
      %v2368 = vpop.f32.mrb[0].mxu0
      %v2369 = vpop.f32.mrb[0].mxu0
      %v2370 = vadd.f32 0.0, %v2369
      %v2371 = vpop.f32.mrb[0].mxu0
      %2372 = vmatprep.mubr.bf16.mxu0 0
      %2373 = vmatmul.mubr.bf16.gmra.mrb[0].mxu0 %v2239
      %v2374 = vpop.f32.mrb[0].mxu0
      %v2375 = vadd.f32 0.0, %v2374
      %v2376 = vpop.f32.mrb[0].mxu0
      %v2377 = vpop.f32.mrb[0].mxu0
      %v2378 = vadd.f32 0.0, %v2377
      %v2379 = vpop.f32.mrb[0].mxu0
      %2380 = vmatprep.mubr.bf16.mxu0 0
      %2381 = vmatmul.mubr.bf16.gmra.mrb[0].mxu0 %v2241
      %v2382 = vpop.f32.mrb[0].mxu0
      %v2383 = vadd.f32 0.0, %v2382
      %v2384 = vpop.f32.mrb[0].mxu0
      %v2385 = vpop.f32.mrb[0].mxu0
      %v2386 = vadd.f32 0.0, %v2385
      %v2387 = vpop.f32.mrb[0].mxu0
      %2388 = vmatprep.mubr.bf16.mxu0 0
      %2389 = vmatmul.mubr.bf16.gmra.mrb[0].mxu0 %v2243
      %v2390 = vpop.f32.mrb[0].mxu0
      %v2391 = vadd.f32 0.0, %v2390
      %v2392 = vpop.f32.mrb[0].mxu0
      %v2393 = vpop.f32.mrb[0].mxu0
      %v2394 = vadd.f32 0.0, %v2393
      %v2395 = vpop.f32.mrb[0].mxu0
      %2396 = vmatprep.mubr.bf16.mxu0 0
      %2397 = vmatmul.mubr.bf16.gmra.mrb[0].mxu0 %v2245
      %v2398 = vpop.f32.mrb[0].mxu0
      %v2399 = vadd.f32 0.0, %v2398
      %v2400 = vpop.f32.mrb[0].mxu0
      %v2401 = vpop.f32.mrb[0].mxu0
      %v2402 = vadd.f32 0.0, %v2401
      %v2403 = vpop.f32.mrb[0].mxu0
      %2404 = vmatprep.mubr.bf16.mxu0 0
      %2405 = vmatmul.mubr.bf16.gmra.mrb[0].mxu0 %v2247
      %v2406 = vpop.f32.mrb[0].mxu0
      %v2407 = vadd.f32 0.0, %v2406
      %v2408 = vpop.f32.mrb[0].mxu0
      %v2409 = vpop.f32.mrb[0].mxu0
      %v2410 = vadd.f32 0.0, %v2409
      %v2411 = vpop.f32.mrb[0].mxu0
      %2412 = vdwg.mxu0
      %v2413 = vadd.f32 %v2183, %v2287
      %v2414 = vadd.f32 %v2184, %v2290
      %v2415 = vadd.f32 %v2185, %v2295
      %v2416 = vadd.f32 %v2186, %v2298
      %v2417 = vadd.f32 %v2187, %v2303
      %v2418 = vadd.f32 %v2188, %v2306
      %v2419 = vadd.f32 %v2189, %v2311
      %v2420 = vadd.f32 %v2190, %v2314
      %v2421 = vadd.f32 %v2191, %v2319
      %v2422 = vadd.f32 %v2192, %v2322
      %v2423 = vadd.f32 %v2193, %v2327
      %v2424 = vadd.f32 %v2194, %v2330
      %v2425 = vadd.f32 %v2195, %v2335
      %v2426 = vadd.f32 %v2196, %v2338
      %v2427 = vadd.f32 %v2197, %v2343
      %v2428 = vadd.f32 %v2198, %v2346
      %v2429 = vadd.f32 %v2199, %v2351
      %v2430 = vadd.f32 %v2200, %v2354
      %v2431 = vadd.f32 %v2201, %v2359
      %v2432 = vadd.f32 %v2202, %v2362
      %v2433 = vadd.f32 %v2203, %v2367
      %v2434 = vadd.f32 %v2204, %v2370
      %v2435 = vadd.f32 %v2205, %v2375
      %v2436 = vadd.f32 %v2206, %v2378
      %v2437 = vadd.f32 %v2207, %v2383
      %v2438 = vadd.f32 %v2208, %v2386
      %v2439 = vadd.f32 %v2209, %v2391
      %v2440 = vadd.f32 %v2210, %v2394
      %v2441 = vadd.f32 %v2211, %v2399
      %v2442 = vadd.f32 %v2212, %v2402
      %v2443 = vadd.f32 %v2213, %v2407
      %v2444 = vadd.f32 %v2214, %v2410
      %v2445 = vld [vmem:[%s620 + $0x8] sm:$0xff]
      %v2446 = vld [vmem:[%s620 + $0x10] sm:$0x1]
      %v2447 = vld [vmem:[%s620 + $0x20] sm:$0xff]
      %v2448 = vld [vmem:[%s620 + $0x28] sm:$0x1]
      %v2449 = vld [vmem:[%s620 + $0x38] sm:$0xff]
      %v2450 = vld [vmem:[%s620 + $0x40] sm:$0x1]
      %v2451 = vld [vmem:[%s620 + $0x50] sm:$0xff]
      %v2452 = vld [vmem:[%s620 + $0x58] sm:$0x1]
      %v2453 = vld [vmem:[%s620 + $0x68] sm:$0xff]
      %v2454 = vld [vmem:[%s620 + $0x70] sm:$0x1]
      %v2455 = vld [vmem:[%s620 + $0x80] sm:$0xff]
      %v2456 = vld [vmem:[%s620 + $0x88] sm:$0x1]
      %v2457 = vld [vmem:[%s620 + $0x98] sm:$0xff]
      %v2458 = vld [vmem:[%s620 + $0xa0] sm:$0x1]
      %v2459 = vld [vmem:[%s620 + $0xb0] sm:$0xff]
      %v2460 = vld [vmem:[%s620 + $0xb8] sm:$0x1]
      %v2461 = vld [vmem:[%s620 + $0xc8] sm:$0xff]
      %v2462 = vld [vmem:[%s620 + $0xd0] sm:$0x1]
      %v2463 = vld [vmem:[%s620 + $0xe0] sm:$0xff]
      %v2464 = vld [vmem:[%s620 + $0xe8] sm:$0x1]
      %v2465 = vld [vmem:[%s620 + $0xf8] sm:$0xff]
      %v2466 = vld [vmem:[%s620 + $0x100] sm:$0x1]
      %v2467 = vld [vmem:[%s620 + $0x110] sm:$0xff]
      %v2468 = vld [vmem:[%s620 + $0x118] sm:$0x1]
      %v2469 = vld [vmem:[%s620 + $0x128] sm:$0xff]
      %v2470 = vld [vmem:[%s620 + $0x130] sm:$0x1]
      %v2471 = vld [vmem:[%s620 + $0x140] sm:$0xff]
      %v2472 = vld [vmem:[%s620 + $0x148] sm:$0x1]
      %v2473 = vld [vmem:[%s620 + $0x158] sm:$0xff]
      %v2474 = vld [vmem:[%s620 + $0x160] sm:$0x1]
      %v2475 = vld [vmem:[%s620 + $0x170] sm:$0xff]
      %v2476 = vld [vmem:[%s620 + $0x178] sm:$0x1]
      %v2478 = vshrl.u32 %v2445, 16
      %v2480 = vshll.u32 %v2445, 16
      %v2482 = vrot.slane %v2480, 1
      %v2483 = vor.u32 %v2478, %v2482
      %v2485 = vshll.u32 %v2446, 16
      %v2487 = vrot.slane %v2485, 1
      %v2488 = vsel %vm1306, %v2483, %v2487
      %v2490 = vshrl.u32 %v2447, 16
      %v2492 = vshll.u32 %v2447, 16
      %v2494 = vrot.slane %v2492, 1
      %v2495 = vor.u32 %v2490, %v2494
      %v2497 = vshll.u32 %v2448, 16
      %v2499 = vrot.slane %v2497, 1
      %v2500 = vsel %vm1306, %v2495, %v2499
      %v2502 = vshrl.u32 %v2449, 16
      %v2504 = vshll.u32 %v2449, 16
      %v2506 = vrot.slane %v2504, 1
      %v2507 = vor.u32 %v2502, %v2506
      %v2509 = vshll.u32 %v2450, 16
      %v2511 = vrot.slane %v2509, 1
      %v2512 = vsel %vm1306, %v2507, %v2511
      %v2514 = vshrl.u32 %v2451, 16
      %v2516 = vshll.u32 %v2451, 16
      %v2518 = vrot.slane %v2516, 1
      %v2519 = vor.u32 %v2514, %v2518
      %v2521 = vshll.u32 %v2452, 16
      %v2523 = vrot.slane %v2521, 1
      %v2524 = vsel %vm1306, %v2519, %v2523
      %v2526 = vshrl.u32 %v2453, 16
      %v2528 = vshll.u32 %v2453, 16
      %v2530 = vrot.slane %v2528, 1
      %v2531 = vor.u32 %v2526, %v2530
      %v2533 = vshll.u32 %v2454, 16
      %v2535 = vrot.slane %v2533, 1
      %v2536 = vsel %vm1306, %v2531, %v2535
      %v2538 = vshrl.u32 %v2455, 16
      %v2540 = vshll.u32 %v2455, 16
      %v2542 = vrot.slane %v2540, 1
      %v2543 = vor.u32 %v2538, %v2542
      %v2545 = vshll.u32 %v2456, 16
      %v2547 = vrot.slane %v2545, 1
      %v2548 = vsel %vm1306, %v2543, %v2547
      %v2550 = vshrl.u32 %v2457, 16
      %v2552 = vshll.u32 %v2457, 16
      %v2554 = vrot.slane %v2552, 1
      %v2555 = vor.u32 %v2550, %v2554
      %v2557 = vshll.u32 %v2458, 16
      %v2559 = vrot.slane %v2557, 1
      %v2560 = vsel %vm1306, %v2555, %v2559
      %v2562 = vshrl.u32 %v2459, 16
      %v2564 = vshll.u32 %v2459, 16
      %v2566 = vrot.slane %v2564, 1
      %v2567 = vor.u32 %v2562, %v2566
      %v2569 = vshll.u32 %v2460, 16
      %v2571 = vrot.slane %v2569, 1
      %v2572 = vsel %vm1306, %v2567, %v2571
      %v2574 = vshrl.u32 %v2461, 16
      %v2576 = vshll.u32 %v2461, 16
      %v2578 = vrot.slane %v2576, 1
      %v2579 = vor.u32 %v2574, %v2578
      %v2581 = vshll.u32 %v2462, 16
      %v2583 = vrot.slane %v2581, 1
      %v2584 = vsel %vm1306, %v2579, %v2583
      %v2586 = vshrl.u32 %v2463, 16
      %v2588 = vshll.u32 %v2463, 16
      %v2590 = vrot.slane %v2588, 1
      %v2591 = vor.u32 %v2586, %v2590
      %v2593 = vshll.u32 %v2464, 16
      %v2595 = vrot.slane %v2593, 1
      %v2596 = vsel %vm1306, %v2591, %v2595
      %v2598 = vshrl.u32 %v2465, 16
      %v2600 = vshll.u32 %v2465, 16
      %v2602 = vrot.slane %v2600, 1
      %v2603 = vor.u32 %v2598, %v2602
      %v2605 = vshll.u32 %v2466, 16
      %v2607 = vrot.slane %v2605, 1
      %v2608 = vsel %vm1306, %v2603, %v2607
      %v2610 = vshrl.u32 %v2467, 16
      %v2612 = vshll.u32 %v2467, 16
      %v2614 = vrot.slane %v2612, 1
      %v2615 = vor.u32 %v2610, %v2614
      %v2617 = vshll.u32 %v2468, 16
      %v2619 = vrot.slane %v2617, 1
      %v2620 = vsel %vm1306, %v2615, %v2619
      %v2622 = vshrl.u32 %v2469, 16
      %v2624 = vshll.u32 %v2469, 16
      %v2626 = vrot.slane %v2624, 1
      %v2627 = vor.u32 %v2622, %v2626
      %v2629 = vshll.u32 %v2470, 16
      %v2631 = vrot.slane %v2629, 1
      %v2632 = vsel %vm1306, %v2627, %v2631
      %v2634 = vshrl.u32 %v2471, 16
      %v2636 = vshll.u32 %v2471, 16
      %v2638 = vrot.slane %v2636, 1
      %v2639 = vor.u32 %v2634, %v2638
      %v2641 = vshll.u32 %v2472, 16
      %v2643 = vrot.slane %v2641, 1
      %v2644 = vsel %vm1306, %v2639, %v2643
      %v2646 = vshrl.u32 %v2473, 16
      %v2648 = vshll.u32 %v2473, 16
      %v2650 = vrot.slane %v2648, 1
      %v2651 = vor.u32 %v2646, %v2650
      %v2653 = vshll.u32 %v2474, 16
      %v2655 = vrot.slane %v2653, 1
      %v2656 = vsel %vm1306, %v2651, %v2655
      %v2658 = vshrl.u32 %v2475, 16
      %v2660 = vshll.u32 %v2475, 16
      %v2662 = vrot.slane %v2660, 1
      %v2663 = vor.u32 %v2658, %v2662
      %v2665 = vshll.u32 %v2476, 16
      %v2667 = vrot.slane %v2665, 1
      %v2668 = vsel %vm1306, %v2663, %v2667
      %s2669 = scalar_lea.vmem %s1, 10
      %v2670 = vld [vmem:[%s2669] sm:$0x3]
      %v2672 = vsel %vm361, %v2488, 0
      %v2675 = vsel %vm361, %v2500, 0
      %v2678 = vsel %vm361, %v2512, 0
      %v2681 = vsel %vm361, %v2524, 0
      %v2684 = vsel %vm361, %v2536, 0
      %v2687 = vsel %vm361, %v2548, 0
      %v2690 = vsel %vm361, %v2560, 0
      %v2693 = vsel %vm361, %v2572, 0
      %v2696 = vsel %vm361, %v2584, 0
      %v2699 = vsel %vm361, %v2596, 0
      %v2702 = vsel %vm361, %v2608, 0
      %v2705 = vsel %vm361, %v2620, 0
      %v2708 = vsel %vm361, %v2632, 0
      %v2711 = vsel %vm361, %v2644, 0
      %v2714 = vsel %vm361, %v2656, 0
      %v2717 = vsel %vm361, %v2668, 0
      %v2720 = vsel %vm897, %v2670, 0
      %2722 = vmatprep.subr.bf16.mxu0 0
      %2723 = vmatpush1.bf16.msra.mxu0 %v2720
      %2724 = vmatprep.subr.bf16.mxu0 0
      %2725 = vmatpush1.bf16.msra.mxu0 0
      %2726 = vmatprep.subr.bf16.mxu0 0
      %2727 = vmatpush1.bf16.msra.mxu0 0
      %2728 = vmatprep.subr.bf16.mxu0 0
      %2729 = vmatpush1.bf16.msra.mxu0 0
      %2730 = vmatprep.subr.bf16.mxu0 0
      %2731 = vmatpush1.bf16.msra.mxu0 0
      %2732 = vmatprep.subr.bf16.mxu0 0
      %2733 = vmatpush1.bf16.msra.mxu0 0
      %2734 = vmatprep.subr.bf16.mxu0 0
      %2735 = vmatpush1.bf16.msra.mxu0 0
      %2736 = vmatprep.subr.bf16.mxu0 0
      %2737 = vmatpush1.bf16.msra.mxu0 0
      %2738 = vmatprep.subr.bf16.mxu0 0
      %2739 = vmatpush1.bf16.msra.mxu0 0
      %2740 = vmatprep.subr.bf16.mxu0 0
      %2741 = vmatpush1.bf16.msra.mxu0 0
      %2742 = vmatprep.subr.bf16.mxu0 0
      %2743 = vmatpush1.bf16.msra.mxu0 0
      %2744 = vmatprep.subr.bf16.mxu0 0
      %2745 = vmatpush1.bf16.msra.mxu0 0
      %2746 = vmatprep.subr.bf16.mxu0 0
      %2747 = vmatpush1.bf16.msra.mxu0 0
      %2748 = vmatprep.subr.bf16.mxu0 0
      %2749 = vmatpush1.bf16.msra.mxu0 0
      %2750 = vmatprep.subr.bf16.mxu0 0
      %2751 = vmatpush1.bf16.msra.mxu0 0
      %2752 = vmatprep.subr.bf16.mxu0 0
      %2753 = vmatpush1.bf16.msra.mxu0 0
      %2754 = vmatprep.mubr.bf16.mxu0 0
      %2755 = vmatmul.mubr.bf16.gmra.mrb[0].mxu0 %v2672
      %v2756 = vpop.f32.mrb[0].mxu0
      %v2757 = vadd.f32 0.0, %v2756
      %v2758 = vpop.f32.mrb[0].mxu0
      %v2759 = vpop.f32.mrb[0].mxu0
      %v2760 = vadd.f32 0.0, %v2759
      %v2761 = vpop.f32.mrb[0].mxu0
      %2762 = vmatprep.mubr.bf16.mxu0 0
      %2763 = vmatmul.mubr.bf16.gmra.mrb[0].mxu0 %v2675
      %v2764 = vpop.f32.mrb[0].mxu0
      %v2765 = vadd.f32 0.0, %v2764
      %v2766 = vpop.f32.mrb[0].mxu0
      %v2767 = vpop.f32.mrb[0].mxu0
      %v2768 = vadd.f32 0.0, %v2767
      %v2769 = vpop.f32.mrb[0].mxu0
      %2770 = vmatprep.mubr.bf16.mxu0 0
      %2771 = vmatmul.mubr.bf16.gmra.mrb[0].mxu0 %v2678
      %v2772 = vpop.f32.mrb[0].mxu0
      %v2773 = vadd.f32 0.0, %v2772
      %v2774 = vpop.f32.mrb[0].mxu0
      %v2775 = vpop.f32.mrb[0].mxu0
      %v2776 = vadd.f32 0.0, %v2775
      %v2777 = vpop.f32.mrb[0].mxu0
      %2778 = vmatprep.mubr.bf16.mxu0 0
      %2779 = vmatmul.mubr.bf16.gmra.mrb[0].mxu0 %v2681
      %v2780 = vpop.f32.mrb[0].mxu0
      %v2781 = vadd.f32 0.0, %v2780
      %v2782 = vpop.f32.mrb[0].mxu0
      %v2783 = vpop.f32.mrb[0].mxu0
      %v2784 = vadd.f32 0.0, %v2783
      %v2785 = vpop.f32.mrb[0].mxu0
      %2786 = vmatprep.mubr.bf16.mxu0 0
      %2787 = vmatmul.mubr.bf16.gmra.mrb[0].mxu0 %v2684
      %v2788 = vpop.f32.mrb[0].mxu0
      %v2789 = vadd.f32 0.0, %v2788
      %v2790 = vpop.f32.mrb[0].mxu0
      %v2791 = vpop.f32.mrb[0].mxu0
      %v2792 = vadd.f32 0.0, %v2791
      %v2793 = vpop.f32.mrb[0].mxu0
      %2794 = vmatprep.mubr.bf16.mxu0 0
      %2795 = vmatmul.mubr.bf16.gmra.mrb[0].mxu0 %v2687
      %v2796 = vpop.f32.mrb[0].mxu0
      %v2797 = vadd.f32 0.0, %v2796
      %v2798 = vpop.f32.mrb[0].mxu0
      %v2799 = vpop.f32.mrb[0].mxu0
      %v2800 = vadd.f32 0.0, %v2799
      %v2801 = vpop.f32.mrb[0].mxu0
      %2802 = vmatprep.mubr.bf16.mxu0 0
      %2803 = vmatmul.mubr.bf16.gmra.mrb[0].mxu0 %v2690
      %v2804 = vpop.f32.mrb[0].mxu0
      %v2805 = vadd.f32 0.0, %v2804
      %v2806 = vpop.f32.mrb[0].mxu0
      %v2807 = vpop.f32.mrb[0].mxu0
      %v2808 = vadd.f32 0.0, %v2807
      %v2809 = vpop.f32.mrb[0].mxu0
      %2810 = vmatprep.mubr.bf16.mxu0 0
      %2811 = vmatmul.mubr.bf16.gmra.mrb[0].mxu0 %v2693
      %v2812 = vpop.f32.mrb[0].mxu0
      %v2813 = vadd.f32 0.0, %v2812
      %v2814 = vpop.f32.mrb[0].mxu0
      %v2815 = vpop.f32.mrb[0].mxu0
      %v2816 = vadd.f32 0.0, %v2815
      %v2817 = vpop.f32.mrb[0].mxu0
      %2818 = vmatprep.mubr.bf16.mxu0 0
      %2819 = vmatmul.mubr.bf16.gmra.mrb[0].mxu0 %v2696
      %v2820 = vpop.f32.mrb[0].mxu0
      %v2821 = vadd.f32 0.0, %v2820
      %v2822 = vpop.f32.mrb[0].mxu0
      %v2823 = vpop.f32.mrb[0].mxu0
      %v2824 = vadd.f32 0.0, %v2823
      %v2825 = vpop.f32.mrb[0].mxu0
      %2826 = vmatprep.mubr.bf16.mxu0 0
      %2827 = vmatmul.mubr.bf16.gmra.mrb[0].mxu0 %v2699
      %v2828 = vpop.f32.mrb[0].mxu0
      %v2829 = vadd.f32 0.0, %v2828
      %v2830 = vpop.f32.mrb[0].mxu0
      %v2831 = vpop.f32.mrb[0].mxu0
      %v2832 = vadd.f32 0.0, %v2831
      %v2833 = vpop.f32.mrb[0].mxu0
      %2834 = vmatprep.mubr.bf16.mxu0 0
      %2835 = vmatmul.mubr.bf16.gmra.mrb[0].mxu0 %v2702
      %v2836 = vpop.f32.mrb[0].mxu0
      %v2837 = vadd.f32 0.0, %v2836
      %v2838 = vpop.f32.mrb[0].mxu0
      %v2839 = vpop.f32.mrb[0].mxu0
      %v2840 = vadd.f32 0.0, %v2839
      %v2841 = vpop.f32.mrb[0].mxu0
      %2842 = vmatprep.mubr.bf16.mxu0 0
      %2843 = vmatmul.mubr.bf16.gmra.mrb[0].mxu0 %v2705
      %v2844 = vpop.f32.mrb[0].mxu0
      %v2845 = vadd.f32 0.0, %v2844
      %v2846 = vpop.f32.mrb[0].mxu0
      %v2847 = vpop.f32.mrb[0].mxu0
      %v2848 = vadd.f32 0.0, %v2847
      %v2849 = vpop.f32.mrb[0].mxu0
      %2850 = vmatprep.mubr.bf16.mxu0 0
      %2851 = vmatmul.mubr.bf16.gmra.mrb[0].mxu0 %v2708
      %v2852 = vpop.f32.mrb[0].mxu0
      %v2853 = vadd.f32 0.0, %v2852
      %v2854 = vpop.f32.mrb[0].mxu0
      %v2855 = vpop.f32.mrb[0].mxu0
      %v2856 = vadd.f32 0.0, %v2855
      %v2857 = vpop.f32.mrb[0].mxu0
      %2858 = vmatprep.mubr.bf16.mxu0 0
      %2859 = vmatmul.mubr.bf16.gmra.mrb[0].mxu0 %v2711
      %v2860 = vpop.f32.mrb[0].mxu0
      %v2861 = vadd.f32 0.0, %v2860
      %v2862 = vpop.f32.mrb[0].mxu0
      %v2863 = vpop.f32.mrb[0].mxu0
      %v2864 = vadd.f32 0.0, %v2863
      %v2865 = vpop.f32.mrb[0].mxu0
      %2866 = vmatprep.mubr.bf16.mxu0 0
      %2867 = vmatmul.mubr.bf16.gmra.mrb[0].mxu0 %v2714
      %v2868 = vpop.f32.mrb[0].mxu0
      %v2869 = vadd.f32 0.0, %v2868
      %v2870 = vpop.f32.mrb[0].mxu0
      %v2871 = vpop.f32.mrb[0].mxu0
      %v2872 = vadd.f32 0.0, %v2871
      %v2873 = vpop.f32.mrb[0].mxu0
      %2874 = vmatprep.mubr.bf16.mxu0 0
      %2875 = vmatmul.mubr.bf16.gmra.mrb[0].mxu0 %v2717
      %v2876 = vpop.f32.mrb[0].mxu0
      %v2877 = vadd.f32 0.0, %v2876
      %v2878 = vpop.f32.mrb[0].mxu0
      %v2879 = vpop.f32.mrb[0].mxu0
      %v2880 = vadd.f32 0.0, %v2879
      %v2881 = vpop.f32.mrb[0].mxu0
      %2882 = vdwg.mxu0
      %v2883 = vadd.f32 %v2413, %v2757
      %v2884 = vadd.f32 %v2414, %v2760
      %v2885 = vadd.f32 %v2415, %v2765
      %v2886 = vadd.f32 %v2416, %v2768
      %v2887 = vadd.f32 %v2417, %v2773
      %v2888 = vadd.f32 %v2418, %v2776
      %v2889 = vadd.f32 %v2419, %v2781
      %v2890 = vadd.f32 %v2420, %v2784
      %v2891 = vadd.f32 %v2421, %v2789
      %v2892 = vadd.f32 %v2422, %v2792
      %v2893 = vadd.f32 %v2423, %v2797
      %v2894 = vadd.f32 %v2424, %v2800
      %v2895 = vadd.f32 %v2425, %v2805
      %v2896 = vadd.f32 %v2426, %v2808
      %v2897 = vadd.f32 %v2427, %v2813
      %v2898 = vadd.f32 %v2428, %v2816
      %v2899 = vadd.f32 %v2429, %v2821
      %v2900 = vadd.f32 %v2430, %v2824
      %v2901 = vadd.f32 %v2431, %v2829
      %v2902 = vadd.f32 %v2432, %v2832
      %v2903 = vadd.f32 %v2433, %v2837
      %v2904 = vadd.f32 %v2434, %v2840
      %v2905 = vadd.f32 %v2435, %v2845
      %v2906 = vadd.f32 %v2436, %v2848
      %v2907 = vadd.f32 %v2437, %v2853
      %v2908 = vadd.f32 %v2438, %v2856
      %v2909 = vadd.f32 %v2439, %v2861
      %v2910 = vadd.f32 %v2440, %v2864
      %v2911 = vadd.f32 %v2441, %v2869
      %v2912 = vadd.f32 %v2442, %v2872
      %v2913 = vadd.f32 %v2443, %v2877
      %v2914 = vadd.f32 %v2444, %v2880
      %s2915 = scalar_lea.vmem [#allocation2], 48
      %v2916 = vld [vmem:[%s2915] sm:$0x80]
      %v2917 = vld [vmem:[%s2915 + $0x8] sm:$0xff]
      %v2918 = vld [vmem:[%s2915 + $0x18] sm:$0x80]
      %v2919 = vld [vmem:[%s2915 + $0x20] sm:$0xff]
      %v2920 = vld [vmem:[%s2915 + $0x30] sm:$0x80]
      %v2921 = vld [vmem:[%s2915 + $0x38] sm:$0xff]
      %v2922 = vld [vmem:[%s2915 + $0x48] sm:$0x80]
      %v2923 = vld [vmem:[%s2915 + $0x50] sm:$0xff]
      %v2924 = vld [vmem:[%s2915 + $0x60] sm:$0x80]
      %v2925 = vld [vmem:[%s2915 + $0x68] sm:$0xff]
      %v2926 = vld [vmem:[%s2915 + $0x78] sm:$0x80]
      %v2927 = vld [vmem:[%s2915 + $0x80] sm:$0xff]
      %v2928 = vld [vmem:[%s2915 + $0x90] sm:$0x80]
      %v2929 = vld [vmem:[%s2915 + $0x98] sm:$0xff]
      %v2930 = vld [vmem:[%s2915 + $0xa8] sm:$0x80]
      %v2931 = vld [vmem:[%s2915 + $0xb0] sm:$0xff]
      %v2932 = vld [vmem:[%s2915 + $0xc0] sm:$0x80]
      %v2933 = vld [vmem:[%s2915 + $0xc8] sm:$0xff]
      %v2934 = vld [vmem:[%s2915 + $0xd8] sm:$0x80]
      %v2935 = vld [vmem:[%s2915 + $0xe0] sm:$0xff]
      %v2936 = vld [vmem:[%s2915 + $0xf0] sm:$0x80]
      %v2937 = vld [vmem:[%s2915 + $0xf8] sm:$0xff]
      %v2938 = vld [vmem:[%s2915 + $0x108] sm:$0x80]
      %v2939 = vld [vmem:[%s2915 + $0x110] sm:$0xff]
      %v2940 = vld [vmem:[%s2915 + $0x120] sm:$0x80]
      %v2941 = vld [vmem:[%s2915 + $0x128] sm:$0xff]
      %v2942 = vld [vmem:[%s2915 + $0x138] sm:$0x80]
      %v2943 = vld [vmem:[%s2915 + $0x140] sm:$0xff]
      %v2944 = vld [vmem:[%s2915 + $0x150] sm:$0x80]
      %v2945 = vld [vmem:[%s2915 + $0x158] sm:$0xff]
      %v2946 = vld [vmem:[%s2915 + $0x168] sm:$0x80]
      %v2947 = vld [vmem:[%s2915 + $0x170] sm:$0xff]
      %v2949 = vshrl.u32 %v2916, 16
      %v2951 = vrot.slane %v2949, 7
      %v2953 = vshrl.u32 %v2917, 16
      %v2955 = vrot.slane %v2953, 7
      %v2956 = vshll.u32 %v2917, 16
      %v2958 = vor.u32 %v2955, %v2956
      %v2959 = vsel %vm669, %v2951, %v2958
      %v2961 = vshrl.u32 %v2918, 16
      %v2963 = vrot.slane %v2961, 7
      %v2965 = vshrl.u32 %v2919, 16
      %v2967 = vrot.slane %v2965, 7
      %v2968 = vshll.u32 %v2919, 16
      %v2970 = vor.u32 %v2967, %v2968
      %v2971 = vsel %vm669, %v2963, %v2970
      %v2973 = vshrl.u32 %v2920, 16
      %v2975 = vrot.slane %v2973, 7
      %v2977 = vshrl.u32 %v2921, 16
      %v2979 = vrot.slane %v2977, 7
      %v2980 = vshll.u32 %v2921, 16
      %v2982 = vor.u32 %v2979, %v2980
      %v2983 = vsel %vm669, %v2975, %v2982
      %v2985 = vshrl.u32 %v2922, 16
      %v2987 = vrot.slane %v2985, 7
      %v2989 = vshrl.u32 %v2923, 16
      %v2991 = vrot.slane %v2989, 7
      %v2992 = vshll.u32 %v2923, 16
      %v2994 = vor.u32 %v2991, %v2992
      %v2995 = vsel %vm669, %v2987, %v2994
      %v2997 = vshrl.u32 %v2924, 16
      %v2999 = vrot.slane %v2997, 7
      %v3001 = vshrl.u32 %v2925, 16
      %v3003 = vrot.slane %v3001, 7
      %v3004 = vshll.u32 %v2925, 16
      %v3006 = vor.u32 %v3003, %v3004
      %v3007 = vsel %vm669, %v2999, %v3006
      %v3009 = vshrl.u32 %v2926, 16
      %v3011 = vrot.slane %v3009, 7
      %v3013 = vshrl.u32 %v2927, 16
      %v3015 = vrot.slane %v3013, 7
      %v3016 = vshll.u32 %v2927, 16
      %v3018 = vor.u32 %v3015, %v3016
      %v3019 = vsel %vm669, %v3011, %v3018
      %v3021 = vshrl.u32 %v2928, 16
      %v3023 = vrot.slane %v3021, 7
      %v3025 = vshrl.u32 %v2929, 16
      %v3027 = vrot.slane %v3025, 7
      %v3028 = vshll.u32 %v2929, 16
      %v3030 = vor.u32 %v3027, %v3028
      %v3031 = vsel %vm669, %v3023, %v3030
      %v3033 = vshrl.u32 %v2930, 16
      %v3035 = vrot.slane %v3033, 7
      %v3037 = vshrl.u32 %v2931, 16
      %v3039 = vrot.slane %v3037, 7
      %v3040 = vshll.u32 %v2931, 16
      %v3042 = vor.u32 %v3039, %v3040
      %v3043 = vsel %vm669, %v3035, %v3042
      %v3045 = vshrl.u32 %v2932, 16
      %v3047 = vrot.slane %v3045, 7
      %v3049 = vshrl.u32 %v2933, 16
      %v3051 = vrot.slane %v3049, 7
      %v3052 = vshll.u32 %v2933, 16
      %v3054 = vor.u32 %v3051, %v3052
      %v3055 = vsel %vm669, %v3047, %v3054
      %v3057 = vshrl.u32 %v2934, 16
      %v3059 = vrot.slane %v3057, 7
      %v3061 = vshrl.u32 %v2935, 16
      %v3063 = vrot.slane %v3061, 7
      %v3064 = vshll.u32 %v2935, 16
      %v3066 = vor.u32 %v3063, %v3064
      %v3067 = vsel %vm669, %v3059, %v3066
      %v3069 = vshrl.u32 %v2936, 16
      %v3071 = vrot.slane %v3069, 7
      %v3073 = vshrl.u32 %v2937, 16
      %v3075 = vrot.slane %v3073, 7
      %v3076 = vshll.u32 %v2937, 16
      %v3078 = vor.u32 %v3075, %v3076
      %v3079 = vsel %vm669, %v3071, %v3078
      %v3081 = vshrl.u32 %v2938, 16
      %v3083 = vrot.slane %v3081, 7
      %v3085 = vshrl.u32 %v2939, 16
      %v3087 = vrot.slane %v3085, 7
      %v3088 = vshll.u32 %v2939, 16
      %v3090 = vor.u32 %v3087, %v3088
      %v3091 = vsel %vm669, %v3083, %v3090
      %v3093 = vshrl.u32 %v2940, 16
      %v3095 = vrot.slane %v3093, 7
      %v3097 = vshrl.u32 %v2941, 16
      %v3099 = vrot.slane %v3097, 7
      %v3100 = vshll.u32 %v2941, 16
      %v3102 = vor.u32 %v3099, %v3100
      %v3103 = vsel %vm669, %v3095, %v3102
      %v3105 = vshrl.u32 %v2942, 16
      %v3107 = vrot.slane %v3105, 7
      %v3109 = vshrl.u32 %v2943, 16
      %v3111 = vrot.slane %v3109, 7
      %v3112 = vshll.u32 %v2943, 16
      %v3114 = vor.u32 %v3111, %v3112
      %v3115 = vsel %vm669, %v3107, %v3114
      %v3117 = vshrl.u32 %v2944, 16
      %v3119 = vrot.slane %v3117, 7
      %v3121 = vshrl.u32 %v2945, 16
      %v3123 = vrot.slane %v3121, 7
      %v3124 = vshll.u32 %v2945, 16
      %v3126 = vor.u32 %v3123, %v3124
      %v3127 = vsel %vm669, %v3119, %v3126
      %v3129 = vshrl.u32 %v2946, 16
      %v3131 = vrot.slane %v3129, 7
      %v3133 = vshrl.u32 %v2947, 16
      %v3135 = vrot.slane %v3133, 7
      %v3136 = vshll.u32 %v2947, 16
      %v3138 = vor.u32 %v3135, %v3136
      %v3139 = vsel %vm669, %v3131, %v3138
      %s3140 = scalar_lea.vmem %s1, 12
      %v3141 = vld [vmem:[%s3140] sm:$0x3]
      %v3143 = vsel %vm361, %v2959, 0
      %v3146 = vsel %vm361, %v2971, 0
      %v3149 = vsel %vm361, %v2983, 0
      %v3152 = vsel %vm361, %v2995, 0
      %v3155 = vsel %vm361, %v3007, 0
      %v3158 = vsel %vm361, %v3019, 0
      %v3161 = vsel %vm361, %v3031, 0
      %v3164 = vsel %vm361, %v3043, 0
      %v3167 = vsel %vm361, %v3055, 0
      %v3170 = vsel %vm361, %v3067, 0
      %v3173 = vsel %vm361, %v3079, 0
      %v3176 = vsel %vm361, %v3091, 0
      %v3179 = vsel %vm361, %v3103, 0
      %v3182 = vsel %vm361, %v3115, 0
      %v3185 = vsel %vm361, %v3127, 0
      %v3188 = vsel %vm361, %v3139, 0
      %v3191 = vsel %vm897, %v3141, 0
      %3193 = vmatprep.subr.bf16.mxu0 0
      %3194 = vmatpush1.bf16.msra.mxu0 %v3191
      %3195 = vmatprep.subr.bf16.mxu0 0
      %3196 = vmatpush1.bf16.msra.mxu0 0
      %3197 = vmatprep.subr.bf16.mxu0 0
      %3198 = vmatpush1.bf16.msra.mxu0 0
      %3199 = vmatprep.subr.bf16.mxu0 0
      %3200 = vmatpush1.bf16.msra.mxu0 0
      %3201 = vmatprep.subr.bf16.mxu0 0
      %3202 = vmatpush1.bf16.msra.mxu0 0
      %3203 = vmatprep.subr.bf16.mxu0 0
      %3204 = vmatpush1.bf16.msra.mxu0 0
      %3205 = vmatprep.subr.bf16.mxu0 0
      %3206 = vmatpush1.bf16.msra.mxu0 0
      %3207 = vmatprep.subr.bf16.mxu0 0
      %3208 = vmatpush1.bf16.msra.mxu0 0
      %3209 = vmatprep.subr.bf16.mxu0 0
      %3210 = vmatpush1.bf16.msra.mxu0 0
      %3211 = vmatprep.subr.bf16.mxu0 0
      %3212 = vmatpush1.bf16.msra.mxu0 0
      %3213 = vmatprep.subr.bf16.mxu0 0
      %3214 = vmatpush1.bf16.msra.mxu0 0
      %3215 = vmatprep.subr.bf16.mxu0 0
      %3216 = vmatpush1.bf16.msra.mxu0 0
      %3217 = vmatprep.subr.bf16.mxu0 0
      %3218 = vmatpush1.bf16.msra.mxu0 0
      %3219 = vmatprep.subr.bf16.mxu0 0
      %3220 = vmatpush1.bf16.msra.mxu0 0
      %3221 = vmatprep.subr.bf16.mxu0 0
      %3222 = vmatpush1.bf16.msra.mxu0 0
      %3223 = vmatprep.subr.bf16.mxu0 0
      %3224 = vmatpush1.bf16.msra.mxu0 0
      %3225 = vmatprep.mubr.bf16.mxu0 0
      %3226 = vmatmul.mubr.bf16.gmra.mrb[0].mxu0 %v3143
      %v3227 = vpop.f32.mrb[0].mxu0
      %v3228 = vadd.f32 0.0, %v3227
      %v3229 = vpop.f32.mrb[0].mxu0
      %v3230 = vpop.f32.mrb[0].mxu0
      %v3231 = vadd.f32 0.0, %v3230
      %v3232 = vpop.f32.mrb[0].mxu0
      %3233 = vmatprep.mubr.bf16.mxu0 0
      %3234 = vmatmul.mubr.bf16.gmra.mrb[0].mxu0 %v3146
      %v3235 = vpop.f32.mrb[0].mxu0
      %v3236 = vadd.f32 0.0, %v3235
      %v3237 = vpop.f32.mrb[0].mxu0
      %v3238 = vpop.f32.mrb[0].mxu0
      %v3239 = vadd.f32 0.0, %v3238
      %v3240 = vpop.f32.mrb[0].mxu0
      %3241 = vmatprep.mubr.bf16.mxu0 0
      %3242 = vmatmul.mubr.bf16.gmra.mrb[0].mxu0 %v3149
      %v3243 = vpop.f32.mrb[0].mxu0
      %v3244 = vadd.f32 0.0, %v3243
      %v3245 = vpop.f32.mrb[0].mxu0
      %v3246 = vpop.f32.mrb[0].mxu0
      %v3247 = vadd.f32 0.0, %v3246
      %v3248 = vpop.f32.mrb[0].mxu0
      %3249 = vmatprep.mubr.bf16.mxu0 0
      %3250 = vmatmul.mubr.bf16.gmra.mrb[0].mxu0 %v3152
      %v3251 = vpop.f32.mrb[0].mxu0
      %v3252 = vadd.f32 0.0, %v3251
      %v3253 = vpop.f32.mrb[0].mxu0
      %v3254 = vpop.f32.mrb[0].mxu0
      %v3255 = vadd.f32 0.0, %v3254
      %v3256 = vpop.f32.mrb[0].mxu0
      %3257 = vmatprep.mubr.bf16.mxu0 0
      %3258 = vmatmul.mubr.bf16.gmra.mrb[0].mxu0 %v3155
      %v3259 = vpop.f32.mrb[0].mxu0
      %v3260 = vadd.f32 0.0, %v3259
      %v3261 = vpop.f32.mrb[0].mxu0
      %v3262 = vpop.f32.mrb[0].mxu0
      %v3263 = vadd.f32 0.0, %v3262
      %v3264 = vpop.f32.mrb[0].mxu0
      %3265 = vmatprep.mubr.bf16.mxu0 0
      %3266 = vmatmul.mubr.bf16.gmra.mrb[0].mxu0 %v3158
      %v3267 = vpop.f32.mrb[0].mxu0
      %v3268 = vadd.f32 0.0, %v3267
      %v3269 = vpop.f32.mrb[0].mxu0
      %v3270 = vpop.f32.mrb[0].mxu0
      %v3271 = vadd.f32 0.0, %v3270
      %v3272 = vpop.f32.mrb[0].mxu0
      %3273 = vmatprep.mubr.bf16.mxu0 0
      %3274 = vmatmul.mubr.bf16.gmra.mrb[0].mxu0 %v3161
      %v3275 = vpop.f32.mrb[0].mxu0
      %v3276 = vadd.f32 0.0, %v3275
      %v3277 = vpop.f32.mrb[0].mxu0
      %v3278 = vpop.f32.mrb[0].mxu0
      %v3279 = vadd.f32 0.0, %v3278
      %v3280 = vpop.f32.mrb[0].mxu0
      %3281 = vmatprep.mubr.bf16.mxu0 0
      %3282 = vmatmul.mubr.bf16.gmra.mrb[0].mxu0 %v3164
      %v3283 = vpop.f32.mrb[0].mxu0
      %v3284 = vadd.f32 0.0, %v3283
      %v3285 = vpop.f32.mrb[0].mxu0
      %v3286 = vpop.f32.mrb[0].mxu0
      %v3287 = vadd.f32 0.0, %v3286
      %v3288 = vpop.f32.mrb[0].mxu0
      %3289 = vmatprep.mubr.bf16.mxu0 0
      %3290 = vmatmul.mubr.bf16.gmra.mrb[0].mxu0 %v3167
      %v3291 = vpop.f32.mrb[0].mxu0
      %v3292 = vadd.f32 0.0, %v3291
      %v3293 = vpop.f32.mrb[0].mxu0
      %v3294 = vpop.f32.mrb[0].mxu0
      %v3295 = vadd.f32 0.0, %v3294
      %v3296 = vpop.f32.mrb[0].mxu0
      %3297 = vmatprep.mubr.bf16.mxu0 0
      %3298 = vmatmul.mubr.bf16.gmra.mrb[0].mxu0 %v3170
      %v3299 = vpop.f32.mrb[0].mxu0
      %v3300 = vadd.f32 0.0, %v3299
      %v3301 = vpop.f32.mrb[0].mxu0
      %v3302 = vpop.f32.mrb[0].mxu0
      %v3303 = vadd.f32 0.0, %v3302
      %v3304 = vpop.f32.mrb[0].mxu0
      %3305 = vmatprep.mubr.bf16.mxu0 0
      %3306 = vmatmul.mubr.bf16.gmra.mrb[0].mxu0 %v3173
      %v3307 = vpop.f32.mrb[0].mxu0
      %v3308 = vadd.f32 0.0, %v3307
      %v3309 = vpop.f32.mrb[0].mxu0
      %v3310 = vpop.f32.mrb[0].mxu0
      %v3311 = vadd.f32 0.0, %v3310
      %v3312 = vpop.f32.mrb[0].mxu0
      %3313 = vmatprep.mubr.bf16.mxu0 0
      %3314 = vmatmul.mubr.bf16.gmra.mrb[0].mxu0 %v3176
      %v3315 = vpop.f32.mrb[0].mxu0
      %v3316 = vadd.f32 0.0, %v3315
      %v3317 = vpop.f32.mrb[0].mxu0
      %v3318 = vpop.f32.mrb[0].mxu0
      %v3319 = vadd.f32 0.0, %v3318
      %v3320 = vpop.f32.mrb[0].mxu0
      %3321 = vmatprep.mubr.bf16.mxu0 0
      %3322 = vmatmul.mubr.bf16.gmra.mrb[0].mxu0 %v3179
      %v3323 = vpop.f32.mrb[0].mxu0
      %v3324 = vadd.f32 0.0, %v3323
      %v3325 = vpop.f32.mrb[0].mxu0
      %v3326 = vpop.f32.mrb[0].mxu0
      %v3327 = vadd.f32 0.0, %v3326
      %v3328 = vpop.f32.mrb[0].mxu0
      %3329 = vmatprep.mubr.bf16.mxu0 0
      %3330 = vmatmul.mubr.bf16.gmra.mrb[0].mxu0 %v3182
      %v3331 = vpop.f32.mrb[0].mxu0
      %v3332 = vadd.f32 0.0, %v3331
      %v3333 = vpop.f32.mrb[0].mxu0
      %v3334 = vpop.f32.mrb[0].mxu0
      %v3335 = vadd.f32 0.0, %v3334
      %v3336 = vpop.f32.mrb[0].mxu0
      %3337 = vmatprep.mubr.bf16.mxu0 0
      %3338 = vmatmul.mubr.bf16.gmra.mrb[0].mxu0 %v3185
      %v3339 = vpop.f32.mrb[0].mxu0
      %v3340 = vadd.f32 0.0, %v3339
      %v3341 = vpop.f32.mrb[0].mxu0
      %v3342 = vpop.f32.mrb[0].mxu0
      %v3343 = vadd.f32 0.0, %v3342
      %v3344 = vpop.f32.mrb[0].mxu0
      %3345 = vmatprep.mubr.bf16.mxu0 0
      %3346 = vmatmul.mubr.bf16.gmra.mrb[0].mxu0 %v3188
      %v3347 = vpop.f32.mrb[0].mxu0
      %v3348 = vadd.f32 0.0, %v3347
      %v3349 = vpop.f32.mrb[0].mxu0
      %v3350 = vpop.f32.mrb[0].mxu0
      %v3351 = vadd.f32 0.0, %v3350
      %v3352 = vpop.f32.mrb[0].mxu0
      %3353 = vdwg.mxu0
      %v3354 = vadd.f32 %v2883, %v3228
      %v3355 = vadd.f32 %v2884, %v3231
      %v3356 = vadd.f32 %v2885, %v3236
      %v3357 = vadd.f32 %v2886, %v3239
      %v3358 = vadd.f32 %v2887, %v3244
      %v3359 = vadd.f32 %v2888, %v3247
      %v3360 = vadd.f32 %v2889, %v3252
      %v3361 = vadd.f32 %v2890, %v3255
      %v3362 = vadd.f32 %v2891, %v3260
      %v3363 = vadd.f32 %v2892, %v3263
      %v3364 = vadd.f32 %v2893, %v3268
      %v3365 = vadd.f32 %v2894, %v3271
      %v3366 = vadd.f32 %v2895, %v3276
      %v3367 = vadd.f32 %v2896, %v3279
      %v3368 = vadd.f32 %v2897, %v3284
      %v3369 = vadd.f32 %v2898, %v3287
      %v3370 = vadd.f32 %v2899, %v3292
      %v3371 = vadd.f32 %v2900, %v3295
      %v3372 = vadd.f32 %v2901, %v3300
      %v3373 = vadd.f32 %v2902, %v3303
      %v3374 = vadd.f32 %v2903, %v3308
      %v3375 = vadd.f32 %v2904, %v3311
      %v3376 = vadd.f32 %v2905, %v3316
      %v3377 = vadd.f32 %v2906, %v3319
      %v3378 = vadd.f32 %v2907, %v3324
      %v3379 = vadd.f32 %v2908, %v3327
      %v3380 = vadd.f32 %v2909, %v3332
      %v3381 = vadd.f32 %v2910, %v3335
      %v3382 = vadd.f32 %v2911, %v3340
      %v3383 = vadd.f32 %v2912, %v3343
      %v3384 = vadd.f32 %v2913, %v3348
      %v3385 = vadd.f32 %v2914, %v3351
      %s3386 = scalar_lea.vmem %s1, 14
      %v3387 = vld [vmem:[%s3386] sm:$0x3]
      %v3388 = vsel %vm361, %v2917, 0
      %v3390 = vsel %vm361, %v2919, 0
      %v3392 = vsel %vm361, %v2921, 0
      %v3394 = vsel %vm361, %v2923, 0
      %v3396 = vsel %vm361, %v2925, 0
      %v3398 = vsel %vm361, %v2927, 0
      %v3400 = vsel %vm361, %v2929, 0
      %v3402 = vsel %vm361, %v2931, 0
      %v3404 = vsel %vm361, %v2933, 0
      %v3406 = vsel %vm361, %v2935, 0
      %v3408 = vsel %vm361, %v2937, 0
      %v3410 = vsel %vm361, %v2939, 0
      %v3412 = vsel %vm361, %v2941, 0
      %v3414 = vsel %vm361, %v2943, 0
      %v3416 = vsel %vm361, %v2945, 0
      %v3418 = vsel %vm361, %v2947, 0
      %v3421 = vsel %vm897, %v3387, 0
      %3423 = vmatprep.subr.bf16.mxu0 0
      %3424 = vmatpush1.bf16.msra.mxu0 %v3421
      %3425 = vmatprep.subr.bf16.mxu0 0
      %3426 = vmatpush1.bf16.msra.mxu0 0
      %3427 = vmatprep.subr.bf16.mxu0 0
      %3428 = vmatpush1.bf16.msra.mxu0 0
      %3429 = vmatprep.subr.bf16.mxu0 0
      %3430 = vmatpush1.bf16.msra.mxu0 0
      %3431 = vmatprep.subr.bf16.mxu0 0
      %3432 = vmatpush1.bf16.msra.mxu0 0
      %3433 = vmatprep.subr.bf16.mxu0 0
      %3434 = vmatpush1.bf16.msra.mxu0 0
      %3435 = vmatprep.subr.bf16.mxu0 0
      %3436 = vmatpush1.bf16.msra.mxu0 0
      %3437 = vmatprep.subr.bf16.mxu0 0
      %3438 = vmatpush1.bf16.msra.mxu0 0
      %3439 = vmatprep.subr.bf16.mxu0 0
      %3440 = vmatpush1.bf16.msra.mxu0 0
      %3441 = vmatprep.subr.bf16.mxu0 0
      %3442 = vmatpush1.bf16.msra.mxu0 0
      %3443 = vmatprep.subr.bf16.mxu0 0
      %3444 = vmatpush1.bf16.msra.mxu0 0
      %3445 = vmatprep.subr.bf16.mxu0 0
      %3446 = vmatpush1.bf16.msra.mxu0 0
      %3447 = vmatprep.subr.bf16.mxu0 0
      %3448 = vmatpush1.bf16.msra.mxu0 0
      %3449 = vmatprep.subr.bf16.mxu0 0
      %3450 = vmatpush1.bf16.msra.mxu0 0
      %3451 = vmatprep.subr.bf16.mxu0 0
      %3452 = vmatpush1.bf16.msra.mxu0 0
      %3453 = vmatprep.subr.bf16.mxu0 0
      %3454 = vmatpush1.bf16.msra.mxu0 0
      %3455 = vmatprep.mubr.bf16.mxu0 0
      %3456 = vmatmul.mubr.bf16.gmra.mrb[0].mxu0 %v3388
      %v3457 = vpop.f32.mrb[0].mxu0
      %v3458 = vadd.f32 0.0, %v3457
      %v3459 = vpop.f32.mrb[0].mxu0
      %v3460 = vpop.f32.mrb[0].mxu0
      %v3461 = vadd.f32 0.0, %v3460
      %v3462 = vpop.f32.mrb[0].mxu0
      %3463 = vmatprep.mubr.bf16.mxu0 0
      %3464 = vmatmul.mubr.bf16.gmra.mrb[0].mxu0 %v3390
      %v3465 = vpop.f32.mrb[0].mxu0
      %v3466 = vadd.f32 0.0, %v3465
      %v3467 = vpop.f32.mrb[0].mxu0
      %v3468 = vpop.f32.mrb[0].mxu0
      %v3469 = vadd.f32 0.0, %v3468
      %v3470 = vpop.f32.mrb[0].mxu0
      %3471 = vmatprep.mubr.bf16.mxu0 0
      %3472 = vmatmul.mubr.bf16.gmra.mrb[0].mxu0 %v3392
      %v3473 = vpop.f32.mrb[0].mxu0
      %v3474 = vadd.f32 0.0, %v3473
      %v3475 = vpop.f32.mrb[0].mxu0
      %v3476 = vpop.f32.mrb[0].mxu0
      %v3477 = vadd.f32 0.0, %v3476
      %v3478 = vpop.f32.mrb[0].mxu0
      %3479 = vmatprep.mubr.bf16.mxu0 0
      %3480 = vmatmul.mubr.bf16.gmra.mrb[0].mxu0 %v3394
      %v3481 = vpop.f32.mrb[0].mxu0
      %v3482 = vadd.f32 0.0, %v3481
      %v3483 = vpop.f32.mrb[0].mxu0
      %v3484 = vpop.f32.mrb[0].mxu0
      %v3485 = vadd.f32 0.0, %v3484
      %v3486 = vpop.f32.mrb[0].mxu0
      %3487 = vmatprep.mubr.bf16.mxu0 0
      %3488 = vmatmul.mubr.bf16.gmra.mrb[0].mxu0 %v3396
      %v3489 = vpop.f32.mrb[0].mxu0
      %v3490 = vadd.f32 0.0, %v3489
      %v3491 = vpop.f32.mrb[0].mxu0
      %v3492 = vpop.f32.mrb[0].mxu0
      %v3493 = vadd.f32 0.0, %v3492
      %v3494 = vpop.f32.mrb[0].mxu0
      %3495 = vmatprep.mubr.bf16.mxu0 0
      %3496 = vmatmul.mubr.bf16.gmra.mrb[0].mxu0 %v3398
      %v3497 = vpop.f32.mrb[0].mxu0
      %v3498 = vadd.f32 0.0, %v3497
      %v3499 = vpop.f32.mrb[0].mxu0
      %v3500 = vpop.f32.mrb[0].mxu0
      %v3501 = vadd.f32 0.0, %v3500
      %v3502 = vpop.f32.mrb[0].mxu0
      %3503 = vmatprep.mubr.bf16.mxu0 0
      %3504 = vmatmul.mubr.bf16.gmra.mrb[0].mxu0 %v3400
      %v3505 = vpop.f32.mrb[0].mxu0
      %v3506 = vadd.f32 0.0, %v3505
      %v3507 = vpop.f32.mrb[0].mxu0
      %v3508 = vpop.f32.mrb[0].mxu0
      %v3509 = vadd.f32 0.0, %v3508
      %v3510 = vpop.f32.mrb[0].mxu0
      %3511 = vmatprep.mubr.bf16.mxu0 0
      %3512 = vmatmul.mubr.bf16.gmra.mrb[0].mxu0 %v3402
      %v3513 = vpop.f32.mrb[0].mxu0
      %v3514 = vadd.f32 0.0, %v3513
      %v3515 = vpop.f32.mrb[0].mxu0
      %v3516 = vpop.f32.mrb[0].mxu0
      %v3517 = vadd.f32 0.0, %v3516
      %v3518 = vpop.f32.mrb[0].mxu0
      %3519 = vmatprep.mubr.bf16.mxu0 0
      %3520 = vmatmul.mubr.bf16.gmra.mrb[0].mxu0 %v3404
      %v3521 = vpop.f32.mrb[0].mxu0
      %v3522 = vadd.f32 0.0, %v3521
      %v3523 = vpop.f32.mrb[0].mxu0
      %v3524 = vpop.f32.mrb[0].mxu0
      %v3525 = vadd.f32 0.0, %v3524
      %v3526 = vpop.f32.mrb[0].mxu0
      %3527 = vmatprep.mubr.bf16.mxu0 0
      %3528 = vmatmul.mubr.bf16.gmra.mrb[0].mxu0 %v3406
      %v3529 = vpop.f32.mrb[0].mxu0
      %v3530 = vadd.f32 0.0, %v3529
      %v3531 = vpop.f32.mrb[0].mxu0
      %v3532 = vpop.f32.mrb[0].mxu0
      %v3533 = vadd.f32 0.0, %v3532
      %v3534 = vpop.f32.mrb[0].mxu0
      %3535 = vmatprep.mubr.bf16.mxu0 0
      %3536 = vmatmul.mubr.bf16.gmra.mrb[0].mxu0 %v3408
      %v3537 = vpop.f32.mrb[0].mxu0
      %v3538 = vadd.f32 0.0, %v3537
      %v3539 = vpop.f32.mrb[0].mxu0
      %v3540 = vpop.f32.mrb[0].mxu0
      %v3541 = vadd.f32 0.0, %v3540
      %v3542 = vpop.f32.mrb[0].mxu0
      %3543 = vmatprep.mubr.bf16.mxu0 0
      %3544 = vmatmul.mubr.bf16.gmra.mrb[0].mxu0 %v3410
      %v3545 = vpop.f32.mrb[0].mxu0
      %v3546 = vadd.f32 0.0, %v3545
      %v3547 = vpop.f32.mrb[0].mxu0
      %v3548 = vpop.f32.mrb[0].mxu0
      %v3549 = vadd.f32 0.0, %v3548
      %v3550 = vpop.f32.mrb[0].mxu0
      %3551 = vmatprep.mubr.bf16.mxu0 0
      %3552 = vmatmul.mubr.bf16.gmra.mrb[0].mxu0 %v3412
      %v3553 = vpop.f32.mrb[0].mxu0
      %v3554 = vadd.f32 0.0, %v3553
      %v3555 = vpop.f32.mrb[0].mxu0
      %v3556 = vpop.f32.mrb[0].mxu0
      %v3557 = vadd.f32 0.0, %v3556
      %v3558 = vpop.f32.mrb[0].mxu0
      %3559 = vmatprep.mubr.bf16.mxu0 0
      %3560 = vmatmul.mubr.bf16.gmra.mrb[0].mxu0 %v3414
      %v3561 = vpop.f32.mrb[0].mxu0
      %v3562 = vadd.f32 0.0, %v3561
      %v3563 = vpop.f32.mrb[0].mxu0
      %v3564 = vpop.f32.mrb[0].mxu0
      %v3565 = vadd.f32 0.0, %v3564
      %v3566 = vpop.f32.mrb[0].mxu0
      %3567 = vmatprep.mubr.bf16.mxu0 0
      %3568 = vmatmul.mubr.bf16.gmra.mrb[0].mxu0 %v3416
      %v3569 = vpop.f32.mrb[0].mxu0
      %v3570 = vadd.f32 0.0, %v3569
      %v3571 = vpop.f32.mrb[0].mxu0
      %v3572 = vpop.f32.mrb[0].mxu0
      %v3573 = vadd.f32 0.0, %v3572
      %v3574 = vpop.f32.mrb[0].mxu0
      %3575 = vmatprep.mubr.bf16.mxu0 0
      %3576 = vmatmul.mubr.bf16.gmra.mrb[0].mxu0 %v3418
      %v3577 = vpop.f32.mrb[0].mxu0
      %v3578 = vadd.f32 0.0, %v3577
      %v3579 = vpop.f32.mrb[0].mxu0
      %v3580 = vpop.f32.mrb[0].mxu0
      %v3581 = vadd.f32 0.0, %v3580
      %v3582 = vpop.f32.mrb[0].mxu0
      %3583 = vdwg.mxu0
      %v3584 = vadd.f32 %v3354, %v3458
      %v3585 = vadd.f32 %v3355, %v3461
      %v3586 = vadd.f32 %v3356, %v3466
      %v3587 = vadd.f32 %v3357, %v3469
      %v3588 = vadd.f32 %v3358, %v3474
      %v3589 = vadd.f32 %v3359, %v3477
      %v3590 = vadd.f32 %v3360, %v3482
      %v3591 = vadd.f32 %v3361, %v3485
      %v3592 = vadd.f32 %v3362, %v3490
      %v3593 = vadd.f32 %v3363, %v3493
      %v3594 = vadd.f32 %v3364, %v3498
      %v3595 = vadd.f32 %v3365, %v3501
      %v3596 = vadd.f32 %v3366, %v3506
      %v3597 = vadd.f32 %v3367, %v3509
      %v3598 = vadd.f32 %v3368, %v3514
      %v3599 = vadd.f32 %v3369, %v3517
      %v3600 = vadd.f32 %v3370, %v3522
      %v3601 = vadd.f32 %v3371, %v3525
      %v3602 = vadd.f32 %v3372, %v3530
      %v3603 = vadd.f32 %v3373, %v3533
      %v3604 = vadd.f32 %v3374, %v3538
      %v3605 = vadd.f32 %v3375, %v3541
      %v3606 = vadd.f32 %v3376, %v3546
      %v3607 = vadd.f32 %v3377, %v3549
      %v3608 = vadd.f32 %v3378, %v3554
      %v3609 = vadd.f32 %v3379, %v3557
      %v3610 = vadd.f32 %v3380, %v3562
      %v3611 = vadd.f32 %v3381, %v3565
      %v3612 = vadd.f32 %v3382, %v3570
      %v3613 = vadd.f32 %v3383, %v3573
      %v3614 = vadd.f32 %v3384, %v3578
      %v3615 = vadd.f32 %v3385, %v3581
      %v3616 = vld [vmem:[%s2915 + $0x8] sm:$0xff]
      %v3617 = vld [vmem:[%s2915 + $0x10] sm:$0x1]
      %v3618 = vld [vmem:[%s2915 + $0x20] sm:$0xff]
      %v3619 = vld [vmem:[%s2915 + $0x28] sm:$0x1]
      %v3620 = vld [vmem:[%s2915 + $0x38] sm:$0xff]
      %v3621 = vld [vmem:[%s2915 + $0x40] sm:$0x1]
      %v3622 = vld [vmem:[%s2915 + $0x50] sm:$0xff]
      %v3623 = vld [vmem:[%s2915 + $0x58] sm:$0x1]
      %v3624 = vld [vmem:[%s2915 + $0x68] sm:$0xff]
      %v3625 = vld [vmem:[%s2915 + $0x70] sm:$0x1]
      %v3626 = vld [vmem:[%s2915 + $0x80] sm:$0xff]
      %v3627 = vld [vmem:[%s2915 + $0x88] sm:$0x1]
      %v3628 = vld [vmem:[%s2915 + $0x98] sm:$0xff]
      %v3629 = vld [vmem:[%s2915 + $0xa0] sm:$0x1]
      %v3630 = vld [vmem:[%s2915 + $0xb0] sm:$0xff]
      %v3631 = vld [vmem:[%s2915 + $0xb8] sm:$0x1]
      %v3632 = vld [vmem:[%s2915 + $0xc8] sm:$0xff]
      %v3633 = vld [vmem:[%s2915 + $0xd0] sm:$0x1]
      %v3634 = vld [vmem:[%s2915 + $0xe0] sm:$0xff]
      %v3635 = vld [vmem:[%s2915 + $0xe8] sm:$0x1]
      %v3636 = vld [vmem:[%s2915 + $0xf8] sm:$0xff]
      %v3637 = vld [vmem:[%s2915 + $0x100] sm:$0x1]
      %v3638 = vld [vmem:[%s2915 + $0x110] sm:$0xff]
      %v3639 = vld [vmem:[%s2915 + $0x118] sm:$0x1]
      %v3640 = vld [vmem:[%s2915 + $0x128] sm:$0xff]
      %v3641 = vld [vmem:[%s2915 + $0x130] sm:$0x1]
      %v3642 = vld [vmem:[%s2915 + $0x140] sm:$0xff]
      %v3643 = vld [vmem:[%s2915 + $0x148] sm:$0x1]
      %v3644 = vld [vmem:[%s2915 + $0x158] sm:$0xff]
      %v3645 = vld [vmem:[%s2915 + $0x160] sm:$0x1]
      %v3646 = vld [vmem:[%s2915 + $0x170] sm:$0xff]
      %v3647 = vld [vmem:[%s2915 + $0x178] sm:$0x1]
      %v3649 = vshrl.u32 %v3616, 16
      %v3651 = vshll.u32 %v3616, 16
      %v3653 = vrot.slane %v3651, 1
      %v3654 = vor.u32 %v3649, %v3653
      %v3656 = vshll.u32 %v3617, 16
      %v3658 = vrot.slane %v3656, 1
      %v3659 = vsel %vm1306, %v3654, %v3658
      %v3661 = vshrl.u32 %v3618, 16
      %v3663 = vshll.u32 %v3618, 16
      %v3665 = vrot.slane %v3663, 1
      %v3666 = vor.u32 %v3661, %v3665
      %v3668 = vshll.u32 %v3619, 16
      %v3670 = vrot.slane %v3668, 1
      %v3671 = vsel %vm1306, %v3666, %v3670
      %v3673 = vshrl.u32 %v3620, 16
      %v3675 = vshll.u32 %v3620, 16
      %v3677 = vrot.slane %v3675, 1
      %v3678 = vor.u32 %v3673, %v3677
      %v3680 = vshll.u32 %v3621, 16
      %v3682 = vrot.slane %v3680, 1
      %v3683 = vsel %vm1306, %v3678, %v3682
      %v3685 = vshrl.u32 %v3622, 16
      %v3687 = vshll.u32 %v3622, 16
      %v3689 = vrot.slane %v3687, 1
      %v3690 = vor.u32 %v3685, %v3689
      %v3692 = vshll.u32 %v3623, 16
      %v3694 = vrot.slane %v3692, 1
      %v3695 = vsel %vm1306, %v3690, %v3694
      %v3697 = vshrl.u32 %v3624, 16
      %v3699 = vshll.u32 %v3624, 16
      %v3701 = vrot.slane %v3699, 1
      %v3702 = vor.u32 %v3697, %v3701
      %v3704 = vshll.u32 %v3625, 16
      %v3706 = vrot.slane %v3704, 1
      %v3707 = vsel %vm1306, %v3702, %v3706
      %v3709 = vshrl.u32 %v3626, 16
      %v3711 = vshll.u32 %v3626, 16
      %v3713 = vrot.slane %v3711, 1
      %v3714 = vor.u32 %v3709, %v3713
      %v3716 = vshll.u32 %v3627, 16
      %v3718 = vrot.slane %v3716, 1
      %v3719 = vsel %vm1306, %v3714, %v3718
      %v3721 = vshrl.u32 %v3628, 16
      %v3723 = vshll.u32 %v3628, 16
      %v3725 = vrot.slane %v3723, 1
      %v3726 = vor.u32 %v3721, %v3725
      %v3728 = vshll.u32 %v3629, 16
      %v3730 = vrot.slane %v3728, 1
      %v3731 = vsel %vm1306, %v3726, %v3730
      %v3733 = vshrl.u32 %v3630, 16
      %v3735 = vshll.u32 %v3630, 16
      %v3737 = vrot.slane %v3735, 1
      %v3738 = vor.u32 %v3733, %v3737
      %v3740 = vshll.u32 %v3631, 16
      %v3742 = vrot.slane %v3740, 1
      %v3743 = vsel %vm1306, %v3738, %v3742
      %v3745 = vshrl.u32 %v3632, 16
      %v3747 = vshll.u32 %v3632, 16
      %v3749 = vrot.slane %v3747, 1
      %v3750 = vor.u32 %v3745, %v3749
      %v3752 = vshll.u32 %v3633, 16
      %v3754 = vrot.slane %v3752, 1
      %v3755 = vsel %vm1306, %v3750, %v3754
      %v3757 = vshrl.u32 %v3634, 16
      %v3759 = vshll.u32 %v3634, 16
      %v3761 = vrot.slane %v3759, 1
      %v3762 = vor.u32 %v3757, %v3761
      %v3764 = vshll.u32 %v3635, 16
      %v3766 = vrot.slane %v3764, 1
      %v3767 = vsel %vm1306, %v3762, %v3766
      %v3769 = vshrl.u32 %v3636, 16
      %v3771 = vshll.u32 %v3636, 16
      %v3773 = vrot.slane %v3771, 1
      %v3774 = vor.u32 %v3769, %v3773
      %v3776 = vshll.u32 %v3637, 16
      %v3778 = vrot.slane %v3776, 1
      %v3779 = vsel %vm1306, %v3774, %v3778
      %v3781 = vshrl.u32 %v3638, 16
      %v3783 = vshll.u32 %v3638, 16
      %v3785 = vrot.slane %v3783, 1
      %v3786 = vor.u32 %v3781, %v3785
      %v3788 = vshll.u32 %v3639, 16
      %v3790 = vrot.slane %v3788, 1
      %v3791 = vsel %vm1306, %v3786, %v3790
      %v3793 = vshrl.u32 %v3640, 16
      %v3795 = vshll.u32 %v3640, 16
      %v3797 = vrot.slane %v3795, 1
      %v3798 = vor.u32 %v3793, %v3797
      %v3800 = vshll.u32 %v3641, 16
      %v3802 = vrot.slane %v3800, 1
      %v3803 = vsel %vm1306, %v3798, %v3802
      %v3805 = vshrl.u32 %v3642, 16
      %v3807 = vshll.u32 %v3642, 16
      %v3809 = vrot.slane %v3807, 1
      %v3810 = vor.u32 %v3805, %v3809
      %v3812 = vshll.u32 %v3643, 16
      %v3814 = vrot.slane %v3812, 1
      %v3815 = vsel %vm1306, %v3810, %v3814
      %v3817 = vshrl.u32 %v3644, 16
      %v3819 = vshll.u32 %v3644, 16
      %v3821 = vrot.slane %v3819, 1
      %v3822 = vor.u32 %v3817, %v3821
      %v3824 = vshll.u32 %v3645, 16
      %v3826 = vrot.slane %v3824, 1
      %v3827 = vsel %vm1306, %v3822, %v3826
      %v3829 = vshrl.u32 %v3646, 16
      %v3831 = vshll.u32 %v3646, 16
      %v3833 = vrot.slane %v3831, 1
      %v3834 = vor.u32 %v3829, %v3833
      %v3836 = vshll.u32 %v3647, 16
      %v3838 = vrot.slane %v3836, 1
      %v3839 = vsel %vm1306, %v3834, %v3838
      %s3840 = scalar_lea.vmem %s1, 16
      %v3841 = vld [vmem:[%s3840] sm:$0x3]
      %v3843 = vsel %vm361, %v3659, 0
      %v3846 = vsel %vm361, %v3671, 0
      %v3849 = vsel %vm361, %v3683, 0
      %v3852 = vsel %vm361, %v3695, 0
      %v3855 = vsel %vm361, %v3707, 0
      %v3858 = vsel %vm361, %v3719, 0
      %v3861 = vsel %vm361, %v3731, 0
      %v3864 = vsel %vm361, %v3743, 0
      %v3867 = vsel %vm361, %v3755, 0
      %v3870 = vsel %vm361, %v3767, 0
      %v3873 = vsel %vm361, %v3779, 0
      %v3876 = vsel %vm361, %v3791, 0
      %v3879 = vsel %vm361, %v3803, 0
      %v3882 = vsel %vm361, %v3815, 0
      %v3885 = vsel %vm361, %v3827, 0
      %v3888 = vsel %vm361, %v3839, 0
      %v3891 = vsel %vm897, %v3841, 0
      %3893 = vmatprep.subr.bf16.mxu0 0
      %3894 = vmatpush1.bf16.msra.mxu0 %v3891
      %3895 = vmatprep.subr.bf16.mxu0 0
      %3896 = vmatpush1.bf16.msra.mxu0 0
      %3897 = vmatprep.subr.bf16.mxu0 0
      %3898 = vmatpush1.bf16.msra.mxu0 0
      %3899 = vmatprep.subr.bf16.mxu0 0
      %3900 = vmatpush1.bf16.msra.mxu0 0
      %3901 = vmatprep.subr.bf16.mxu0 0
      %3902 = vmatpush1.bf16.msra.mxu0 0
      %3903 = vmatprep.subr.bf16.mxu0 0
      %3904 = vmatpush1.bf16.msra.mxu0 0
      %3905 = vmatprep.subr.bf16.mxu0 0
      %3906 = vmatpush1.bf16.msra.mxu0 0
      %3907 = vmatprep.subr.bf16.mxu0 0
      %3908 = vmatpush1.bf16.msra.mxu0 0
      %3909 = vmatprep.subr.bf16.mxu0 0
      %3910 = vmatpush1.bf16.msra.mxu0 0
      %3911 = vmatprep.subr.bf16.mxu0 0
      %3912 = vmatpush1.bf16.msra.mxu0 0
      %3913 = vmatprep.subr.bf16.mxu0 0
      %3914 = vmatpush1.bf16.msra.mxu0 0
      %3915 = vmatprep.subr.bf16.mxu0 0
      %3916 = vmatpush1.bf16.msra.mxu0 0
      %3917 = vmatprep.subr.bf16.mxu0 0
      %3918 = vmatpush1.bf16.msra.mxu0 0
      %3919 = vmatprep.subr.bf16.mxu0 0
      %3920 = vmatpush1.bf16.msra.mxu0 0
      %3921 = vmatprep.subr.bf16.mxu0 0
      %3922 = vmatpush1.bf16.msra.mxu0 0
      %3923 = vmatprep.subr.bf16.mxu0 0
      %3924 = vmatpush1.bf16.msra.mxu0 0
      %3925 = vmatprep.mubr.bf16.mxu0 0
      %3926 = vmatmul.mubr.bf16.gmra.mrb[0].mxu0 %v3843
      %v3927 = vpop.f32.mrb[0].mxu0
      %v3928 = vadd.f32 0.0, %v3927
      %v3929 = vpop.f32.mrb[0].mxu0
      %v3930 = vpop.f32.mrb[0].mxu0
      %v3931 = vadd.f32 0.0, %v3930
      %v3932 = vpop.f32.mrb[0].mxu0
      %3933 = vmatprep.mubr.bf16.mxu0 0
      %3934 = vmatmul.mubr.bf16.gmra.mrb[0].mxu0 %v3846
      %v3935 = vpop.f32.mrb[0].mxu0
      %v3936 = vadd.f32 0.0, %v3935
      %v3937 = vpop.f32.mrb[0].mxu0
      %v3938 = vpop.f32.mrb[0].mxu0
      %v3939 = vadd.f32 0.0, %v3938
      %v3940 = vpop.f32.mrb[0].mxu0
      %3941 = vmatprep.mubr.bf16.mxu0 0
      %3942 = vmatmul.mubr.bf16.gmra.mrb[0].mxu0 %v3849
      %v3943 = vpop.f32.mrb[0].mxu0
      %v3944 = vadd.f32 0.0, %v3943
      %v3945 = vpop.f32.mrb[0].mxu0
      %v3946 = vpop.f32.mrb[0].mxu0
      %v3947 = vadd.f32 0.0, %v3946
      %v3948 = vpop.f32.mrb[0].mxu0
      %3949 = vmatprep.mubr.bf16.mxu0 0
      %3950 = vmatmul.mubr.bf16.gmra.mrb[0].mxu0 %v3852
      %v3951 = vpop.f32.mrb[0].mxu0
      %v3952 = vadd.f32 0.0, %v3951
      %v3953 = vpop.f32.mrb[0].mxu0
      %v3954 = vpop.f32.mrb[0].mxu0
      %v3955 = vadd.f32 0.0, %v3954
      %v3956 = vpop.f32.mrb[0].mxu0
      %3957 = vmatprep.mubr.bf16.mxu0 0
      %3958 = vmatmul.mubr.bf16.gmra.mrb[0].mxu0 %v3855
      %v3959 = vpop.f32.mrb[0].mxu0
      %v3960 = vadd.f32 0.0, %v3959
      %v3961 = vpop.f32.mrb[0].mxu0
      %v3962 = vpop.f32.mrb[0].mxu0
      %v3963 = vadd.f32 0.0, %v3962
      %v3964 = vpop.f32.mrb[0].mxu0
      %3965 = vmatprep.mubr.bf16.mxu0 0
      %3966 = vmatmul.mubr.bf16.gmra.mrb[0].mxu0 %v3858
      %v3967 = vpop.f32.mrb[0].mxu0
      %v3968 = vadd.f32 0.0, %v3967
      %v3969 = vpop.f32.mrb[0].mxu0
      %v3970 = vpop.f32.mrb[0].mxu0
      %v3971 = vadd.f32 0.0, %v3970
      %v3972 = vpop.f32.mrb[0].mxu0
      %3973 = vmatprep.mubr.bf16.mxu0 0
      %3974 = vmatmul.mubr.bf16.gmra.mrb[0].mxu0 %v3861
      %v3975 = vpop.f32.mrb[0].mxu0
      %v3976 = vadd.f32 0.0, %v3975
      %v3977 = vpop.f32.mrb[0].mxu0
      %v3978 = vpop.f32.mrb[0].mxu0
      %v3979 = vadd.f32 0.0, %v3978
      %v3980 = vpop.f32.mrb[0].mxu0
      %3981 = vmatprep.mubr.bf16.mxu0 0
      %3982 = vmatmul.mubr.bf16.gmra.mrb[0].mxu0 %v3864
      %v3983 = vpop.f32.mrb[0].mxu0
      %v3984 = vadd.f32 0.0, %v3983
      %v3985 = vpop.f32.mrb[0].mxu0
      %v3986 = vpop.f32.mrb[0].mxu0
      %v3987 = vadd.f32 0.0, %v3986
      %v3988 = vpop.f32.mrb[0].mxu0
      %3989 = vmatprep.mubr.bf16.mxu0 0
      %3990 = vmatmul.mubr.bf16.gmra.mrb[0].mxu0 %v3867
      %v3991 = vpop.f32.mrb[0].mxu0
      %v3992 = vadd.f32 0.0, %v3991
      %v3993 = vpop.f32.mrb[0].mxu0
      %v3994 = vpop.f32.mrb[0].mxu0
      %v3995 = vadd.f32 0.0, %v3994
      %v3996 = vpop.f32.mrb[0].mxu0
      %3997 = vmatprep.mubr.bf16.mxu0 0
      %3998 = vmatmul.mubr.bf16.gmra.mrb[0].mxu0 %v3870
      %v3999 = vpop.f32.mrb[0].mxu0
      %v4000 = vadd.f32 0.0, %v3999
      %v4001 = vpop.f32.mrb[0].mxu0
      %v4002 = vpop.f32.mrb[0].mxu0
      %v4003 = vadd.f32 0.0, %v4002
      %v4004 = vpop.f32.mrb[0].mxu0
      %4005 = vmatprep.mubr.bf16.mxu0 0
      %4006 = vmatmul.mubr.bf16.gmra.mrb[0].mxu0 %v3873
      %v4007 = vpop.f32.mrb[0].mxu0
      %v4008 = vadd.f32 0.0, %v4007
      %v4009 = vpop.f32.mrb[0].mxu0
      %v4010 = vpop.f32.mrb[0].mxu0
      %v4011 = vadd.f32 0.0, %v4010
      %v4012 = vpop.f32.mrb[0].mxu0
      %4013 = vmatprep.mubr.bf16.mxu0 0
      %4014 = vmatmul.mubr.bf16.gmra.mrb[0].mxu0 %v3876
      %v4015 = vpop.f32.mrb[0].mxu0
      %v4016 = vadd.f32 0.0, %v4015
      %v4017 = vpop.f32.mrb[0].mxu0
      %v4018 = vpop.f32.mrb[0].mxu0
      %v4019 = vadd.f32 0.0, %v4018
      %v4020 = vpop.f32.mrb[0].mxu0
      %4021 = vmatprep.mubr.bf16.mxu0 0
      %4022 = vmatmul.mubr.bf16.gmra.mrb[0].mxu0 %v3879
      %v4023 = vpop.f32.mrb[0].mxu0
      %v4024 = vadd.f32 0.0, %v4023
      %v4025 = vpop.f32.mrb[0].mxu0
      %v4026 = vpop.f32.mrb[0].mxu0
      %v4027 = vadd.f32 0.0, %v4026
      %v4028 = vpop.f32.mrb[0].mxu0
      %4029 = vmatprep.mubr.bf16.mxu0 0
      %4030 = vmatmul.mubr.bf16.gmra.mrb[0].mxu0 %v3882
      %v4031 = vpop.f32.mrb[0].mxu0
      %v4032 = vadd.f32 0.0, %v4031
      %v4033 = vpop.f32.mrb[0].mxu0
      %v4034 = vpop.f32.mrb[0].mxu0
      %v4035 = vadd.f32 0.0, %v4034
      %v4036 = vpop.f32.mrb[0].mxu0
      %4037 = vmatprep.mubr.bf16.mxu0 0
      %4038 = vmatmul.mubr.bf16.gmra.mrb[0].mxu0 %v3885
      %v4039 = vpop.f32.mrb[0].mxu0
      %v4040 = vadd.f32 0.0, %v4039
      %v4041 = vpop.f32.mrb[0].mxu0
      %v4042 = vpop.f32.mrb[0].mxu0
      %v4043 = vadd.f32 0.0, %v4042
      %v4044 = vpop.f32.mrb[0].mxu0
      %4045 = vmatprep.mubr.bf16.mxu0 0
      %4046 = vmatmul.mubr.bf16.gmra.mrb[0].mxu0 %v3888
      %v4047 = vpop.f32.mrb[0].mxu0
      %v4048 = vadd.f32 0.0, %v4047
      %v4049 = vpop.f32.mrb[0].mxu0
      %v4050 = vpop.f32.mrb[0].mxu0
      %v4051 = vadd.f32 0.0, %v4050
      %v4052 = vpop.f32.mrb[0].mxu0
      %4053 = vdwg.mxu0
      %v4054 = vadd.f32 %v3584, %v3928
      %v4055 = vadd.f32 %v3585, %v3931
      %v4056 = vadd.f32 %v3586, %v3936
      %v4057 = vadd.f32 %v3587, %v3939
      %v4058 = vadd.f32 %v3588, %v3944
      %v4059 = vadd.f32 %v3589, %v3947
      %v4060 = vadd.f32 %v3590, %v3952
      %v4061 = vadd.f32 %v3591, %v3955
      %v4062 = vadd.f32 %v3592, %v3960
      %v4063 = vadd.f32 %v3593, %v3963
      %v4064 = vadd.f32 %v3594, %v3968
      %v4065 = vadd.f32 %v3595, %v3971
      %v4066 = vadd.f32 %v3596, %v3976
      %v4067 = vadd.f32 %v3597, %v3979
      %v4068 = vadd.f32 %v3598, %v3984
      %v4069 = vadd.f32 %v3599, %v3987
      %v4070 = vadd.f32 %v3600, %v3992
      %v4071 = vadd.f32 %v3601, %v3995
      %v4072 = vadd.f32 %v3602, %v4000
      %v4073 = vadd.f32 %v3603, %v4003
      %v4074 = vadd.f32 %v3604, %v4008
      %v4075 = vadd.f32 %v3605, %v4011
      %v4076 = vadd.f32 %v3606, %v4016
      %v4077 = vadd.f32 %v3607, %v4019
      %v4078 = vadd.f32 %v3608, %v4024
      %v4079 = vadd.f32 %v3609, %v4027
      %v4080 = vadd.f32 %v3610, %v4032
      %v4081 = vadd.f32 %v3611, %v4035
      %v4082 = vadd.f32 %v3612, %v4040
      %v4083 = vadd.f32 %v3613, %v4043
      %v4084 = vadd.f32 %v3614, %v4048
      %v4085 = vadd.f32 %v3615, %v4051
      %v4086 = vld [vmem:[%s2] sm:$0x1]
      %v4088 = vlaneseq
      %v4089 = vshrl.u32 %v4088, 7
      %v4090 = vsub.s32 0, %v4089
      %v4091 = vrot.slane %v4086, %v4090
      %v4093 = vmul.f32 %v4054, %v4091
      %v4094 = vmul.f32 %v4055, %v4091
      %v4095 = vmul.f32 %v4056, %v4091
      %v4096 = vmul.f32 %v4057, %v4091
      %v4097 = vmul.f32 %v4058, %v4091
      %v4098 = vmul.f32 %v4059, %v4091
      %v4099 = vmul.f32 %v4060, %v4091
      %v4100 = vmul.f32 %v4061, %v4091
      %v4101 = vmul.f32 %v4062, %v4091
      %v4102 = vmul.f32 %v4063, %v4091
      %v4103 = vmul.f32 %v4064, %v4091
      %v4104 = vmul.f32 %v4065, %v4091
      %v4105 = vmul.f32 %v4066, %v4091
      %v4106 = vmul.f32 %v4067, %v4091
      %v4107 = vmul.f32 %v4068, %v4091
      %v4108 = vmul.f32 %v4069, %v4091
      %v4109 = vmul.f32 %v4070, %v4091
      %v4110 = vmul.f32 %v4071, %v4091
      %v4111 = vmul.f32 %v4072, %v4091
      %v4112 = vmul.f32 %v4073, %v4091
      %v4113 = vmul.f32 %v4074, %v4091
      %v4114 = vmul.f32 %v4075, %v4091
      %v4115 = vmul.f32 %v4076, %v4091
      %v4116 = vmul.f32 %v4077, %v4091
      %v4117 = vmul.f32 %v4078, %v4091
      %v4118 = vmul.f32 %v4079, %v4091
      %v4119 = vmul.f32 %v4080, %v4091
      %v4120 = vmul.f32 %v4081, %v4091
      %v4121 = vmul.f32 %v4082, %v4091
      %v4122 = vmul.f32 %v4083, %v4091
      %v4123 = vmul.f32 %v4084, %v4091
      %v4124 = vmul.f32 %v4085, %v4091
      %v4125 = vld [vmem:[%s3] sm:$0x1]
      %v4127 = vlaneseq
      %v4128 = vshrl.u32 %v4127, 7
      %v4129 = vsub.s32 0, %v4128
      %v4130 = vrot.slane %v4125, %v4129
      %v4132 = vadd.f32 %v4093, %v4130
      %v4133 = vadd.f32 %v4094, %v4130
      %v4134 = vadd.f32 %v4095, %v4130
      %v4135 = vadd.f32 %v4096, %v4130
      %v4136 = vadd.f32 %v4097, %v4130
      %v4137 = vadd.f32 %v4098, %v4130
      %v4138 = vadd.f32 %v4099, %v4130
      %v4139 = vadd.f32 %v4100, %v4130
      %v4140 = vadd.f32 %v4101, %v4130
      %v4141 = vadd.f32 %v4102, %v4130
      %v4142 = vadd.f32 %v4103, %v4130
      %v4143 = vadd.f32 %v4104, %v4130
      %v4144 = vadd.f32 %v4105, %v4130
      %v4145 = vadd.f32 %v4106, %v4130
      %v4146 = vadd.f32 %v4107, %v4130
      %v4147 = vadd.f32 %v4108, %v4130
      %v4148 = vadd.f32 %v4109, %v4130
      %v4149 = vadd.f32 %v4110, %v4130
      %v4150 = vadd.f32 %v4111, %v4130
      %v4151 = vadd.f32 %v4112, %v4130
      %v4152 = vadd.f32 %v4113, %v4130
      %v4153 = vadd.f32 %v4114, %v4130
      %v4154 = vadd.f32 %v4115, %v4130
      %v4155 = vadd.f32 %v4116, %v4130
      %v4156 = vadd.f32 %v4117, %v4130
      %v4157 = vadd.f32 %v4118, %v4130
      %v4158 = vadd.f32 %v4119, %v4130
      %v4159 = vadd.f32 %v4120, %v4130
      %v4160 = vadd.f32 %v4121, %v4130
      %v4161 = vadd.f32 %v4122, %v4130
      %v4162 = vadd.f32 %v4123, %v4130
      %v4163 = vadd.f32 %v4124, %v4130
      %v4164 = vmax.f32 %v4132, 0.0
      %v4165 = vmax.f32 %v4133, 0.0
      %v4166 = vmax.f32 %v4134, 0.0
      %v4167 = vmax.f32 %v4135, 0.0
      %v4168 = vmax.f32 %v4136, 0.0
      %v4169 = vmax.f32 %v4137, 0.0
      %v4170 = vmax.f32 %v4138, 0.0
      %v4171 = vmax.f32 %v4139, 0.0
      %v4172 = vmax.f32 %v4140, 0.0
      %v4173 = vmax.f32 %v4141, 0.0
      %v4174 = vmax.f32 %v4142, 0.0
      %v4175 = vmax.f32 %v4143, 0.0
      %v4176 = vmax.f32 %v4144, 0.0
      %v4177 = vmax.f32 %v4145, 0.0
      %v4178 = vmax.f32 %v4146, 0.0
      %v4179 = vmax.f32 %v4147, 0.0
      %v4180 = vmax.f32 %v4148, 0.0
      %v4181 = vmax.f32 %v4149, 0.0
      %v4182 = vmax.f32 %v4150, 0.0
      %v4183 = vmax.f32 %v4151, 0.0
      %v4184 = vmax.f32 %v4152, 0.0
      %v4185 = vmax.f32 %v4153, 0.0
      %v4186 = vmax.f32 %v4154, 0.0
      %v4187 = vmax.f32 %v4155, 0.0
      %v4188 = vmax.f32 %v4156, 0.0
      %v4189 = vmax.f32 %v4157, 0.0
      %v4190 = vmax.f32 %v4158, 0.0
      %v4191 = vmax.f32 %v4159, 0.0
      %v4192 = vmax.f32 %v4160, 0.0
      %v4193 = vmax.f32 %v4161, 0.0
      %v4194 = vmax.f32 %v4162, 0.0
      %v4195 = vmax.f32 %v4163, 0.0
      %v4196 = vpack.c.bf16 %v4165, %v4164
      %v4197 = vpack.c.bf16 %v4167, %v4166
      %v4198 = vpack.c.bf16 %v4169, %v4168
      %v4199 = vpack.c.bf16 %v4171, %v4170
      %v4200 = vpack.c.bf16 %v4173, %v4172
      %v4201 = vpack.c.bf16 %v4175, %v4174
      %v4202 = vpack.c.bf16 %v4177, %v4176
      %v4203 = vpack.c.bf16 %v4179, %v4178
      %v4204 = vpack.c.bf16 %v4181, %v4180
      %v4205 = vpack.c.bf16 %v4183, %v4182
      %v4206 = vpack.c.bf16 %v4185, %v4184
      %v4207 = vpack.c.bf16 %v4187, %v4186
      %v4208 = vpack.c.bf16 %v4189, %v4188
      %v4209 = vpack.c.bf16 %v4191, %v4190
      %v4210 = vpack.c.bf16 %v4193, %v4192
      %v4211 = vpack.c.bf16 %v4195, %v4194
      %s4212 = scalar_lea.vmem [#allocation3], 24
      %4213 = vst.msk [vmem:[%s4212 + $0x8] sm:$0xff] %vm405, %v4196
      %4214 = vst.msk [vmem:[%s4212 + $0x20] sm:$0xff] %vm405, %v4197
      %4215 = vst.msk [vmem:[%s4212 + $0x38] sm:$0xff] %vm405, %v4198
      %4216 = vst.msk [vmem:[%s4212 + $0x50] sm:$0xff] %vm405, %v4199
      %4217 = vst.msk [vmem:[%s4212 + $0x68] sm:$0xff] %vm405, %v4200
      %4218 = vst.msk [vmem:[%s4212 + $0x80] sm:$0xff] %vm405, %v4201
      %4219 = vst.msk [vmem:[%s4212 + $0x98] sm:$0xff] %vm405, %v4202
      %4220 = vst.msk [vmem:[%s4212 + $0xb0] sm:$0xff] %vm405, %v4203
      %4221 = vst.msk [vmem:[%s4212 + $0xc8] sm:$0xff] %vm405, %v4204
      %4222 = vst.msk [vmem:[%s4212 + $0xe0] sm:$0xff] %vm405, %v4205
      %4223 = vst.msk [vmem:[%s4212 + $0xf8] sm:$0xff] %vm405, %v4206
      %4224 = vst.msk [vmem:[%s4212 + $0x110] sm:$0xff] %vm405, %v4207
      %4225 = vst.msk [vmem:[%s4212 + $0x128] sm:$0xff] %vm405, %v4208
      %4226 = vst.msk [vmem:[%s4212 + $0x140] sm:$0xff] %vm405, %v4209
      %4227 = vst.msk [vmem:[%s4212 + $0x158] sm:$0xff] %vm405, %v4210
      %4228 = vst.msk [vmem:[%s4212 + $0x170] sm:$0xff] %vm405, %v4211
      %v4229 = vld [vmem:[#allocation3] sm:$0x80]
      %v4230 = vld [vmem:[#allocation3 + $0x8] sm:$0xff]
      %v4231 = vld [vmem:[#allocation3 + $0x18] sm:$0x80]
      %v4232 = vld [vmem:[#allocation3 + $0x20] sm:$0xff]
      %v4233 = vld [vmem:[#allocation3 + $0x30] sm:$0x80]
      %v4234 = vld [vmem:[#allocation3 + $0x38] sm:$0xff]
      %v4235 = vld [vmem:[#allocation3 + $0x48] sm:$0x80]
      %v4236 = vld [vmem:[#allocation3 + $0x50] sm:$0xff]
      %v4237 = vld [vmem:[#allocation3 + $0x60] sm:$0x80]
      %v4238 = vld [vmem:[#allocation3 + $0x68] sm:$0xff]
      %v4239 = vld [vmem:[#allocation3 + $0x78] sm:$0x80]
      %v4240 = vld [vmem:[#allocation3 + $0x80] sm:$0xff]
      %v4241 = vld [vmem:[#allocation3 + $0x90] sm:$0x80]
      %v4242 = vld [vmem:[#allocation3 + $0x98] sm:$0xff]
      %v4243 = vld [vmem:[#allocation3 + $0xa8] sm:$0x80]
      %v4244 = vld [vmem:[#allocation3 + $0xb0] sm:$0xff]
      %v4245 = vld [vmem:[#allocation3 + $0xc0] sm:$0x80]
      %v4246 = vld [vmem:[#allocation3 + $0xc8] sm:$0xff]
      %v4247 = vld [vmem:[#allocation3 + $0xd8] sm:$0x80]
      %v4248 = vld [vmem:[#allocation3 + $0xe0] sm:$0xff]
      %v4249 = vld [vmem:[#allocation3 + $0xf0] sm:$0x80]
      %v4250 = vld [vmem:[#allocation3 + $0xf8] sm:$0xff]
      %v4251 = vld [vmem:[#allocation3 + $0x108] sm:$0x80]
      %v4252 = vld [vmem:[#allocation3 + $0x110] sm:$0xff]
      %v4253 = vld [vmem:[#allocation3 + $0x120] sm:$0x80]
      %v4254 = vld [vmem:[#allocation3 + $0x128] sm:$0xff]
      %v4255 = vld [vmem:[#allocation3 + $0x138] sm:$0x80]
      %v4256 = vld [vmem:[#allocation3 + $0x140] sm:$0xff]
      %v4257 = vld [vmem:[#allocation3 + $0x150] sm:$0x80]
      %v4258 = vld [vmem:[#allocation3 + $0x158] sm:$0xff]
      %v4259 = vld [vmem:[#allocation3 + $0x168] sm:$0x80]
      %v4260 = vld [vmem:[#allocation3 + $0x170] sm:$0xff]
      %v4262 = vshrl.u32 %v4229, 16
      %v4264 = vrot.slane %v4262, 7
      %v4266 = vshrl.u32 %v4230, 16
      %v4268 = vrot.slane %v4266, 7
      %v4269 = vshll.u32 %v4230, 16
      %v4271 = vor.u32 %v4268, %v4269
      %v4272 = vsel %vm669, %v4264, %v4271
      %v4274 = vshrl.u32 %v4231, 16
      %v4276 = vrot.slane %v4274, 7
      %v4278 = vshrl.u32 %v4232, 16
      %v4280 = vrot.slane %v4278, 7
      %v4281 = vshll.u32 %v4232, 16
      %v4283 = vor.u32 %v4280, %v4281
      %v4284 = vsel %vm669, %v4276, %v4283
      %v4286 = vshrl.u32 %v4233, 16
      %v4288 = vrot.slane %v4286, 7
      %v4290 = vshrl.u32 %v4234, 16
      %v4292 = vrot.slane %v4290, 7
      %v4293 = vshll.u32 %v4234, 16
      %v4295 = vor.u32 %v4292, %v4293
      %v4296 = vsel %vm669, %v4288, %v4295
      %v4298 = vshrl.u32 %v4235, 16
      %v4300 = vrot.slane %v4298, 7
      %v4302 = vshrl.u32 %v4236, 16
      %v4304 = vrot.slane %v4302, 7
      %v4305 = vshll.u32 %v4236, 16
      %v4307 = vor.u32 %v4304, %v4305
      %v4308 = vsel %vm669, %v4300, %v4307
      %v4310 = vshrl.u32 %v4237, 16
      %v4312 = vrot.slane %v4310, 7
      %v4314 = vshrl.u32 %v4238, 16
      %v4316 = vrot.slane %v4314, 7
      %v4317 = vshll.u32 %v4238, 16
      %v4319 = vor.u32 %v4316, %v4317
      %v4320 = vsel %vm669, %v4312, %v4319
      %v4322 = vshrl.u32 %v4239, 16
      %v4324 = vrot.slane %v4322, 7
      %v4326 = vshrl.u32 %v4240, 16
      %v4328 = vrot.slane %v4326, 7
      %v4329 = vshll.u32 %v4240, 16
      %v4331 = vor.u32 %v4328, %v4329
      %v4332 = vsel %vm669, %v4324, %v4331
      %v4334 = vshrl.u32 %v4241, 16
      %v4336 = vrot.slane %v4334, 7
      %v4338 = vshrl.u32 %v4242, 16
      %v4340 = vrot.slane %v4338, 7
      %v4341 = vshll.u32 %v4242, 16
      %v4343 = vor.u32 %v4340, %v4341
      %v4344 = vsel %vm669, %v4336, %v4343
      %v4346 = vshrl.u32 %v4243, 16
      %v4348 = vrot.slane %v4346, 7
      %v4350 = vshrl.u32 %v4244, 16
      %v4352 = vrot.slane %v4350, 7
      %v4353 = vshll.u32 %v4244, 16
      %v4355 = vor.u32 %v4352, %v4353
      %v4356 = vsel %vm669, %v4348, %v4355
      %v4358 = vshrl.u32 %v4245, 16
      %v4360 = vrot.slane %v4358, 7
      %v4362 = vshrl.u32 %v4246, 16
      %v4364 = vrot.slane %v4362, 7
      %v4365 = vshll.u32 %v4246, 16
      %v4367 = vor.u32 %v4364, %v4365
      %v4368 = vsel %vm669, %v4360, %v4367
      %v4370 = vshrl.u32 %v4247, 16
      %v4372 = vrot.slane %v4370, 7
      %v4374 = vshrl.u32 %v4248, 16
      %v4376 = vrot.slane %v4374, 7
      %v4377 = vshll.u32 %v4248, 16
      %v4379 = vor.u32 %v4376, %v4377
      %v4380 = vsel %vm669, %v4372, %v4379
      %v4382 = vshrl.u32 %v4249, 16
      %v4384 = vrot.slane %v4382, 7
      %v4386 = vshrl.u32 %v4250, 16
      %v4388 = vrot.slane %v4386, 7
      %v4389 = vshll.u32 %v4250, 16
      %v4391 = vor.u32 %v4388, %v4389
      %v4392 = vsel %vm669, %v4384, %v4391
      %v4394 = vshrl.u32 %v4251, 16
      %v4396 = vrot.slane %v4394, 7
      %v4398 = vshrl.u32 %v4252, 16
      %v4400 = vrot.slane %v4398, 7
      %v4401 = vshll.u32 %v4252, 16
      %v4403 = vor.u32 %v4400, %v4401
      %v4404 = vsel %vm669, %v4396, %v4403
      %v4406 = vshrl.u32 %v4253, 16
      %v4408 = vrot.slane %v4406, 7
      %v4410 = vshrl.u32 %v4254, 16
      %v4412 = vrot.slane %v4410, 7
      %v4413 = vshll.u32 %v4254, 16
      %v4415 = vor.u32 %v4412, %v4413
      %v4416 = vsel %vm669, %v4408, %v4415
      %v4418 = vshrl.u32 %v4255, 16
      %v4420 = vrot.slane %v4418, 7
      %v4422 = vshrl.u32 %v4256, 16
      %v4424 = vrot.slane %v4422, 7
      %v4425 = vshll.u32 %v4256, 16
      %v4427 = vor.u32 %v4424, %v4425
      %v4428 = vsel %vm669, %v4420, %v4427
      %v4430 = vshrl.u32 %v4257, 16
      %v4432 = vrot.slane %v4430, 7
      %v4434 = vshrl.u32 %v4258, 16
      %v4436 = vrot.slane %v4434, 7
      %v4437 = vshll.u32 %v4258, 16
      %v4439 = vor.u32 %v4436, %v4437
      %v4440 = vsel %vm669, %v4432, %v4439
      %v4442 = vshrl.u32 %v4259, 16
      %v4444 = vrot.slane %v4442, 7
      %v4446 = vshrl.u32 %v4260, 16
      %v4448 = vrot.slane %v4446, 7
      %v4449 = vshll.u32 %v4260, 16
      %v4451 = vor.u32 %v4448, %v4449
      %v4452 = vsel %vm669, %v4444, %v4451
      %v4453 = vld [vmem:[%s4] sm:$0xf]
      %s4454 = scalar_lea.vmem %s4, 4
      %v4455 = vld [vmem:[%s4454] sm:$0xf]
      %v4456 = vsel %vm405, %v4230, 0
      %v4458 = vsel %vm405, %v4232, 0
      %v4460 = vsel %vm405, %v4234, 0
      %v4462 = vsel %vm405, %v4236, 0
      %v4464 = vsel %vm405, %v4238, 0
      %v4466 = vsel %vm405, %v4240, 0
      %v4468 = vsel %vm405, %v4242, 0
      %v4470 = vsel %vm405, %v4244, 0
      %v4472 = vsel %vm405, %v4246, 0
      %v4474 = vsel %vm405, %v4248, 0
      %v4476 = vsel %vm405, %v4250, 0
      %v4478 = vsel %vm405, %v4252, 0
      %v4480 = vsel %vm405, %v4254, 0
      %v4482 = vsel %vm405, %v4256, 0
      %v4484 = vsel %vm405, %v4258, 0
      %v4486 = vsel %vm405, %v4260, 0
      %vm4488 = vcmask 1043456
      %v4490 = vsel %vm4488, %v4455, 0
      %4492 = vmatprep.subr.bf16.mxu0 0
      %4493 = vmatpush1.bf16.msra.mxu0 %v4490
      %4494 = vmatprep.subr.bf16.mxu0 0
      %4495 = vmatpush1.bf16.msra.mxu0 0
      %4496 = vmatprep.subr.bf16.mxu0 0
      %4497 = vmatpush1.bf16.msra.mxu0 0
      %4498 = vmatprep.subr.bf16.mxu0 0
      %4499 = vmatpush1.bf16.msra.mxu0 0
      %4500 = vmatprep.subr.bf16.mxu0 0
      %4501 = vmatpush1.bf16.msra.mxu0 0
      %4502 = vmatprep.subr.bf16.mxu0 0
      %4503 = vmatpush1.bf16.msra.mxu0 0
      %4504 = vmatprep.subr.bf16.mxu0 0
      %4505 = vmatpush1.bf16.msra.mxu0 0
      %4506 = vmatprep.subr.bf16.mxu0 0
      %4507 = vmatpush1.bf16.msra.mxu0 0
      %4508 = vmatprep.subr.bf16.mxu0 0
      %4509 = vmatpush1.bf16.msra.mxu0 0
      %4510 = vmatprep.subr.bf16.mxu0 0
      %4511 = vmatpush1.bf16.msra.mxu0 0
      %4512 = vmatprep.subr.bf16.mxu0 0
      %4513 = vmatpush1.bf16.msra.mxu0 0
      %4514 = vmatprep.subr.bf16.mxu0 0
      %4515 = vmatpush1.bf16.msra.mxu0 0
      %4516 = vmatprep.subr.bf16.mxu0 0
      %4517 = vmatpush1.bf16.msra.mxu0 0
      %4518 = vmatprep.subr.bf16.mxu0 0
      %4519 = vmatpush1.bf16.msra.mxu0 0
      %4520 = vmatprep.subr.bf16.mxu0 0
      %4521 = vmatpush1.bf16.msra.mxu0 0
      %4522 = vmatprep.subr.bf16.mxu0 0
      %4523 = vmatpush1.bf16.msra.mxu0 0
      %4524 = vmatprep.mubr.bf16.mxu0 0
      %4525 = vmatmul.mubr.bf16.gmra.mrb[0].mxu0 %v4456
      %v4526 = vpop.f32.mrb[0].mxu0
      %v4527 = vadd.f32 0.0, %v4526
      %v4528 = vpop.f32.mrb[0].mxu0
      %v4529 = vpop.f32.mrb[0].mxu0
      %v4530 = vadd.f32 0.0, %v4529
      %v4531 = vpop.f32.mrb[0].mxu0
      %4532 = vmatprep.mubr.bf16.mxu0 0
      %4533 = vmatmul.mubr.bf16.gmra.mrb[0].mxu0 %v4458
      %v4534 = vpop.f32.mrb[0].mxu0
      %v4535 = vadd.f32 0.0, %v4534
      %v4536 = vpop.f32.mrb[0].mxu0
      %v4537 = vpop.f32.mrb[0].mxu0
      %v4538 = vadd.f32 0.0, %v4537
      %v4539 = vpop.f32.mrb[0].mxu0
      %4540 = vmatprep.mubr.bf16.mxu0 0
      %4541 = vmatmul.mubr.bf16.gmra.mrb[0].mxu0 %v4460
      %v4542 = vpop.f32.mrb[0].mxu0
      %v4543 = vadd.f32 0.0, %v4542
      %v4544 = vpop.f32.mrb[0].mxu0
      %v4545 = vpop.f32.mrb[0].mxu0
      %v4546 = vadd.f32 0.0, %v4545
      %v4547 = vpop.f32.mrb[0].mxu0
      %4548 = vmatprep.mubr.bf16.mxu0 0
      %4549 = vmatmul.mubr.bf16.gmra.mrb[0].mxu0 %v4462
      %v4550 = vpop.f32.mrb[0].mxu0
      %v4551 = vadd.f32 0.0, %v4550
      %v4552 = vpop.f32.mrb[0].mxu0
      %v4553 = vpop.f32.mrb[0].mxu0
      %v4554 = vadd.f32 0.0, %v4553
      %v4555 = vpop.f32.mrb[0].mxu0
      %4556 = vmatprep.mubr.bf16.mxu0 0
      %4557 = vmatmul.mubr.bf16.gmra.mrb[0].mxu0 %v4464
      %v4558 = vpop.f32.mrb[0].mxu0
      %v4559 = vadd.f32 0.0, %v4558
      %v4560 = vpop.f32.mrb[0].mxu0
      %v4561 = vpop.f32.mrb[0].mxu0
      %v4562 = vadd.f32 0.0, %v4561
      %v4563 = vpop.f32.mrb[0].mxu0
      %4564 = vmatprep.mubr.bf16.mxu0 0
      %4565 = vmatmul.mubr.bf16.gmra.mrb[0].mxu0 %v4466
      %v4566 = vpop.f32.mrb[0].mxu0
      %v4567 = vadd.f32 0.0, %v4566
      %v4568 = vpop.f32.mrb[0].mxu0
      %v4569 = vpop.f32.mrb[0].mxu0
      %v4570 = vadd.f32 0.0, %v4569
      %v4571 = vpop.f32.mrb[0].mxu0
      %4572 = vmatprep.mubr.bf16.mxu0 0
      %4573 = vmatmul.mubr.bf16.gmra.mrb[0].mxu0 %v4468
      %v4574 = vpop.f32.mrb[0].mxu0
      %v4575 = vadd.f32 0.0, %v4574
      %v4576 = vpop.f32.mrb[0].mxu0
      %v4577 = vpop.f32.mrb[0].mxu0
      %v4578 = vadd.f32 0.0, %v4577
      %v4579 = vpop.f32.mrb[0].mxu0
      %4580 = vmatprep.mubr.bf16.mxu0 0
      %4581 = vmatmul.mubr.bf16.gmra.mrb[0].mxu0 %v4470
      %v4582 = vpop.f32.mrb[0].mxu0
      %v4583 = vadd.f32 0.0, %v4582
      %v4584 = vpop.f32.mrb[0].mxu0
      %v4585 = vpop.f32.mrb[0].mxu0
      %v4586 = vadd.f32 0.0, %v4585
      %v4587 = vpop.f32.mrb[0].mxu0
      %4588 = vmatprep.mubr.bf16.mxu0 0
      %4589 = vmatmul.mubr.bf16.gmra.mrb[0].mxu0 %v4472
      %v4590 = vpop.f32.mrb[0].mxu0
      %v4591 = vadd.f32 0.0, %v4590
      %v4592 = vpop.f32.mrb[0].mxu0
      %v4593 = vpop.f32.mrb[0].mxu0
      %v4594 = vadd.f32 0.0, %v4593
      %v4595 = vpop.f32.mrb[0].mxu0
      %4596 = vmatprep.mubr.bf16.mxu0 0
      %4597 = vmatmul.mubr.bf16.gmra.mrb[0].mxu0 %v4474
      %v4598 = vpop.f32.mrb[0].mxu0
      %v4599 = vadd.f32 0.0, %v4598
      %v4600 = vpop.f32.mrb[0].mxu0
      %v4601 = vpop.f32.mrb[0].mxu0
      %v4602 = vadd.f32 0.0, %v4601
      %v4603 = vpop.f32.mrb[0].mxu0
      %4604 = vmatprep.mubr.bf16.mxu0 0
      %4605 = vmatmul.mubr.bf16.gmra.mrb[0].mxu0 %v4476
      %v4606 = vpop.f32.mrb[0].mxu0
      %v4607 = vadd.f32 0.0, %v4606
      %v4608 = vpop.f32.mrb[0].mxu0
      %v4609 = vpop.f32.mrb[0].mxu0
      %v4610 = vadd.f32 0.0, %v4609
      %v4611 = vpop.f32.mrb[0].mxu0
      %4612 = vmatprep.mubr.bf16.mxu0 0
      %4613 = vmatmul.mubr.bf16.gmra.mrb[0].mxu0 %v4478
      %v4614 = vpop.f32.mrb[0].mxu0
      %v4615 = vadd.f32 0.0, %v4614
      %v4616 = vpop.f32.mrb[0].mxu0
      %v4617 = vpop.f32.mrb[0].mxu0
      %v4618 = vadd.f32 0.0, %v4617
      %v4619 = vpop.f32.mrb[0].mxu0
      %4620 = vmatprep.mubr.bf16.mxu0 0
      %4621 = vmatmul.mubr.bf16.gmra.mrb[0].mxu0 %v4480
      %v4622 = vpop.f32.mrb[0].mxu0
      %v4623 = vadd.f32 0.0, %v4622
      %v4624 = vpop.f32.mrb[0].mxu0
      %v4625 = vpop.f32.mrb[0].mxu0
      %v4626 = vadd.f32 0.0, %v4625
      %v4627 = vpop.f32.mrb[0].mxu0
      %4628 = vmatprep.mubr.bf16.mxu0 0
      %4629 = vmatmul.mubr.bf16.gmra.mrb[0].mxu0 %v4482
      %v4630 = vpop.f32.mrb[0].mxu0
      %v4631 = vadd.f32 0.0, %v4630
      %v4632 = vpop.f32.mrb[0].mxu0
      %v4633 = vpop.f32.mrb[0].mxu0
      %v4634 = vadd.f32 0.0, %v4633
      %v4635 = vpop.f32.mrb[0].mxu0
      %4636 = vmatprep.mubr.bf16.mxu0 0
      %4637 = vmatmul.mubr.bf16.gmra.mrb[0].mxu0 %v4484
      %v4638 = vpop.f32.mrb[0].mxu0
      %v4639 = vadd.f32 0.0, %v4638
      %v4640 = vpop.f32.mrb[0].mxu0
      %v4641 = vpop.f32.mrb[0].mxu0
      %v4642 = vadd.f32 0.0, %v4641
      %v4643 = vpop.f32.mrb[0].mxu0
      %4644 = vmatprep.mubr.bf16.mxu0 0
      %4645 = vmatmul.mubr.bf16.gmra.mrb[0].mxu0 %v4486
      %v4646 = vpop.f32.mrb[0].mxu0
      %v4647 = vadd.f32 0.0, %v4646
      %v4648 = vpop.f32.mrb[0].mxu0
      %v4649 = vpop.f32.mrb[0].mxu0
      %v4650 = vadd.f32 0.0, %v4649
      %v4651 = vpop.f32.mrb[0].mxu0
      %4652 = vdwg.mxu0
      %v4654 = vsel %vm405, %v4272, 0
      %v4657 = vsel %vm405, %v4284, 0
      %v4660 = vsel %vm405, %v4296, 0
      %v4663 = vsel %vm405, %v4308, 0
      %v4666 = vsel %vm405, %v4320, 0
      %v4669 = vsel %vm405, %v4332, 0
      %v4672 = vsel %vm405, %v4344, 0
      %v4675 = vsel %vm405, %v4356, 0
      %v4678 = vsel %vm405, %v4368, 0
      %v4681 = vsel %vm405, %v4380, 0
      %v4684 = vsel %vm405, %v4392, 0
      %v4687 = vsel %vm405, %v4404, 0
      %v4690 = vsel %vm405, %v4416, 0
      %v4693 = vsel %vm405, %v4428, 0
      %v4696 = vsel %vm405, %v4440, 0
      %v4699 = vsel %vm405, %v4452, 0
      %v4702 = vsel %vm4488, %v4453, 0
      %4704 = vmatprep.subr.bf16.mxu0 0
      %4705 = vmatpush1.bf16.msra.mxu0 %v4702
      %4706 = vmatprep.subr.bf16.mxu0 0
      %4707 = vmatpush1.bf16.msra.mxu0 0
      %4708 = vmatprep.subr.bf16.mxu0 0
      %4709 = vmatpush1.bf16.msra.mxu0 0
      %4710 = vmatprep.subr.bf16.mxu0 0
      %4711 = vmatpush1.bf16.msra.mxu0 0
      %4712 = vmatprep.subr.bf16.mxu0 0
      %4713 = vmatpush1.bf16.msra.mxu0 0
      %4714 = vmatprep.subr.bf16.mxu0 0
      %4715 = vmatpush1.bf16.msra.mxu0 0
      %4716 = vmatprep.subr.bf16.mxu0 0
      %4717 = vmatpush1.bf16.msra.mxu0 0
      %4718 = vmatprep.subr.bf16.mxu0 0
      %4719 = vmatpush1.bf16.msra.mxu0 0
      %4720 = vmatprep.subr.bf16.mxu0 0
      %4721 = vmatpush1.bf16.msra.mxu0 0
      %4722 = vmatprep.subr.bf16.mxu0 0
      %4723 = vmatpush1.bf16.msra.mxu0 0
      %4724 = vmatprep.subr.bf16.mxu0 0
      %4725 = vmatpush1.bf16.msra.mxu0 0
      %4726 = vmatprep.subr.bf16.mxu0 0
      %4727 = vmatpush1.bf16.msra.mxu0 0
      %4728 = vmatprep.subr.bf16.mxu0 0
      %4729 = vmatpush1.bf16.msra.mxu0 0
      %4730 = vmatprep.subr.bf16.mxu0 0
      %4731 = vmatpush1.bf16.msra.mxu0 0
      %4732 = vmatprep.subr.bf16.mxu0 0
      %4733 = vmatpush1.bf16.msra.mxu0 0
      %4734 = vmatprep.subr.bf16.mxu0 0
      %4735 = vmatpush1.bf16.msra.mxu0 0
      %4736 = vmatprep.mubr.bf16.mxu0 0
      %4737 = vmatmul.mubr.bf16.gmra.mrb[0].mxu0 %v4654
      %v4738 = vpop.f32.mrb[0].mxu0
      %v4739 = vadd.f32 %v4527, %v4738
      %v4740 = vpop.f32.mrb[0].mxu0
      %v4741 = vpop.f32.mrb[0].mxu0
      %v4742 = vadd.f32 %v4530, %v4741
      %v4743 = vpop.f32.mrb[0].mxu0
      %4744 = vmatprep.mubr.bf16.mxu0 0
      %4745 = vmatmul.mubr.bf16.gmra.mrb[0].mxu0 %v4657
      %v4746 = vpop.f32.mrb[0].mxu0
      %v4747 = vadd.f32 %v4535, %v4746
      %v4748 = vpop.f32.mrb[0].mxu0
      %v4749 = vpop.f32.mrb[0].mxu0
      %v4750 = vadd.f32 %v4538, %v4749
      %v4751 = vpop.f32.mrb[0].mxu0
      %4752 = vmatprep.mubr.bf16.mxu0 0
      %4753 = vmatmul.mubr.bf16.gmra.mrb[0].mxu0 %v4660
      %v4754 = vpop.f32.mrb[0].mxu0
      %v4755 = vadd.f32 %v4543, %v4754
      %v4756 = vpop.f32.mrb[0].mxu0
      %v4757 = vpop.f32.mrb[0].mxu0
      %v4758 = vadd.f32 %v4546, %v4757
      %v4759 = vpop.f32.mrb[0].mxu0
      %4760 = vmatprep.mubr.bf16.mxu0 0
      %4761 = vmatmul.mubr.bf16.gmra.mrb[0].mxu0 %v4663
      %v4762 = vpop.f32.mrb[0].mxu0
      %v4763 = vadd.f32 %v4551, %v4762
      %v4764 = vpop.f32.mrb[0].mxu0
      %v4765 = vpop.f32.mrb[0].mxu0
      %v4766 = vadd.f32 %v4554, %v4765
      %v4767 = vpop.f32.mrb[0].mxu0
      %4768 = vmatprep.mubr.bf16.mxu0 0
      %4769 = vmatmul.mubr.bf16.gmra.mrb[0].mxu0 %v4666
      %v4770 = vpop.f32.mrb[0].mxu0
      %v4771 = vadd.f32 %v4559, %v4770
      %v4772 = vpop.f32.mrb[0].mxu0
      %v4773 = vpop.f32.mrb[0].mxu0
      %v4774 = vadd.f32 %v4562, %v4773
      %v4775 = vpop.f32.mrb[0].mxu0
      %4776 = vmatprep.mubr.bf16.mxu0 0
      %4777 = vmatmul.mubr.bf16.gmra.mrb[0].mxu0 %v4669
      %v4778 = vpop.f32.mrb[0].mxu0
      %v4779 = vadd.f32 %v4567, %v4778
      %v4780 = vpop.f32.mrb[0].mxu0
      %v4781 = vpop.f32.mrb[0].mxu0
      %v4782 = vadd.f32 %v4570, %v4781
      %v4783 = vpop.f32.mrb[0].mxu0
      %4784 = vmatprep.mubr.bf16.mxu0 0
      %4785 = vmatmul.mubr.bf16.gmra.mrb[0].mxu0 %v4672
      %v4786 = vpop.f32.mrb[0].mxu0
      %v4787 = vadd.f32 %v4575, %v4786
      %v4788 = vpop.f32.mrb[0].mxu0
      %v4789 = vpop.f32.mrb[0].mxu0
      %v4790 = vadd.f32 %v4578, %v4789
      %v4791 = vpop.f32.mrb[0].mxu0
      %4792 = vmatprep.mubr.bf16.mxu0 0
      %4793 = vmatmul.mubr.bf16.gmra.mrb[0].mxu0 %v4675
      %v4794 = vpop.f32.mrb[0].mxu0
      %v4795 = vadd.f32 %v4583, %v4794
      %v4796 = vpop.f32.mrb[0].mxu0
      %v4797 = vpop.f32.mrb[0].mxu0
      %v4798 = vadd.f32 %v4586, %v4797
      %v4799 = vpop.f32.mrb[0].mxu0
      %4800 = vmatprep.mubr.bf16.mxu0 0
      %4801 = vmatmul.mubr.bf16.gmra.mrb[0].mxu0 %v4678
      %v4802 = vpop.f32.mrb[0].mxu0
      %v4803 = vadd.f32 %v4591, %v4802
      %v4804 = vpop.f32.mrb[0].mxu0
      %v4805 = vpop.f32.mrb[0].mxu0
      %v4806 = vadd.f32 %v4594, %v4805
      %v4807 = vpop.f32.mrb[0].mxu0
      %4808 = vmatprep.mubr.bf16.mxu0 0
      %4809 = vmatmul.mubr.bf16.gmra.mrb[0].mxu0 %v4681
      %v4810 = vpop.f32.mrb[0].mxu0
      %v4811 = vadd.f32 %v4599, %v4810
      %v4812 = vpop.f32.mrb[0].mxu0
      %v4813 = vpop.f32.mrb[0].mxu0
      %v4814 = vadd.f32 %v4602, %v4813
      %v4815 = vpop.f32.mrb[0].mxu0
      %4816 = vmatprep.mubr.bf16.mxu0 0
      %4817 = vmatmul.mubr.bf16.gmra.mrb[0].mxu0 %v4684
      %v4818 = vpop.f32.mrb[0].mxu0
      %v4819 = vadd.f32 %v4607, %v4818
      %v4820 = vpop.f32.mrb[0].mxu0
      %v4821 = vpop.f32.mrb[0].mxu0
      %v4822 = vadd.f32 %v4610, %v4821
      %v4823 = vpop.f32.mrb[0].mxu0
      %4824 = vmatprep.mubr.bf16.mxu0 0
      %4825 = vmatmul.mubr.bf16.gmra.mrb[0].mxu0 %v4687
      %v4826 = vpop.f32.mrb[0].mxu0
      %v4827 = vadd.f32 %v4615, %v4826
      %v4828 = vpop.f32.mrb[0].mxu0
      %v4829 = vpop.f32.mrb[0].mxu0
      %v4830 = vadd.f32 %v4618, %v4829
      %v4831 = vpop.f32.mrb[0].mxu0
      %4832 = vmatprep.mubr.bf16.mxu0 0
      %4833 = vmatmul.mubr.bf16.gmra.mrb[0].mxu0 %v4690
      %v4834 = vpop.f32.mrb[0].mxu0
      %v4835 = vadd.f32 %v4623, %v4834
      %v4836 = vpop.f32.mrb[0].mxu0
      %v4837 = vpop.f32.mrb[0].mxu0
      %v4838 = vadd.f32 %v4626, %v4837
      %v4839 = vpop.f32.mrb[0].mxu0
      %4840 = vmatprep.mubr.bf16.mxu0 0
      %4841 = vmatmul.mubr.bf16.gmra.mrb[0].mxu0 %v4693
      %v4842 = vpop.f32.mrb[0].mxu0
      %v4843 = vadd.f32 %v4631, %v4842
      %v4844 = vpop.f32.mrb[0].mxu0
      %v4845 = vpop.f32.mrb[0].mxu0
      %v4846 = vadd.f32 %v4634, %v4845
      %v4847 = vpop.f32.mrb[0].mxu0
      %4848 = vmatprep.mubr.bf16.mxu0 0
      %4849 = vmatmul.mubr.bf16.gmra.mrb[0].mxu0 %v4696
      %v4850 = vpop.f32.mrb[0].mxu0
      %v4851 = vadd.f32 %v4639, %v4850
      %v4852 = vpop.f32.mrb[0].mxu0
      %v4853 = vpop.f32.mrb[0].mxu0
      %v4854 = vadd.f32 %v4642, %v4853
      %v4855 = vpop.f32.mrb[0].mxu0
      %4856 = vmatprep.mubr.bf16.mxu0 0
      %4857 = vmatmul.mubr.bf16.gmra.mrb[0].mxu0 %v4699
      %v4858 = vpop.f32.mrb[0].mxu0
      %v4859 = vadd.f32 %v4647, %v4858
      %v4860 = vpop.f32.mrb[0].mxu0
      %v4861 = vpop.f32.mrb[0].mxu0
      %v4862 = vadd.f32 %v4650, %v4861
      %v4863 = vpop.f32.mrb[0].mxu0
      %4864 = vdwg.mxu0
      %v4865 = vld [vmem:[#allocation3 + $0x8] sm:$0xff]
      %v4866 = vld [vmem:[#allocation3 + $0x10] sm:$0x1]
      %v4867 = vld [vmem:[#allocation3 + $0x20] sm:$0xff]
      %v4868 = vld [vmem:[#allocation3 + $0x28] sm:$0x1]
      %v4869 = vld [vmem:[#allocation3 + $0x38] sm:$0xff]
      %v4870 = vld [vmem:[#allocation3 + $0x40] sm:$0x1]
      %v4871 = vld [vmem:[#allocation3 + $0x50] sm:$0xff]
      %v4872 = vld [vmem:[#allocation3 + $0x58] sm:$0x1]
      %v4873 = vld [vmem:[#allocation3 + $0x68] sm:$0xff]
      %v4874 = vld [vmem:[#allocation3 + $0x70] sm:$0x1]
      %v4875 = vld [vmem:[#allocation3 + $0x80] sm:$0xff]
      %v4876 = vld [vmem:[#allocation3 + $0x88] sm:$0x1]
      %v4877 = vld [vmem:[#allocation3 + $0x98] sm:$0xff]
      %v4878 = vld [vmem:[#allocation3 + $0xa0] sm:$0x1]
      %v4879 = vld [vmem:[#allocation3 + $0xb0] sm:$0xff]
      %v4880 = vld [vmem:[#allocation3 + $0xb8] sm:$0x1]
      %v4881 = vld [vmem:[#allocation3 + $0xc8] sm:$0xff]
      %v4882 = vld [vmem:[#allocation3 + $0xd0] sm:$0x1]
      %v4883 = vld [vmem:[#allocation3 + $0xe0] sm:$0xff]
      %v4884 = vld [vmem:[#allocation3 + $0xe8] sm:$0x1]
      %v4885 = vld [vmem:[#allocation3 + $0xf8] sm:$0xff]
      %v4886 = vld [vmem:[#allocation3 + $0x100] sm:$0x1]
      %v4887 = vld [vmem:[#allocation3 + $0x110] sm:$0xff]
      %v4888 = vld [vmem:[#allocation3 + $0x118] sm:$0x1]
      %v4889 = vld [vmem:[#allocation3 + $0x128] sm:$0xff]
      %v4890 = vld [vmem:[#allocation3 + $0x130] sm:$0x1]
      %v4891 = vld [vmem:[#allocation3 + $0x140] sm:$0xff]
      %v4892 = vld [vmem:[#allocation3 + $0x148] sm:$0x1]
      %v4893 = vld [vmem:[#allocation3 + $0x158] sm:$0xff]
      %v4894 = vld [vmem:[#allocation3 + $0x160] sm:$0x1]
      %v4895 = vld [vmem:[#allocation3 + $0x170] sm:$0xff]
      %v4896 = vld [vmem:[#allocation3 + $0x178] sm:$0x1]
      %v4898 = vshrl.u32 %v4865, 16
      %v4900 = vshll.u32 %v4865, 16
      %v4902 = vrot.slane %v4900, 1
      %v4903 = vor.u32 %v4898, %v4902
      %v4905 = vshll.u32 %v4866, 16
      %v4907 = vrot.slane %v4905, 1
      %v4908 = vsel %vm1306, %v4903, %v4907
      %v4910 = vshrl.u32 %v4867, 16
      %v4912 = vshll.u32 %v4867, 16
      %v4914 = vrot.slane %v4912, 1
      %v4915 = vor.u32 %v4910, %v4914
      %v4917 = vshll.u32 %v4868, 16
      %v4919 = vrot.slane %v4917, 1
      %v4920 = vsel %vm1306, %v4915, %v4919
      %v4922 = vshrl.u32 %v4869, 16
      %v4924 = vshll.u32 %v4869, 16
      %v4926 = vrot.slane %v4924, 1
      %v4927 = vor.u32 %v4922, %v4926
      %v4929 = vshll.u32 %v4870, 16
      %v4931 = vrot.slane %v4929, 1
      %v4932 = vsel %vm1306, %v4927, %v4931
      %v4934 = vshrl.u32 %v4871, 16
      %v4936 = vshll.u32 %v4871, 16
      %v4938 = vrot.slane %v4936, 1
      %v4939 = vor.u32 %v4934, %v4938
      %v4941 = vshll.u32 %v4872, 16
      %v4943 = vrot.slane %v4941, 1
      %v4944 = vsel %vm1306, %v4939, %v4943
      %v4946 = vshrl.u32 %v4873, 16
      %v4948 = vshll.u32 %v4873, 16
      %v4950 = vrot.slane %v4948, 1
      %v4951 = vor.u32 %v4946, %v4950
      %v4953 = vshll.u32 %v4874, 16
      %v4955 = vrot.slane %v4953, 1
      %v4956 = vsel %vm1306, %v4951, %v4955
      %v4958 = vshrl.u32 %v4875, 16
      %v4960 = vshll.u32 %v4875, 16
      %v4962 = vrot.slane %v4960, 1
      %v4963 = vor.u32 %v4958, %v4962
      %v4965 = vshll.u32 %v4876, 16
      %v4967 = vrot.slane %v4965, 1
      %v4968 = vsel %vm1306, %v4963, %v4967
      %v4970 = vshrl.u32 %v4877, 16
      %v4972 = vshll.u32 %v4877, 16
      %v4974 = vrot.slane %v4972, 1
      %v4975 = vor.u32 %v4970, %v4974
      %v4977 = vshll.u32 %v4878, 16
      %v4979 = vrot.slane %v4977, 1
      %v4980 = vsel %vm1306, %v4975, %v4979
      %v4982 = vshrl.u32 %v4879, 16
      %v4984 = vshll.u32 %v4879, 16
      %v4986 = vrot.slane %v4984, 1
      %v4987 = vor.u32 %v4982, %v4986
      %v4989 = vshll.u32 %v4880, 16
      %v4991 = vrot.slane %v4989, 1
      %v4992 = vsel %vm1306, %v4987, %v4991
      %v4994 = vshrl.u32 %v4881, 16
      %v4996 = vshll.u32 %v4881, 16
      %v4998 = vrot.slane %v4996, 1
      %v4999 = vor.u32 %v4994, %v4998
      %v5001 = vshll.u32 %v4882, 16
      %v5003 = vrot.slane %v5001, 1
      %v5004 = vsel %vm1306, %v4999, %v5003
      %v5006 = vshrl.u32 %v4883, 16
      %v5008 = vshll.u32 %v4883, 16
      %v5010 = vrot.slane %v5008, 1
      %v5011 = vor.u32 %v5006, %v5010
      %v5013 = vshll.u32 %v4884, 16
      %v5015 = vrot.slane %v5013, 1
      %v5016 = vsel %vm1306, %v5011, %v5015
      %v5018 = vshrl.u32 %v4885, 16
      %v5020 = vshll.u32 %v4885, 16
      %v5022 = vrot.slane %v5020, 1
      %v5023 = vor.u32 %v5018, %v5022
      %v5025 = vshll.u32 %v4886, 16
      %v5027 = vrot.slane %v5025, 1
      %v5028 = vsel %vm1306, %v5023, %v5027
      %v5030 = vshrl.u32 %v4887, 16
      %v5032 = vshll.u32 %v4887, 16
      %v5034 = vrot.slane %v5032, 1
      %v5035 = vor.u32 %v5030, %v5034
      %v5037 = vshll.u32 %v4888, 16
      %v5039 = vrot.slane %v5037, 1
      %v5040 = vsel %vm1306, %v5035, %v5039
      %v5042 = vshrl.u32 %v4889, 16
      %v5044 = vshll.u32 %v4889, 16
      %v5046 = vrot.slane %v5044, 1
      %v5047 = vor.u32 %v5042, %v5046
      %v5049 = vshll.u32 %v4890, 16
      %v5051 = vrot.slane %v5049, 1
      %v5052 = vsel %vm1306, %v5047, %v5051
      %v5054 = vshrl.u32 %v4891, 16
      %v5056 = vshll.u32 %v4891, 16
      %v5058 = vrot.slane %v5056, 1
      %v5059 = vor.u32 %v5054, %v5058
      %v5061 = vshll.u32 %v4892, 16
      %v5063 = vrot.slane %v5061, 1
      %v5064 = vsel %vm1306, %v5059, %v5063
      %v5066 = vshrl.u32 %v4893, 16
      %v5068 = vshll.u32 %v4893, 16
      %v5070 = vrot.slane %v5068, 1
      %v5071 = vor.u32 %v5066, %v5070
      %v5073 = vshll.u32 %v4894, 16
      %v5075 = vrot.slane %v5073, 1
      %v5076 = vsel %vm1306, %v5071, %v5075
      %v5078 = vshrl.u32 %v4895, 16
      %v5080 = vshll.u32 %v4895, 16
      %v5082 = vrot.slane %v5080, 1
      %v5083 = vor.u32 %v5078, %v5082
      %v5085 = vshll.u32 %v4896, 16
      %v5087 = vrot.slane %v5085, 1
      %v5088 = vsel %vm1306, %v5083, %v5087
      %s5089 = scalar_lea.vmem %s4, 8
      %v5090 = vld [vmem:[%s5089] sm:$0xf]
      %v5092 = vsel %vm405, %v4908, 0
      %v5095 = vsel %vm405, %v4920, 0
      %v5098 = vsel %vm405, %v4932, 0
      %v5101 = vsel %vm405, %v4944, 0
      %v5104 = vsel %vm405, %v4956, 0
      %v5107 = vsel %vm405, %v4968, 0
      %v5110 = vsel %vm405, %v4980, 0
      %v5113 = vsel %vm405, %v4992, 0
      %v5116 = vsel %vm405, %v5004, 0
      %v5119 = vsel %vm405, %v5016, 0
      %v5122 = vsel %vm405, %v5028, 0
      %v5125 = vsel %vm405, %v5040, 0
      %v5128 = vsel %vm405, %v5052, 0
      %v5131 = vsel %vm405, %v5064, 0
      %v5134 = vsel %vm405, %v5076, 0
      %v5137 = vsel %vm405, %v5088, 0
      %v5140 = vsel %vm4488, %v5090, 0
      %5142 = vmatprep.subr.bf16.mxu0 0
      %5143 = vmatpush1.bf16.msra.mxu0 %v5140
      %5144 = vmatprep.subr.bf16.mxu0 0
      %5145 = vmatpush1.bf16.msra.mxu0 0
      %5146 = vmatprep.subr.bf16.mxu0 0
      %5147 = vmatpush1.bf16.msra.mxu0 0
      %5148 = vmatprep.subr.bf16.mxu0 0
      %5149 = vmatpush1.bf16.msra.mxu0 0
      %5150 = vmatprep.subr.bf16.mxu0 0
      %5151 = vmatpush1.bf16.msra.mxu0 0
      %5152 = vmatprep.subr.bf16.mxu0 0
      %5153 = vmatpush1.bf16.msra.mxu0 0
      %5154 = vmatprep.subr.bf16.mxu0 0
      %5155 = vmatpush1.bf16.msra.mxu0 0
      %5156 = vmatprep.subr.bf16.mxu0 0
      %5157 = vmatpush1.bf16.msra.mxu0 0
      %5158 = vmatprep.subr.bf16.mxu0 0
      %5159 = vmatpush1.bf16.msra.mxu0 0
      %5160 = vmatprep.subr.bf16.mxu0 0
      %5161 = vmatpush1.bf16.msra.mxu0 0
      %5162 = vmatprep.subr.bf16.mxu0 0
      %5163 = vmatpush1.bf16.msra.mxu0 0
      %5164 = vmatprep.subr.bf16.mxu0 0
      %5165 = vmatpush1.bf16.msra.mxu0 0
      %5166 = vmatprep.subr.bf16.mxu0 0
      %5167 = vmatpush1.bf16.msra.mxu0 0
      %5168 = vmatprep.subr.bf16.mxu0 0
      %5169 = vmatpush1.bf16.msra.mxu0 0
      %5170 = vmatprep.subr.bf16.mxu0 0
      %5171 = vmatpush1.bf16.msra.mxu0 0
      %5172 = vmatprep.subr.bf16.mxu0 0
      %5173 = vmatpush1.bf16.msra.mxu0 0
      %5174 = vmatprep.mubr.bf16.mxu0 0
      %5175 = vmatmul.mubr.bf16.gmra.mrb[0].mxu0 %v5092
      %v5176 = vpop.f32.mrb[0].mxu0
      %v5177 = vadd.f32 0.0, %v5176
      %v5178 = vpop.f32.mrb[0].mxu0
      %v5179 = vpop.f32.mrb[0].mxu0
      %v5180 = vadd.f32 0.0, %v5179
      %v5181 = vpop.f32.mrb[0].mxu0
      %5182 = vmatprep.mubr.bf16.mxu0 0
      %5183 = vmatmul.mubr.bf16.gmra.mrb[0].mxu0 %v5095
      %v5184 = vpop.f32.mrb[0].mxu0
      %v5185 = vadd.f32 0.0, %v5184
      %v5186 = vpop.f32.mrb[0].mxu0
      %v5187 = vpop.f32.mrb[0].mxu0
      %v5188 = vadd.f32 0.0, %v5187
      %v5189 = vpop.f32.mrb[0].mxu0
      %5190 = vmatprep.mubr.bf16.mxu0 0
      %5191 = vmatmul.mubr.bf16.gmra.mrb[0].mxu0 %v5098
      %v5192 = vpop.f32.mrb[0].mxu0
      %v5193 = vadd.f32 0.0, %v5192
      %v5194 = vpop.f32.mrb[0].mxu0
      %v5195 = vpop.f32.mrb[0].mxu0
      %v5196 = vadd.f32 0.0, %v5195
      %v5197 = vpop.f32.mrb[0].mxu0
      %5198 = vmatprep.mubr.bf16.mxu0 0
      %5199 = vmatmul.mubr.bf16.gmra.mrb[0].mxu0 %v5101
      %v5200 = vpop.f32.mrb[0].mxu0
      %v5201 = vadd.f32 0.0, %v5200
      %v5202 = vpop.f32.mrb[0].mxu0
      %v5203 = vpop.f32.mrb[0].mxu0
      %v5204 = vadd.f32 0.0, %v5203
      %v5205 = vpop.f32.mrb[0].mxu0
      %5206 = vmatprep.mubr.bf16.mxu0 0
      %5207 = vmatmul.mubr.bf16.gmra.mrb[0].mxu0 %v5104
      %v5208 = vpop.f32.mrb[0].mxu0
      %v5209 = vadd.f32 0.0, %v5208
      %v5210 = vpop.f32.mrb[0].mxu0
      %v5211 = vpop.f32.mrb[0].mxu0
      %v5212 = vadd.f32 0.0, %v5211
      %v5213 = vpop.f32.mrb[0].mxu0
      %5214 = vmatprep.mubr.bf16.mxu0 0
      %5215 = vmatmul.mubr.bf16.gmra.mrb[0].mxu0 %v5107
      %v5216 = vpop.f32.mrb[0].mxu0
      %v5217 = vadd.f32 0.0, %v5216
      %v5218 = vpop.f32.mrb[0].mxu0
      %v5219 = vpop.f32.mrb[0].mxu0
      %v5220 = vadd.f32 0.0, %v5219
      %v5221 = vpop.f32.mrb[0].mxu0
      %5222 = vmatprep.mubr.bf16.mxu0 0
      %5223 = vmatmul.mubr.bf16.gmra.mrb[0].mxu0 %v5110
      %v5224 = vpop.f32.mrb[0].mxu0
      %v5225 = vadd.f32 0.0, %v5224
      %v5226 = vpop.f32.mrb[0].mxu0
      %v5227 = vpop.f32.mrb[0].mxu0
      %v5228 = vadd.f32 0.0, %v5227
      %v5229 = vpop.f32.mrb[0].mxu0
      %5230 = vmatprep.mubr.bf16.mxu0 0
      %5231 = vmatmul.mubr.bf16.gmra.mrb[0].mxu0 %v5113
      %v5232 = vpop.f32.mrb[0].mxu0
      %v5233 = vadd.f32 0.0, %v5232
      %v5234 = vpop.f32.mrb[0].mxu0
      %v5235 = vpop.f32.mrb[0].mxu0
      %v5236 = vadd.f32 0.0, %v5235
      %v5237 = vpop.f32.mrb[0].mxu0
      %5238 = vmatprep.mubr.bf16.mxu0 0
      %5239 = vmatmul.mubr.bf16.gmra.mrb[0].mxu0 %v5116
      %v5240 = vpop.f32.mrb[0].mxu0
      %v5241 = vadd.f32 0.0, %v5240
      %v5242 = vpop.f32.mrb[0].mxu0
      %v5243 = vpop.f32.mrb[0].mxu0
      %v5244 = vadd.f32 0.0, %v5243
      %v5245 = vpop.f32.mrb[0].mxu0
      %5246 = vmatprep.mubr.bf16.mxu0 0
      %5247 = vmatmul.mubr.bf16.gmra.mrb[0].mxu0 %v5119
      %v5248 = vpop.f32.mrb[0].mxu0
      %v5249 = vadd.f32 0.0, %v5248
      %v5250 = vpop.f32.mrb[0].mxu0
      %v5251 = vpop.f32.mrb[0].mxu0
      %v5252 = vadd.f32 0.0, %v5251
      %v5253 = vpop.f32.mrb[0].mxu0
      %5254 = vmatprep.mubr.bf16.mxu0 0
      %5255 = vmatmul.mubr.bf16.gmra.mrb[0].mxu0 %v5122
      %v5256 = vpop.f32.mrb[0].mxu0
      %v5257 = vadd.f32 0.0, %v5256
      %v5258 = vpop.f32.mrb[0].mxu0
      %v5259 = vpop.f32.mrb[0].mxu0
      %v5260 = vadd.f32 0.0, %v5259
      %v5261 = vpop.f32.mrb[0].mxu0
      %5262 = vmatprep.mubr.bf16.mxu0 0
      %5263 = vmatmul.mubr.bf16.gmra.mrb[0].mxu0 %v5125
      %v5264 = vpop.f32.mrb[0].mxu0
      %v5265 = vadd.f32 0.0, %v5264
      %v5266 = vpop.f32.mrb[0].mxu0
      %v5267 = vpop.f32.mrb[0].mxu0
      %v5268 = vadd.f32 0.0, %v5267
      %v5269 = vpop.f32.mrb[0].mxu0
      %5270 = vmatprep.mubr.bf16.mxu0 0
      %5271 = vmatmul.mubr.bf16.gmra.mrb[0].mxu0 %v5128
      %v5272 = vpop.f32.mrb[0].mxu0
      %v5273 = vadd.f32 0.0, %v5272
      %v5274 = vpop.f32.mrb[0].mxu0
      %v5275 = vpop.f32.mrb[0].mxu0
      %v5276 = vadd.f32 0.0, %v5275
      %v5277 = vpop.f32.mrb[0].mxu0
      %5278 = vmatprep.mubr.bf16.mxu0 0
      %5279 = vmatmul.mubr.bf16.gmra.mrb[0].mxu0 %v5131
      %v5280 = vpop.f32.mrb[0].mxu0
      %v5281 = vadd.f32 0.0, %v5280
      %v5282 = vpop.f32.mrb[0].mxu0
      %v5283 = vpop.f32.mrb[0].mxu0
      %v5284 = vadd.f32 0.0, %v5283
      %v5285 = vpop.f32.mrb[0].mxu0
      %5286 = vmatprep.mubr.bf16.mxu0 0
      %5287 = vmatmul.mubr.bf16.gmra.mrb[0].mxu0 %v5134
      %v5288 = vpop.f32.mrb[0].mxu0
      %v5289 = vadd.f32 0.0, %v5288
      %v5290 = vpop.f32.mrb[0].mxu0
      %v5291 = vpop.f32.mrb[0].mxu0
      %v5292 = vadd.f32 0.0, %v5291
      %v5293 = vpop.f32.mrb[0].mxu0
      %5294 = vmatprep.mubr.bf16.mxu0 0
      %5295 = vmatmul.mubr.bf16.gmra.mrb[0].mxu0 %v5137
      %v5296 = vpop.f32.mrb[0].mxu0
      %v5297 = vadd.f32 0.0, %v5296
      %v5298 = vpop.f32.mrb[0].mxu0
      %v5299 = vpop.f32.mrb[0].mxu0
      %v5300 = vadd.f32 0.0, %v5299
      %v5301 = vpop.f32.mrb[0].mxu0
      %5302 = vdwg.mxu0
      %v5303 = vadd.f32 %v4739, %v5177
      %v5304 = vadd.f32 %v4742, %v5180
      %v5305 = vadd.f32 %v4747, %v5185
      %v5306 = vadd.f32 %v4750, %v5188
      %v5307 = vadd.f32 %v4755, %v5193
      %v5308 = vadd.f32 %v4758, %v5196
      %v5309 = vadd.f32 %v4763, %v5201
      %v5310 = vadd.f32 %v4766, %v5204
      %v5311 = vadd.f32 %v4771, %v5209
      %v5312 = vadd.f32 %v4774, %v5212
      %v5313 = vadd.f32 %v4779, %v5217
      %v5314 = vadd.f32 %v4782, %v5220
      %v5315 = vadd.f32 %v4787, %v5225
      %v5316 = vadd.f32 %v4790, %v5228
      %v5317 = vadd.f32 %v4795, %v5233
      %v5318 = vadd.f32 %v4798, %v5236
      %v5319 = vadd.f32 %v4803, %v5241
      %v5320 = vadd.f32 %v4806, %v5244
      %v5321 = vadd.f32 %v4811, %v5249
      %v5322 = vadd.f32 %v4814, %v5252
      %v5323 = vadd.f32 %v4819, %v5257
      %v5324 = vadd.f32 %v4822, %v5260
      %v5325 = vadd.f32 %v4827, %v5265
      %v5326 = vadd.f32 %v4830, %v5268
      %v5327 = vadd.f32 %v4835, %v5273
      %v5328 = vadd.f32 %v4838, %v5276
      %v5329 = vadd.f32 %v4843, %v5281
      %v5330 = vadd.f32 %v4846, %v5284
      %v5331 = vadd.f32 %v4851, %v5289
      %v5332 = vadd.f32 %v4854, %v5292
      %v5333 = vadd.f32 %v4859, %v5297
      %v5334 = vadd.f32 %v4862, %v5300
      %v5335 = vld [vmem:[%s4212] sm:$0x80]
      %v5336 = vld [vmem:[%s4212 + $0x8] sm:$0xff]
      %v5337 = vld [vmem:[%s4212 + $0x18] sm:$0x80]
      %v5338 = vld [vmem:[%s4212 + $0x20] sm:$0xff]
      %v5339 = vld [vmem:[%s4212 + $0x30] sm:$0x80]
      %v5340 = vld [vmem:[%s4212 + $0x38] sm:$0xff]
      %v5341 = vld [vmem:[%s4212 + $0x48] sm:$0x80]
      %v5342 = vld [vmem:[%s4212 + $0x50] sm:$0xff]
      %v5343 = vld [vmem:[%s4212 + $0x60] sm:$0x80]
      %v5344 = vld [vmem:[%s4212 + $0x68] sm:$0xff]
      %v5345 = vld [vmem:[%s4212 + $0x78] sm:$0x80]
      %v5346 = vld [vmem:[%s4212 + $0x80] sm:$0xff]
      %v5347 = vld [vmem:[%s4212 + $0x90] sm:$0x80]
      %v5348 = vld [vmem:[%s4212 + $0x98] sm:$0xff]
      %v5349 = vld [vmem:[%s4212 + $0xa8] sm:$0x80]
      %v5350 = vld [vmem:[%s4212 + $0xb0] sm:$0xff]
      %v5351 = vld [vmem:[%s4212 + $0xc0] sm:$0x80]
      %v5352 = vld [vmem:[%s4212 + $0xc8] sm:$0xff]
      %v5353 = vld [vmem:[%s4212 + $0xd8] sm:$0x80]
      %v5354 = vld [vmem:[%s4212 + $0xe0] sm:$0xff]
      %v5355 = vld [vmem:[%s4212 + $0xf0] sm:$0x80]
      %v5356 = vld [vmem:[%s4212 + $0xf8] sm:$0xff]
      %v5357 = vld [vmem:[%s4212 + $0x108] sm:$0x80]
      %v5358 = vld [vmem:[%s4212 + $0x110] sm:$0xff]
      %v5359 = vld [vmem:[%s4212 + $0x120] sm:$0x80]
      %v5360 = vld [vmem:[%s4212 + $0x128] sm:$0xff]
      %v5361 = vld [vmem:[%s4212 + $0x138] sm:$0x80]
      %v5362 = vld [vmem:[%s4212 + $0x140] sm:$0xff]
      %v5363 = vld [vmem:[%s4212 + $0x150] sm:$0x80]
      %v5364 = vld [vmem:[%s4212 + $0x158] sm:$0xff]
      %v5365 = vld [vmem:[%s4212 + $0x168] sm:$0x80]
      %v5366 = vld [vmem:[%s4212 + $0x170] sm:$0xff]
      %v5368 = vshrl.u32 %v5335, 16
      %v5370 = vrot.slane %v5368, 7
      %v5372 = vshrl.u32 %v5336, 16
      %v5374 = vrot.slane %v5372, 7
      %v5375 = vshll.u32 %v5336, 16
      %v5377 = vor.u32 %v5374, %v5375
      %v5378 = vsel %vm669, %v5370, %v5377
      %v5380 = vshrl.u32 %v5337, 16
      %v5382 = vrot.slane %v5380, 7
      %v5384 = vshrl.u32 %v5338, 16
      %v5386 = vrot.slane %v5384, 7
      %v5387 = vshll.u32 %v5338, 16
      %v5389 = vor.u32 %v5386, %v5387
      %v5390 = vsel %vm669, %v5382, %v5389
      %v5392 = vshrl.u32 %v5339, 16
      %v5394 = vrot.slane %v5392, 7
      %v5396 = vshrl.u32 %v5340, 16
      %v5398 = vrot.slane %v5396, 7
      %v5399 = vshll.u32 %v5340, 16
      %v5401 = vor.u32 %v5398, %v5399
      %v5402 = vsel %vm669, %v5394, %v5401
      %v5404 = vshrl.u32 %v5341, 16
      %v5406 = vrot.slane %v5404, 7
      %v5408 = vshrl.u32 %v5342, 16
      %v5410 = vrot.slane %v5408, 7
      %v5411 = vshll.u32 %v5342, 16
      %v5413 = vor.u32 %v5410, %v5411
      %v5414 = vsel %vm669, %v5406, %v5413
      %v5416 = vshrl.u32 %v5343, 16
      %v5418 = vrot.slane %v5416, 7
      %v5420 = vshrl.u32 %v5344, 16
      %v5422 = vrot.slane %v5420, 7
      %v5423 = vshll.u32 %v5344, 16
      %v5425 = vor.u32 %v5422, %v5423
      %v5426 = vsel %vm669, %v5418, %v5425
      %v5428 = vshrl.u32 %v5345, 16
      %v5430 = vrot.slane %v5428, 7
      %v5432 = vshrl.u32 %v5346, 16
      %v5434 = vrot.slane %v5432, 7
      %v5435 = vshll.u32 %v5346, 16
      %v5437 = vor.u32 %v5434, %v5435
      %v5438 = vsel %vm669, %v5430, %v5437
      %v5440 = vshrl.u32 %v5347, 16
      %v5442 = vrot.slane %v5440, 7
      %v5444 = vshrl.u32 %v5348, 16
      %v5446 = vrot.slane %v5444, 7
      %v5447 = vshll.u32 %v5348, 16
      %v5449 = vor.u32 %v5446, %v5447
      %v5450 = vsel %vm669, %v5442, %v5449
      %v5452 = vshrl.u32 %v5349, 16
      %v5454 = vrot.slane %v5452, 7
      %v5456 = vshrl.u32 %v5350, 16
      %v5458 = vrot.slane %v5456, 7
      %v5459 = vshll.u32 %v5350, 16
      %v5461 = vor.u32 %v5458, %v5459
      %v5462 = vsel %vm669, %v5454, %v5461
      %v5464 = vshrl.u32 %v5351, 16
      %v5466 = vrot.slane %v5464, 7
      %v5468 = vshrl.u32 %v5352, 16
      %v5470 = vrot.slane %v5468, 7
      %v5471 = vshll.u32 %v5352, 16
      %v5473 = vor.u32 %v5470, %v5471
      %v5474 = vsel %vm669, %v5466, %v5473
      %v5476 = vshrl.u32 %v5353, 16
      %v5478 = vrot.slane %v5476, 7
      %v5480 = vshrl.u32 %v5354, 16
      %v5482 = vrot.slane %v5480, 7
      %v5483 = vshll.u32 %v5354, 16
      %v5485 = vor.u32 %v5482, %v5483
      %v5486 = vsel %vm669, %v5478, %v5485
      %v5488 = vshrl.u32 %v5355, 16
      %v5490 = vrot.slane %v5488, 7
      %v5492 = vshrl.u32 %v5356, 16
      %v5494 = vrot.slane %v5492, 7
      %v5495 = vshll.u32 %v5356, 16
      %v5497 = vor.u32 %v5494, %v5495
      %v5498 = vsel %vm669, %v5490, %v5497
      %v5500 = vshrl.u32 %v5357, 16
      %v5502 = vrot.slane %v5500, 7
      %v5504 = vshrl.u32 %v5358, 16
      %v5506 = vrot.slane %v5504, 7
      %v5507 = vshll.u32 %v5358, 16
      %v5509 = vor.u32 %v5506, %v5507
      %v5510 = vsel %vm669, %v5502, %v5509
      %v5512 = vshrl.u32 %v5359, 16
      %v5514 = vrot.slane %v5512, 7
      %v5516 = vshrl.u32 %v5360, 16
      %v5518 = vrot.slane %v5516, 7
      %v5519 = vshll.u32 %v5360, 16
      %v5521 = vor.u32 %v5518, %v5519
      %v5522 = vsel %vm669, %v5514, %v5521
      %v5524 = vshrl.u32 %v5361, 16
      %v5526 = vrot.slane %v5524, 7
      %v5528 = vshrl.u32 %v5362, 16
      %v5530 = vrot.slane %v5528, 7
      %v5531 = vshll.u32 %v5362, 16
      %v5533 = vor.u32 %v5530, %v5531
      %v5534 = vsel %vm669, %v5526, %v5533
      %v5536 = vshrl.u32 %v5363, 16
      %v5538 = vrot.slane %v5536, 7
      %v5540 = vshrl.u32 %v5364, 16
      %v5542 = vrot.slane %v5540, 7
      %v5543 = vshll.u32 %v5364, 16
      %v5545 = vor.u32 %v5542, %v5543
      %v5546 = vsel %vm669, %v5538, %v5545
      %v5548 = vshrl.u32 %v5365, 16
      %v5550 = vrot.slane %v5548, 7
      %v5552 = vshrl.u32 %v5366, 16
      %v5554 = vrot.slane %v5552, 7
      %v5555 = vshll.u32 %v5366, 16
      %v5557 = vor.u32 %v5554, %v5555
      %v5558 = vsel %vm669, %v5550, %v5557
      %s5559 = scalar_lea.vmem %s4, 12
      %v5560 = vld [vmem:[%s5559] sm:$0xf]
      %v5562 = vsel %vm405, %v5378, 0
      %v5565 = vsel %vm405, %v5390, 0
      %v5568 = vsel %vm405, %v5402, 0
      %v5571 = vsel %vm405, %v5414, 0
      %v5574 = vsel %vm405, %v5426, 0
      %v5577 = vsel %vm405, %v5438, 0
      %v5580 = vsel %vm405, %v5450, 0
      %v5583 = vsel %vm405, %v5462, 0
      %v5586 = vsel %vm405, %v5474, 0
      %v5589 = vsel %vm405, %v5486, 0
      %v5592 = vsel %vm405, %v5498, 0
      %v5595 = vsel %vm405, %v5510, 0
      %v5598 = vsel %vm405, %v5522, 0
      %v5601 = vsel %vm405, %v5534, 0
      %v5604 = vsel %vm405, %v5546, 0
      %v5607 = vsel %vm405, %v5558, 0
      %v5610 = vsel %vm4488, %v5560, 0
      %5612 = vmatprep.subr.bf16.mxu0 0
      %5613 = vmatpush1.bf16.msra.mxu0 %v5610
      %5614 = vmatprep.subr.bf16.mxu0 0
      %5615 = vmatpush1.bf16.msra.mxu0 0
      %5616 = vmatprep.subr.bf16.mxu0 0
      %5617 = vmatpush1.bf16.msra.mxu0 0
      %5618 = vmatprep.subr.bf16.mxu0 0
      %5619 = vmatpush1.bf16.msra.mxu0 0
      %5620 = vmatprep.subr.bf16.mxu0 0
      %5621 = vmatpush1.bf16.msra.mxu0 0
      %5622 = vmatprep.subr.bf16.mxu0 0
      %5623 = vmatpush1.bf16.msra.mxu0 0
      %5624 = vmatprep.subr.bf16.mxu0 0
      %5625 = vmatpush1.bf16.msra.mxu0 0
      %5626 = vmatprep.subr.bf16.mxu0 0
      %5627 = vmatpush1.bf16.msra.mxu0 0
      %5628 = vmatprep.subr.bf16.mxu0 0
      %5629 = vmatpush1.bf16.msra.mxu0 0
      %5630 = vmatprep.subr.bf16.mxu0 0
      %5631 = vmatpush1.bf16.msra.mxu0 0
      %5632 = vmatprep.subr.bf16.mxu0 0
      %5633 = vmatpush1.bf16.msra.mxu0 0
      %5634 = vmatprep.subr.bf16.mxu0 0
      %5635 = vmatpush1.bf16.msra.mxu0 0
      %5636 = vmatprep.subr.bf16.mxu0 0
      %5637 = vmatpush1.bf16.msra.mxu0 0
      %5638 = vmatprep.subr.bf16.mxu0 0
      %5639 = vmatpush1.bf16.msra.mxu0 0
      %5640 = vmatprep.subr.bf16.mxu0 0
      %5641 = vmatpush1.bf16.msra.mxu0 0
      %5642 = vmatprep.subr.bf16.mxu0 0
      %5643 = vmatpush1.bf16.msra.mxu0 0
      %5644 = vmatprep.mubr.bf16.mxu0 0
      %5645 = vmatmul.mubr.bf16.gmra.mrb[0].mxu0 %v5562
      %v5646 = vpop.f32.mrb[0].mxu0
      %v5647 = vadd.f32 0.0, %v5646
      %v5648 = vpop.f32.mrb[0].mxu0
      %v5649 = vpop.f32.mrb[0].mxu0
      %v5650 = vadd.f32 0.0, %v5649
      %v5651 = vpop.f32.mrb[0].mxu0
      %5652 = vmatprep.mubr.bf16.mxu0 0
      %5653 = vmatmul.mubr.bf16.gmra.mrb[0].mxu0 %v5565
      %v5654 = vpop.f32.mrb[0].mxu0
      %v5655 = vadd.f32 0.0, %v5654
      %v5656 = vpop.f32.mrb[0].mxu0
      %v5657 = vpop.f32.mrb[0].mxu0
      %v5658 = vadd.f32 0.0, %v5657
      %v5659 = vpop.f32.mrb[0].mxu0
      %5660 = vmatprep.mubr.bf16.mxu0 0
      %5661 = vmatmul.mubr.bf16.gmra.mrb[0].mxu0 %v5568
      %v5662 = vpop.f32.mrb[0].mxu0
      %v5663 = vadd.f32 0.0, %v5662
      %v5664 = vpop.f32.mrb[0].mxu0
      %v5665 = vpop.f32.mrb[0].mxu0
      %v5666 = vadd.f32 0.0, %v5665
      %v5667 = vpop.f32.mrb[0].mxu0
      %5668 = vmatprep.mubr.bf16.mxu0 0
      %5669 = vmatmul.mubr.bf16.gmra.mrb[0].mxu0 %v5571
      %v5670 = vpop.f32.mrb[0].mxu0
      %v5671 = vadd.f32 0.0, %v5670
      %v5672 = vpop.f32.mrb[0].mxu0
      %v5673 = vpop.f32.mrb[0].mxu0
      %v5674 = vadd.f32 0.0, %v5673
      %v5675 = vpop.f32.mrb[0].mxu0
      %5676 = vmatprep.mubr.bf16.mxu0 0
      %5677 = vmatmul.mubr.bf16.gmra.mrb[0].mxu0 %v5574
      %v5678 = vpop.f32.mrb[0].mxu0
      %v5679 = vadd.f32 0.0, %v5678
      %v5680 = vpop.f32.mrb[0].mxu0
      %v5681 = vpop.f32.mrb[0].mxu0
      %v5682 = vadd.f32 0.0, %v5681
      %v5683 = vpop.f32.mrb[0].mxu0
      %5684 = vmatprep.mubr.bf16.mxu0 0
      %5685 = vmatmul.mubr.bf16.gmra.mrb[0].mxu0 %v5577
      %v5686 = vpop.f32.mrb[0].mxu0
      %v5687 = vadd.f32 0.0, %v5686
      %v5688 = vpop.f32.mrb[0].mxu0
      %v5689 = vpop.f32.mrb[0].mxu0
      %v5690 = vadd.f32 0.0, %v5689
      %v5691 = vpop.f32.mrb[0].mxu0
      %5692 = vmatprep.mubr.bf16.mxu0 0
      %5693 = vmatmul.mubr.bf16.gmra.mrb[0].mxu0 %v5580
      %v5694 = vpop.f32.mrb[0].mxu0
      %v5695 = vadd.f32 0.0, %v5694
      %v5696 = vpop.f32.mrb[0].mxu0
      %v5697 = vpop.f32.mrb[0].mxu0
      %v5698 = vadd.f32 0.0, %v5697
      %v5699 = vpop.f32.mrb[0].mxu0
      %5700 = vmatprep.mubr.bf16.mxu0 0
      %5701 = vmatmul.mubr.bf16.gmra.mrb[0].mxu0 %v5583
      %v5702 = vpop.f32.mrb[0].mxu0
      %v5703 = vadd.f32 0.0, %v5702
      %v5704 = vpop.f32.mrb[0].mxu0
      %v5705 = vpop.f32.mrb[0].mxu0
      %v5706 = vadd.f32 0.0, %v5705
      %v5707 = vpop.f32.mrb[0].mxu0
      %5708 = vmatprep.mubr.bf16.mxu0 0
      %5709 = vmatmul.mubr.bf16.gmra.mrb[0].mxu0 %v5586
      %v5710 = vpop.f32.mrb[0].mxu0
      %v5711 = vadd.f32 0.0, %v5710
      %v5712 = vpop.f32.mrb[0].mxu0
      %v5713 = vpop.f32.mrb[0].mxu0
      %v5714 = vadd.f32 0.0, %v5713
      %v5715 = vpop.f32.mrb[0].mxu0
      %5716 = vmatprep.mubr.bf16.mxu0 0
      %5717 = vmatmul.mubr.bf16.gmra.mrb[0].mxu0 %v5589
      %v5718 = vpop.f32.mrb[0].mxu0
      %v5719 = vadd.f32 0.0, %v5718
      %v5720 = vpop.f32.mrb[0].mxu0
      %v5721 = vpop.f32.mrb[0].mxu0
      %v5722 = vadd.f32 0.0, %v5721
      %v5723 = vpop.f32.mrb[0].mxu0
      %5724 = vmatprep.mubr.bf16.mxu0 0
      %5725 = vmatmul.mubr.bf16.gmra.mrb[0].mxu0 %v5592
      %v5726 = vpop.f32.mrb[0].mxu0
      %v5727 = vadd.f32 0.0, %v5726
      %v5728 = vpop.f32.mrb[0].mxu0
      %v5729 = vpop.f32.mrb[0].mxu0
      %v5730 = vadd.f32 0.0, %v5729
      %v5731 = vpop.f32.mrb[0].mxu0
      %5732 = vmatprep.mubr.bf16.mxu0 0
      %5733 = vmatmul.mubr.bf16.gmra.mrb[0].mxu0 %v5595
      %v5734 = vpop.f32.mrb[0].mxu0
      %v5735 = vadd.f32 0.0, %v5734
      %v5736 = vpop.f32.mrb[0].mxu0
      %v5737 = vpop.f32.mrb[0].mxu0
      %v5738 = vadd.f32 0.0, %v5737
      %v5739 = vpop.f32.mrb[0].mxu0
      %5740 = vmatprep.mubr.bf16.mxu0 0
      %5741 = vmatmul.mubr.bf16.gmra.mrb[0].mxu0 %v5598
      %v5742 = vpop.f32.mrb[0].mxu0
      %v5743 = vadd.f32 0.0, %v5742
      %v5744 = vpop.f32.mrb[0].mxu0
      %v5745 = vpop.f32.mrb[0].mxu0
      %v5746 = vadd.f32 0.0, %v5745
      %v5747 = vpop.f32.mrb[0].mxu0
      %5748 = vmatprep.mubr.bf16.mxu0 0
      %5749 = vmatmul.mubr.bf16.gmra.mrb[0].mxu0 %v5601
      %v5750 = vpop.f32.mrb[0].mxu0
      %v5751 = vadd.f32 0.0, %v5750
      %v5752 = vpop.f32.mrb[0].mxu0
      %v5753 = vpop.f32.mrb[0].mxu0
      %v5754 = vadd.f32 0.0, %v5753
      %v5755 = vpop.f32.mrb[0].mxu0
      %5756 = vmatprep.mubr.bf16.mxu0 0
      %5757 = vmatmul.mubr.bf16.gmra.mrb[0].mxu0 %v5604
      %v5758 = vpop.f32.mrb[0].mxu0
      %v5759 = vadd.f32 0.0, %v5758
      %v5760 = vpop.f32.mrb[0].mxu0
      %v5761 = vpop.f32.mrb[0].mxu0
      %v5762 = vadd.f32 0.0, %v5761
      %v5763 = vpop.f32.mrb[0].mxu0
      %5764 = vmatprep.mubr.bf16.mxu0 0
      %5765 = vmatmul.mubr.bf16.gmra.mrb[0].mxu0 %v5607
      %v5766 = vpop.f32.mrb[0].mxu0
      %v5767 = vadd.f32 0.0, %v5766
      %v5768 = vpop.f32.mrb[0].mxu0
      %v5769 = vpop.f32.mrb[0].mxu0
      %v5770 = vadd.f32 0.0, %v5769
      %v5771 = vpop.f32.mrb[0].mxu0
      %5772 = vdwg.mxu0
      %v5773 = vadd.f32 %v5303, %v5647
      %v5774 = vadd.f32 %v5304, %v5650
      %v5775 = vadd.f32 %v5305, %v5655
      %v5776 = vadd.f32 %v5306, %v5658
      %v5777 = vadd.f32 %v5307, %v5663
      %v5778 = vadd.f32 %v5308, %v5666
      %v5779 = vadd.f32 %v5309, %v5671
      %v5780 = vadd.f32 %v5310, %v5674
      %v5781 = vadd.f32 %v5311, %v5679
      %v5782 = vadd.f32 %v5312, %v5682
      %v5783 = vadd.f32 %v5313, %v5687
      %v5784 = vadd.f32 %v5314, %v5690
      %v5785 = vadd.f32 %v5315, %v5695
      %v5786 = vadd.f32 %v5316, %v5698
      %v5787 = vadd.f32 %v5317, %v5703
      %v5788 = vadd.f32 %v5318, %v5706
      %v5789 = vadd.f32 %v5319, %v5711
      %v5790 = vadd.f32 %v5320, %v5714
      %v5791 = vadd.f32 %v5321, %v5719
      %v5792 = vadd.f32 %v5322, %v5722
      %v5793 = vadd.f32 %v5323, %v5727
      %v5794 = vadd.f32 %v5324, %v5730
      %v5795 = vadd.f32 %v5325, %v5735
      %v5796 = vadd.f32 %v5326, %v5738
      %v5797 = vadd.f32 %v5327, %v5743
      %v5798 = vadd.f32 %v5328, %v5746
      %v5799 = vadd.f32 %v5329, %v5751
      %v5800 = vadd.f32 %v5330, %v5754
      %v5801 = vadd.f32 %v5331, %v5759
      %v5802 = vadd.f32 %v5332, %v5762
      %v5803 = vadd.f32 %v5333, %v5767
      %v5804 = vadd.f32 %v5334, %v5770
      %s5805 = scalar_lea.vmem %s4, 16
      %v5806 = vld [vmem:[%s5805] sm:$0xf]
      %v5807 = vsel %vm405, %v5336, 0
      %v5809 = vsel %vm405, %v5338, 0
      %v5811 = vsel %vm405, %v5340, 0
      %v5813 = vsel %vm405, %v5342, 0
      %v5815 = vsel %vm405, %v5344, 0
      %v5817 = vsel %vm405, %v5346, 0
      %v5819 = vsel %vm405, %v5348, 0
      %v5821 = vsel %vm405, %v5350, 0
      %v5823 = vsel %vm405, %v5352, 0
      %v5825 = vsel %vm405, %v5354, 0
      %v5827 = vsel %vm405, %v5356, 0
      %v5829 = vsel %vm405, %v5358, 0
      %v5831 = vsel %vm405, %v5360, 0
      %v5833 = vsel %vm405, %v5362, 0
      %v5835 = vsel %vm405, %v5364, 0
      %v5837 = vsel %vm405, %v5366, 0
      %v5840 = vsel %vm4488, %v5806, 0
      %5842 = vmatprep.subr.bf16.mxu0 0
      %5843 = vmatpush1.bf16.msra.mxu0 %v5840
      %5844 = vmatprep.subr.bf16.mxu0 0
      %5845 = vmatpush1.bf16.msra.mxu0 0
      %5846 = vmatprep.subr.bf16.mxu0 0
      %5847 = vmatpush1.bf16.msra.mxu0 0
      %5848 = vmatprep.subr.bf16.mxu0 0
      %5849 = vmatpush1.bf16.msra.mxu0 0
      %5850 = vmatprep.subr.bf16.mxu0 0
      %5851 = vmatpush1.bf16.msra.mxu0 0
      %5852 = vmatprep.subr.bf16.mxu0 0
      %5853 = vmatpush1.bf16.msra.mxu0 0
      %5854 = vmatprep.subr.bf16.mxu0 0
      %5855 = vmatpush1.bf16.msra.mxu0 0
      %5856 = vmatprep.subr.bf16.mxu0 0
      %5857 = vmatpush1.bf16.msra.mxu0 0
      %5858 = vmatprep.subr.bf16.mxu0 0
      %5859 = vmatpush1.bf16.msra.mxu0 0
      %5860 = vmatprep.subr.bf16.mxu0 0
      %5861 = vmatpush1.bf16.msra.mxu0 0
      %5862 = vmatprep.subr.bf16.mxu0 0
      %5863 = vmatpush1.bf16.msra.mxu0 0
      %5864 = vmatprep.subr.bf16.mxu0 0
      %5865 = vmatpush1.bf16.msra.mxu0 0
      %5866 = vmatprep.subr.bf16.mxu0 0
      %5867 = vmatpush1.bf16.msra.mxu0 0
      %5868 = vmatprep.subr.bf16.mxu0 0
      %5869 = vmatpush1.bf16.msra.mxu0 0
      %5870 = vmatprep.subr.bf16.mxu0 0
      %5871 = vmatpush1.bf16.msra.mxu0 0
      %5872 = vmatprep.subr.bf16.mxu0 0
      %5873 = vmatpush1.bf16.msra.mxu0 0
      %5874 = vmatprep.mubr.bf16.mxu0 0
      %5875 = vmatmul.mubr.bf16.gmra.mrb[0].mxu0 %v5807
      %v5876 = vpop.f32.mrb[0].mxu0
      %v5877 = vadd.f32 0.0, %v5876
      %v5878 = vpop.f32.mrb[0].mxu0
      %v5879 = vpop.f32.mrb[0].mxu0
      %v5880 = vadd.f32 0.0, %v5879
      %v5881 = vpop.f32.mrb[0].mxu0
      %5882 = vmatprep.mubr.bf16.mxu0 0
      %5883 = vmatmul.mubr.bf16.gmra.mrb[0].mxu0 %v5809
      %v5884 = vpop.f32.mrb[0].mxu0
      %v5885 = vadd.f32 0.0, %v5884
      %v5886 = vpop.f32.mrb[0].mxu0
      %v5887 = vpop.f32.mrb[0].mxu0
      %v5888 = vadd.f32 0.0, %v5887
      %v5889 = vpop.f32.mrb[0].mxu0
      %5890 = vmatprep.mubr.bf16.mxu0 0
      %5891 = vmatmul.mubr.bf16.gmra.mrb[0].mxu0 %v5811
      %v5892 = vpop.f32.mrb[0].mxu0
      %v5893 = vadd.f32 0.0, %v5892
      %v5894 = vpop.f32.mrb[0].mxu0
      %v5895 = vpop.f32.mrb[0].mxu0
      %v5896 = vadd.f32 0.0, %v5895
      %v5897 = vpop.f32.mrb[0].mxu0
      %5898 = vmatprep.mubr.bf16.mxu0 0
      %5899 = vmatmul.mubr.bf16.gmra.mrb[0].mxu0 %v5813
      %v5900 = vpop.f32.mrb[0].mxu0
      %v5901 = vadd.f32 0.0, %v5900
      %v5902 = vpop.f32.mrb[0].mxu0
      %v5903 = vpop.f32.mrb[0].mxu0
      %v5904 = vadd.f32 0.0, %v5903
      %v5905 = vpop.f32.mrb[0].mxu0
      %5906 = vmatprep.mubr.bf16.mxu0 0
      %5907 = vmatmul.mubr.bf16.gmra.mrb[0].mxu0 %v5815
      %v5908 = vpop.f32.mrb[0].mxu0
      %v5909 = vadd.f32 0.0, %v5908
      %v5910 = vpop.f32.mrb[0].mxu0
      %v5911 = vpop.f32.mrb[0].mxu0
      %v5912 = vadd.f32 0.0, %v5911
      %v5913 = vpop.f32.mrb[0].mxu0
      %5914 = vmatprep.mubr.bf16.mxu0 0
      %5915 = vmatmul.mubr.bf16.gmra.mrb[0].mxu0 %v5817
      %v5916 = vpop.f32.mrb[0].mxu0
      %v5917 = vadd.f32 0.0, %v5916
      %v5918 = vpop.f32.mrb[0].mxu0
      %v5919 = vpop.f32.mrb[0].mxu0
      %v5920 = vadd.f32 0.0, %v5919
      %v5921 = vpop.f32.mrb[0].mxu0
      %5922 = vmatprep.mubr.bf16.mxu0 0
      %5923 = vmatmul.mubr.bf16.gmra.mrb[0].mxu0 %v5819
      %v5924 = vpop.f32.mrb[0].mxu0
      %v5925 = vadd.f32 0.0, %v5924
      %v5926 = vpop.f32.mrb[0].mxu0
      %v5927 = vpop.f32.mrb[0].mxu0
      %v5928 = vadd.f32 0.0, %v5927
      %v5929 = vpop.f32.mrb[0].mxu0
      %5930 = vmatprep.mubr.bf16.mxu0 0
      %5931 = vmatmul.mubr.bf16.gmra.mrb[0].mxu0 %v5821
      %v5932 = vpop.f32.mrb[0].mxu0
      %v5933 = vadd.f32 0.0, %v5932
      %v5934 = vpop.f32.mrb[0].mxu0
      %v5935 = vpop.f32.mrb[0].mxu0
      %v5936 = vadd.f32 0.0, %v5935
      %v5937 = vpop.f32.mrb[0].mxu0
      %5938 = vmatprep.mubr.bf16.mxu0 0
      %5939 = vmatmul.mubr.bf16.gmra.mrb[0].mxu0 %v5823
      %v5940 = vpop.f32.mrb[0].mxu0
      %v5941 = vadd.f32 0.0, %v5940
      %v5942 = vpop.f32.mrb[0].mxu0
      %v5943 = vpop.f32.mrb[0].mxu0
      %v5944 = vadd.f32 0.0, %v5943
      %v5945 = vpop.f32.mrb[0].mxu0
      %5946 = vmatprep.mubr.bf16.mxu0 0
      %5947 = vmatmul.mubr.bf16.gmra.mrb[0].mxu0 %v5825
      %v5948 = vpop.f32.mrb[0].mxu0
      %v5949 = vadd.f32 0.0, %v5948
      %v5950 = vpop.f32.mrb[0].mxu0
      %v5951 = vpop.f32.mrb[0].mxu0
      %v5952 = vadd.f32 0.0, %v5951
      %v5953 = vpop.f32.mrb[0].mxu0
      %5954 = vmatprep.mubr.bf16.mxu0 0
      %5955 = vmatmul.mubr.bf16.gmra.mrb[0].mxu0 %v5827
      %v5956 = vpop.f32.mrb[0].mxu0
      %v5957 = vadd.f32 0.0, %v5956
      %v5958 = vpop.f32.mrb[0].mxu0
      %v5959 = vpop.f32.mrb[0].mxu0
      %v5960 = vadd.f32 0.0, %v5959
      %v5961 = vpop.f32.mrb[0].mxu0
      %5962 = vmatprep.mubr.bf16.mxu0 0
      %5963 = vmatmul.mubr.bf16.gmra.mrb[0].mxu0 %v5829
      %v5964 = vpop.f32.mrb[0].mxu0
      %v5965 = vadd.f32 0.0, %v5964
      %v5966 = vpop.f32.mrb[0].mxu0
      %v5967 = vpop.f32.mrb[0].mxu0
      %v5968 = vadd.f32 0.0, %v5967
      %v5969 = vpop.f32.mrb[0].mxu0
      %5970 = vmatprep.mubr.bf16.mxu0 0
      %5971 = vmatmul.mubr.bf16.gmra.mrb[0].mxu0 %v5831
      %v5972 = vpop.f32.mrb[0].mxu0
      %v5973 = vadd.f32 0.0, %v5972
      %v5974 = vpop.f32.mrb[0].mxu0
      %v5975 = vpop.f32.mrb[0].mxu0
      %v5976 = vadd.f32 0.0, %v5975
      %v5977 = vpop.f32.mrb[0].mxu0
      %5978 = vmatprep.mubr.bf16.mxu0 0
      %5979 = vmatmul.mubr.bf16.gmra.mrb[0].mxu0 %v5833
      %v5980 = vpop.f32.mrb[0].mxu0
      %v5981 = vadd.f32 0.0, %v5980
      %v5982 = vpop.f32.mrb[0].mxu0
      %v5983 = vpop.f32.mrb[0].mxu0
      %v5984 = vadd.f32 0.0, %v5983
      %v5985 = vpop.f32.mrb[0].mxu0
      %5986 = vmatprep.mubr.bf16.mxu0 0
      %5987 = vmatmul.mubr.bf16.gmra.mrb[0].mxu0 %v5835
      %v5988 = vpop.f32.mrb[0].mxu0
      %v5989 = vadd.f32 0.0, %v5988
      %v5990 = vpop.f32.mrb[0].mxu0
      %v5991 = vpop.f32.mrb[0].mxu0
      %v5992 = vadd.f32 0.0, %v5991
      %v5993 = vpop.f32.mrb[0].mxu0
      %5994 = vmatprep.mubr.bf16.mxu0 0
      %5995 = vmatmul.mubr.bf16.gmra.mrb[0].mxu0 %v5837
      %v5996 = vpop.f32.mrb[0].mxu0
      %v5997 = vadd.f32 0.0, %v5996
      %v5998 = vpop.f32.mrb[0].mxu0
      %v5999 = vpop.f32.mrb[0].mxu0
      %v6000 = vadd.f32 0.0, %v5999
      %v6001 = vpop.f32.mrb[0].mxu0
      %6002 = vdwg.mxu0
      %v6003 = vadd.f32 %v5773, %v5877
      %v6004 = vadd.f32 %v5774, %v5880
      %v6005 = vadd.f32 %v5775, %v5885
      %v6006 = vadd.f32 %v5776, %v5888
      %v6007 = vadd.f32 %v5777, %v5893
      %v6008 = vadd.f32 %v5778, %v5896
      %v6009 = vadd.f32 %v5779, %v5901
      %v6010 = vadd.f32 %v5780, %v5904
      %v6011 = vadd.f32 %v5781, %v5909
      %v6012 = vadd.f32 %v5782, %v5912
      %v6013 = vadd.f32 %v5783, %v5917
      %v6014 = vadd.f32 %v5784, %v5920
      %v6015 = vadd.f32 %v5785, %v5925
      %v6016 = vadd.f32 %v5786, %v5928
      %v6017 = vadd.f32 %v5787, %v5933
      %v6018 = vadd.f32 %v5788, %v5936
      %v6019 = vadd.f32 %v5789, %v5941
      %v6020 = vadd.f32 %v5790, %v5944
      %v6021 = vadd.f32 %v5791, %v5949
      %v6022 = vadd.f32 %v5792, %v5952
      %v6023 = vadd.f32 %v5793, %v5957
      %v6024 = vadd.f32 %v5794, %v5960
      %v6025 = vadd.f32 %v5795, %v5965
      %v6026 = vadd.f32 %v5796, %v5968
      %v6027 = vadd.f32 %v5797, %v5973
      %v6028 = vadd.f32 %v5798, %v5976
      %v6029 = vadd.f32 %v5799, %v5981
      %v6030 = vadd.f32 %v5800, %v5984
      %v6031 = vadd.f32 %v5801, %v5989
      %v6032 = vadd.f32 %v5802, %v5992
      %v6033 = vadd.f32 %v5803, %v5997
      %v6034 = vadd.f32 %v5804, %v6000
      %v6035 = vld [vmem:[%s4212 + $0x8] sm:$0xff]
      %v6036 = vld [vmem:[%s4212 + $0x10] sm:$0x1]
      %v6037 = vld [vmem:[%s4212 + $0x20] sm:$0xff]
      %v6038 = vld [vmem:[%s4212 + $0x28] sm:$0x1]
      %v6039 = vld [vmem:[%s4212 + $0x38] sm:$0xff]
      %v6040 = vld [vmem:[%s4212 + $0x40] sm:$0x1]
      %v6041 = vld [vmem:[%s4212 + $0x50] sm:$0xff]
      %v6042 = vld [vmem:[%s4212 + $0x58] sm:$0x1]
      %v6043 = vld [vmem:[%s4212 + $0x68] sm:$0xff]
      %v6044 = vld [vmem:[%s4212 + $0x70] sm:$0x1]
      %v6045 = vld [vmem:[%s4212 + $0x80] sm:$0xff]
      %v6046 = vld [vmem:[%s4212 + $0x88] sm:$0x1]
      %v6047 = vld [vmem:[%s4212 + $0x98] sm:$0xff]
      %v6048 = vld [vmem:[%s4212 + $0xa0] sm:$0x1]
      %v6049 = vld [vmem:[%s4212 + $0xb0] sm:$0xff]
      %v6050 = vld [vmem:[%s4212 + $0xb8] sm:$0x1]
      %v6051 = vld [vmem:[%s4212 + $0xc8] sm:$0xff]
      %v6052 = vld [vmem:[%s4212 + $0xd0] sm:$0x1]
      %v6053 = vld [vmem:[%s4212 + $0xe0] sm:$0xff]
      %v6054 = vld [vmem:[%s4212 + $0xe8] sm:$0x1]
      %v6055 = vld [vmem:[%s4212 + $0xf8] sm:$0xff]
      %v6056 = vld [vmem:[%s4212 + $0x100] sm:$0x1]
      %v6057 = vld [vmem:[%s4212 + $0x110] sm:$0xff]
      %v6058 = vld [vmem:[%s4212 + $0x118] sm:$0x1]
      %v6059 = vld [vmem:[%s4212 + $0x128] sm:$0xff]
      %v6060 = vld [vmem:[%s4212 + $0x130] sm:$0x1]
      %v6061 = vld [vmem:[%s4212 + $0x140] sm:$0xff]
      %v6062 = vld [vmem:[%s4212 + $0x148] sm:$0x1]
      %v6063 = vld [vmem:[%s4212 + $0x158] sm:$0xff]
      %v6064 = vld [vmem:[%s4212 + $0x160] sm:$0x1]
      %v6065 = vld [vmem:[%s4212 + $0x170] sm:$0xff]
      %v6066 = vld [vmem:[%s4212 + $0x178] sm:$0x1]
      %v6068 = vshrl.u32 %v6035, 16
      %v6070 = vshll.u32 %v6035, 16
      %v6072 = vrot.slane %v6070, 1
      %v6073 = vor.u32 %v6068, %v6072
      %v6075 = vshll.u32 %v6036, 16
      %v6077 = vrot.slane %v6075, 1
      %v6078 = vsel %vm1306, %v6073, %v6077
      %v6080 = vshrl.u32 %v6037, 16
      %v6082 = vshll.u32 %v6037, 16
      %v6084 = vrot.slane %v6082, 1
      %v6085 = vor.u32 %v6080, %v6084
      %v6087 = vshll.u32 %v6038, 16
      %v6089 = vrot.slane %v6087, 1
      %v6090 = vsel %vm1306, %v6085, %v6089
      %v6092 = vshrl.u32 %v6039, 16
      %v6094 = vshll.u32 %v6039, 16
      %v6096 = vrot.slane %v6094, 1
      %v6097 = vor.u32 %v6092, %v6096
      %v6099 = vshll.u32 %v6040, 16
      %v6101 = vrot.slane %v6099, 1
      %v6102 = vsel %vm1306, %v6097, %v6101
      %v6104 = vshrl.u32 %v6041, 16
      %v6106 = vshll.u32 %v6041, 16
      %v6108 = vrot.slane %v6106, 1
      %v6109 = vor.u32 %v6104, %v6108
      %v6111 = vshll.u32 %v6042, 16
      %v6113 = vrot.slane %v6111, 1
      %v6114 = vsel %vm1306, %v6109, %v6113
      %v6116 = vshrl.u32 %v6043, 16
      %v6118 = vshll.u32 %v6043, 16
      %v6120 = vrot.slane %v6118, 1
      %v6121 = vor.u32 %v6116, %v6120
      %v6123 = vshll.u32 %v6044, 16
      %v6125 = vrot.slane %v6123, 1
      %v6126 = vsel %vm1306, %v6121, %v6125
      %v6128 = vshrl.u32 %v6045, 16
      %v6130 = vshll.u32 %v6045, 16
      %v6132 = vrot.slane %v6130, 1
      %v6133 = vor.u32 %v6128, %v6132
      %v6135 = vshll.u32 %v6046, 16
      %v6137 = vrot.slane %v6135, 1
      %v6138 = vsel %vm1306, %v6133, %v6137
      %v6140 = vshrl.u32 %v6047, 16
      %v6142 = vshll.u32 %v6047, 16
      %v6144 = vrot.slane %v6142, 1
      %v6145 = vor.u32 %v6140, %v6144
      %v6147 = vshll.u32 %v6048, 16
      %v6149 = vrot.slane %v6147, 1
      %v6150 = vsel %vm1306, %v6145, %v6149
      %v6152 = vshrl.u32 %v6049, 16
      %v6154 = vshll.u32 %v6049, 16
      %v6156 = vrot.slane %v6154, 1
      %v6157 = vor.u32 %v6152, %v6156
      %v6159 = vshll.u32 %v6050, 16
      %v6161 = vrot.slane %v6159, 1
      %v6162 = vsel %vm1306, %v6157, %v6161
      %v6164 = vshrl.u32 %v6051, 16
      %v6166 = vshll.u32 %v6051, 16
      %v6168 = vrot.slane %v6166, 1
      %v6169 = vor.u32 %v6164, %v6168
      %v6171 = vshll.u32 %v6052, 16
      %v6173 = vrot.slane %v6171, 1
      %v6174 = vsel %vm1306, %v6169, %v6173
      %v6176 = vshrl.u32 %v6053, 16
      %v6178 = vshll.u32 %v6053, 16
      %v6180 = vrot.slane %v6178, 1
      %v6181 = vor.u32 %v6176, %v6180
      %v6183 = vshll.u32 %v6054, 16
      %v6185 = vrot.slane %v6183, 1
      %v6186 = vsel %vm1306, %v6181, %v6185
      %v6188 = vshrl.u32 %v6055, 16
      %v6190 = vshll.u32 %v6055, 16
      %v6192 = vrot.slane %v6190, 1
      %v6193 = vor.u32 %v6188, %v6192
      %v6195 = vshll.u32 %v6056, 16
      %v6197 = vrot.slane %v6195, 1
      %v6198 = vsel %vm1306, %v6193, %v6197
      %v6200 = vshrl.u32 %v6057, 16
      %v6202 = vshll.u32 %v6057, 16
      %v6204 = vrot.slane %v6202, 1
      %v6205 = vor.u32 %v6200, %v6204
      %v6207 = vshll.u32 %v6058, 16
      %v6209 = vrot.slane %v6207, 1
      %v6210 = vsel %vm1306, %v6205, %v6209
      %v6212 = vshrl.u32 %v6059, 16
      %v6214 = vshll.u32 %v6059, 16
      %v6216 = vrot.slane %v6214, 1
      %v6217 = vor.u32 %v6212, %v6216
      %v6219 = vshll.u32 %v6060, 16
      %v6221 = vrot.slane %v6219, 1
      %v6222 = vsel %vm1306, %v6217, %v6221
      %v6224 = vshrl.u32 %v6061, 16
      %v6226 = vshll.u32 %v6061, 16
      %v6228 = vrot.slane %v6226, 1
      %v6229 = vor.u32 %v6224, %v6228
      %v6231 = vshll.u32 %v6062, 16
      %v6233 = vrot.slane %v6231, 1
      %v6234 = vsel %vm1306, %v6229, %v6233
      %v6236 = vshrl.u32 %v6063, 16
      %v6238 = vshll.u32 %v6063, 16
      %v6240 = vrot.slane %v6238, 1
      %v6241 = vor.u32 %v6236, %v6240
      %v6243 = vshll.u32 %v6064, 16
      %v6245 = vrot.slane %v6243, 1
      %v6246 = vsel %vm1306, %v6241, %v6245
      %v6248 = vshrl.u32 %v6065, 16
      %v6250 = vshll.u32 %v6065, 16
      %v6252 = vrot.slane %v6250, 1
      %v6253 = vor.u32 %v6248, %v6252
      %v6255 = vshll.u32 %v6066, 16
      %v6257 = vrot.slane %v6255, 1
      %v6258 = vsel %vm1306, %v6253, %v6257
      %s6259 = scalar_lea.vmem %s4, 20
      %v6260 = vld [vmem:[%s6259] sm:$0xf]
      %v6262 = vsel %vm405, %v6078, 0
      %v6265 = vsel %vm405, %v6090, 0
      %v6268 = vsel %vm405, %v6102, 0
      %v6271 = vsel %vm405, %v6114, 0
      %v6274 = vsel %vm405, %v6126, 0
      %v6277 = vsel %vm405, %v6138, 0
      %v6280 = vsel %vm405, %v6150, 0
      %v6283 = vsel %vm405, %v6162, 0
      %v6286 = vsel %vm405, %v6174, 0
      %v6289 = vsel %vm405, %v6186, 0
      %v6292 = vsel %vm405, %v6198, 0
      %v6295 = vsel %vm405, %v6210, 0
      %v6298 = vsel %vm405, %v6222, 0
      %v6301 = vsel %vm405, %v6234, 0
      %v6304 = vsel %vm405, %v6246, 0
      %v6307 = vsel %vm405, %v6258, 0
      %v6310 = vsel %vm4488, %v6260, 0
      %6312 = vmatprep.subr.bf16.mxu0 0
      %6313 = vmatpush1.bf16.msra.mxu0 %v6310
      %6314 = vmatprep.subr.bf16.mxu0 0
      %6315 = vmatpush1.bf16.msra.mxu0 0
      %6316 = vmatprep.subr.bf16.mxu0 0
      %6317 = vmatpush1.bf16.msra.mxu0 0
      %6318 = vmatprep.subr.bf16.mxu0 0
      %6319 = vmatpush1.bf16.msra.mxu0 0
      %6320 = vmatprep.subr.bf16.mxu0 0
      %6321 = vmatpush1.bf16.msra.mxu0 0
      %6322 = vmatprep.subr.bf16.mxu0 0
      %6323 = vmatpush1.bf16.msra.mxu0 0
      %6324 = vmatprep.subr.bf16.mxu0 0
      %6325 = vmatpush1.bf16.msra.mxu0 0
      %6326 = vmatprep.subr.bf16.mxu0 0
      %6327 = vmatpush1.bf16.msra.mxu0 0
      %6328 = vmatprep.subr.bf16.mxu0 0
      %6329 = vmatpush1.bf16.msra.mxu0 0
      %6330 = vmatprep.subr.bf16.mxu0 0
      %6331 = vmatpush1.bf16.msra.mxu0 0
      %6332 = vmatprep.subr.bf16.mxu0 0
      %6333 = vmatpush1.bf16.msra.mxu0 0
      %6334 = vmatprep.subr.bf16.mxu0 0
      %6335 = vmatpush1.bf16.msra.mxu0 0
      %6336 = vmatprep.subr.bf16.mxu0 0
      %6337 = vmatpush1.bf16.msra.mxu0 0
      %6338 = vmatprep.subr.bf16.mxu0 0
      %6339 = vmatpush1.bf16.msra.mxu0 0
      %6340 = vmatprep.subr.bf16.mxu0 0
      %6341 = vmatpush1.bf16.msra.mxu0 0
      %6342 = vmatprep.subr.bf16.mxu0 0
      %6343 = vmatpush1.bf16.msra.mxu0 0
      %6344 = vmatprep.mubr.bf16.mxu0 0
      %6345 = vmatmul.mubr.bf16.gmra.mrb[0].mxu0 %v6262
      %v6346 = vpop.f32.mrb[0].mxu0
      %v6347 = vadd.f32 0.0, %v6346
      %v6348 = vpop.f32.mrb[0].mxu0
      %v6349 = vpop.f32.mrb[0].mxu0
      %v6350 = vadd.f32 0.0, %v6349
      %v6351 = vpop.f32.mrb[0].mxu0
      %6352 = vmatprep.mubr.bf16.mxu0 0
      %6353 = vmatmul.mubr.bf16.gmra.mrb[0].mxu0 %v6265
      %v6354 = vpop.f32.mrb[0].mxu0
      %v6355 = vadd.f32 0.0, %v6354
      %v6356 = vpop.f32.mrb[0].mxu0
      %v6357 = vpop.f32.mrb[0].mxu0
      %v6358 = vadd.f32 0.0, %v6357
      %v6359 = vpop.f32.mrb[0].mxu0
      %6360 = vmatprep.mubr.bf16.mxu0 0
      %6361 = vmatmul.mubr.bf16.gmra.mrb[0].mxu0 %v6268
      %v6362 = vpop.f32.mrb[0].mxu0
      %v6363 = vadd.f32 0.0, %v6362
      %v6364 = vpop.f32.mrb[0].mxu0
      %v6365 = vpop.f32.mrb[0].mxu0
      %v6366 = vadd.f32 0.0, %v6365
      %v6367 = vpop.f32.mrb[0].mxu0
      %6368 = vmatprep.mubr.bf16.mxu0 0
      %6369 = vmatmul.mubr.bf16.gmra.mrb[0].mxu0 %v6271
      %v6370 = vpop.f32.mrb[0].mxu0
      %v6371 = vadd.f32 0.0, %v6370
      %v6372 = vpop.f32.mrb[0].mxu0
      %v6373 = vpop.f32.mrb[0].mxu0
      %v6374 = vadd.f32 0.0, %v6373
      %v6375 = vpop.f32.mrb[0].mxu0
      %6376 = vmatprep.mubr.bf16.mxu0 0
      %6377 = vmatmul.mubr.bf16.gmra.mrb[0].mxu0 %v6274
      %v6378 = vpop.f32.mrb[0].mxu0
      %v6379 = vadd.f32 0.0, %v6378
      %v6380 = vpop.f32.mrb[0].mxu0
      %v6381 = vpop.f32.mrb[0].mxu0
      %v6382 = vadd.f32 0.0, %v6381
      %v6383 = vpop.f32.mrb[0].mxu0
      %6384 = vmatprep.mubr.bf16.mxu0 0
      %6385 = vmatmul.mubr.bf16.gmra.mrb[0].mxu0 %v6277
      %v6386 = vpop.f32.mrb[0].mxu0
      %v6387 = vadd.f32 0.0, %v6386
      %v6388 = vpop.f32.mrb[0].mxu0
      %v6389 = vpop.f32.mrb[0].mxu0
      %v6390 = vadd.f32 0.0, %v6389
      %v6391 = vpop.f32.mrb[0].mxu0
      %6392 = vmatprep.mubr.bf16.mxu0 0
      %6393 = vmatmul.mubr.bf16.gmra.mrb[0].mxu0 %v6280
      %v6394 = vpop.f32.mrb[0].mxu0
      %v6395 = vadd.f32 0.0, %v6394
      %v6396 = vpop.f32.mrb[0].mxu0
      %v6397 = vpop.f32.mrb[0].mxu0
      %v6398 = vadd.f32 0.0, %v6397
      %v6399 = vpop.f32.mrb[0].mxu0
      %6400 = vmatprep.mubr.bf16.mxu0 0
      %6401 = vmatmul.mubr.bf16.gmra.mrb[0].mxu0 %v6283
      %v6402 = vpop.f32.mrb[0].mxu0
      %v6403 = vadd.f32 0.0, %v6402
      %v6404 = vpop.f32.mrb[0].mxu0
      %v6405 = vpop.f32.mrb[0].mxu0
      %v6406 = vadd.f32 0.0, %v6405
      %v6407 = vpop.f32.mrb[0].mxu0
      %6408 = vmatprep.mubr.bf16.mxu0 0
      %6409 = vmatmul.mubr.bf16.gmra.mrb[0].mxu0 %v6286
      %v6410 = vpop.f32.mrb[0].mxu0
      %v6411 = vadd.f32 0.0, %v6410
      %v6412 = vpop.f32.mrb[0].mxu0
      %v6413 = vpop.f32.mrb[0].mxu0
      %v6414 = vadd.f32 0.0, %v6413
      %v6415 = vpop.f32.mrb[0].mxu0
      %6416 = vmatprep.mubr.bf16.mxu0 0
      %6417 = vmatmul.mubr.bf16.gmra.mrb[0].mxu0 %v6289
      %v6418 = vpop.f32.mrb[0].mxu0
      %v6419 = vadd.f32 0.0, %v6418
      %v6420 = vpop.f32.mrb[0].mxu0
      %v6421 = vpop.f32.mrb[0].mxu0
      %v6422 = vadd.f32 0.0, %v6421
      %v6423 = vpop.f32.mrb[0].mxu0
      %6424 = vmatprep.mubr.bf16.mxu0 0
      %6425 = vmatmul.mubr.bf16.gmra.mrb[0].mxu0 %v6292
      %v6426 = vpop.f32.mrb[0].mxu0
      %v6427 = vadd.f32 0.0, %v6426
      %v6428 = vpop.f32.mrb[0].mxu0
      %v6429 = vpop.f32.mrb[0].mxu0
      %v6430 = vadd.f32 0.0, %v6429
      %v6431 = vpop.f32.mrb[0].mxu0
      %6432 = vmatprep.mubr.bf16.mxu0 0
      %6433 = vmatmul.mubr.bf16.gmra.mrb[0].mxu0 %v6295
      %v6434 = vpop.f32.mrb[0].mxu0
      %v6435 = vadd.f32 0.0, %v6434
      %v6436 = vpop.f32.mrb[0].mxu0
      %v6437 = vpop.f32.mrb[0].mxu0
      %v6438 = vadd.f32 0.0, %v6437
      %v6439 = vpop.f32.mrb[0].mxu0
      %6440 = vmatprep.mubr.bf16.mxu0 0
      %6441 = vmatmul.mubr.bf16.gmra.mrb[0].mxu0 %v6298
      %v6442 = vpop.f32.mrb[0].mxu0
      %v6443 = vadd.f32 0.0, %v6442
      %v6444 = vpop.f32.mrb[0].mxu0
      %v6445 = vpop.f32.mrb[0].mxu0
      %v6446 = vadd.f32 0.0, %v6445
      %v6447 = vpop.f32.mrb[0].mxu0
      %6448 = vmatprep.mubr.bf16.mxu0 0
      %6449 = vmatmul.mubr.bf16.gmra.mrb[0].mxu0 %v6301
      %v6450 = vpop.f32.mrb[0].mxu0
      %v6451 = vadd.f32 0.0, %v6450
      %v6452 = vpop.f32.mrb[0].mxu0
      %v6453 = vpop.f32.mrb[0].mxu0
      %v6454 = vadd.f32 0.0, %v6453
      %v6455 = vpop.f32.mrb[0].mxu0
      %6456 = vmatprep.mubr.bf16.mxu0 0
      %6457 = vmatmul.mubr.bf16.gmra.mrb[0].mxu0 %v6304
      %v6458 = vpop.f32.mrb[0].mxu0
      %v6459 = vadd.f32 0.0, %v6458
      %v6460 = vpop.f32.mrb[0].mxu0
      %v6461 = vpop.f32.mrb[0].mxu0
      %v6462 = vadd.f32 0.0, %v6461
      %v6463 = vpop.f32.mrb[0].mxu0
      %6464 = vmatprep.mubr.bf16.mxu0 0
      %6465 = vmatmul.mubr.bf16.gmra.mrb[0].mxu0 %v6307
      %v6466 = vpop.f32.mrb[0].mxu0
      %v6467 = vadd.f32 0.0, %v6466
      %v6468 = vpop.f32.mrb[0].mxu0
      %v6469 = vpop.f32.mrb[0].mxu0
      %v6470 = vadd.f32 0.0, %v6469
      %v6471 = vpop.f32.mrb[0].mxu0
      %6472 = vdwg.mxu0
      %v6473 = vadd.f32 %v6003, %v6347
      %v6474 = vadd.f32 %v6004, %v6350
      %v6475 = vadd.f32 %v6005, %v6355
      %v6476 = vadd.f32 %v6006, %v6358
      %v6477 = vadd.f32 %v6007, %v6363
      %v6478 = vadd.f32 %v6008, %v6366
      %v6479 = vadd.f32 %v6009, %v6371
      %v6480 = vadd.f32 %v6010, %v6374
      %v6481 = vadd.f32 %v6011, %v6379
      %v6482 = vadd.f32 %v6012, %v6382
      %v6483 = vadd.f32 %v6013, %v6387
      %v6484 = vadd.f32 %v6014, %v6390
      %v6485 = vadd.f32 %v6015, %v6395
      %v6486 = vadd.f32 %v6016, %v6398
      %v6487 = vadd.f32 %v6017, %v6403
      %v6488 = vadd.f32 %v6018, %v6406
      %v6489 = vadd.f32 %v6019, %v6411
      %v6490 = vadd.f32 %v6020, %v6414
      %v6491 = vadd.f32 %v6021, %v6419
      %v6492 = vadd.f32 %v6022, %v6422
      %v6493 = vadd.f32 %v6023, %v6427
      %v6494 = vadd.f32 %v6024, %v6430
      %v6495 = vadd.f32 %v6025, %v6435
      %v6496 = vadd.f32 %v6026, %v6438
      %v6497 = vadd.f32 %v6027, %v6443
      %v6498 = vadd.f32 %v6028, %v6446
      %v6499 = vadd.f32 %v6029, %v6451
      %v6500 = vadd.f32 %v6030, %v6454
      %v6501 = vadd.f32 %v6031, %v6459
      %v6502 = vadd.f32 %v6032, %v6462
      %v6503 = vadd.f32 %v6033, %v6467
      %v6504 = vadd.f32 %v6034, %v6470
      %s6505 = scalar_lea.vmem [#allocation3], 48
      %v6506 = vld [vmem:[%s6505] sm:$0x80]
      %v6507 = vld [vmem:[%s6505 + $0x8] sm:$0xff]
      %v6508 = vld [vmem:[%s6505 + $0x18] sm:$0x80]
      %v6509 = vld [vmem:[%s6505 + $0x20] sm:$0xff]
      %v6510 = vld [vmem:[%s6505 + $0x30] sm:$0x80]
      %v6511 = vld [vmem:[%s6505 + $0x38] sm:$0xff]
      %v6512 = vld [vmem:[%s6505 + $0x48] sm:$0x80]
      %v6513 = vld [vmem:[%s6505 + $0x50] sm:$0xff]
      %v6514 = vld [vmem:[%s6505 + $0x60] sm:$0x80]
      %v6515 = vld [vmem:[%s6505 + $0x68] sm:$0xff]
      %v6516 = vld [vmem:[%s6505 + $0x78] sm:$0x80]
      %v6517 = vld [vmem:[%s6505 + $0x80] sm:$0xff]
      %v6518 = vld [vmem:[%s6505 + $0x90] sm:$0x80]
      %v6519 = vld [vmem:[%s6505 + $0x98] sm:$0xff]
      %v6520 = vld [vmem:[%s6505 + $0xa8] sm:$0x80]
      %v6521 = vld [vmem:[%s6505 + $0xb0] sm:$0xff]
      %v6522 = vld [vmem:[%s6505 + $0xc0] sm:$0x80]
      %v6523 = vld [vmem:[%s6505 + $0xc8] sm:$0xff]
      %v6524 = vld [vmem:[%s6505 + $0xd8] sm:$0x80]
      %v6525 = vld [vmem:[%s6505 + $0xe0] sm:$0xff]
      %v6526 = vld [vmem:[%s6505 + $0xf0] sm:$0x80]
      %v6527 = vld [vmem:[%s6505 + $0xf8] sm:$0xff]
      %v6528 = vld [vmem:[%s6505 + $0x108] sm:$0x80]
      %v6529 = vld [vmem:[%s6505 + $0x110] sm:$0xff]
      %v6530 = vld [vmem:[%s6505 + $0x120] sm:$0x80]
      %v6531 = vld [vmem:[%s6505 + $0x128] sm:$0xff]
      %v6532 = vld [vmem:[%s6505 + $0x138] sm:$0x80]
      %v6533 = vld [vmem:[%s6505 + $0x140] sm:$0xff]
      %v6534 = vld [vmem:[%s6505 + $0x150] sm:$0x80]
      %v6535 = vld [vmem:[%s6505 + $0x158] sm:$0xff]
      %v6536 = vld [vmem:[%s6505 + $0x168] sm:$0x80]
      %v6537 = vld [vmem:[%s6505 + $0x170] sm:$0xff]
      %v6539 = vshrl.u32 %v6506, 16
      %v6541 = vrot.slane %v6539, 7
      %v6543 = vshrl.u32 %v6507, 16
      %v6545 = vrot.slane %v6543, 7
      %v6546 = vshll.u32 %v6507, 16
      %v6548 = vor.u32 %v6545, %v6546
      %v6549 = vsel %vm669, %v6541, %v6548
      %v6551 = vshrl.u32 %v6508, 16
      %v6553 = vrot.slane %v6551, 7
      %v6555 = vshrl.u32 %v6509, 16
      %v6557 = vrot.slane %v6555, 7
      %v6558 = vshll.u32 %v6509, 16
      %v6560 = vor.u32 %v6557, %v6558
      %v6561 = vsel %vm669, %v6553, %v6560
      %v6563 = vshrl.u32 %v6510, 16
      %v6565 = vrot.slane %v6563, 7
      %v6567 = vshrl.u32 %v6511, 16
      %v6569 = vrot.slane %v6567, 7
      %v6570 = vshll.u32 %v6511, 16
      %v6572 = vor.u32 %v6569, %v6570
      %v6573 = vsel %vm669, %v6565, %v6572
      %v6575 = vshrl.u32 %v6512, 16
      %v6577 = vrot.slane %v6575, 7
      %v6579 = vshrl.u32 %v6513, 16
      %v6581 = vrot.slane %v6579, 7
      %v6582 = vshll.u32 %v6513, 16
      %v6584 = vor.u32 %v6581, %v6582
      %v6585 = vsel %vm669, %v6577, %v6584
      %v6587 = vshrl.u32 %v6514, 16
      %v6589 = vrot.slane %v6587, 7
      %v6591 = vshrl.u32 %v6515, 16
      %v6593 = vrot.slane %v6591, 7
      %v6594 = vshll.u32 %v6515, 16
      %v6596 = vor.u32 %v6593, %v6594
      %v6597 = vsel %vm669, %v6589, %v6596
      %v6599 = vshrl.u32 %v6516, 16
      %v6601 = vrot.slane %v6599, 7
      %v6603 = vshrl.u32 %v6517, 16
      %v6605 = vrot.slane %v6603, 7
      %v6606 = vshll.u32 %v6517, 16
      %v6608 = vor.u32 %v6605, %v6606
      %v6609 = vsel %vm669, %v6601, %v6608
      %v6611 = vshrl.u32 %v6518, 16
      %v6613 = vrot.slane %v6611, 7
      %v6615 = vshrl.u32 %v6519, 16
      %v6617 = vrot.slane %v6615, 7
      %v6618 = vshll.u32 %v6519, 16
      %v6620 = vor.u32 %v6617, %v6618
      %v6621 = vsel %vm669, %v6613, %v6620
      %v6623 = vshrl.u32 %v6520, 16
      %v6625 = vrot.slane %v6623, 7
      %v6627 = vshrl.u32 %v6521, 16
      %v6629 = vrot.slane %v6627, 7
      %v6630 = vshll.u32 %v6521, 16
      %v6632 = vor.u32 %v6629, %v6630
      %v6633 = vsel %vm669, %v6625, %v6632
      %v6635 = vshrl.u32 %v6522, 16
      %v6637 = vrot.slane %v6635, 7
      %v6639 = vshrl.u32 %v6523, 16
      %v6641 = vrot.slane %v6639, 7
      %v6642 = vshll.u32 %v6523, 16
      %v6644 = vor.u32 %v6641, %v6642
      %v6645 = vsel %vm669, %v6637, %v6644
      %v6647 = vshrl.u32 %v6524, 16
      %v6649 = vrot.slane %v6647, 7
      %v6651 = vshrl.u32 %v6525, 16
      %v6653 = vrot.slane %v6651, 7
      %v6654 = vshll.u32 %v6525, 16
      %v6656 = vor.u32 %v6653, %v6654
      %v6657 = vsel %vm669, %v6649, %v6656
      %v6659 = vshrl.u32 %v6526, 16
      %v6661 = vrot.slane %v6659, 7
      %v6663 = vshrl.u32 %v6527, 16
      %v6665 = vrot.slane %v6663, 7
      %v6666 = vshll.u32 %v6527, 16
      %v6668 = vor.u32 %v6665, %v6666
      %v6669 = vsel %vm669, %v6661, %v6668
      %v6671 = vshrl.u32 %v6528, 16
      %v6673 = vrot.slane %v6671, 7
      %v6675 = vshrl.u32 %v6529, 16
      %v6677 = vrot.slane %v6675, 7
      %v6678 = vshll.u32 %v6529, 16
      %v6680 = vor.u32 %v6677, %v6678
      %v6681 = vsel %vm669, %v6673, %v6680
      %v6683 = vshrl.u32 %v6530, 16
      %v6685 = vrot.slane %v6683, 7
      %v6687 = vshrl.u32 %v6531, 16
      %v6689 = vrot.slane %v6687, 7
      %v6690 = vshll.u32 %v6531, 16
      %v6692 = vor.u32 %v6689, %v6690
      %v6693 = vsel %vm669, %v6685, %v6692
      %v6695 = vshrl.u32 %v6532, 16
      %v6697 = vrot.slane %v6695, 7
      %v6699 = vshrl.u32 %v6533, 16
      %v6701 = vrot.slane %v6699, 7
      %v6702 = vshll.u32 %v6533, 16
      %v6704 = vor.u32 %v6701, %v6702
      %v6705 = vsel %vm669, %v6697, %v6704
      %v6707 = vshrl.u32 %v6534, 16
      %v6709 = vrot.slane %v6707, 7
      %v6711 = vshrl.u32 %v6535, 16
      %v6713 = vrot.slane %v6711, 7
      %v6714 = vshll.u32 %v6535, 16
      %v6716 = vor.u32 %v6713, %v6714
      %v6717 = vsel %vm669, %v6709, %v6716
      %v6719 = vshrl.u32 %v6536, 16
      %v6721 = vrot.slane %v6719, 7
      %v6723 = vshrl.u32 %v6537, 16
      %v6725 = vrot.slane %v6723, 7
      %v6726 = vshll.u32 %v6537, 16
      %v6728 = vor.u32 %v6725, %v6726
      %v6729 = vsel %vm669, %v6721, %v6728
      %s6730 = scalar_lea.vmem %s4, 24
      %v6731 = vld [vmem:[%s6730] sm:$0xf]
      %v6733 = vsel %vm405, %v6549, 0
      %v6736 = vsel %vm405, %v6561, 0
      %v6739 = vsel %vm405, %v6573, 0
      %v6742 = vsel %vm405, %v6585, 0
      %v6745 = vsel %vm405, %v6597, 0
      %v6748 = vsel %vm405, %v6609, 0
      %v6751 = vsel %vm405, %v6621, 0
      %v6754 = vsel %vm405, %v6633, 0
      %v6757 = vsel %vm405, %v6645, 0
      %v6760 = vsel %vm405, %v6657, 0
      %v6763 = vsel %vm405, %v6669, 0
      %v6766 = vsel %vm405, %v6681, 0
      %v6769 = vsel %vm405, %v6693, 0
      %v6772 = vsel %vm405, %v6705, 0
      %v6775 = vsel %vm405, %v6717, 0
      %v6778 = vsel %vm405, %v6729, 0
      %v6781 = vsel %vm4488, %v6731, 0
      %6783 = vmatprep.subr.bf16.mxu0 0
      %6784 = vmatpush1.bf16.msra.mxu0 %v6781
      %6785 = vmatprep.subr.bf16.mxu0 0
      %6786 = vmatpush1.bf16.msra.mxu0 0
      %6787 = vmatprep.subr.bf16.mxu0 0
      %6788 = vmatpush1.bf16.msra.mxu0 0
      %6789 = vmatprep.subr.bf16.mxu0 0
      %6790 = vmatpush1.bf16.msra.mxu0 0
      %6791 = vmatprep.subr.bf16.mxu0 0
      %6792 = vmatpush1.bf16.msra.mxu0 0
      %6793 = vmatprep.subr.bf16.mxu0 0
      %6794 = vmatpush1.bf16.msra.mxu0 0
      %6795 = vmatprep.subr.bf16.mxu0 0
      %6796 = vmatpush1.bf16.msra.mxu0 0
      %6797 = vmatprep.subr.bf16.mxu0 0
      %6798 = vmatpush1.bf16.msra.mxu0 0
      %6799 = vmatprep.subr.bf16.mxu0 0
      %6800 = vmatpush1.bf16.msra.mxu0 0
      %6801 = vmatprep.subr.bf16.mxu0 0
      %6802 = vmatpush1.bf16.msra.mxu0 0
      %6803 = vmatprep.subr.bf16.mxu0 0
      %6804 = vmatpush1.bf16.msra.mxu0 0
      %6805 = vmatprep.subr.bf16.mxu0 0
      %6806 = vmatpush1.bf16.msra.mxu0 0
      %6807 = vmatprep.subr.bf16.mxu0 0
      %6808 = vmatpush1.bf16.msra.mxu0 0
      %6809 = vmatprep.subr.bf16.mxu0 0
      %6810 = vmatpush1.bf16.msra.mxu0 0
      %6811 = vmatprep.subr.bf16.mxu0 0
      %6812 = vmatpush1.bf16.msra.mxu0 0
      %6813 = vmatprep.subr.bf16.mxu0 0
      %6814 = vmatpush1.bf16.msra.mxu0 0
      %6815 = vmatprep.mubr.bf16.mxu0 0
      %6816 = vmatmul.mubr.bf16.gmra.mrb[0].mxu0 %v6733
      %v6817 = vpop.f32.mrb[0].mxu0
      %v6818 = vadd.f32 0.0, %v6817
      %v6819 = vpop.f32.mrb[0].mxu0
      %v6820 = vpop.f32.mrb[0].mxu0
      %v6821 = vadd.f32 0.0, %v6820
      %v6822 = vpop.f32.mrb[0].mxu0
      %6823 = vmatprep.mubr.bf16.mxu0 0
      %6824 = vmatmul.mubr.bf16.gmra.mrb[0].mxu0 %v6736
      %v6825 = vpop.f32.mrb[0].mxu0
      %v6826 = vadd.f32 0.0, %v6825
      %v6827 = vpop.f32.mrb[0].mxu0
      %v6828 = vpop.f32.mrb[0].mxu0
      %v6829 = vadd.f32 0.0, %v6828
      %v6830 = vpop.f32.mrb[0].mxu0
      %6831 = vmatprep.mubr.bf16.mxu0 0
      %6832 = vmatmul.mubr.bf16.gmra.mrb[0].mxu0 %v6739
      %v6833 = vpop.f32.mrb[0].mxu0
      %v6834 = vadd.f32 0.0, %v6833
      %v6835 = vpop.f32.mrb[0].mxu0
      %v6836 = vpop.f32.mrb[0].mxu0
      %v6837 = vadd.f32 0.0, %v6836
      %v6838 = vpop.f32.mrb[0].mxu0
      %6839 = vmatprep.mubr.bf16.mxu0 0
      %6840 = vmatmul.mubr.bf16.gmra.mrb[0].mxu0 %v6742
      %v6841 = vpop.f32.mrb[0].mxu0
      %v6842 = vadd.f32 0.0, %v6841
      %v6843 = vpop.f32.mrb[0].mxu0
      %v6844 = vpop.f32.mrb[0].mxu0
      %v6845 = vadd.f32 0.0, %v6844
      %v6846 = vpop.f32.mrb[0].mxu0
      %6847 = vmatprep.mubr.bf16.mxu0 0
      %6848 = vmatmul.mubr.bf16.gmra.mrb[0].mxu0 %v6745
      %v6849 = vpop.f32.mrb[0].mxu0
      %v6850 = vadd.f32 0.0, %v6849
      %v6851 = vpop.f32.mrb[0].mxu0
      %v6852 = vpop.f32.mrb[0].mxu0
      %v6853 = vadd.f32 0.0, %v6852
      %v6854 = vpop.f32.mrb[0].mxu0
      %6855 = vmatprep.mubr.bf16.mxu0 0
      %6856 = vmatmul.mubr.bf16.gmra.mrb[0].mxu0 %v6748
      %v6857 = vpop.f32.mrb[0].mxu0
      %v6858 = vadd.f32 0.0, %v6857
      %v6859 = vpop.f32.mrb[0].mxu0
      %v6860 = vpop.f32.mrb[0].mxu0
      %v6861 = vadd.f32 0.0, %v6860
      %v6862 = vpop.f32.mrb[0].mxu0
      %6863 = vmatprep.mubr.bf16.mxu0 0
      %6864 = vmatmul.mubr.bf16.gmra.mrb[0].mxu0 %v6751
      %v6865 = vpop.f32.mrb[0].mxu0
      %v6866 = vadd.f32 0.0, %v6865
      %v6867 = vpop.f32.mrb[0].mxu0
      %v6868 = vpop.f32.mrb[0].mxu0
      %v6869 = vadd.f32 0.0, %v6868
      %v6870 = vpop.f32.mrb[0].mxu0
      %6871 = vmatprep.mubr.bf16.mxu0 0
      %6872 = vmatmul.mubr.bf16.gmra.mrb[0].mxu0 %v6754
      %v6873 = vpop.f32.mrb[0].mxu0
      %v6874 = vadd.f32 0.0, %v6873
      %v6875 = vpop.f32.mrb[0].mxu0
      %v6876 = vpop.f32.mrb[0].mxu0
      %v6877 = vadd.f32 0.0, %v6876
      %v6878 = vpop.f32.mrb[0].mxu0
      %6879 = vmatprep.mubr.bf16.mxu0 0
      %6880 = vmatmul.mubr.bf16.gmra.mrb[0].mxu0 %v6757
      %v6881 = vpop.f32.mrb[0].mxu0
      %v6882 = vadd.f32 0.0, %v6881
      %v6883 = vpop.f32.mrb[0].mxu0
      %v6884 = vpop.f32.mrb[0].mxu0
      %v6885 = vadd.f32 0.0, %v6884
      %v6886 = vpop.f32.mrb[0].mxu0
      %6887 = vmatprep.mubr.bf16.mxu0 0
      %6888 = vmatmul.mubr.bf16.gmra.mrb[0].mxu0 %v6760
      %v6889 = vpop.f32.mrb[0].mxu0
      %v6890 = vadd.f32 0.0, %v6889
      %v6891 = vpop.f32.mrb[0].mxu0
      %v6892 = vpop.f32.mrb[0].mxu0
      %v6893 = vadd.f32 0.0, %v6892
      %v6894 = vpop.f32.mrb[0].mxu0
      %6895 = vmatprep.mubr.bf16.mxu0 0
      %6896 = vmatmul.mubr.bf16.gmra.mrb[0].mxu0 %v6763
      %v6897 = vpop.f32.mrb[0].mxu0
      %v6898 = vadd.f32 0.0, %v6897
      %v6899 = vpop.f32.mrb[0].mxu0
      %v6900 = vpop.f32.mrb[0].mxu0
      %v6901 = vadd.f32 0.0, %v6900
      %v6902 = vpop.f32.mrb[0].mxu0
      %6903 = vmatprep.mubr.bf16.mxu0 0
      %6904 = vmatmul.mubr.bf16.gmra.mrb[0].mxu0 %v6766
      %v6905 = vpop.f32.mrb[0].mxu0
      %v6906 = vadd.f32 0.0, %v6905
      %v6907 = vpop.f32.mrb[0].mxu0
      %v6908 = vpop.f32.mrb[0].mxu0
      %v6909 = vadd.f32 0.0, %v6908
      %v6910 = vpop.f32.mrb[0].mxu0
      %6911 = vmatprep.mubr.bf16.mxu0 0
      %6912 = vmatmul.mubr.bf16.gmra.mrb[0].mxu0 %v6769
      %v6913 = vpop.f32.mrb[0].mxu0
      %v6914 = vadd.f32 0.0, %v6913
      %v6915 = vpop.f32.mrb[0].mxu0
      %v6916 = vpop.f32.mrb[0].mxu0
      %v6917 = vadd.f32 0.0, %v6916
      %v6918 = vpop.f32.mrb[0].mxu0
      %6919 = vmatprep.mubr.bf16.mxu0 0
      %6920 = vmatmul.mubr.bf16.gmra.mrb[0].mxu0 %v6772
      %v6921 = vpop.f32.mrb[0].mxu0
      %v6922 = vadd.f32 0.0, %v6921
      %v6923 = vpop.f32.mrb[0].mxu0
      %v6924 = vpop.f32.mrb[0].mxu0
      %v6925 = vadd.f32 0.0, %v6924
      %v6926 = vpop.f32.mrb[0].mxu0
      %6927 = vmatprep.mubr.bf16.mxu0 0
      %6928 = vmatmul.mubr.bf16.gmra.mrb[0].mxu0 %v6775
      %v6929 = vpop.f32.mrb[0].mxu0
      %v6930 = vadd.f32 0.0, %v6929
      %v6931 = vpop.f32.mrb[0].mxu0
      %v6932 = vpop.f32.mrb[0].mxu0
      %v6933 = vadd.f32 0.0, %v6932
      %v6934 = vpop.f32.mrb[0].mxu0
      %6935 = vmatprep.mubr.bf16.mxu0 0
      %6936 = vmatmul.mubr.bf16.gmra.mrb[0].mxu0 %v6778
      %v6937 = vpop.f32.mrb[0].mxu0
      %v6938 = vadd.f32 0.0, %v6937
      %v6939 = vpop.f32.mrb[0].mxu0
      %v6940 = vpop.f32.mrb[0].mxu0
      %v6941 = vadd.f32 0.0, %v6940
      %v6942 = vpop.f32.mrb[0].mxu0
      %6943 = vdwg.mxu0
      %v6944 = vadd.f32 %v6473, %v6818
      %v6945 = vadd.f32 %v6474, %v6821
      %v6946 = vadd.f32 %v6475, %v6826
      %v6947 = vadd.f32 %v6476, %v6829
      %v6948 = vadd.f32 %v6477, %v6834
      %v6949 = vadd.f32 %v6478, %v6837
      %v6950 = vadd.f32 %v6479, %v6842
      %v6951 = vadd.f32 %v6480, %v6845
      %v6952 = vadd.f32 %v6481, %v6850
      %v6953 = vadd.f32 %v6482, %v6853
      %v6954 = vadd.f32 %v6483, %v6858
      %v6955 = vadd.f32 %v6484, %v6861
      %v6956 = vadd.f32 %v6485, %v6866
      %v6957 = vadd.f32 %v6486, %v6869
      %v6958 = vadd.f32 %v6487, %v6874
      %v6959 = vadd.f32 %v6488, %v6877
      %v6960 = vadd.f32 %v6489, %v6882
      %v6961 = vadd.f32 %v6490, %v6885
      %v6962 = vadd.f32 %v6491, %v6890
      %v6963 = vadd.f32 %v6492, %v6893
      %v6964 = vadd.f32 %v6493, %v6898
      %v6965 = vadd.f32 %v6494, %v6901
      %v6966 = vadd.f32 %v6495, %v6906
      %v6967 = vadd.f32 %v6496, %v6909
      %v6968 = vadd.f32 %v6497, %v6914
      %v6969 = vadd.f32 %v6498, %v6917
      %v6970 = vadd.f32 %v6499, %v6922
      %v6971 = vadd.f32 %v6500, %v6925
      %v6972 = vadd.f32 %v6501, %v6930
      %v6973 = vadd.f32 %v6502, %v6933
      %v6974 = vadd.f32 %v6503, %v6938
      %v6975 = vadd.f32 %v6504, %v6941
      %s6976 = scalar_lea.vmem %s4, 28
      %v6977 = vld [vmem:[%s6976] sm:$0xf]
      %v6978 = vsel %vm405, %v6507, 0
      %v6980 = vsel %vm405, %v6509, 0
      %v6982 = vsel %vm405, %v6511, 0
      %v6984 = vsel %vm405, %v6513, 0
      %v6986 = vsel %vm405, %v6515, 0
      %v6988 = vsel %vm405, %v6517, 0
      %v6990 = vsel %vm405, %v6519, 0
      %v6992 = vsel %vm405, %v6521, 0
      %v6994 = vsel %vm405, %v6523, 0
      %v6996 = vsel %vm405, %v6525, 0
      %v6998 = vsel %vm405, %v6527, 0
      %v7000 = vsel %vm405, %v6529, 0
      %v7002 = vsel %vm405, %v6531, 0
      %v7004 = vsel %vm405, %v6533, 0
      %v7006 = vsel %vm405, %v6535, 0
      %v7008 = vsel %vm405, %v6537, 0
      %v7011 = vsel %vm4488, %v6977, 0
      %7013 = vmatprep.subr.bf16.mxu0 0
      %7014 = vmatpush1.bf16.msra.mxu0 %v7011
      %7015 = vmatprep.subr.bf16.mxu0 0
      %7016 = vmatpush1.bf16.msra.mxu0 0
      %7017 = vmatprep.subr.bf16.mxu0 0
      %7018 = vmatpush1.bf16.msra.mxu0 0
      %7019 = vmatprep.subr.bf16.mxu0 0
      %7020 = vmatpush1.bf16.msra.mxu0 0
      %7021 = vmatprep.subr.bf16.mxu0 0
      %7022 = vmatpush1.bf16.msra.mxu0 0
      %7023 = vmatprep.subr.bf16.mxu0 0
      %7024 = vmatpush1.bf16.msra.mxu0 0
      %7025 = vmatprep.subr.bf16.mxu0 0
      %7026 = vmatpush1.bf16.msra.mxu0 0
      %7027 = vmatprep.subr.bf16.mxu0 0
      %7028 = vmatpush1.bf16.msra.mxu0 0
      %7029 = vmatprep.subr.bf16.mxu0 0
      %7030 = vmatpush1.bf16.msra.mxu0 0
      %7031 = vmatprep.subr.bf16.mxu0 0
      %7032 = vmatpush1.bf16.msra.mxu0 0
      %7033 = vmatprep.subr.bf16.mxu0 0
      %7034 = vmatpush1.bf16.msra.mxu0 0
      %7035 = vmatprep.subr.bf16.mxu0 0
      %7036 = vmatpush1.bf16.msra.mxu0 0
      %7037 = vmatprep.subr.bf16.mxu0 0
      %7038 = vmatpush1.bf16.msra.mxu0 0
      %7039 = vmatprep.subr.bf16.mxu0 0
      %7040 = vmatpush1.bf16.msra.mxu0 0
      %7041 = vmatprep.subr.bf16.mxu0 0
      %7042 = vmatpush1.bf16.msra.mxu0 0
      %7043 = vmatprep.subr.bf16.mxu0 0
      %7044 = vmatpush1.bf16.msra.mxu0 0
      %7045 = vmatprep.mubr.bf16.mxu0 0
      %7046 = vmatmul.mubr.bf16.gmra.mrb[0].mxu0 %v6978
      %v7047 = vpop.f32.mrb[0].mxu0
      %v7048 = vadd.f32 0.0, %v7047
      %v7049 = vpop.f32.mrb[0].mxu0
      %v7050 = vpop.f32.mrb[0].mxu0
      %v7051 = vadd.f32 0.0, %v7050
      %v7052 = vpop.f32.mrb[0].mxu0
      %7053 = vmatprep.mubr.bf16.mxu0 0
      %7054 = vmatmul.mubr.bf16.gmra.mrb[0].mxu0 %v6980
      %v7055 = vpop.f32.mrb[0].mxu0
      %v7056 = vadd.f32 0.0, %v7055
      %v7057 = vpop.f32.mrb[0].mxu0
      %v7058 = vpop.f32.mrb[0].mxu0
      %v7059 = vadd.f32 0.0, %v7058
      %v7060 = vpop.f32.mrb[0].mxu0
      %7061 = vmatprep.mubr.bf16.mxu0 0
      %7062 = vmatmul.mubr.bf16.gmra.mrb[0].mxu0 %v6982
      %v7063 = vpop.f32.mrb[0].mxu0
      %v7064 = vadd.f32 0.0, %v7063
      %v7065 = vpop.f32.mrb[0].mxu0
      %v7066 = vpop.f32.mrb[0].mxu0
      %v7067 = vadd.f32 0.0, %v7066
      %v7068 = vpop.f32.mrb[0].mxu0
      %7069 = vmatprep.mubr.bf16.mxu0 0
      %7070 = vmatmul.mubr.bf16.gmra.mrb[0].mxu0 %v6984
      %v7071 = vpop.f32.mrb[0].mxu0
      %v7072 = vadd.f32 0.0, %v7071
      %v7073 = vpop.f32.mrb[0].mxu0
      %v7074 = vpop.f32.mrb[0].mxu0
      %v7075 = vadd.f32 0.0, %v7074
      %v7076 = vpop.f32.mrb[0].mxu0
      %7077 = vmatprep.mubr.bf16.mxu0 0
      %7078 = vmatmul.mubr.bf16.gmra.mrb[0].mxu0 %v6986
      %v7079 = vpop.f32.mrb[0].mxu0
      %v7080 = vadd.f32 0.0, %v7079
      %v7081 = vpop.f32.mrb[0].mxu0
      %v7082 = vpop.f32.mrb[0].mxu0
      %v7083 = vadd.f32 0.0, %v7082
      %v7084 = vpop.f32.mrb[0].mxu0
      %7085 = vmatprep.mubr.bf16.mxu0 0
      %7086 = vmatmul.mubr.bf16.gmra.mrb[0].mxu0 %v6988
      %v7087 = vpop.f32.mrb[0].mxu0
      %v7088 = vadd.f32 0.0, %v7087
      %v7089 = vpop.f32.mrb[0].mxu0
      %v7090 = vpop.f32.mrb[0].mxu0
      %v7091 = vadd.f32 0.0, %v7090
      %v7092 = vpop.f32.mrb[0].mxu0
      %7093 = vmatprep.mubr.bf16.mxu0 0
      %7094 = vmatmul.mubr.bf16.gmra.mrb[0].mxu0 %v6990
      %v7095 = vpop.f32.mrb[0].mxu0
      %v7096 = vadd.f32 0.0, %v7095
      %v7097 = vpop.f32.mrb[0].mxu0
      %v7098 = vpop.f32.mrb[0].mxu0
      %v7099 = vadd.f32 0.0, %v7098
      %v7100 = vpop.f32.mrb[0].mxu0
      %7101 = vmatprep.mubr.bf16.mxu0 0
      %7102 = vmatmul.mubr.bf16.gmra.mrb[0].mxu0 %v6992
      %v7103 = vpop.f32.mrb[0].mxu0
      %v7104 = vadd.f32 0.0, %v7103
      %v7105 = vpop.f32.mrb[0].mxu0
      %v7106 = vpop.f32.mrb[0].mxu0
      %v7107 = vadd.f32 0.0, %v7106
      %v7108 = vpop.f32.mrb[0].mxu0
      %7109 = vmatprep.mubr.bf16.mxu0 0
      %7110 = vmatmul.mubr.bf16.gmra.mrb[0].mxu0 %v6994
      %v7111 = vpop.f32.mrb[0].mxu0
      %v7112 = vadd.f32 0.0, %v7111
      %v7113 = vpop.f32.mrb[0].mxu0
      %v7114 = vpop.f32.mrb[0].mxu0
      %v7115 = vadd.f32 0.0, %v7114
      %v7116 = vpop.f32.mrb[0].mxu0
      %7117 = vmatprep.mubr.bf16.mxu0 0
      %7118 = vmatmul.mubr.bf16.gmra.mrb[0].mxu0 %v6996
      %v7119 = vpop.f32.mrb[0].mxu0
      %v7120 = vadd.f32 0.0, %v7119
      %v7121 = vpop.f32.mrb[0].mxu0
      %v7122 = vpop.f32.mrb[0].mxu0
      %v7123 = vadd.f32 0.0, %v7122
      %v7124 = vpop.f32.mrb[0].mxu0
      %7125 = vmatprep.mubr.bf16.mxu0 0
      %7126 = vmatmul.mubr.bf16.gmra.mrb[0].mxu0 %v6998
      %v7127 = vpop.f32.mrb[0].mxu0
      %v7128 = vadd.f32 0.0, %v7127
      %v7129 = vpop.f32.mrb[0].mxu0
      %v7130 = vpop.f32.mrb[0].mxu0
      %v7131 = vadd.f32 0.0, %v7130
      %v7132 = vpop.f32.mrb[0].mxu0
      %7133 = vmatprep.mubr.bf16.mxu0 0
      %7134 = vmatmul.mubr.bf16.gmra.mrb[0].mxu0 %v7000
      %v7135 = vpop.f32.mrb[0].mxu0
      %v7136 = vadd.f32 0.0, %v7135
      %v7137 = vpop.f32.mrb[0].mxu0
      %v7138 = vpop.f32.mrb[0].mxu0
      %v7139 = vadd.f32 0.0, %v7138
      %v7140 = vpop.f32.mrb[0].mxu0
      %7141 = vmatprep.mubr.bf16.mxu0 0
      %7142 = vmatmul.mubr.bf16.gmra.mrb[0].mxu0 %v7002
      %v7143 = vpop.f32.mrb[0].mxu0
      %v7144 = vadd.f32 0.0, %v7143
      %v7145 = vpop.f32.mrb[0].mxu0
      %v7146 = vpop.f32.mrb[0].mxu0
      %v7147 = vadd.f32 0.0, %v7146
      %v7148 = vpop.f32.mrb[0].mxu0
      %7149 = vmatprep.mubr.bf16.mxu0 0
      %7150 = vmatmul.mubr.bf16.gmra.mrb[0].mxu0 %v7004
      %v7151 = vpop.f32.mrb[0].mxu0
      %v7152 = vadd.f32 0.0, %v7151
      %v7153 = vpop.f32.mrb[0].mxu0
      %v7154 = vpop.f32.mrb[0].mxu0
      %v7155 = vadd.f32 0.0, %v7154
      %v7156 = vpop.f32.mrb[0].mxu0
      %7157 = vmatprep.mubr.bf16.mxu0 0
      %7158 = vmatmul.mubr.bf16.gmra.mrb[0].mxu0 %v7006
      %v7159 = vpop.f32.mrb[0].mxu0
      %v7160 = vadd.f32 0.0, %v7159
      %v7161 = vpop.f32.mrb[0].mxu0
      %v7162 = vpop.f32.mrb[0].mxu0
      %v7163 = vadd.f32 0.0, %v7162
      %v7164 = vpop.f32.mrb[0].mxu0
      %7165 = vmatprep.mubr.bf16.mxu0 0
      %7166 = vmatmul.mubr.bf16.gmra.mrb[0].mxu0 %v7008
      %v7167 = vpop.f32.mrb[0].mxu0
      %v7168 = vadd.f32 0.0, %v7167
      %v7169 = vpop.f32.mrb[0].mxu0
      %v7170 = vpop.f32.mrb[0].mxu0
      %v7171 = vadd.f32 0.0, %v7170
      %v7172 = vpop.f32.mrb[0].mxu0
      %7173 = vdwg.mxu0
      %v7174 = vadd.f32 %v6944, %v7048
      %v7175 = vadd.f32 %v6945, %v7051
      %v7176 = vadd.f32 %v6946, %v7056
      %v7177 = vadd.f32 %v6947, %v7059
      %v7178 = vadd.f32 %v6948, %v7064
      %v7179 = vadd.f32 %v6949, %v7067
      %v7180 = vadd.f32 %v6950, %v7072
      %v7181 = vadd.f32 %v6951, %v7075
      %v7182 = vadd.f32 %v6952, %v7080
      %v7183 = vadd.f32 %v6953, %v7083
      %v7184 = vadd.f32 %v6954, %v7088
      %v7185 = vadd.f32 %v6955, %v7091
      %v7186 = vadd.f32 %v6956, %v7096
      %v7187 = vadd.f32 %v6957, %v7099
      %v7188 = vadd.f32 %v6958, %v7104
      %v7189 = vadd.f32 %v6959, %v7107
      %v7190 = vadd.f32 %v6960, %v7112
      %v7191 = vadd.f32 %v6961, %v7115
      %v7192 = vadd.f32 %v6962, %v7120
      %v7193 = vadd.f32 %v6963, %v7123
      %v7194 = vadd.f32 %v6964, %v7128
      %v7195 = vadd.f32 %v6965, %v7131
      %v7196 = vadd.f32 %v6966, %v7136
      %v7197 = vadd.f32 %v6967, %v7139
      %v7198 = vadd.f32 %v6968, %v7144
      %v7199 = vadd.f32 %v6969, %v7147
      %v7200 = vadd.f32 %v6970, %v7152
      %v7201 = vadd.f32 %v6971, %v7155
      %v7202 = vadd.f32 %v6972, %v7160
      %v7203 = vadd.f32 %v6973, %v7163
      %v7204 = vadd.f32 %v6974, %v7168
      %v7205 = vadd.f32 %v6975, %v7171
      %v7206 = vld [vmem:[%s6505 + $0x8] sm:$0xff]
      %v7207 = vld [vmem:[%s6505 + $0x10] sm:$0x1]
      %v7208 = vld [vmem:[%s6505 + $0x20] sm:$0xff]
      %v7209 = vld [vmem:[%s6505 + $0x28] sm:$0x1]
      %v7210 = vld [vmem:[%s6505 + $0x38] sm:$0xff]
      %v7211 = vld [vmem:[%s6505 + $0x40] sm:$0x1]
      %v7212 = vld [vmem:[%s6505 + $0x50] sm:$0xff]
      %v7213 = vld [vmem:[%s6505 + $0x58] sm:$0x1]
      %v7214 = vld [vmem:[%s6505 + $0x68] sm:$0xff]
      %v7215 = vld [vmem:[%s6505 + $0x70] sm:$0x1]
      %v7216 = vld [vmem:[%s6505 + $0x80] sm:$0xff]
      %v7217 = vld [vmem:[%s6505 + $0x88] sm:$0x1]
      %v7218 = vld [vmem:[%s6505 + $0x98] sm:$0xff]
      %v7219 = vld [vmem:[%s6505 + $0xa0] sm:$0x1]
      %v7220 = vld [vmem:[%s6505 + $0xb0] sm:$0xff]
      %v7221 = vld [vmem:[%s6505 + $0xb8] sm:$0x1]
      %v7222 = vld [vmem:[%s6505 + $0xc8] sm:$0xff]
      %v7223 = vld [vmem:[%s6505 + $0xd0] sm:$0x1]
      %v7224 = vld [vmem:[%s6505 + $0xe0] sm:$0xff]
      %v7225 = vld [vmem:[%s6505 + $0xe8] sm:$0x1]
      %v7226 = vld [vmem:[%s6505 + $0xf8] sm:$0xff]
      %v7227 = vld [vmem:[%s6505 + $0x100] sm:$0x1]
      %v7228 = vld [vmem:[%s6505 + $0x110] sm:$0xff]
      %v7229 = vld [vmem:[%s6505 + $0x118] sm:$0x1]
      %v7230 = vld [vmem:[%s6505 + $0x128] sm:$0xff]
      %v7231 = vld [vmem:[%s6505 + $0x130] sm:$0x1]
      %v7232 = vld [vmem:[%s6505 + $0x140] sm:$0xff]
      %v7233 = vld [vmem:[%s6505 + $0x148] sm:$0x1]
      %v7234 = vld [vmem:[%s6505 + $0x158] sm:$0xff]
      %v7235 = vld [vmem:[%s6505 + $0x160] sm:$0x1]
      %v7236 = vld [vmem:[%s6505 + $0x170] sm:$0xff]
      %v7237 = vld [vmem:[%s6505 + $0x178] sm:$0x1]
      %v7239 = vshrl.u32 %v7206, 16
      %v7241 = vshll.u32 %v7206, 16
      %v7243 = vrot.slane %v7241, 1
      %v7244 = vor.u32 %v7239, %v7243
      %v7246 = vshll.u32 %v7207, 16
      %v7248 = vrot.slane %v7246, 1
      %v7249 = vsel %vm1306, %v7244, %v7248
      %v7251 = vshrl.u32 %v7208, 16
      %v7253 = vshll.u32 %v7208, 16
      %v7255 = vrot.slane %v7253, 1
      %v7256 = vor.u32 %v7251, %v7255
      %v7258 = vshll.u32 %v7209, 16
      %v7260 = vrot.slane %v7258, 1
      %v7261 = vsel %vm1306, %v7256, %v7260
      %v7263 = vshrl.u32 %v7210, 16
      %v7265 = vshll.u32 %v7210, 16
      %v7267 = vrot.slane %v7265, 1
      %v7268 = vor.u32 %v7263, %v7267
      %v7270 = vshll.u32 %v7211, 16
      %v7272 = vrot.slane %v7270, 1
      %v7273 = vsel %vm1306, %v7268, %v7272
      %v7275 = vshrl.u32 %v7212, 16
      %v7277 = vshll.u32 %v7212, 16
      %v7279 = vrot.slane %v7277, 1
      %v7280 = vor.u32 %v7275, %v7279
      %v7282 = vshll.u32 %v7213, 16
      %v7284 = vrot.slane %v7282, 1
      %v7285 = vsel %vm1306, %v7280, %v7284
      %v7287 = vshrl.u32 %v7214, 16
      %v7289 = vshll.u32 %v7214, 16
      %v7291 = vrot.slane %v7289, 1
      %v7292 = vor.u32 %v7287, %v7291
      %v7294 = vshll.u32 %v7215, 16
      %v7296 = vrot.slane %v7294, 1
      %v7297 = vsel %vm1306, %v7292, %v7296
      %v7299 = vshrl.u32 %v7216, 16
      %v7301 = vshll.u32 %v7216, 16
      %v7303 = vrot.slane %v7301, 1
      %v7304 = vor.u32 %v7299, %v7303
      %v7306 = vshll.u32 %v7217, 16
      %v7308 = vrot.slane %v7306, 1
      %v7309 = vsel %vm1306, %v7304, %v7308
      %v7311 = vshrl.u32 %v7218, 16
      %v7313 = vshll.u32 %v7218, 16
      %v7315 = vrot.slane %v7313, 1
      %v7316 = vor.u32 %v7311, %v7315
      %v7318 = vshll.u32 %v7219, 16
      %v7320 = vrot.slane %v7318, 1
      %v7321 = vsel %vm1306, %v7316, %v7320
      %v7323 = vshrl.u32 %v7220, 16
      %v7325 = vshll.u32 %v7220, 16
      %v7327 = vrot.slane %v7325, 1
      %v7328 = vor.u32 %v7323, %v7327
      %v7330 = vshll.u32 %v7221, 16
      %v7332 = vrot.slane %v7330, 1
      %v7333 = vsel %vm1306, %v7328, %v7332
      %v7335 = vshrl.u32 %v7222, 16
      %v7337 = vshll.u32 %v7222, 16
      %v7339 = vrot.slane %v7337, 1
      %v7340 = vor.u32 %v7335, %v7339
      %v7342 = vshll.u32 %v7223, 16
      %v7344 = vrot.slane %v7342, 1
      %v7345 = vsel %vm1306, %v7340, %v7344
      %v7347 = vshrl.u32 %v7224, 16
      %v7349 = vshll.u32 %v7224, 16
      %v7351 = vrot.slane %v7349, 1
      %v7352 = vor.u32 %v7347, %v7351
      %v7354 = vshll.u32 %v7225, 16
      %v7356 = vrot.slane %v7354, 1
      %v7357 = vsel %vm1306, %v7352, %v7356
      %v7359 = vshrl.u32 %v7226, 16
      %v7361 = vshll.u32 %v7226, 16
      %v7363 = vrot.slane %v7361, 1
      %v7364 = vor.u32 %v7359, %v7363
      %v7366 = vshll.u32 %v7227, 16
      %v7368 = vrot.slane %v7366, 1
      %v7369 = vsel %vm1306, %v7364, %v7368
      %v7371 = vshrl.u32 %v7228, 16
      %v7373 = vshll.u32 %v7228, 16
      %v7375 = vrot.slane %v7373, 1
      %v7376 = vor.u32 %v7371, %v7375
      %v7378 = vshll.u32 %v7229, 16
      %v7380 = vrot.slane %v7378, 1
      %v7381 = vsel %vm1306, %v7376, %v7380
      %v7383 = vshrl.u32 %v7230, 16
      %v7385 = vshll.u32 %v7230, 16
      %v7387 = vrot.slane %v7385, 1
      %v7388 = vor.u32 %v7383, %v7387
      %v7390 = vshll.u32 %v7231, 16
      %v7392 = vrot.slane %v7390, 1
      %v7393 = vsel %vm1306, %v7388, %v7392
      %v7395 = vshrl.u32 %v7232, 16
      %v7397 = vshll.u32 %v7232, 16
      %v7399 = vrot.slane %v7397, 1
      %v7400 = vor.u32 %v7395, %v7399
      %v7402 = vshll.u32 %v7233, 16
      %v7404 = vrot.slane %v7402, 1
      %v7405 = vsel %vm1306, %v7400, %v7404
      %v7407 = vshrl.u32 %v7234, 16
      %v7409 = vshll.u32 %v7234, 16
      %v7411 = vrot.slane %v7409, 1
      %v7412 = vor.u32 %v7407, %v7411
      %v7414 = vshll.u32 %v7235, 16
      %v7416 = vrot.slane %v7414, 1
      %v7417 = vsel %vm1306, %v7412, %v7416
      %v7419 = vshrl.u32 %v7236, 16
      %v7421 = vshll.u32 %v7236, 16
      %v7423 = vrot.slane %v7421, 1
      %v7424 = vor.u32 %v7419, %v7423
      %v7426 = vshll.u32 %v7237, 16
      %v7428 = vrot.slane %v7426, 1
      %v7429 = vsel %vm1306, %v7424, %v7428
      %s7430 = scalar_lea.vmem %s4, 32
      %v7431 = vld [vmem:[%s7430] sm:$0xf]
      %v7433 = vsel %vm405, %v7249, 0
      %v7436 = vsel %vm405, %v7261, 0
      %v7439 = vsel %vm405, %v7273, 0
      %v7442 = vsel %vm405, %v7285, 0
      %v7445 = vsel %vm405, %v7297, 0
      %v7448 = vsel %vm405, %v7309, 0
      %v7451 = vsel %vm405, %v7321, 0
      %v7454 = vsel %vm405, %v7333, 0
      %v7457 = vsel %vm405, %v7345, 0
      %v7460 = vsel %vm405, %v7357, 0
      %v7463 = vsel %vm405, %v7369, 0
      %v7466 = vsel %vm405, %v7381, 0
      %v7469 = vsel %vm405, %v7393, 0
      %v7472 = vsel %vm405, %v7405, 0
      %v7475 = vsel %vm405, %v7417, 0
      %v7478 = vsel %vm405, %v7429, 0
      %v7481 = vsel %vm4488, %v7431, 0
      %7483 = vmatprep.subr.bf16.mxu0 0
      %7484 = vmatpush1.bf16.msra.mxu0 %v7481
      %7485 = vmatprep.subr.bf16.mxu0 0
      %7486 = vmatpush1.bf16.msra.mxu0 0
      %7487 = vmatprep.subr.bf16.mxu0 0
      %7488 = vmatpush1.bf16.msra.mxu0 0
      %7489 = vmatprep.subr.bf16.mxu0 0
      %7490 = vmatpush1.bf16.msra.mxu0 0
      %7491 = vmatprep.subr.bf16.mxu0 0
      %7492 = vmatpush1.bf16.msra.mxu0 0
      %7493 = vmatprep.subr.bf16.mxu0 0
      %7494 = vmatpush1.bf16.msra.mxu0 0
      %7495 = vmatprep.subr.bf16.mxu0 0
      %7496 = vmatpush1.bf16.msra.mxu0 0
      %7497 = vmatprep.subr.bf16.mxu0 0
      %7498 = vmatpush1.bf16.msra.mxu0 0
      %7499 = vmatprep.subr.bf16.mxu0 0
      %7500 = vmatpush1.bf16.msra.mxu0 0
      %7501 = vmatprep.subr.bf16.mxu0 0
      %7502 = vmatpush1.bf16.msra.mxu0 0
      %7503 = vmatprep.subr.bf16.mxu0 0
      %7504 = vmatpush1.bf16.msra.mxu0 0
      %7505 = vmatprep.subr.bf16.mxu0 0
      %7506 = vmatpush1.bf16.msra.mxu0 0
      %7507 = vmatprep.subr.bf16.mxu0 0
      %7508 = vmatpush1.bf16.msra.mxu0 0
      %7509 = vmatprep.subr.bf16.mxu0 0
      %7510 = vmatpush1.bf16.msra.mxu0 0
      %7511 = vmatprep.subr.bf16.mxu0 0
      %7512 = vmatpush1.bf16.msra.mxu0 0
      %7513 = vmatprep.subr.bf16.mxu0 0
      %7514 = vmatpush1.bf16.msra.mxu0 0
      %7515 = vmatprep.mubr.bf16.mxu0 0
      %7516 = vmatmul.mubr.bf16.gmra.mrb[0].mxu0 %v7433
      %v7517 = vpop.f32.mrb[0].mxu0
      %v7518 = vadd.f32 0.0, %v7517
      %v7519 = vpop.f32.mrb[0].mxu0
      %v7520 = vpop.f32.mrb[0].mxu0
      %v7521 = vadd.f32 0.0, %v7520
      %v7522 = vpop.f32.mrb[0].mxu0
      %7523 = vmatprep.mubr.bf16.mxu0 0
      %7524 = vmatmul.mubr.bf16.gmra.mrb[0].mxu0 %v7436
      %v7525 = vpop.f32.mrb[0].mxu0
      %v7526 = vadd.f32 0.0, %v7525
      %v7527 = vpop.f32.mrb[0].mxu0
      %v7528 = vpop.f32.mrb[0].mxu0
      %v7529 = vadd.f32 0.0, %v7528
      %v7530 = vpop.f32.mrb[0].mxu0
      %7531 = vmatprep.mubr.bf16.mxu0 0
      %7532 = vmatmul.mubr.bf16.gmra.mrb[0].mxu0 %v7439
      %v7533 = vpop.f32.mrb[0].mxu0
      %v7534 = vadd.f32 0.0, %v7533
      %v7535 = vpop.f32.mrb[0].mxu0
      %v7536 = vpop.f32.mrb[0].mxu0
      %v7537 = vadd.f32 0.0, %v7536
      %v7538 = vpop.f32.mrb[0].mxu0
      %7539 = vmatprep.mubr.bf16.mxu0 0
      %7540 = vmatmul.mubr.bf16.gmra.mrb[0].mxu0 %v7442
      %v7541 = vpop.f32.mrb[0].mxu0
      %v7542 = vadd.f32 0.0, %v7541
      %v7543 = vpop.f32.mrb[0].mxu0
      %v7544 = vpop.f32.mrb[0].mxu0
      %v7545 = vadd.f32 0.0, %v7544
      %v7546 = vpop.f32.mrb[0].mxu0
      %7547 = vmatprep.mubr.bf16.mxu0 0
      %7548 = vmatmul.mubr.bf16.gmra.mrb[0].mxu0 %v7445
      %v7549 = vpop.f32.mrb[0].mxu0
      %v7550 = vadd.f32 0.0, %v7549
      %v7551 = vpop.f32.mrb[0].mxu0
      %v7552 = vpop.f32.mrb[0].mxu0
      %v7553 = vadd.f32 0.0, %v7552
      %v7554 = vpop.f32.mrb[0].mxu0
      %7555 = vmatprep.mubr.bf16.mxu0 0
      %7556 = vmatmul.mubr.bf16.gmra.mrb[0].mxu0 %v7448
      %v7557 = vpop.f32.mrb[0].mxu0
      %v7558 = vadd.f32 0.0, %v7557
      %v7559 = vpop.f32.mrb[0].mxu0
      %v7560 = vpop.f32.mrb[0].mxu0
      %v7561 = vadd.f32 0.0, %v7560
      %v7562 = vpop.f32.mrb[0].mxu0
      %7563 = vmatprep.mubr.bf16.mxu0 0
      %7564 = vmatmul.mubr.bf16.gmra.mrb[0].mxu0 %v7451
      %v7565 = vpop.f32.mrb[0].mxu0
      %v7566 = vadd.f32 0.0, %v7565
      %v7567 = vpop.f32.mrb[0].mxu0
      %v7568 = vpop.f32.mrb[0].mxu0
      %v7569 = vadd.f32 0.0, %v7568
      %v7570 = vpop.f32.mrb[0].mxu0
      %7571 = vmatprep.mubr.bf16.mxu0 0
      %7572 = vmatmul.mubr.bf16.gmra.mrb[0].mxu0 %v7454
      %v7573 = vpop.f32.mrb[0].mxu0
      %v7574 = vadd.f32 0.0, %v7573
      %v7575 = vpop.f32.mrb[0].mxu0
      %v7576 = vpop.f32.mrb[0].mxu0
      %v7577 = vadd.f32 0.0, %v7576
      %v7578 = vpop.f32.mrb[0].mxu0
      %7579 = vmatprep.mubr.bf16.mxu0 0
      %7580 = vmatmul.mubr.bf16.gmra.mrb[0].mxu0 %v7457
      %v7581 = vpop.f32.mrb[0].mxu0
      %v7582 = vadd.f32 0.0, %v7581
      %v7583 = vpop.f32.mrb[0].mxu0
      %v7584 = vpop.f32.mrb[0].mxu0
      %v7585 = vadd.f32 0.0, %v7584
      %v7586 = vpop.f32.mrb[0].mxu0
      %7587 = vmatprep.mubr.bf16.mxu0 0
      %7588 = vmatmul.mubr.bf16.gmra.mrb[0].mxu0 %v7460
      %v7589 = vpop.f32.mrb[0].mxu0
      %v7590 = vadd.f32 0.0, %v7589
      %v7591 = vpop.f32.mrb[0].mxu0
      %v7592 = vpop.f32.mrb[0].mxu0
      %v7593 = vadd.f32 0.0, %v7592
      %v7594 = vpop.f32.mrb[0].mxu0
      %7595 = vmatprep.mubr.bf16.mxu0 0
      %7596 = vmatmul.mubr.bf16.gmra.mrb[0].mxu0 %v7463
      %v7597 = vpop.f32.mrb[0].mxu0
      %v7598 = vadd.f32 0.0, %v7597
      %v7599 = vpop.f32.mrb[0].mxu0
      %v7600 = vpop.f32.mrb[0].mxu0
      %v7601 = vadd.f32 0.0, %v7600
      %v7602 = vpop.f32.mrb[0].mxu0
      %7603 = vmatprep.mubr.bf16.mxu0 0
      %7604 = vmatmul.mubr.bf16.gmra.mrb[0].mxu0 %v7466
      %v7605 = vpop.f32.mrb[0].mxu0
      %v7606 = vadd.f32 0.0, %v7605
      %v7607 = vpop.f32.mrb[0].mxu0
      %v7608 = vpop.f32.mrb[0].mxu0
      %v7609 = vadd.f32 0.0, %v7608
      %v7610 = vpop.f32.mrb[0].mxu0
      %7611 = vmatprep.mubr.bf16.mxu0 0
      %7612 = vmatmul.mubr.bf16.gmra.mrb[0].mxu0 %v7469
      %v7613 = vpop.f32.mrb[0].mxu0
      %v7614 = vadd.f32 0.0, %v7613
      %v7615 = vpop.f32.mrb[0].mxu0
      %v7616 = vpop.f32.mrb[0].mxu0
      %v7617 = vadd.f32 0.0, %v7616
      %v7618 = vpop.f32.mrb[0].mxu0
      %7619 = vmatprep.mubr.bf16.mxu0 0
      %7620 = vmatmul.mubr.bf16.gmra.mrb[0].mxu0 %v7472
      %v7621 = vpop.f32.mrb[0].mxu0
      %v7622 = vadd.f32 0.0, %v7621
      %v7623 = vpop.f32.mrb[0].mxu0
      %v7624 = vpop.f32.mrb[0].mxu0
      %v7625 = vadd.f32 0.0, %v7624
      %v7626 = vpop.f32.mrb[0].mxu0
      %7627 = vmatprep.mubr.bf16.mxu0 0
      %7628 = vmatmul.mubr.bf16.gmra.mrb[0].mxu0 %v7475
      %v7629 = vpop.f32.mrb[0].mxu0
      %v7630 = vadd.f32 0.0, %v7629
      %v7631 = vpop.f32.mrb[0].mxu0
      %v7632 = vpop.f32.mrb[0].mxu0
      %v7633 = vadd.f32 0.0, %v7632
      %v7634 = vpop.f32.mrb[0].mxu0
      %7635 = vmatprep.mubr.bf16.mxu0 0
      %7636 = vmatmul.mubr.bf16.gmra.mrb[0].mxu0 %v7478
      %v7637 = vpop.f32.mrb[0].mxu0
      %v7638 = vadd.f32 0.0, %v7637
      %v7639 = vpop.f32.mrb[0].mxu0
      %v7640 = vpop.f32.mrb[0].mxu0
      %v7641 = vadd.f32 0.0, %v7640
      %v7642 = vpop.f32.mrb[0].mxu0
      %7643 = vdwg.mxu0
      %v7644 = vadd.f32 %v7174, %v7518
      %v7645 = vadd.f32 %v7175, %v7521
      %v7646 = vadd.f32 %v7176, %v7526
      %v7647 = vadd.f32 %v7177, %v7529
      %v7648 = vadd.f32 %v7178, %v7534
      %v7649 = vadd.f32 %v7179, %v7537
      %v7650 = vadd.f32 %v7180, %v7542
      %v7651 = vadd.f32 %v7181, %v7545
      %v7652 = vadd.f32 %v7182, %v7550
      %v7653 = vadd.f32 %v7183, %v7553
      %v7654 = vadd.f32 %v7184, %v7558
      %v7655 = vadd.f32 %v7185, %v7561
      %v7656 = vadd.f32 %v7186, %v7566
      %v7657 = vadd.f32 %v7187, %v7569
      %v7658 = vadd.f32 %v7188, %v7574
      %v7659 = vadd.f32 %v7189, %v7577
      %v7660 = vadd.f32 %v7190, %v7582
      %v7661 = vadd.f32 %v7191, %v7585
      %v7662 = vadd.f32 %v7192, %v7590
      %v7663 = vadd.f32 %v7193, %v7593
      %v7664 = vadd.f32 %v7194, %v7598
      %v7665 = vadd.f32 %v7195, %v7601
      %v7666 = vadd.f32 %v7196, %v7606
      %v7667 = vadd.f32 %v7197, %v7609
      %v7668 = vadd.f32 %v7198, %v7614
      %v7669 = vadd.f32 %v7199, %v7617
      %v7670 = vadd.f32 %v7200, %v7622
      %v7671 = vadd.f32 %v7201, %v7625
      %v7672 = vadd.f32 %v7202, %v7630
      %v7673 = vadd.f32 %v7203, %v7633
      %v7674 = vadd.f32 %v7204, %v7638
      %v7675 = vadd.f32 %v7205, %v7641
      %v7676 = vld [vmem:[%s5] sm:$0x1]
      %v7678 = vlaneseq
      %v7679 = vshrl.u32 %v7678, 7
      %v7680 = vsub.s32 0, %v7679
      %v7681 = vrot.slane %v7676, %v7680
      %v7683 = vmul.f32 %v7644, %v7681
      %v7684 = vmul.f32 %v7645, %v7681
      %v7685 = vmul.f32 %v7646, %v7681
      %v7686 = vmul.f32 %v7647, %v7681
      %v7687 = vmul.f32 %v7648, %v7681
      %v7688 = vmul.f32 %v7649, %v7681
      %v7689 = vmul.f32 %v7650, %v7681
      %v7690 = vmul.f32 %v7651, %v7681
      %v7691 = vmul.f32 %v7652, %v7681
      %v7692 = vmul.f32 %v7653, %v7681
      %v7693 = vmul.f32 %v7654, %v7681
      %v7694 = vmul.f32 %v7655, %v7681
      %v7695 = vmul.f32 %v7656, %v7681
      %v7696 = vmul.f32 %v7657, %v7681
      %v7697 = vmul.f32 %v7658, %v7681
      %v7698 = vmul.f32 %v7659, %v7681
      %v7699 = vmul.f32 %v7660, %v7681
      %v7700 = vmul.f32 %v7661, %v7681
      %v7701 = vmul.f32 %v7662, %v7681
      %v7702 = vmul.f32 %v7663, %v7681
      %v7703 = vmul.f32 %v7664, %v7681
      %v7704 = vmul.f32 %v7665, %v7681
      %v7705 = vmul.f32 %v7666, %v7681
      %v7706 = vmul.f32 %v7667, %v7681
      %v7707 = vmul.f32 %v7668, %v7681
      %v7708 = vmul.f32 %v7669, %v7681
      %v7709 = vmul.f32 %v7670, %v7681
      %v7710 = vmul.f32 %v7671, %v7681
      %v7711 = vmul.f32 %v7672, %v7681
      %v7712 = vmul.f32 %v7673, %v7681
      %v7713 = vmul.f32 %v7674, %v7681
      %v7714 = vmul.f32 %v7675, %v7681
      %v7715 = vld [vmem:[%s6] sm:$0x1]
      %v7717 = vlaneseq
      %v7718 = vshrl.u32 %v7717, 7
      %v7719 = vsub.s32 0, %v7718
      %v7720 = vrot.slane %v7715, %v7719
      %v7722 = vadd.f32 %v7683, %v7720
      %v7723 = vadd.f32 %v7684, %v7720
      %v7724 = vadd.f32 %v7685, %v7720
      %v7725 = vadd.f32 %v7686, %v7720
      %v7726 = vadd.f32 %v7687, %v7720
      %v7727 = vadd.f32 %v7688, %v7720
      %v7728 = vadd.f32 %v7689, %v7720
      %v7729 = vadd.f32 %v7690, %v7720
      %v7730 = vadd.f32 %v7691, %v7720
      %v7731 = vadd.f32 %v7692, %v7720
      %v7732 = vadd.f32 %v7693, %v7720
      %v7733 = vadd.f32 %v7694, %v7720
      %v7734 = vadd.f32 %v7695, %v7720
      %v7735 = vadd.f32 %v7696, %v7720
      %v7736 = vadd.f32 %v7697, %v7720
      %v7737 = vadd.f32 %v7698, %v7720
      %v7738 = vadd.f32 %v7699, %v7720
      %v7739 = vadd.f32 %v7700, %v7720
      %v7740 = vadd.f32 %v7701, %v7720
      %v7741 = vadd.f32 %v7702, %v7720
      %v7742 = vadd.f32 %v7703, %v7720
      %v7743 = vadd.f32 %v7704, %v7720
      %v7744 = vadd.f32 %v7705, %v7720
      %v7745 = vadd.f32 %v7706, %v7720
      %v7746 = vadd.f32 %v7707, %v7720
      %v7747 = vadd.f32 %v7708, %v7720
      %v7748 = vadd.f32 %v7709, %v7720
      %v7749 = vadd.f32 %v7710, %v7720
      %v7750 = vadd.f32 %v7711, %v7720
      %v7751 = vadd.f32 %v7712, %v7720
      %v7752 = vadd.f32 %v7713, %v7720
      %v7753 = vadd.f32 %v7714, %v7720
      %v7754 = vmax.f32 %v7722, 0.0
      %v7755 = vmax.f32 %v7723, 0.0
      %v7756 = vmax.f32 %v7724, 0.0
      %v7757 = vmax.f32 %v7725, 0.0
      %v7758 = vmax.f32 %v7726, 0.0
      %v7759 = vmax.f32 %v7727, 0.0
      %v7760 = vmax.f32 %v7728, 0.0
      %v7761 = vmax.f32 %v7729, 0.0
      %v7762 = vmax.f32 %v7730, 0.0
      %v7763 = vmax.f32 %v7731, 0.0
      %v7764 = vmax.f32 %v7732, 0.0
      %v7765 = vmax.f32 %v7733, 0.0
      %v7766 = vmax.f32 %v7734, 0.0
      %v7767 = vmax.f32 %v7735, 0.0
      %v7768 = vmax.f32 %v7736, 0.0
      %v7769 = vmax.f32 %v7737, 0.0
      %v7770 = vmax.f32 %v7738, 0.0
      %v7771 = vmax.f32 %v7739, 0.0
      %v7772 = vmax.f32 %v7740, 0.0
      %v7773 = vmax.f32 %v7741, 0.0
      %v7774 = vmax.f32 %v7742, 0.0
      %v7775 = vmax.f32 %v7743, 0.0
      %v7776 = vmax.f32 %v7744, 0.0
      %v7777 = vmax.f32 %v7745, 0.0
      %v7778 = vmax.f32 %v7746, 0.0
      %v7779 = vmax.f32 %v7747, 0.0
      %v7780 = vmax.f32 %v7748, 0.0
      %v7781 = vmax.f32 %v7749, 0.0
      %v7782 = vmax.f32 %v7750, 0.0
      %v7783 = vmax.f32 %v7751, 0.0
      %v7784 = vmax.f32 %v7752, 0.0
      %v7785 = vmax.f32 %v7753, 0.0
      %v7786 = vpack.c.bf16 %v7755, %v7754
      %v7787 = vpack.c.bf16 %v7757, %v7756
      %v7788 = vpack.c.bf16 %v7759, %v7758
      %v7789 = vpack.c.bf16 %v7761, %v7760
      %v7790 = vpack.c.bf16 %v7763, %v7762
      %v7791 = vpack.c.bf16 %v7765, %v7764
      %v7792 = vpack.c.bf16 %v7767, %v7766
      %v7793 = vpack.c.bf16 %v7769, %v7768
      %v7794 = vpack.c.bf16 %v7771, %v7770
      %v7795 = vpack.c.bf16 %v7773, %v7772
      %v7796 = vpack.c.bf16 %v7775, %v7774
      %v7797 = vpack.c.bf16 %v7777, %v7776
      %v7798 = vpack.c.bf16 %v7779, %v7778
      %v7799 = vpack.c.bf16 %v7781, %v7780
      %v7800 = vpack.c.bf16 %v7783, %v7782
      %v7801 = vpack.c.bf16 %v7785, %v7784
      %s7802 = scalar_lea.vmem [#allocation4], 24
      %7803 = vst.msk [vmem:[%s7802 + $0x8] sm:$0xff] %vm405, %v7786
      %7804 = vst.msk [vmem:[%s7802 + $0x20] sm:$0xff] %vm405, %v7787
      %7805 = vst.msk [vmem:[%s7802 + $0x38] sm:$0xff] %vm405, %v7788
      %7806 = vst.msk [vmem:[%s7802 + $0x50] sm:$0xff] %vm405, %v7789
      %7807 = vst.msk [vmem:[%s7802 + $0x68] sm:$0xff] %vm405, %v7790
      %7808 = vst.msk [vmem:[%s7802 + $0x80] sm:$0xff] %vm405, %v7791
      %7809 = vst.msk [vmem:[%s7802 + $0x98] sm:$0xff] %vm405, %v7792
      %7810 = vst.msk [vmem:[%s7802 + $0xb0] sm:$0xff] %vm405, %v7793
      %7811 = vst.msk [vmem:[%s7802 + $0xc8] sm:$0xff] %vm405, %v7794
      %7812 = vst.msk [vmem:[%s7802 + $0xe0] sm:$0xff] %vm405, %v7795
      %7813 = vst.msk [vmem:[%s7802 + $0xf8] sm:$0xff] %vm405, %v7796
      %7814 = vst.msk [vmem:[%s7802 + $0x110] sm:$0xff] %vm405, %v7797
      %7815 = vst.msk [vmem:[%s7802 + $0x128] sm:$0xff] %vm405, %v7798
      %7816 = vst.msk [vmem:[%s7802 + $0x140] sm:$0xff] %vm405, %v7799
      %7817 = vst.msk [vmem:[%s7802 + $0x158] sm:$0xff] %vm405, %v7800
      %7818 = vst.msk [vmem:[%s7802 + $0x170] sm:$0xff] %vm405, %v7801
      %v7819 = vld [vmem:[#allocation4] sm:$0x80]
      %v7820 = vld [vmem:[#allocation4 + $0x8] sm:$0xff]
      %v7821 = vld [vmem:[#allocation4 + $0x30] sm:$0x80]
      %v7822 = vld [vmem:[#allocation4 + $0x38] sm:$0xff]
      %v7823 = vld [vmem:[#allocation4 + $0x60] sm:$0x80]
      %v7824 = vld [vmem:[#allocation4 + $0x68] sm:$0xff]
      %v7825 = vld [vmem:[#allocation4 + $0x90] sm:$0x80]
      %v7826 = vld [vmem:[#allocation4 + $0x98] sm:$0xff]
      %v7827 = vld [vmem:[#allocation4 + $0xc0] sm:$0x80]
      %v7828 = vld [vmem:[#allocation4 + $0xc8] sm:$0xff]
      %v7829 = vld [vmem:[#allocation4 + $0xf0] sm:$0x80]
      %v7830 = vld [vmem:[#allocation4 + $0xf8] sm:$0xff]
      %v7831 = vld [vmem:[#allocation4 + $0x120] sm:$0x80]
      %v7832 = vld [vmem:[#allocation4 + $0x128] sm:$0xff]
      %v7833 = vld [vmem:[#allocation4 + $0x150] sm:$0x80]
      %v7834 = vld [vmem:[#allocation4 + $0x158] sm:$0xff]
      %v7836 = vshrl.u32 %v7819, 16
      %v7838 = vrot.slane %v7836, 7
      %v7840 = vshrl.u32 %v7820, 16
      %v7842 = vrot.slane %v7840, 7
      %v7843 = vshll.u32 %v7820, 16
      %v7845 = vor.u32 %v7842, %v7843
      %v7846 = vsel %vm669, %v7838, %v7845
      %v7848 = vshrl.u32 %v7821, 16
      %v7850 = vrot.slane %v7848, 7
      %v7852 = vshrl.u32 %v7822, 16
      %v7854 = vrot.slane %v7852, 7
      %v7855 = vshll.u32 %v7822, 16
      %v7857 = vor.u32 %v7854, %v7855
      %v7858 = vsel %vm669, %v7850, %v7857
      %v7860 = vshrl.u32 %v7823, 16
      %v7862 = vrot.slane %v7860, 7
      %v7864 = vshrl.u32 %v7824, 16
      %v7866 = vrot.slane %v7864, 7
      %v7867 = vshll.u32 %v7824, 16
      %v7869 = vor.u32 %v7866, %v7867
      %v7870 = vsel %vm669, %v7862, %v7869
      %v7872 = vshrl.u32 %v7825, 16
      %v7874 = vrot.slane %v7872, 7
      %v7876 = vshrl.u32 %v7826, 16
      %v7878 = vrot.slane %v7876, 7
      %v7879 = vshll.u32 %v7826, 16
      %v7881 = vor.u32 %v7878, %v7879
      %v7882 = vsel %vm669, %v7874, %v7881
      %v7884 = vshrl.u32 %v7827, 16
      %v7886 = vrot.slane %v7884, 7
      %v7888 = vshrl.u32 %v7828, 16
      %v7890 = vrot.slane %v7888, 7
      %v7891 = vshll.u32 %v7828, 16
      %v7893 = vor.u32 %v7890, %v7891
      %v7894 = vsel %vm669, %v7886, %v7893
      %v7896 = vshrl.u32 %v7829, 16
      %v7898 = vrot.slane %v7896, 7
      %v7900 = vshrl.u32 %v7830, 16
      %v7902 = vrot.slane %v7900, 7
      %v7903 = vshll.u32 %v7830, 16
      %v7905 = vor.u32 %v7902, %v7903
      %v7906 = vsel %vm669, %v7898, %v7905
      %v7908 = vshrl.u32 %v7831, 16
      %v7910 = vrot.slane %v7908, 7
      %v7912 = vshrl.u32 %v7832, 16
      %v7914 = vrot.slane %v7912, 7
      %v7915 = vshll.u32 %v7832, 16
      %v7917 = vor.u32 %v7914, %v7915
      %v7918 = vsel %vm669, %v7910, %v7917
      %v7920 = vshrl.u32 %v7833, 16
      %v7922 = vrot.slane %v7920, 7
      %v7924 = vshrl.u32 %v7834, 16
      %v7926 = vrot.slane %v7924, 7
      %v7927 = vshll.u32 %v7834, 16
      %v7929 = vor.u32 %v7926, %v7927
      %v7930 = vsel %vm669, %v7922, %v7929
      %v7931 = vld [vmem:[%s7] sm:$0xf]
      %s7932 = scalar_lea.vmem %s7, 4
      %v7933 = vld [vmem:[%s7932] sm:$0xf]
      %v7934 = vsel %vm405, %v7820, 0
      %v7936 = vsel %vm405, %v7822, 0
      %v7938 = vsel %vm405, %v7824, 0
      %v7940 = vsel %vm405, %v7826, 0
      %v7942 = vsel %vm405, %v7828, 0
      %v7944 = vsel %vm405, %v7830, 0
      %v7946 = vsel %vm405, %v7832, 0
      %v7948 = vsel %vm405, %v7834, 0
      %v7951 = vsel %vm4488, %v7933, 0
      %7953 = vmatprep.subr.bf16.mxu0 0
      %7954 = vmatpush1.bf16.msra.mxu0 %v7951
      %7955 = vmatprep.subr.bf16.mxu0 0
      %7956 = vmatpush1.bf16.msra.mxu0 0
      %7957 = vmatprep.subr.bf16.mxu0 0
      %7958 = vmatpush1.bf16.msra.mxu0 0
      %7959 = vmatprep.subr.bf16.mxu0 0
      %7960 = vmatpush1.bf16.msra.mxu0 0
      %7961 = vmatprep.subr.bf16.mxu0 0
      %7962 = vmatpush1.bf16.msra.mxu0 0
      %7963 = vmatprep.subr.bf16.mxu0 0
      %7964 = vmatpush1.bf16.msra.mxu0 0
      %7965 = vmatprep.subr.bf16.mxu0 0
      %7966 = vmatpush1.bf16.msra.mxu0 0
      %7967 = vmatprep.subr.bf16.mxu0 0
      %7968 = vmatpush1.bf16.msra.mxu0 0
      %7969 = vmatprep.subr.bf16.mxu0 0
      %7970 = vmatpush1.bf16.msra.mxu0 0
      %7971 = vmatprep.subr.bf16.mxu0 0
      %7972 = vmatpush1.bf16.msra.mxu0 0
      %7973 = vmatprep.subr.bf16.mxu0 0
      %7974 = vmatpush1.bf16.msra.mxu0 0
      %7975 = vmatprep.subr.bf16.mxu0 0
      %7976 = vmatpush1.bf16.msra.mxu0 0
      %7977 = vmatprep.subr.bf16.mxu0 0
      %7978 = vmatpush1.bf16.msra.mxu0 0
      %7979 = vmatprep.subr.bf16.mxu0 0
      %7980 = vmatpush1.bf16.msra.mxu0 0
      %7981 = vmatprep.subr.bf16.mxu0 0
      %7982 = vmatpush1.bf16.msra.mxu0 0
      %7983 = vmatprep.subr.bf16.mxu0 0
      %7984 = vmatpush1.bf16.msra.mxu0 0
      %7985 = vmatprep.mubr.bf16.mxu0 0
      %7986 = vmatmul.mubr.bf16.gmra.mrb[0].mxu0 %v7934
      %v7987 = vpop.f32.mrb[0].mxu0
      %v7988 = vadd.f32 0.0, %v7987
      %v7989 = vpop.f32.mrb[0].mxu0
      %v7990 = vpop.f32.mrb[0].mxu0
      %v7991 = vadd.f32 0.0, %v7990
      %v7992 = vpop.f32.mrb[0].mxu0
      %7993 = vmatprep.mubr.bf16.mxu0 0
      %7994 = vmatmul.mubr.bf16.gmra.mrb[0].mxu0 %v7936
      %v7995 = vpop.f32.mrb[0].mxu0
      %v7996 = vadd.f32 0.0, %v7995
      %v7997 = vpop.f32.mrb[0].mxu0
      %v7998 = vpop.f32.mrb[0].mxu0
      %v7999 = vadd.f32 0.0, %v7998
      %v8000 = vpop.f32.mrb[0].mxu0
      %8001 = vmatprep.mubr.bf16.mxu0 0
      %8002 = vmatmul.mubr.bf16.gmra.mrb[0].mxu0 %v7938
      %v8003 = vpop.f32.mrb[0].mxu0
      %v8004 = vadd.f32 0.0, %v8003
      %v8005 = vpop.f32.mrb[0].mxu0
      %v8006 = vpop.f32.mrb[0].mxu0
      %v8007 = vadd.f32 0.0, %v8006
      %v8008 = vpop.f32.mrb[0].mxu0
      %8009 = vmatprep.mubr.bf16.mxu0 0
      %8010 = vmatmul.mubr.bf16.gmra.mrb[0].mxu0 %v7940
      %v8011 = vpop.f32.mrb[0].mxu0
      %v8012 = vadd.f32 0.0, %v8011
      %v8013 = vpop.f32.mrb[0].mxu0
      %v8014 = vpop.f32.mrb[0].mxu0
      %v8015 = vadd.f32 0.0, %v8014
      %v8016 = vpop.f32.mrb[0].mxu0
      %8017 = vmatprep.mubr.bf16.mxu0 0
      %8018 = vmatmul.mubr.bf16.gmra.mrb[0].mxu0 %v7942
      %v8019 = vpop.f32.mrb[0].mxu0
      %v8020 = vadd.f32 0.0, %v8019
      %v8021 = vpop.f32.mrb[0].mxu0
      %v8022 = vpop.f32.mrb[0].mxu0
      %v8023 = vadd.f32 0.0, %v8022
      %v8024 = vpop.f32.mrb[0].mxu0
      %8025 = vmatprep.mubr.bf16.mxu0 0
      %8026 = vmatmul.mubr.bf16.gmra.mrb[0].mxu0 %v7944
      %v8027 = vpop.f32.mrb[0].mxu0
      %v8028 = vadd.f32 0.0, %v8027
      %v8029 = vpop.f32.mrb[0].mxu0
      %v8030 = vpop.f32.mrb[0].mxu0
      %v8031 = vadd.f32 0.0, %v8030
      %v8032 = vpop.f32.mrb[0].mxu0
      %8033 = vmatprep.mubr.bf16.mxu0 0
      %8034 = vmatmul.mubr.bf16.gmra.mrb[0].mxu0 %v7946
      %v8035 = vpop.f32.mrb[0].mxu0
      %v8036 = vadd.f32 0.0, %v8035
      %v8037 = vpop.f32.mrb[0].mxu0
      %v8038 = vpop.f32.mrb[0].mxu0
      %v8039 = vadd.f32 0.0, %v8038
      %v8040 = vpop.f32.mrb[0].mxu0
      %8041 = vmatprep.mubr.bf16.mxu0 0
      %8042 = vmatmul.mubr.bf16.gmra.mrb[0].mxu0 %v7948
      %v8043 = vpop.f32.mrb[0].mxu0
      %v8044 = vadd.f32 0.0, %v8043
      %v8045 = vpop.f32.mrb[0].mxu0
      %v8046 = vpop.f32.mrb[0].mxu0
      %v8047 = vadd.f32 0.0, %v8046
      %v8048 = vpop.f32.mrb[0].mxu0
      %8049 = vdwg.mxu0
      %v8051 = vsel %vm405, %v7846, 0
      %v8054 = vsel %vm405, %v7858, 0
      %v8057 = vsel %vm405, %v7870, 0
      %v8060 = vsel %vm405, %v7882, 0
      %v8063 = vsel %vm405, %v7894, 0
      %v8066 = vsel %vm405, %v7906, 0
      %v8069 = vsel %vm405, %v7918, 0
      %v8072 = vsel %vm405, %v7930, 0
      %v8075 = vsel %vm4488, %v7931, 0
      %8077 = vmatprep.subr.bf16.mxu0 0
      %8078 = vmatpush1.bf16.msra.mxu0 %v8075
      %8079 = vmatprep.subr.bf16.mxu0 0
      %8080 = vmatpush1.bf16.msra.mxu0 0
      %8081 = vmatprep.subr.bf16.mxu0 0
      %8082 = vmatpush1.bf16.msra.mxu0 0
      %8083 = vmatprep.subr.bf16.mxu0 0
      %8084 = vmatpush1.bf16.msra.mxu0 0
      %8085 = vmatprep.subr.bf16.mxu0 0
      %8086 = vmatpush1.bf16.msra.mxu0 0
      %8087 = vmatprep.subr.bf16.mxu0 0
      %8088 = vmatpush1.bf16.msra.mxu0 0
      %8089 = vmatprep.subr.bf16.mxu0 0
      %8090 = vmatpush1.bf16.msra.mxu0 0
      %8091 = vmatprep.subr.bf16.mxu0 0
      %8092 = vmatpush1.bf16.msra.mxu0 0
      %8093 = vmatprep.subr.bf16.mxu0 0
      %8094 = vmatpush1.bf16.msra.mxu0 0
      %8095 = vmatprep.subr.bf16.mxu0 0
      %8096 = vmatpush1.bf16.msra.mxu0 0
      %8097 = vmatprep.subr.bf16.mxu0 0
      %8098 = vmatpush1.bf16.msra.mxu0 0
      %8099 = vmatprep.subr.bf16.mxu0 0
      %8100 = vmatpush1.bf16.msra.mxu0 0
      %8101 = vmatprep.subr.bf16.mxu0 0
      %8102 = vmatpush1.bf16.msra.mxu0 0
      %8103 = vmatprep.subr.bf16.mxu0 0
      %8104 = vmatpush1.bf16.msra.mxu0 0
      %8105 = vmatprep.subr.bf16.mxu0 0
      %8106 = vmatpush1.bf16.msra.mxu0 0
      %8107 = vmatprep.subr.bf16.mxu0 0
      %8108 = vmatpush1.bf16.msra.mxu0 0
      %8109 = vmatprep.mubr.bf16.mxu0 0
      %8110 = vmatmul.mubr.bf16.gmra.mrb[0].mxu0 %v8051
      %v8111 = vpop.f32.mrb[0].mxu0
      %v8112 = vadd.f32 %v7988, %v8111
      %v8113 = vpop.f32.mrb[0].mxu0
      %v8114 = vpop.f32.mrb[0].mxu0
      %v8115 = vadd.f32 %v7991, %v8114
      %v8116 = vpop.f32.mrb[0].mxu0
      %8117 = vmatprep.mubr.bf16.mxu0 0
      %8118 = vmatmul.mubr.bf16.gmra.mrb[0].mxu0 %v8054
      %v8119 = vpop.f32.mrb[0].mxu0
      %v8120 = vadd.f32 %v7996, %v8119
      %v8121 = vpop.f32.mrb[0].mxu0
      %v8122 = vpop.f32.mrb[0].mxu0
      %v8123 = vadd.f32 %v7999, %v8122
      %v8124 = vpop.f32.mrb[0].mxu0
      %8125 = vmatprep.mubr.bf16.mxu0 0
      %8126 = vmatmul.mubr.bf16.gmra.mrb[0].mxu0 %v8057
      %v8127 = vpop.f32.mrb[0].mxu0
      %v8128 = vadd.f32 %v8004, %v8127
      %v8129 = vpop.f32.mrb[0].mxu0
      %v8130 = vpop.f32.mrb[0].mxu0
      %v8131 = vadd.f32 %v8007, %v8130
      %v8132 = vpop.f32.mrb[0].mxu0
      %8133 = vmatprep.mubr.bf16.mxu0 0
      %8134 = vmatmul.mubr.bf16.gmra.mrb[0].mxu0 %v8060
      %v8135 = vpop.f32.mrb[0].mxu0
      %v8136 = vadd.f32 %v8012, %v8135
      %v8137 = vpop.f32.mrb[0].mxu0
      %v8138 = vpop.f32.mrb[0].mxu0
      %v8139 = vadd.f32 %v8015, %v8138
      %v8140 = vpop.f32.mrb[0].mxu0
      %8141 = vmatprep.mubr.bf16.mxu0 0
      %8142 = vmatmul.mubr.bf16.gmra.mrb[0].mxu0 %v8063
      %v8143 = vpop.f32.mrb[0].mxu0
      %v8144 = vadd.f32 %v8020, %v8143
      %v8145 = vpop.f32.mrb[0].mxu0
      %v8146 = vpop.f32.mrb[0].mxu0
      %v8147 = vadd.f32 %v8023, %v8146
      %v8148 = vpop.f32.mrb[0].mxu0
      %8149 = vmatprep.mubr.bf16.mxu0 0
      %8150 = vmatmul.mubr.bf16.gmra.mrb[0].mxu0 %v8066
      %v8151 = vpop.f32.mrb[0].mxu0
      %v8152 = vadd.f32 %v8028, %v8151
      %v8153 = vpop.f32.mrb[0].mxu0
      %v8154 = vpop.f32.mrb[0].mxu0
      %v8155 = vadd.f32 %v8031, %v8154
      %v8156 = vpop.f32.mrb[0].mxu0
      %8157 = vmatprep.mubr.bf16.mxu0 0
      %8158 = vmatmul.mubr.bf16.gmra.mrb[0].mxu0 %v8069
      %v8159 = vpop.f32.mrb[0].mxu0
      %v8160 = vadd.f32 %v8036, %v8159
      %v8161 = vpop.f32.mrb[0].mxu0
      %v8162 = vpop.f32.mrb[0].mxu0
      %v8163 = vadd.f32 %v8039, %v8162
      %v8164 = vpop.f32.mrb[0].mxu0
      %8165 = vmatprep.mubr.bf16.mxu0 0
      %8166 = vmatmul.mubr.bf16.gmra.mrb[0].mxu0 %v8072
      %v8167 = vpop.f32.mrb[0].mxu0
      %v8168 = vadd.f32 %v8044, %v8167
      %v8169 = vpop.f32.mrb[0].mxu0
      %v8170 = vpop.f32.mrb[0].mxu0
      %v8171 = vadd.f32 %v8047, %v8170
      %v8172 = vpop.f32.mrb[0].mxu0
      %8173 = vdwg.mxu0
      %v8174 = vld [vmem:[#allocation4 + $0x8] sm:$0xff]
      %v8175 = vld [vmem:[#allocation4 + $0x10] sm:$0x1]
      %v8176 = vld [vmem:[#allocation4 + $0x38] sm:$0xff]
      %v8177 = vld [vmem:[#allocation4 + $0x40] sm:$0x1]
      %v8178 = vld [vmem:[#allocation4 + $0x68] sm:$0xff]
      %v8179 = vld [vmem:[#allocation4 + $0x70] sm:$0x1]
      %v8180 = vld [vmem:[#allocation4 + $0x98] sm:$0xff]
      %v8181 = vld [vmem:[#allocation4 + $0xa0] sm:$0x1]
      %v8182 = vld [vmem:[#allocation4 + $0xc8] sm:$0xff]
      %v8183 = vld [vmem:[#allocation4 + $0xd0] sm:$0x1]
      %v8184 = vld [vmem:[#allocation4 + $0xf8] sm:$0xff]
      %v8185 = vld [vmem:[#allocation4 + $0x100] sm:$0x1]
      %v8186 = vld [vmem:[#allocation4 + $0x128] sm:$0xff]
      %v8187 = vld [vmem:[#allocation4 + $0x130] sm:$0x1]
      %v8188 = vld [vmem:[#allocation4 + $0x158] sm:$0xff]
      %v8189 = vld [vmem:[#allocation4 + $0x160] sm:$0x1]
      %v8191 = vshrl.u32 %v8174, 16
      %v8193 = vshll.u32 %v8174, 16
      %v8195 = vrot.slane %v8193, 1
      %v8196 = vor.u32 %v8191, %v8195
      %v8198 = vshll.u32 %v8175, 16
      %v8200 = vrot.slane %v8198, 1
      %v8201 = vsel %vm1306, %v8196, %v8200
      %v8203 = vshrl.u32 %v8176, 16
      %v8205 = vshll.u32 %v8176, 16
      %v8207 = vrot.slane %v8205, 1
      %v8208 = vor.u32 %v8203, %v8207
      %v8210 = vshll.u32 %v8177, 16
      %v8212 = vrot.slane %v8210, 1
      %v8213 = vsel %vm1306, %v8208, %v8212
      %v8215 = vshrl.u32 %v8178, 16
      %v8217 = vshll.u32 %v8178, 16
      %v8219 = vrot.slane %v8217, 1
      %v8220 = vor.u32 %v8215, %v8219
      %v8222 = vshll.u32 %v8179, 16
      %v8224 = vrot.slane %v8222, 1
      %v8225 = vsel %vm1306, %v8220, %v8224
      %v8227 = vshrl.u32 %v8180, 16
      %v8229 = vshll.u32 %v8180, 16
      %v8231 = vrot.slane %v8229, 1
      %v8232 = vor.u32 %v8227, %v8231
      %v8234 = vshll.u32 %v8181, 16
      %v8236 = vrot.slane %v8234, 1
      %v8237 = vsel %vm1306, %v8232, %v8236
      %v8239 = vshrl.u32 %v8182, 16
      %v8241 = vshll.u32 %v8182, 16
      %v8243 = vrot.slane %v8241, 1
      %v8244 = vor.u32 %v8239, %v8243
      %v8246 = vshll.u32 %v8183, 16
      %v8248 = vrot.slane %v8246, 1
      %v8249 = vsel %vm1306, %v8244, %v8248
      %v8251 = vshrl.u32 %v8184, 16
      %v8253 = vshll.u32 %v8184, 16
      %v8255 = vrot.slane %v8253, 1
      %v8256 = vor.u32 %v8251, %v8255
      %v8258 = vshll.u32 %v8185, 16
      %v8260 = vrot.slane %v8258, 1
      %v8261 = vsel %vm1306, %v8256, %v8260
      %v8263 = vshrl.u32 %v8186, 16
      %v8265 = vshll.u32 %v8186, 16
      %v8267 = vrot.slane %v8265, 1
      %v8268 = vor.u32 %v8263, %v8267
      %v8270 = vshll.u32 %v8187, 16
      %v8272 = vrot.slane %v8270, 1
      %v8273 = vsel %vm1306, %v8268, %v8272
      %v8275 = vshrl.u32 %v8188, 16
      %v8277 = vshll.u32 %v8188, 16
      %v8279 = vrot.slane %v8277, 1
      %v8280 = vor.u32 %v8275, %v8279
      %v8282 = vshll.u32 %v8189, 16
      %v8284 = vrot.slane %v8282, 1
      %v8285 = vsel %vm1306, %v8280, %v8284
      %s8286 = scalar_lea.vmem %s7, 8
      %v8287 = vld [vmem:[%s8286] sm:$0xf]
      %v8289 = vsel %vm405, %v8201, 0
      %v8292 = vsel %vm405, %v8213, 0
      %v8295 = vsel %vm405, %v8225, 0
      %v8298 = vsel %vm405, %v8237, 0
      %v8301 = vsel %vm405, %v8249, 0
      %v8304 = vsel %vm405, %v8261, 0
      %v8307 = vsel %vm405, %v8273, 0
      %v8310 = vsel %vm405, %v8285, 0
      %v8313 = vsel %vm4488, %v8287, 0
      %8315 = vmatprep.subr.bf16.mxu0 0
      %8316 = vmatpush1.bf16.msra.mxu0 %v8313
      %8317 = vmatprep.subr.bf16.mxu0 0
      %8318 = vmatpush1.bf16.msra.mxu0 0
      %8319 = vmatprep.subr.bf16.mxu0 0
      %8320 = vmatpush1.bf16.msra.mxu0 0
      %8321 = vmatprep.subr.bf16.mxu0 0
      %8322 = vmatpush1.bf16.msra.mxu0 0
      %8323 = vmatprep.subr.bf16.mxu0 0
      %8324 = vmatpush1.bf16.msra.mxu0 0
      %8325 = vmatprep.subr.bf16.mxu0 0
      %8326 = vmatpush1.bf16.msra.mxu0 0
      %8327 = vmatprep.subr.bf16.mxu0 0
      %8328 = vmatpush1.bf16.msra.mxu0 0
      %8329 = vmatprep.subr.bf16.mxu0 0
      %8330 = vmatpush1.bf16.msra.mxu0 0
      %8331 = vmatprep.subr.bf16.mxu0 0
      %8332 = vmatpush1.bf16.msra.mxu0 0
      %8333 = vmatprep.subr.bf16.mxu0 0
      %8334 = vmatpush1.bf16.msra.mxu0 0
      %8335 = vmatprep.subr.bf16.mxu0 0
      %8336 = vmatpush1.bf16.msra.mxu0 0
      %8337 = vmatprep.subr.bf16.mxu0 0
      %8338 = vmatpush1.bf16.msra.mxu0 0
      %8339 = vmatprep.subr.bf16.mxu0 0
      %8340 = vmatpush1.bf16.msra.mxu0 0
      %8341 = vmatprep.subr.bf16.mxu0 0
      %8342 = vmatpush1.bf16.msra.mxu0 0
      %8343 = vmatprep.subr.bf16.mxu0 0
      %8344 = vmatpush1.bf16.msra.mxu0 0
      %8345 = vmatprep.subr.bf16.mxu0 0
      %8346 = vmatpush1.bf16.msra.mxu0 0
      %8347 = vmatprep.mubr.bf16.mxu0 0
      %8348 = vmatmul.mubr.bf16.gmra.mrb[0].mxu0 %v8289
      %v8349 = vpop.f32.mrb[0].mxu0
      %v8350 = vadd.f32 0.0, %v8349
      %v8351 = vpop.f32.mrb[0].mxu0
      %v8352 = vpop.f32.mrb[0].mxu0
      %v8353 = vadd.f32 0.0, %v8352
      %v8354 = vpop.f32.mrb[0].mxu0
      %8355 = vmatprep.mubr.bf16.mxu0 0
      %8356 = vmatmul.mubr.bf16.gmra.mrb[0].mxu0 %v8292
      %v8357 = vpop.f32.mrb[0].mxu0
      %v8358 = vadd.f32 0.0, %v8357
      %v8359 = vpop.f32.mrb[0].mxu0
      %v8360 = vpop.f32.mrb[0].mxu0
      %v8361 = vadd.f32 0.0, %v8360
      %v8362 = vpop.f32.mrb[0].mxu0
      %8363 = vmatprep.mubr.bf16.mxu0 0
      %8364 = vmatmul.mubr.bf16.gmra.mrb[0].mxu0 %v8295
      %v8365 = vpop.f32.mrb[0].mxu0
      %v8366 = vadd.f32 0.0, %v8365
      %v8367 = vpop.f32.mrb[0].mxu0
      %v8368 = vpop.f32.mrb[0].mxu0
      %v8369 = vadd.f32 0.0, %v8368
      %v8370 = vpop.f32.mrb[0].mxu0
      %8371 = vmatprep.mubr.bf16.mxu0 0
      %8372 = vmatmul.mubr.bf16.gmra.mrb[0].mxu0 %v8298
      %v8373 = vpop.f32.mrb[0].mxu0
      %v8374 = vadd.f32 0.0, %v8373
      %v8375 = vpop.f32.mrb[0].mxu0
      %v8376 = vpop.f32.mrb[0].mxu0
      %v8377 = vadd.f32 0.0, %v8376
      %v8378 = vpop.f32.mrb[0].mxu0
      %8379 = vmatprep.mubr.bf16.mxu0 0
      %8380 = vmatmul.mubr.bf16.gmra.mrb[0].mxu0 %v8301
      %v8381 = vpop.f32.mrb[0].mxu0
      %v8382 = vadd.f32 0.0, %v8381
      %v8383 = vpop.f32.mrb[0].mxu0
      %v8384 = vpop.f32.mrb[0].mxu0
      %v8385 = vadd.f32 0.0, %v8384
      %v8386 = vpop.f32.mrb[0].mxu0
      %8387 = vmatprep.mubr.bf16.mxu0 0
      %8388 = vmatmul.mubr.bf16.gmra.mrb[0].mxu0 %v8304
      %v8389 = vpop.f32.mrb[0].mxu0
      %v8390 = vadd.f32 0.0, %v8389
      %v8391 = vpop.f32.mrb[0].mxu0
      %v8392 = vpop.f32.mrb[0].mxu0
      %v8393 = vadd.f32 0.0, %v8392
      %v8394 = vpop.f32.mrb[0].mxu0
      %8395 = vmatprep.mubr.bf16.mxu0 0
      %8396 = vmatmul.mubr.bf16.gmra.mrb[0].mxu0 %v8307
      %v8397 = vpop.f32.mrb[0].mxu0
      %v8398 = vadd.f32 0.0, %v8397
      %v8399 = vpop.f32.mrb[0].mxu0
      %v8400 = vpop.f32.mrb[0].mxu0
      %v8401 = vadd.f32 0.0, %v8400
      %v8402 = vpop.f32.mrb[0].mxu0
      %8403 = vmatprep.mubr.bf16.mxu0 0
      %8404 = vmatmul.mubr.bf16.gmra.mrb[0].mxu0 %v8310
      %v8405 = vpop.f32.mrb[0].mxu0
      %v8406 = vadd.f32 0.0, %v8405
      %v8407 = vpop.f32.mrb[0].mxu0
      %v8408 = vpop.f32.mrb[0].mxu0
      %v8409 = vadd.f32 0.0, %v8408
      %v8410 = vpop.f32.mrb[0].mxu0
      %8411 = vdwg.mxu0
      %v8412 = vadd.f32 %v8112, %v8350
      %v8413 = vadd.f32 %v8115, %v8353
      %v8414 = vadd.f32 %v8120, %v8358
      %v8415 = vadd.f32 %v8123, %v8361
      %v8416 = vadd.f32 %v8128, %v8366
      %v8417 = vadd.f32 %v8131, %v8369
      %v8418 = vadd.f32 %v8136, %v8374
      %v8419 = vadd.f32 %v8139, %v8377
      %v8420 = vadd.f32 %v8144, %v8382
      %v8421 = vadd.f32 %v8147, %v8385
      %v8422 = vadd.f32 %v8152, %v8390
      %v8423 = vadd.f32 %v8155, %v8393
      %v8424 = vadd.f32 %v8160, %v8398
      %v8425 = vadd.f32 %v8163, %v8401
      %v8426 = vadd.f32 %v8168, %v8406
      %v8427 = vadd.f32 %v8171, %v8409
      %v8428 = vld [vmem:[%s7802] sm:$0x80]
      %v8429 = vld [vmem:[%s7802 + $0x8] sm:$0xff]
      %v8430 = vld [vmem:[%s7802 + $0x30] sm:$0x80]
      %v8431 = vld [vmem:[%s7802 + $0x38] sm:$0xff]
      %v8432 = vld [vmem:[%s7802 + $0x60] sm:$0x80]
      %v8433 = vld [vmem:[%s7802 + $0x68] sm:$0xff]
      %v8434 = vld [vmem:[%s7802 + $0x90] sm:$0x80]
      %v8435 = vld [vmem:[%s7802 + $0x98] sm:$0xff]
      %v8436 = vld [vmem:[%s7802 + $0xc0] sm:$0x80]
      %v8437 = vld [vmem:[%s7802 + $0xc8] sm:$0xff]
      %v8438 = vld [vmem:[%s7802 + $0xf0] sm:$0x80]
      %v8439 = vld [vmem:[%s7802 + $0xf8] sm:$0xff]
      %v8440 = vld [vmem:[%s7802 + $0x120] sm:$0x80]
      %v8441 = vld [vmem:[%s7802 + $0x128] sm:$0xff]
      %v8442 = vld [vmem:[%s7802 + $0x150] sm:$0x80]
      %v8443 = vld [vmem:[%s7802 + $0x158] sm:$0xff]
      %v8445 = vshrl.u32 %v8428, 16
      %v8447 = vrot.slane %v8445, 7
      %v8449 = vshrl.u32 %v8429, 16
      %v8451 = vrot.slane %v8449, 7
      %v8452 = vshll.u32 %v8429, 16
      %v8454 = vor.u32 %v8451, %v8452
      %v8455 = vsel %vm669, %v8447, %v8454
      %v8457 = vshrl.u32 %v8430, 16
      %v8459 = vrot.slane %v8457, 7
      %v8461 = vshrl.u32 %v8431, 16
      %v8463 = vrot.slane %v8461, 7
      %v8464 = vshll.u32 %v8431, 16
      %v8466 = vor.u32 %v8463, %v8464
      %v8467 = vsel %vm669, %v8459, %v8466
      %v8469 = vshrl.u32 %v8432, 16
      %v8471 = vrot.slane %v8469, 7
      %v8473 = vshrl.u32 %v8433, 16
      %v8475 = vrot.slane %v8473, 7
      %v8476 = vshll.u32 %v8433, 16
      %v8478 = vor.u32 %v8475, %v8476
      %v8479 = vsel %vm669, %v8471, %v8478
      %v8481 = vshrl.u32 %v8434, 16
      %v8483 = vrot.slane %v8481, 7
      %v8485 = vshrl.u32 %v8435, 16
      %v8487 = vrot.slane %v8485, 7
      %v8488 = vshll.u32 %v8435, 16
      %v8490 = vor.u32 %v8487, %v8488
      %v8491 = vsel %vm669, %v8483, %v8490
      %v8493 = vshrl.u32 %v8436, 16
      %v8495 = vrot.slane %v8493, 7
      %v8497 = vshrl.u32 %v8437, 16
      %v8499 = vrot.slane %v8497, 7
      %v8500 = vshll.u32 %v8437, 16
      %v8502 = vor.u32 %v8499, %v8500
      %v8503 = vsel %vm669, %v8495, %v8502
      %v8505 = vshrl.u32 %v8438, 16
      %v8507 = vrot.slane %v8505, 7
      %v8509 = vshrl.u32 %v8439, 16
      %v8511 = vrot.slane %v8509, 7
      %v8512 = vshll.u32 %v8439, 16
      %v8514 = vor.u32 %v8511, %v8512
      %v8515 = vsel %vm669, %v8507, %v8514
      %v8517 = vshrl.u32 %v8440, 16
      %v8519 = vrot.slane %v8517, 7
      %v8521 = vshrl.u32 %v8441, 16
      %v8523 = vrot.slane %v8521, 7
      %v8524 = vshll.u32 %v8441, 16
      %v8526 = vor.u32 %v8523, %v8524
      %v8527 = vsel %vm669, %v8519, %v8526
      %v8529 = vshrl.u32 %v8442, 16
      %v8531 = vrot.slane %v8529, 7
      %v8533 = vshrl.u32 %v8443, 16
      %v8535 = vrot.slane %v8533, 7
      %v8536 = vshll.u32 %v8443, 16
      %v8538 = vor.u32 %v8535, %v8536
      %v8539 = vsel %vm669, %v8531, %v8538
      %s8540 = scalar_lea.vmem %s7, 12
      %v8541 = vld [vmem:[%s8540] sm:$0xf]
      %v8543 = vsel %vm405, %v8455, 0
      %v8546 = vsel %vm405, %v8467, 0
      %v8549 = vsel %vm405, %v8479, 0
      %v8552 = vsel %vm405, %v8491, 0
      %v8555 = vsel %vm405, %v8503, 0
      %v8558 = vsel %vm405, %v8515, 0
      %v8561 = vsel %vm405, %v8527, 0
      %v8564 = vsel %vm405, %v8539, 0
      %v8567 = vsel %vm4488, %v8541, 0
      %8569 = vmatprep.subr.bf16.mxu0 0
      %8570 = vmatpush1.bf16.msra.mxu0 %v8567
      %8571 = vmatprep.subr.bf16.mxu0 0
      %8572 = vmatpush1.bf16.msra.mxu0 0
      %8573 = vmatprep.subr.bf16.mxu0 0
      %8574 = vmatpush1.bf16.msra.mxu0 0
      %8575 = vmatprep.subr.bf16.mxu0 0
      %8576 = vmatpush1.bf16.msra.mxu0 0
      %8577 = vmatprep.subr.bf16.mxu0 0
      %8578 = vmatpush1.bf16.msra.mxu0 0
      %8579 = vmatprep.subr.bf16.mxu0 0
      %8580 = vmatpush1.bf16.msra.mxu0 0
      %8581 = vmatprep.subr.bf16.mxu0 0
      %8582 = vmatpush1.bf16.msra.mxu0 0
      %8583 = vmatprep.subr.bf16.mxu0 0
      %8584 = vmatpush1.bf16.msra.mxu0 0
      %8585 = vmatprep.subr.bf16.mxu0 0
      %8586 = vmatpush1.bf16.msra.mxu0 0
      %8587 = vmatprep.subr.bf16.mxu0 0
      %8588 = vmatpush1.bf16.msra.mxu0 0
      %8589 = vmatprep.subr.bf16.mxu0 0
      %8590 = vmatpush1.bf16.msra.mxu0 0
      %8591 = vmatprep.subr.bf16.mxu0 0
      %8592 = vmatpush1.bf16.msra.mxu0 0
      %8593 = vmatprep.subr.bf16.mxu0 0
      %8594 = vmatpush1.bf16.msra.mxu0 0
      %8595 = vmatprep.subr.bf16.mxu0 0
      %8596 = vmatpush1.bf16.msra.mxu0 0
      %8597 = vmatprep.subr.bf16.mxu0 0
      %8598 = vmatpush1.bf16.msra.mxu0 0
      %8599 = vmatprep.subr.bf16.mxu0 0
      %8600 = vmatpush1.bf16.msra.mxu0 0
      %8601 = vmatprep.mubr.bf16.mxu0 0
      %8602 = vmatmul.mubr.bf16.gmra.mrb[0].mxu0 %v8543
      %v8603 = vpop.f32.mrb[0].mxu0
      %v8604 = vadd.f32 0.0, %v8603
      %v8605 = vpop.f32.mrb[0].mxu0
      %v8606 = vpop.f32.mrb[0].mxu0
      %v8607 = vadd.f32 0.0, %v8606
      %v8608 = vpop.f32.mrb[0].mxu0
      %8609 = vmatprep.mubr.bf16.mxu0 0
      %8610 = vmatmul.mubr.bf16.gmra.mrb[0].mxu0 %v8546
      %v8611 = vpop.f32.mrb[0].mxu0
      %v8612 = vadd.f32 0.0, %v8611
      %v8613 = vpop.f32.mrb[0].mxu0
      %v8614 = vpop.f32.mrb[0].mxu0
      %v8615 = vadd.f32 0.0, %v8614
      %v8616 = vpop.f32.mrb[0].mxu0
      %8617 = vmatprep.mubr.bf16.mxu0 0
      %8618 = vmatmul.mubr.bf16.gmra.mrb[0].mxu0 %v8549
      %v8619 = vpop.f32.mrb[0].mxu0
      %v8620 = vadd.f32 0.0, %v8619
      %v8621 = vpop.f32.mrb[0].mxu0
      %v8622 = vpop.f32.mrb[0].mxu0
      %v8623 = vadd.f32 0.0, %v8622
      %v8624 = vpop.f32.mrb[0].mxu0
      %8625 = vmatprep.mubr.bf16.mxu0 0
      %8626 = vmatmul.mubr.bf16.gmra.mrb[0].mxu0 %v8552
      %v8627 = vpop.f32.mrb[0].mxu0
      %v8628 = vadd.f32 0.0, %v8627
      %v8629 = vpop.f32.mrb[0].mxu0
      %v8630 = vpop.f32.mrb[0].mxu0
      %v8631 = vadd.f32 0.0, %v8630
      %v8632 = vpop.f32.mrb[0].mxu0
      %8633 = vmatprep.mubr.bf16.mxu0 0
      %8634 = vmatmul.mubr.bf16.gmra.mrb[0].mxu0 %v8555
      %v8635 = vpop.f32.mrb[0].mxu0
      %v8636 = vadd.f32 0.0, %v8635
      %v8637 = vpop.f32.mrb[0].mxu0
      %v8638 = vpop.f32.mrb[0].mxu0
      %v8639 = vadd.f32 0.0, %v8638
      %v8640 = vpop.f32.mrb[0].mxu0
      %8641 = vmatprep.mubr.bf16.mxu0 0
      %8642 = vmatmul.mubr.bf16.gmra.mrb[0].mxu0 %v8558
      %v8643 = vpop.f32.mrb[0].mxu0
      %v8644 = vadd.f32 0.0, %v8643
      %v8645 = vpop.f32.mrb[0].mxu0
      %v8646 = vpop.f32.mrb[0].mxu0
      %v8647 = vadd.f32 0.0, %v8646
      %v8648 = vpop.f32.mrb[0].mxu0
      %8649 = vmatprep.mubr.bf16.mxu0 0
      %8650 = vmatmul.mubr.bf16.gmra.mrb[0].mxu0 %v8561
      %v8651 = vpop.f32.mrb[0].mxu0
      %v8652 = vadd.f32 0.0, %v8651
      %v8653 = vpop.f32.mrb[0].mxu0
      %v8654 = vpop.f32.mrb[0].mxu0
      %v8655 = vadd.f32 0.0, %v8654
      %v8656 = vpop.f32.mrb[0].mxu0
      %8657 = vmatprep.mubr.bf16.mxu0 0
      %8658 = vmatmul.mubr.bf16.gmra.mrb[0].mxu0 %v8564
      %v8659 = vpop.f32.mrb[0].mxu0
      %v8660 = vadd.f32 0.0, %v8659
      %v8661 = vpop.f32.mrb[0].mxu0
      %v8662 = vpop.f32.mrb[0].mxu0
      %v8663 = vadd.f32 0.0, %v8662
      %v8664 = vpop.f32.mrb[0].mxu0
      %8665 = vdwg.mxu0
      %v8666 = vadd.f32 %v8412, %v8604
      %v8667 = vadd.f32 %v8413, %v8607
      %v8668 = vadd.f32 %v8414, %v8612
      %v8669 = vadd.f32 %v8415, %v8615
      %v8670 = vadd.f32 %v8416, %v8620
      %v8671 = vadd.f32 %v8417, %v8623
      %v8672 = vadd.f32 %v8418, %v8628
      %v8673 = vadd.f32 %v8419, %v8631
      %v8674 = vadd.f32 %v8420, %v8636
      %v8675 = vadd.f32 %v8421, %v8639
      %v8676 = vadd.f32 %v8422, %v8644
      %v8677 = vadd.f32 %v8423, %v8647
      %v8678 = vadd.f32 %v8424, %v8652
      %v8679 = vadd.f32 %v8425, %v8655
      %v8680 = vadd.f32 %v8426, %v8660
      %v8681 = vadd.f32 %v8427, %v8663
      %s8682 = scalar_lea.vmem %s7, 16
      %v8683 = vld [vmem:[%s8682] sm:$0xf]
      %v8684 = vsel %vm405, %v8429, 0
      %v8686 = vsel %vm405, %v8431, 0
      %v8688 = vsel %vm405, %v8433, 0
      %v8690 = vsel %vm405, %v8435, 0
      %v8692 = vsel %vm405, %v8437, 0
      %v8694 = vsel %vm405, %v8439, 0
      %v8696 = vsel %vm405, %v8441, 0
      %v8698 = vsel %vm405, %v8443, 0
      %v8701 = vsel %vm4488, %v8683, 0
      %8703 = vmatprep.subr.bf16.mxu0 0
      %8704 = vmatpush1.bf16.msra.mxu0 %v8701
      %8705 = vmatprep.subr.bf16.mxu0 0
      %8706 = vmatpush1.bf16.msra.mxu0 0
      %8707 = vmatprep.subr.bf16.mxu0 0
      %8708 = vmatpush1.bf16.msra.mxu0 0
      %8709 = vmatprep.subr.bf16.mxu0 0
      %8710 = vmatpush1.bf16.msra.mxu0 0
      %8711 = vmatprep.subr.bf16.mxu0 0
      %8712 = vmatpush1.bf16.msra.mxu0 0
      %8713 = vmatprep.subr.bf16.mxu0 0
      %8714 = vmatpush1.bf16.msra.mxu0 0
      %8715 = vmatprep.subr.bf16.mxu0 0
      %8716 = vmatpush1.bf16.msra.mxu0 0
      %8717 = vmatprep.subr.bf16.mxu0 0
      %8718 = vmatpush1.bf16.msra.mxu0 0
      %8719 = vmatprep.subr.bf16.mxu0 0
      %8720 = vmatpush1.bf16.msra.mxu0 0
      %8721 = vmatprep.subr.bf16.mxu0 0
      %8722 = vmatpush1.bf16.msra.mxu0 0
      %8723 = vmatprep.subr.bf16.mxu0 0
      %8724 = vmatpush1.bf16.msra.mxu0 0
      %8725 = vmatprep.subr.bf16.mxu0 0
      %8726 = vmatpush1.bf16.msra.mxu0 0
      %8727 = vmatprep.subr.bf16.mxu0 0
      %8728 = vmatpush1.bf16.msra.mxu0 0
      %8729 = vmatprep.subr.bf16.mxu0 0
      %8730 = vmatpush1.bf16.msra.mxu0 0
      %8731 = vmatprep.subr.bf16.mxu0 0
      %8732 = vmatpush1.bf16.msra.mxu0 0
      %8733 = vmatprep.subr.bf16.mxu0 0
      %8734 = vmatpush1.bf16.msra.mxu0 0
      %8735 = vmatprep.mubr.bf16.mxu0 0
      %8736 = vmatmul.mubr.bf16.gmra.mrb[0].mxu0 %v8684
      %v8737 = vpop.f32.mrb[0].mxu0
      %v8738 = vadd.f32 0.0, %v8737
      %v8739 = vpop.f32.mrb[0].mxu0
      %v8740 = vpop.f32.mrb[0].mxu0
      %v8741 = vadd.f32 0.0, %v8740
      %v8742 = vpop.f32.mrb[0].mxu0
      %8743 = vmatprep.mubr.bf16.mxu0 0
      %8744 = vmatmul.mubr.bf16.gmra.mrb[0].mxu0 %v8686
      %v8745 = vpop.f32.mrb[0].mxu0
      %v8746 = vadd.f32 0.0, %v8745
      %v8747 = vpop.f32.mrb[0].mxu0
      %v8748 = vpop.f32.mrb[0].mxu0
      %v8749 = vadd.f32 0.0, %v8748
      %v8750 = vpop.f32.mrb[0].mxu0
      %8751 = vmatprep.mubr.bf16.mxu0 0
      %8752 = vmatmul.mubr.bf16.gmra.mrb[0].mxu0 %v8688
      %v8753 = vpop.f32.mrb[0].mxu0
      %v8754 = vadd.f32 0.0, %v8753
      %v8755 = vpop.f32.mrb[0].mxu0
      %v8756 = vpop.f32.mrb[0].mxu0
      %v8757 = vadd.f32 0.0, %v8756
      %v8758 = vpop.f32.mrb[0].mxu0
      %8759 = vmatprep.mubr.bf16.mxu0 0
      %8760 = vmatmul.mubr.bf16.gmra.mrb[0].mxu0 %v8690
      %v8761 = vpop.f32.mrb[0].mxu0
      %v8762 = vadd.f32 0.0, %v8761
      %v8763 = vpop.f32.mrb[0].mxu0
      %v8764 = vpop.f32.mrb[0].mxu0
      %v8765 = vadd.f32 0.0, %v8764
      %v8766 = vpop.f32.mrb[0].mxu0
      %8767 = vmatprep.mubr.bf16.mxu0 0
      %8768 = vmatmul.mubr.bf16.gmra.mrb[0].mxu0 %v8692
      %v8769 = vpop.f32.mrb[0].mxu0
      %v8770 = vadd.f32 0.0, %v8769
      %v8771 = vpop.f32.mrb[0].mxu0
      %v8772 = vpop.f32.mrb[0].mxu0
      %v8773 = vadd.f32 0.0, %v8772
      %v8774 = vpop.f32.mrb[0].mxu0
      %8775 = vmatprep.mubr.bf16.mxu0 0
      %8776 = vmatmul.mubr.bf16.gmra.mrb[0].mxu0 %v8694
      %v8777 = vpop.f32.mrb[0].mxu0
      %v8778 = vadd.f32 0.0, %v8777
      %v8779 = vpop.f32.mrb[0].mxu0
      %v8780 = vpop.f32.mrb[0].mxu0
      %v8781 = vadd.f32 0.0, %v8780
      %v8782 = vpop.f32.mrb[0].mxu0
      %8783 = vmatprep.mubr.bf16.mxu0 0
      %8784 = vmatmul.mubr.bf16.gmra.mrb[0].mxu0 %v8696
      %v8785 = vpop.f32.mrb[0].mxu0
      %v8786 = vadd.f32 0.0, %v8785
      %v8787 = vpop.f32.mrb[0].mxu0
      %v8788 = vpop.f32.mrb[0].mxu0
      %v8789 = vadd.f32 0.0, %v8788
      %v8790 = vpop.f32.mrb[0].mxu0
      %8791 = vmatprep.mubr.bf16.mxu0 0
      %8792 = vmatmul.mubr.bf16.gmra.mrb[0].mxu0 %v8698
      %v8793 = vpop.f32.mrb[0].mxu0
      %v8794 = vadd.f32 0.0, %v8793
      %v8795 = vpop.f32.mrb[0].mxu0
      %v8796 = vpop.f32.mrb[0].mxu0
      %v8797 = vadd.f32 0.0, %v8796
      %v8798 = vpop.f32.mrb[0].mxu0
      %8799 = vdwg.mxu0
      %v8800 = vadd.f32 %v8666, %v8738
      %v8801 = vadd.f32 %v8667, %v8741
      %v8802 = vadd.f32 %v8668, %v8746
      %v8803 = vadd.f32 %v8669, %v8749
      %v8804 = vadd.f32 %v8670, %v8754
      %v8805 = vadd.f32 %v8671, %v8757
      %v8806 = vadd.f32 %v8672, %v8762
      %v8807 = vadd.f32 %v8673, %v8765
      %v8808 = vadd.f32 %v8674, %v8770
      %v8809 = vadd.f32 %v8675, %v8773
      %v8810 = vadd.f32 %v8676, %v8778
      %v8811 = vadd.f32 %v8677, %v8781
      %v8812 = vadd.f32 %v8678, %v8786
      %v8813 = vadd.f32 %v8679, %v8789
      %v8814 = vadd.f32 %v8680, %v8794
      %v8815 = vadd.f32 %v8681, %v8797
      %v8816 = vld [vmem:[%s7802 + $0x8] sm:$0xff]
      %v8817 = vld [vmem:[%s7802 + $0x10] sm:$0x1]
      %v8818 = vld [vmem:[%s7802 + $0x38] sm:$0xff]
      %v8819 = vld [vmem:[%s7802 + $0x40] sm:$0x1]
      %v8820 = vld [vmem:[%s7802 + $0x68] sm:$0xff]
      %v8821 = vld [vmem:[%s7802 + $0x70] sm:$0x1]
      %v8822 = vld [vmem:[%s7802 + $0x98] sm:$0xff]
      %v8823 = vld [vmem:[%s7802 + $0xa0] sm:$0x1]
      %v8824 = vld [vmem:[%s7802 + $0xc8] sm:$0xff]
      %v8825 = vld [vmem:[%s7802 + $0xd0] sm:$0x1]
      %v8826 = vld [vmem:[%s7802 + $0xf8] sm:$0xff]
      %v8827 = vld [vmem:[%s7802 + $0x100] sm:$0x1]
      %v8828 = vld [vmem:[%s7802 + $0x128] sm:$0xff]
      %v8829 = vld [vmem:[%s7802 + $0x130] sm:$0x1]
      %v8830 = vld [vmem:[%s7802 + $0x158] sm:$0xff]
      %v8831 = vld [vmem:[%s7802 + $0x160] sm:$0x1]
      %v8833 = vshrl.u32 %v8816, 16
      %v8835 = vshll.u32 %v8816, 16
      %v8837 = vrot.slane %v8835, 1
      %v8838 = vor.u32 %v8833, %v8837
      %v8840 = vshll.u32 %v8817, 16
      %v8842 = vrot.slane %v8840, 1
      %v8843 = vsel %vm1306, %v8838, %v8842
      %v8845 = vshrl.u32 %v8818, 16
      %v8847 = vshll.u32 %v8818, 16
      %v8849 = vrot.slane %v8847, 1
      %v8850 = vor.u32 %v8845, %v8849
      %v8852 = vshll.u32 %v8819, 16
      %v8854 = vrot.slane %v8852, 1
      %v8855 = vsel %vm1306, %v8850, %v8854
      %v8857 = vshrl.u32 %v8820, 16
      %v8859 = vshll.u32 %v8820, 16
      %v8861 = vrot.slane %v8859, 1
      %v8862 = vor.u32 %v8857, %v8861
      %v8864 = vshll.u32 %v8821, 16
      %v8866 = vrot.slane %v8864, 1
      %v8867 = vsel %vm1306, %v8862, %v8866
      %v8869 = vshrl.u32 %v8822, 16
      %v8871 = vshll.u32 %v8822, 16
      %v8873 = vrot.slane %v8871, 1
      %v8874 = vor.u32 %v8869, %v8873
      %v8876 = vshll.u32 %v8823, 16
      %v8878 = vrot.slane %v8876, 1
      %v8879 = vsel %vm1306, %v8874, %v8878
      %v8881 = vshrl.u32 %v8824, 16
      %v8883 = vshll.u32 %v8824, 16
      %v8885 = vrot.slane %v8883, 1
      %v8886 = vor.u32 %v8881, %v8885
      %v8888 = vshll.u32 %v8825, 16
      %v8890 = vrot.slane %v8888, 1
      %v8891 = vsel %vm1306, %v8886, %v8890
      %v8893 = vshrl.u32 %v8826, 16
      %v8895 = vshll.u32 %v8826, 16
      %v8897 = vrot.slane %v8895, 1
      %v8898 = vor.u32 %v8893, %v8897
      %v8900 = vshll.u32 %v8827, 16
      %v8902 = vrot.slane %v8900, 1
      %v8903 = vsel %vm1306, %v8898, %v8902
      %v8905 = vshrl.u32 %v8828, 16
      %v8907 = vshll.u32 %v8828, 16
      %v8909 = vrot.slane %v8907, 1
      %v8910 = vor.u32 %v8905, %v8909
      %v8912 = vshll.u32 %v8829, 16
      %v8914 = vrot.slane %v8912, 1
      %v8915 = vsel %vm1306, %v8910, %v8914
      %v8917 = vshrl.u32 %v8830, 16
      %v8919 = vshll.u32 %v8830, 16
      %v8921 = vrot.slane %v8919, 1
      %v8922 = vor.u32 %v8917, %v8921
      %v8924 = vshll.u32 %v8831, 16
      %v8926 = vrot.slane %v8924, 1
      %v8927 = vsel %vm1306, %v8922, %v8926
      %s8928 = scalar_lea.vmem %s7, 20
      %v8929 = vld [vmem:[%s8928] sm:$0xf]
      %v8931 = vsel %vm405, %v8843, 0
      %v8934 = vsel %vm405, %v8855, 0
      %v8937 = vsel %vm405, %v8867, 0
      %v8940 = vsel %vm405, %v8879, 0
      %v8943 = vsel %vm405, %v8891, 0
      %v8946 = vsel %vm405, %v8903, 0
      %v8949 = vsel %vm405, %v8915, 0
      %v8952 = vsel %vm405, %v8927, 0
      %v8955 = vsel %vm4488, %v8929, 0
      %8957 = vmatprep.subr.bf16.mxu0 0
      %8958 = vmatpush1.bf16.msra.mxu0 %v8955
      %8959 = vmatprep.subr.bf16.mxu0 0
      %8960 = vmatpush1.bf16.msra.mxu0 0
      %8961 = vmatprep.subr.bf16.mxu0 0
      %8962 = vmatpush1.bf16.msra.mxu0 0
      %8963 = vmatprep.subr.bf16.mxu0 0
      %8964 = vmatpush1.bf16.msra.mxu0 0
      %8965 = vmatprep.subr.bf16.mxu0 0
      %8966 = vmatpush1.bf16.msra.mxu0 0
      %8967 = vmatprep.subr.bf16.mxu0 0
      %8968 = vmatpush1.bf16.msra.mxu0 0
      %8969 = vmatprep.subr.bf16.mxu0 0
      %8970 = vmatpush1.bf16.msra.mxu0 0
      %8971 = vmatprep.subr.bf16.mxu0 0
      %8972 = vmatpush1.bf16.msra.mxu0 0
      %8973 = vmatprep.subr.bf16.mxu0 0
      %8974 = vmatpush1.bf16.msra.mxu0 0
      %8975 = vmatprep.subr.bf16.mxu0 0
      %8976 = vmatpush1.bf16.msra.mxu0 0
      %8977 = vmatprep.subr.bf16.mxu0 0
      %8978 = vmatpush1.bf16.msra.mxu0 0
      %8979 = vmatprep.subr.bf16.mxu0 0
      %8980 = vmatpush1.bf16.msra.mxu0 0
      %8981 = vmatprep.subr.bf16.mxu0 0
      %8982 = vmatpush1.bf16.msra.mxu0 0
      %8983 = vmatprep.subr.bf16.mxu0 0
      %8984 = vmatpush1.bf16.msra.mxu0 0
      %8985 = vmatprep.subr.bf16.mxu0 0
      %8986 = vmatpush1.bf16.msra.mxu0 0
      %8987 = vmatprep.subr.bf16.mxu0 0
      %8988 = vmatpush1.bf16.msra.mxu0 0
      %8989 = vmatprep.mubr.bf16.mxu0 0
      %8990 = vmatmul.mubr.bf16.gmra.mrb[0].mxu0 %v8931
      %v8991 = vpop.f32.mrb[0].mxu0
      %v8992 = vadd.f32 0.0, %v8991
      %v8993 = vpop.f32.mrb[0].mxu0
      %v8994 = vpop.f32.mrb[0].mxu0
      %v8995 = vadd.f32 0.0, %v8994
      %v8996 = vpop.f32.mrb[0].mxu0
      %8997 = vmatprep.mubr.bf16.mxu0 0
      %8998 = vmatmul.mubr.bf16.gmra.mrb[0].mxu0 %v8934
      %v8999 = vpop.f32.mrb[0].mxu0
      %v9000 = vadd.f32 0.0, %v8999
      %v9001 = vpop.f32.mrb[0].mxu0
      %v9002 = vpop.f32.mrb[0].mxu0
      %v9003 = vadd.f32 0.0, %v9002
      %v9004 = vpop.f32.mrb[0].mxu0
      %9005 = vmatprep.mubr.bf16.mxu0 0
      %9006 = vmatmul.mubr.bf16.gmra.mrb[0].mxu0 %v8937
      %v9007 = vpop.f32.mrb[0].mxu0
      %v9008 = vadd.f32 0.0, %v9007
      %v9009 = vpop.f32.mrb[0].mxu0
      %v9010 = vpop.f32.mrb[0].mxu0
      %v9011 = vadd.f32 0.0, %v9010
      %v9012 = vpop.f32.mrb[0].mxu0
      %9013 = vmatprep.mubr.bf16.mxu0 0
      %9014 = vmatmul.mubr.bf16.gmra.mrb[0].mxu0 %v8940
      %v9015 = vpop.f32.mrb[0].mxu0
      %v9016 = vadd.f32 0.0, %v9015
      %v9017 = vpop.f32.mrb[0].mxu0
      %v9018 = vpop.f32.mrb[0].mxu0
      %v9019 = vadd.f32 0.0, %v9018
      %v9020 = vpop.f32.mrb[0].mxu0
      %9021 = vmatprep.mubr.bf16.mxu0 0
      %9022 = vmatmul.mubr.bf16.gmra.mrb[0].mxu0 %v8943
      %v9023 = vpop.f32.mrb[0].mxu0
      %v9024 = vadd.f32 0.0, %v9023
      %v9025 = vpop.f32.mrb[0].mxu0
      %v9026 = vpop.f32.mrb[0].mxu0
      %v9027 = vadd.f32 0.0, %v9026
      %v9028 = vpop.f32.mrb[0].mxu0
      %9029 = vmatprep.mubr.bf16.mxu0 0
      %9030 = vmatmul.mubr.bf16.gmra.mrb[0].mxu0 %v8946
      %v9031 = vpop.f32.mrb[0].mxu0
      %v9032 = vadd.f32 0.0, %v9031
      %v9033 = vpop.f32.mrb[0].mxu0
      %v9034 = vpop.f32.mrb[0].mxu0
      %v9035 = vadd.f32 0.0, %v9034
      %v9036 = vpop.f32.mrb[0].mxu0
      %9037 = vmatprep.mubr.bf16.mxu0 0
      %9038 = vmatmul.mubr.bf16.gmra.mrb[0].mxu0 %v8949
      %v9039 = vpop.f32.mrb[0].mxu0
      %v9040 = vadd.f32 0.0, %v9039
      %v9041 = vpop.f32.mrb[0].mxu0
      %v9042 = vpop.f32.mrb[0].mxu0
      %v9043 = vadd.f32 0.0, %v9042
      %v9044 = vpop.f32.mrb[0].mxu0
      %9045 = vmatprep.mubr.bf16.mxu0 0
      %9046 = vmatmul.mubr.bf16.gmra.mrb[0].mxu0 %v8952
      %v9047 = vpop.f32.mrb[0].mxu0
      %v9048 = vadd.f32 0.0, %v9047
      %v9049 = vpop.f32.mrb[0].mxu0
      %v9050 = vpop.f32.mrb[0].mxu0
      %v9051 = vadd.f32 0.0, %v9050
      %v9052 = vpop.f32.mrb[0].mxu0
      %9053 = vdwg.mxu0
      %v9054 = vadd.f32 %v8800, %v8992
      %v9055 = vadd.f32 %v8801, %v8995
      %v9056 = vadd.f32 %v8802, %v9000
      %v9057 = vadd.f32 %v8803, %v9003
      %v9058 = vadd.f32 %v8804, %v9008
      %v9059 = vadd.f32 %v8805, %v9011
      %v9060 = vadd.f32 %v8806, %v9016
      %v9061 = vadd.f32 %v8807, %v9019
      %v9062 = vadd.f32 %v8808, %v9024
      %v9063 = vadd.f32 %v8809, %v9027
      %v9064 = vadd.f32 %v8810, %v9032
      %v9065 = vadd.f32 %v8811, %v9035
      %v9066 = vadd.f32 %v8812, %v9040
      %v9067 = vadd.f32 %v8813, %v9043
      %v9068 = vadd.f32 %v8814, %v9048
      %v9069 = vadd.f32 %v8815, %v9051
      %s9070 = scalar_lea.vmem [#allocation4], 48
      %v9071 = vld [vmem:[%s9070] sm:$0x80]
      %v9072 = vld [vmem:[%s9070 + $0x8] sm:$0xff]
      %v9073 = vld [vmem:[%s9070 + $0x30] sm:$0x80]
      %v9074 = vld [vmem:[%s9070 + $0x38] sm:$0xff]
      %v9075 = vld [vmem:[%s9070 + $0x60] sm:$0x80]
      %v9076 = vld [vmem:[%s9070 + $0x68] sm:$0xff]
      %v9077 = vld [vmem:[%s9070 + $0x90] sm:$0x80]
      %v9078 = vld [vmem:[%s9070 + $0x98] sm:$0xff]
      %v9079 = vld [vmem:[%s9070 + $0xc0] sm:$0x80]
      %v9080 = vld [vmem:[%s9070 + $0xc8] sm:$0xff]
      %v9081 = vld [vmem:[%s9070 + $0xf0] sm:$0x80]
      %v9082 = vld [vmem:[%s9070 + $0xf8] sm:$0xff]
      %v9083 = vld [vmem:[%s9070 + $0x120] sm:$0x80]
      %v9084 = vld [vmem:[%s9070 + $0x128] sm:$0xff]
      %v9085 = vld [vmem:[%s9070 + $0x150] sm:$0x80]
      %v9086 = vld [vmem:[%s9070 + $0x158] sm:$0xff]
      %v9088 = vshrl.u32 %v9071, 16
      %v9090 = vrot.slane %v9088, 7
      %v9092 = vshrl.u32 %v9072, 16
      %v9094 = vrot.slane %v9092, 7
      %v9095 = vshll.u32 %v9072, 16
      %v9097 = vor.u32 %v9094, %v9095
      %v9098 = vsel %vm669, %v9090, %v9097
      %v9100 = vshrl.u32 %v9073, 16
      %v9102 = vrot.slane %v9100, 7
      %v9104 = vshrl.u32 %v9074, 16
      %v9106 = vrot.slane %v9104, 7
      %v9107 = vshll.u32 %v9074, 16
      %v9109 = vor.u32 %v9106, %v9107
      %v9110 = vsel %vm669, %v9102, %v9109
      %v9112 = vshrl.u32 %v9075, 16
      %v9114 = vrot.slane %v9112, 7
      %v9116 = vshrl.u32 %v9076, 16
      %v9118 = vrot.slane %v9116, 7
      %v9119 = vshll.u32 %v9076, 16
      %v9121 = vor.u32 %v9118, %v9119
      %v9122 = vsel %vm669, %v9114, %v9121
      %v9124 = vshrl.u32 %v9077, 16
      %v9126 = vrot.slane %v9124, 7
      %v9128 = vshrl.u32 %v9078, 16
      %v9130 = vrot.slane %v9128, 7
      %v9131 = vshll.u32 %v9078, 16
      %v9133 = vor.u32 %v9130, %v9131
      %v9134 = vsel %vm669, %v9126, %v9133
      %v9136 = vshrl.u32 %v9079, 16
      %v9138 = vrot.slane %v9136, 7
      %v9140 = vshrl.u32 %v9080, 16
      %v9142 = vrot.slane %v9140, 7
      %v9143 = vshll.u32 %v9080, 16
      %v9145 = vor.u32 %v9142, %v9143
      %v9146 = vsel %vm669, %v9138, %v9145
      %v9148 = vshrl.u32 %v9081, 16
      %v9150 = vrot.slane %v9148, 7
      %v9152 = vshrl.u32 %v9082, 16
      %v9154 = vrot.slane %v9152, 7
      %v9155 = vshll.u32 %v9082, 16
      %v9157 = vor.u32 %v9154, %v9155
      %v9158 = vsel %vm669, %v9150, %v9157
      %v9160 = vshrl.u32 %v9083, 16
      %v9162 = vrot.slane %v9160, 7
      %v9164 = vshrl.u32 %v9084, 16
      %v9166 = vrot.slane %v9164, 7
      %v9167 = vshll.u32 %v9084, 16
      %v9169 = vor.u32 %v9166, %v9167
      %v9170 = vsel %vm669, %v9162, %v9169
      %v9172 = vshrl.u32 %v9085, 16
      %v9174 = vrot.slane %v9172, 7
      %v9176 = vshrl.u32 %v9086, 16
      %v9178 = vrot.slane %v9176, 7
      %v9179 = vshll.u32 %v9086, 16
      %v9181 = vor.u32 %v9178, %v9179
      %v9182 = vsel %vm669, %v9174, %v9181
      %s9183 = scalar_lea.vmem %s7, 24
      %v9184 = vld [vmem:[%s9183] sm:$0xf]
      %v9186 = vsel %vm405, %v9098, 0
      %v9189 = vsel %vm405, %v9110, 0
      %v9192 = vsel %vm405, %v9122, 0
      %v9195 = vsel %vm405, %v9134, 0
      %v9198 = vsel %vm405, %v9146, 0
      %v9201 = vsel %vm405, %v9158, 0
      %v9204 = vsel %vm405, %v9170, 0
      %v9207 = vsel %vm405, %v9182, 0
      %v9210 = vsel %vm4488, %v9184, 0
      %9212 = vmatprep.subr.bf16.mxu0 0
      %9213 = vmatpush1.bf16.msra.mxu0 %v9210
      %9214 = vmatprep.subr.bf16.mxu0 0
      %9215 = vmatpush1.bf16.msra.mxu0 0
      %9216 = vmatprep.subr.bf16.mxu0 0
      %9217 = vmatpush1.bf16.msra.mxu0 0
      %9218 = vmatprep.subr.bf16.mxu0 0
      %9219 = vmatpush1.bf16.msra.mxu0 0
      %9220 = vmatprep.subr.bf16.mxu0 0
      %9221 = vmatpush1.bf16.msra.mxu0 0
      %9222 = vmatprep.subr.bf16.mxu0 0
      %9223 = vmatpush1.bf16.msra.mxu0 0
      %9224 = vmatprep.subr.bf16.mxu0 0
      %9225 = vmatpush1.bf16.msra.mxu0 0
      %9226 = vmatprep.subr.bf16.mxu0 0
      %9227 = vmatpush1.bf16.msra.mxu0 0
      %9228 = vmatprep.subr.bf16.mxu0 0
      %9229 = vmatpush1.bf16.msra.mxu0 0
      %9230 = vmatprep.subr.bf16.mxu0 0
      %9231 = vmatpush1.bf16.msra.mxu0 0
      %9232 = vmatprep.subr.bf16.mxu0 0
      %9233 = vmatpush1.bf16.msra.mxu0 0
      %9234 = vmatprep.subr.bf16.mxu0 0
      %9235 = vmatpush1.bf16.msra.mxu0 0
      %9236 = vmatprep.subr.bf16.mxu0 0
      %9237 = vmatpush1.bf16.msra.mxu0 0
      %9238 = vmatprep.subr.bf16.mxu0 0
      %9239 = vmatpush1.bf16.msra.mxu0 0
      %9240 = vmatprep.subr.bf16.mxu0 0
      %9241 = vmatpush1.bf16.msra.mxu0 0
      %9242 = vmatprep.subr.bf16.mxu0 0
      %9243 = vmatpush1.bf16.msra.mxu0 0
      %9244 = vmatprep.mubr.bf16.mxu0 0
      %9245 = vmatmul.mubr.bf16.gmra.mrb[0].mxu0 %v9186
      %v9246 = vpop.f32.mrb[0].mxu0
      %v9247 = vadd.f32 0.0, %v9246
      %v9248 = vpop.f32.mrb[0].mxu0
      %v9249 = vpop.f32.mrb[0].mxu0
      %v9250 = vadd.f32 0.0, %v9249
      %v9251 = vpop.f32.mrb[0].mxu0
      %9252 = vmatprep.mubr.bf16.mxu0 0
      %9253 = vmatmul.mubr.bf16.gmra.mrb[0].mxu0 %v9189
      %v9254 = vpop.f32.mrb[0].mxu0
      %v9255 = vadd.f32 0.0, %v9254
      %v9256 = vpop.f32.mrb[0].mxu0
      %v9257 = vpop.f32.mrb[0].mxu0
      %v9258 = vadd.f32 0.0, %v9257
      %v9259 = vpop.f32.mrb[0].mxu0
      %9260 = vmatprep.mubr.bf16.mxu0 0
      %9261 = vmatmul.mubr.bf16.gmra.mrb[0].mxu0 %v9192
      %v9262 = vpop.f32.mrb[0].mxu0
      %v9263 = vadd.f32 0.0, %v9262
      %v9264 = vpop.f32.mrb[0].mxu0
      %v9265 = vpop.f32.mrb[0].mxu0
      %v9266 = vadd.f32 0.0, %v9265
      %v9267 = vpop.f32.mrb[0].mxu0
      %9268 = vmatprep.mubr.bf16.mxu0 0
      %9269 = vmatmul.mubr.bf16.gmra.mrb[0].mxu0 %v9195
      %v9270 = vpop.f32.mrb[0].mxu0
      %v9271 = vadd.f32 0.0, %v9270
      %v9272 = vpop.f32.mrb[0].mxu0
      %v9273 = vpop.f32.mrb[0].mxu0
      %v9274 = vadd.f32 0.0, %v9273
      %v9275 = vpop.f32.mrb[0].mxu0
      %9276 = vmatprep.mubr.bf16.mxu0 0
      %9277 = vmatmul.mubr.bf16.gmra.mrb[0].mxu0 %v9198
      %v9278 = vpop.f32.mrb[0].mxu0
      %v9279 = vadd.f32 0.0, %v9278
      %v9280 = vpop.f32.mrb[0].mxu0
      %v9281 = vpop.f32.mrb[0].mxu0
      %v9282 = vadd.f32 0.0, %v9281
      %v9283 = vpop.f32.mrb[0].mxu0
      %9284 = vmatprep.mubr.bf16.mxu0 0
      %9285 = vmatmul.mubr.bf16.gmra.mrb[0].mxu0 %v9201
      %v9286 = vpop.f32.mrb[0].mxu0
      %v9287 = vadd.f32 0.0, %v9286
      %v9288 = vpop.f32.mrb[0].mxu0
      %v9289 = vpop.f32.mrb[0].mxu0
      %v9290 = vadd.f32 0.0, %v9289
      %v9291 = vpop.f32.mrb[0].mxu0
      %9292 = vmatprep.mubr.bf16.mxu0 0
      %9293 = vmatmul.mubr.bf16.gmra.mrb[0].mxu0 %v9204
      %v9294 = vpop.f32.mrb[0].mxu0
      %v9295 = vadd.f32 0.0, %v9294
      %v9296 = vpop.f32.mrb[0].mxu0
      %v9297 = vpop.f32.mrb[0].mxu0
      %v9298 = vadd.f32 0.0, %v9297
      %v9299 = vpop.f32.mrb[0].mxu0
      %9300 = vmatprep.mubr.bf16.mxu0 0
      %9301 = vmatmul.mubr.bf16.gmra.mrb[0].mxu0 %v9207
      %v9302 = vpop.f32.mrb[0].mxu0
      %v9303 = vadd.f32 0.0, %v9302
      %v9304 = vpop.f32.mrb[0].mxu0
      %v9305 = vpop.f32.mrb[0].mxu0
      %v9306 = vadd.f32 0.0, %v9305
      %v9307 = vpop.f32.mrb[0].mxu0
      %9308 = vdwg.mxu0
      %v9309 = vadd.f32 %v9054, %v9247
      %v9310 = vadd.f32 %v9055, %v9250
      %v9311 = vadd.f32 %v9056, %v9255
      %v9312 = vadd.f32 %v9057, %v9258
      %v9313 = vadd.f32 %v9058, %v9263
      %v9314 = vadd.f32 %v9059, %v9266
      %v9315 = vadd.f32 %v9060, %v9271
      %v9316 = vadd.f32 %v9061, %v9274
      %v9317 = vadd.f32 %v9062, %v9279
      %v9318 = vadd.f32 %v9063, %v9282
      %v9319 = vadd.f32 %v9064, %v9287
      %v9320 = vadd.f32 %v9065, %v9290
      %v9321 = vadd.f32 %v9066, %v9295
      %v9322 = vadd.f32 %v9067, %v9298
      %v9323 = vadd.f32 %v9068, %v9303
      %v9324 = vadd.f32 %v9069, %v9306
      %s9325 = scalar_lea.vmem %s7, 28
      %v9326 = vld [vmem:[%s9325] sm:$0xf]
      %v9327 = vsel %vm405, %v9072, 0
      %v9329 = vsel %vm405, %v9074, 0
      %v9331 = vsel %vm405, %v9076, 0
      %v9333 = vsel %vm405, %v9078, 0
      %v9335 = vsel %vm405, %v9080, 0
      %v9337 = vsel %vm405, %v9082, 0
      %v9339 = vsel %vm405, %v9084, 0
      %v9341 = vsel %vm405, %v9086, 0
      %v9344 = vsel %vm4488, %v9326, 0
      %9346 = vmatprep.subr.bf16.mxu0 0
      %9347 = vmatpush1.bf16.msra.mxu0 %v9344
      %9348 = vmatprep.subr.bf16.mxu0 0
      %9349 = vmatpush1.bf16.msra.mxu0 0
      %9350 = vmatprep.subr.bf16.mxu0 0
      %9351 = vmatpush1.bf16.msra.mxu0 0
      %9352 = vmatprep.subr.bf16.mxu0 0
      %9353 = vmatpush1.bf16.msra.mxu0 0
      %9354 = vmatprep.subr.bf16.mxu0 0
      %9355 = vmatpush1.bf16.msra.mxu0 0
      %9356 = vmatprep.subr.bf16.mxu0 0
      %9357 = vmatpush1.bf16.msra.mxu0 0
      %9358 = vmatprep.subr.bf16.mxu0 0
      %9359 = vmatpush1.bf16.msra.mxu0 0
      %9360 = vmatprep.subr.bf16.mxu0 0
      %9361 = vmatpush1.bf16.msra.mxu0 0
      %9362 = vmatprep.subr.bf16.mxu0 0
      %9363 = vmatpush1.bf16.msra.mxu0 0
      %9364 = vmatprep.subr.bf16.mxu0 0
      %9365 = vmatpush1.bf16.msra.mxu0 0
      %9366 = vmatprep.subr.bf16.mxu0 0
      %9367 = vmatpush1.bf16.msra.mxu0 0
      %9368 = vmatprep.subr.bf16.mxu0 0
      %9369 = vmatpush1.bf16.msra.mxu0 0
      %9370 = vmatprep.subr.bf16.mxu0 0
      %9371 = vmatpush1.bf16.msra.mxu0 0
      %9372 = vmatprep.subr.bf16.mxu0 0
      %9373 = vmatpush1.bf16.msra.mxu0 0
      %9374 = vmatprep.subr.bf16.mxu0 0
      %9375 = vmatpush1.bf16.msra.mxu0 0
      %9376 = vmatprep.subr.bf16.mxu0 0
      %9377 = vmatpush1.bf16.msra.mxu0 0
      %9378 = vmatprep.mubr.bf16.mxu0 0
      %9379 = vmatmul.mubr.bf16.gmra.mrb[0].mxu0 %v9327
      %v9380 = vpop.f32.mrb[0].mxu0
      %v9381 = vadd.f32 0.0, %v9380
      %v9382 = vpop.f32.mrb[0].mxu0
      %v9383 = vpop.f32.mrb[0].mxu0
      %v9384 = vadd.f32 0.0, %v9383
      %v9385 = vpop.f32.mrb[0].mxu0
      %9386 = vmatprep.mubr.bf16.mxu0 0
      %9387 = vmatmul.mubr.bf16.gmra.mrb[0].mxu0 %v9329
      %v9388 = vpop.f32.mrb[0].mxu0
      %v9389 = vadd.f32 0.0, %v9388
      %v9390 = vpop.f32.mrb[0].mxu0
      %v9391 = vpop.f32.mrb[0].mxu0
      %v9392 = vadd.f32 0.0, %v9391
      %v9393 = vpop.f32.mrb[0].mxu0
      %9394 = vmatprep.mubr.bf16.mxu0 0
      %9395 = vmatmul.mubr.bf16.gmra.mrb[0].mxu0 %v9331
      %v9396 = vpop.f32.mrb[0].mxu0
      %v9397 = vadd.f32 0.0, %v9396
      %v9398 = vpop.f32.mrb[0].mxu0
      %v9399 = vpop.f32.mrb[0].mxu0
      %v9400 = vadd.f32 0.0, %v9399
      %v9401 = vpop.f32.mrb[0].mxu0
      %9402 = vmatprep.mubr.bf16.mxu0 0
      %9403 = vmatmul.mubr.bf16.gmra.mrb[0].mxu0 %v9333
      %v9404 = vpop.f32.mrb[0].mxu0
      %v9405 = vadd.f32 0.0, %v9404
      %v9406 = vpop.f32.mrb[0].mxu0
      %v9407 = vpop.f32.mrb[0].mxu0
      %v9408 = vadd.f32 0.0, %v9407
      %v9409 = vpop.f32.mrb[0].mxu0
      %9410 = vmatprep.mubr.bf16.mxu0 0
      %9411 = vmatmul.mubr.bf16.gmra.mrb[0].mxu0 %v9335
      %v9412 = vpop.f32.mrb[0].mxu0
      %v9413 = vadd.f32 0.0, %v9412
      %v9414 = vpop.f32.mrb[0].mxu0
      %v9415 = vpop.f32.mrb[0].mxu0
      %v9416 = vadd.f32 0.0, %v9415
      %v9417 = vpop.f32.mrb[0].mxu0
      %9418 = vmatprep.mubr.bf16.mxu0 0
      %9419 = vmatmul.mubr.bf16.gmra.mrb[0].mxu0 %v9337
      %v9420 = vpop.f32.mrb[0].mxu0
      %v9421 = vadd.f32 0.0, %v9420
      %v9422 = vpop.f32.mrb[0].mxu0
      %v9423 = vpop.f32.mrb[0].mxu0
      %v9424 = vadd.f32 0.0, %v9423
      %v9425 = vpop.f32.mrb[0].mxu0
      %9426 = vmatprep.mubr.bf16.mxu0 0
      %9427 = vmatmul.mubr.bf16.gmra.mrb[0].mxu0 %v9339
      %v9428 = vpop.f32.mrb[0].mxu0
      %v9429 = vadd.f32 0.0, %v9428
      %v9430 = vpop.f32.mrb[0].mxu0
      %v9431 = vpop.f32.mrb[0].mxu0
      %v9432 = vadd.f32 0.0, %v9431
      %v9433 = vpop.f32.mrb[0].mxu0
      %9434 = vmatprep.mubr.bf16.mxu0 0
      %9435 = vmatmul.mubr.bf16.gmra.mrb[0].mxu0 %v9341
      %v9436 = vpop.f32.mrb[0].mxu0
      %v9437 = vadd.f32 0.0, %v9436
      %v9438 = vpop.f32.mrb[0].mxu0
      %v9439 = vpop.f32.mrb[0].mxu0
      %v9440 = vadd.f32 0.0, %v9439
      %v9441 = vpop.f32.mrb[0].mxu0
      %9442 = vdwg.mxu0
      %v9443 = vadd.f32 %v9309, %v9381
      %v9444 = vadd.f32 %v9310, %v9384
      %v9445 = vadd.f32 %v9311, %v9389
      %v9446 = vadd.f32 %v9312, %v9392
      %v9447 = vadd.f32 %v9313, %v9397
      %v9448 = vadd.f32 %v9314, %v9400
      %v9449 = vadd.f32 %v9315, %v9405
      %v9450 = vadd.f32 %v9316, %v9408
      %v9451 = vadd.f32 %v9317, %v9413
      %v9452 = vadd.f32 %v9318, %v9416
      %v9453 = vadd.f32 %v9319, %v9421
      %v9454 = vadd.f32 %v9320, %v9424
      %v9455 = vadd.f32 %v9321, %v9429
      %v9456 = vadd.f32 %v9322, %v9432
      %v9457 = vadd.f32 %v9323, %v9437
      %v9458 = vadd.f32 %v9324, %v9440
      %v9459 = vld [vmem:[%s9070 + $0x8] sm:$0xff]
      %v9460 = vld [vmem:[%s9070 + $0x10] sm:$0x1]
      %v9461 = vld [vmem:[%s9070 + $0x38] sm:$0xff]
      %v9462 = vld [vmem:[%s9070 + $0x40] sm:$0x1]
      %v9463 = vld [vmem:[%s9070 + $0x68] sm:$0xff]
      %v9464 = vld [vmem:[%s9070 + $0x70] sm:$0x1]
      %v9465 = vld [vmem:[%s9070 + $0x98] sm:$0xff]
      %v9466 = vld [vmem:[%s9070 + $0xa0] sm:$0x1]
      %v9467 = vld [vmem:[%s9070 + $0xc8] sm:$0xff]
      %v9468 = vld [vmem:[%s9070 + $0xd0] sm:$0x1]
      %v9469 = vld [vmem:[%s9070 + $0xf8] sm:$0xff]
      %v9470 = vld [vmem:[%s9070 + $0x100] sm:$0x1]
      %v9471 = vld [vmem:[%s9070 + $0x128] sm:$0xff]
      %v9472 = vld [vmem:[%s9070 + $0x130] sm:$0x1]
      %v9473 = vld [vmem:[%s9070 + $0x158] sm:$0xff]
      %v9474 = vld [vmem:[%s9070 + $0x160] sm:$0x1]
      %v9476 = vshrl.u32 %v9459, 16
      %v9478 = vshll.u32 %v9459, 16
      %v9480 = vrot.slane %v9478, 1
      %v9481 = vor.u32 %v9476, %v9480
      %v9483 = vshll.u32 %v9460, 16
      %v9485 = vrot.slane %v9483, 1
      %v9486 = vsel %vm1306, %v9481, %v9485
      %v9488 = vshrl.u32 %v9461, 16
      %v9490 = vshll.u32 %v9461, 16
      %v9492 = vrot.slane %v9490, 1
      %v9493 = vor.u32 %v9488, %v9492
      %v9495 = vshll.u32 %v9462, 16
      %v9497 = vrot.slane %v9495, 1
      %v9498 = vsel %vm1306, %v9493, %v9497
      %v9500 = vshrl.u32 %v9463, 16
      %v9502 = vshll.u32 %v9463, 16
      %v9504 = vrot.slane %v9502, 1
      %v9505 = vor.u32 %v9500, %v9504
      %v9507 = vshll.u32 %v9464, 16
      %v9509 = vrot.slane %v9507, 1
      %v9510 = vsel %vm1306, %v9505, %v9509
      %v9512 = vshrl.u32 %v9465, 16
      %v9514 = vshll.u32 %v9465, 16
      %v9516 = vrot.slane %v9514, 1
      %v9517 = vor.u32 %v9512, %v9516
      %v9519 = vshll.u32 %v9466, 16
      %v9521 = vrot.slane %v9519, 1
      %v9522 = vsel %vm1306, %v9517, %v9521
      %v9524 = vshrl.u32 %v9467, 16
      %v9526 = vshll.u32 %v9467, 16
      %v9528 = vrot.slane %v9526, 1
      %v9529 = vor.u32 %v9524, %v9528
      %v9531 = vshll.u32 %v9468, 16
      %v9533 = vrot.slane %v9531, 1
      %v9534 = vsel %vm1306, %v9529, %v9533
      %v9536 = vshrl.u32 %v9469, 16
      %v9538 = vshll.u32 %v9469, 16
      %v9540 = vrot.slane %v9538, 1
      %v9541 = vor.u32 %v9536, %v9540
      %v9543 = vshll.u32 %v9470, 16
      %v9545 = vrot.slane %v9543, 1
      %v9546 = vsel %vm1306, %v9541, %v9545
      %v9548 = vshrl.u32 %v9471, 16
      %v9550 = vshll.u32 %v9471, 16
      %v9552 = vrot.slane %v9550, 1
      %v9553 = vor.u32 %v9548, %v9552
      %v9555 = vshll.u32 %v9472, 16
      %v9557 = vrot.slane %v9555, 1
      %v9558 = vsel %vm1306, %v9553, %v9557
      %v9560 = vshrl.u32 %v9473, 16
      %v9562 = vshll.u32 %v9473, 16
      %v9564 = vrot.slane %v9562, 1
      %v9565 = vor.u32 %v9560, %v9564
      %v9567 = vshll.u32 %v9474, 16
      %v9569 = vrot.slane %v9567, 1
      %v9570 = vsel %vm1306, %v9565, %v9569
      %s9571 = scalar_lea.vmem %s7, 32
      %v9572 = vld [vmem:[%s9571] sm:$0xf]
      %v9574 = vsel %vm405, %v9486, 0
      %v9577 = vsel %vm405, %v9498, 0
      %v9580 = vsel %vm405, %v9510, 0
      %v9583 = vsel %vm405, %v9522, 0
      %v9586 = vsel %vm405, %v9534, 0
      %v9589 = vsel %vm405, %v9546, 0
      %v9592 = vsel %vm405, %v9558, 0
      %v9595 = vsel %vm405, %v9570, 0
      %v9598 = vsel %vm4488, %v9572, 0
      %9600 = vmatprep.subr.bf16.mxu0 0
      %9601 = vmatpush1.bf16.msra.mxu0 %v9598
      %9602 = vmatprep.subr.bf16.mxu0 0
      %9603 = vmatpush1.bf16.msra.mxu0 0
      %9604 = vmatprep.subr.bf16.mxu0 0
      %9605 = vmatpush1.bf16.msra.mxu0 0
      %9606 = vmatprep.subr.bf16.mxu0 0
      %9607 = vmatpush1.bf16.msra.mxu0 0
      %9608 = vmatprep.subr.bf16.mxu0 0
      %9609 = vmatpush1.bf16.msra.mxu0 0
      %9610 = vmatprep.subr.bf16.mxu0 0
      %9611 = vmatpush1.bf16.msra.mxu0 0
      %9612 = vmatprep.subr.bf16.mxu0 0
      %9613 = vmatpush1.bf16.msra.mxu0 0
      %9614 = vmatprep.subr.bf16.mxu0 0
      %9615 = vmatpush1.bf16.msra.mxu0 0
      %9616 = vmatprep.subr.bf16.mxu0 0
      %9617 = vmatpush1.bf16.msra.mxu0 0
      %9618 = vmatprep.subr.bf16.mxu0 0
      %9619 = vmatpush1.bf16.msra.mxu0 0
      %9620 = vmatprep.subr.bf16.mxu0 0
      %9621 = vmatpush1.bf16.msra.mxu0 0
      %9622 = vmatprep.subr.bf16.mxu0 0
      %9623 = vmatpush1.bf16.msra.mxu0 0
      %9624 = vmatprep.subr.bf16.mxu0 0
      %9625 = vmatpush1.bf16.msra.mxu0 0
      %9626 = vmatprep.subr.bf16.mxu0 0
      %9627 = vmatpush1.bf16.msra.mxu0 0
      %9628 = vmatprep.subr.bf16.mxu0 0
      %9629 = vmatpush1.bf16.msra.mxu0 0
      %9630 = vmatprep.subr.bf16.mxu0 0
      %9631 = vmatpush1.bf16.msra.mxu0 0
      %9632 = vmatprep.mubr.bf16.mxu0 0
      %9633 = vmatmul.mubr.bf16.gmra.mrb[0].mxu0 %v9574
      %v9634 = vpop.f32.mrb[0].mxu0
      %v9635 = vadd.f32 0.0, %v9634
      %v9636 = vpop.f32.mrb[0].mxu0
      %v9637 = vpop.f32.mrb[0].mxu0
      %v9638 = vadd.f32 0.0, %v9637
      %v9639 = vpop.f32.mrb[0].mxu0
      %9640 = vmatprep.mubr.bf16.mxu0 0
      %9641 = vmatmul.mubr.bf16.gmra.mrb[0].mxu0 %v9577
      %v9642 = vpop.f32.mrb[0].mxu0
      %v9643 = vadd.f32 0.0, %v9642
      %v9644 = vpop.f32.mrb[0].mxu0
      %v9645 = vpop.f32.mrb[0].mxu0
      %v9646 = vadd.f32 0.0, %v9645
      %v9647 = vpop.f32.mrb[0].mxu0
      %9648 = vmatprep.mubr.bf16.mxu0 0
      %9649 = vmatmul.mubr.bf16.gmra.mrb[0].mxu0 %v9580
      %v9650 = vpop.f32.mrb[0].mxu0
      %v9651 = vadd.f32 0.0, %v9650
      %v9652 = vpop.f32.mrb[0].mxu0
      %v9653 = vpop.f32.mrb[0].mxu0
      %v9654 = vadd.f32 0.0, %v9653
      %v9655 = vpop.f32.mrb[0].mxu0
      %9656 = vmatprep.mubr.bf16.mxu0 0
      %9657 = vmatmul.mubr.bf16.gmra.mrb[0].mxu0 %v9583
      %v9658 = vpop.f32.mrb[0].mxu0
      %v9659 = vadd.f32 0.0, %v9658
      %v9660 = vpop.f32.mrb[0].mxu0
      %v9661 = vpop.f32.mrb[0].mxu0
      %v9662 = vadd.f32 0.0, %v9661
      %v9663 = vpop.f32.mrb[0].mxu0
      %9664 = vmatprep.mubr.bf16.mxu0 0
      %9665 = vmatmul.mubr.bf16.gmra.mrb[0].mxu0 %v9586
      %v9666 = vpop.f32.mrb[0].mxu0
      %v9667 = vadd.f32 0.0, %v9666
      %v9668 = vpop.f32.mrb[0].mxu0
      %v9669 = vpop.f32.mrb[0].mxu0
      %v9670 = vadd.f32 0.0, %v9669
      %v9671 = vpop.f32.mrb[0].mxu0
      %9672 = vmatprep.mubr.bf16.mxu0 0
      %9673 = vmatmul.mubr.bf16.gmra.mrb[0].mxu0 %v9589
      %v9674 = vpop.f32.mrb[0].mxu0
      %v9675 = vadd.f32 0.0, %v9674
      %v9676 = vpop.f32.mrb[0].mxu0
      %v9677 = vpop.f32.mrb[0].mxu0
      %v9678 = vadd.f32 0.0, %v9677
      %v9679 = vpop.f32.mrb[0].mxu0
      %9680 = vmatprep.mubr.bf16.mxu0 0
      %9681 = vmatmul.mubr.bf16.gmra.mrb[0].mxu0 %v9592
      %v9682 = vpop.f32.mrb[0].mxu0
      %v9683 = vadd.f32 0.0, %v9682
      %v9684 = vpop.f32.mrb[0].mxu0
      %v9685 = vpop.f32.mrb[0].mxu0
      %v9686 = vadd.f32 0.0, %v9685
      %v9687 = vpop.f32.mrb[0].mxu0
      %9688 = vmatprep.mubr.bf16.mxu0 0
      %9689 = vmatmul.mubr.bf16.gmra.mrb[0].mxu0 %v9595
      %v9690 = vpop.f32.mrb[0].mxu0
      %v9691 = vadd.f32 0.0, %v9690
      %v9692 = vpop.f32.mrb[0].mxu0
      %v9693 = vpop.f32.mrb[0].mxu0
      %v9694 = vadd.f32 0.0, %v9693
      %v9695 = vpop.f32.mrb[0].mxu0
      %9696 = vdwg.mxu0
      %v9697 = vadd.f32 %v9443, %v9635
      %v9698 = vadd.f32 %v9444, %v9638
      %v9699 = vadd.f32 %v9445, %v9643
      %v9700 = vadd.f32 %v9446, %v9646
      %v9701 = vadd.f32 %v9447, %v9651
      %v9702 = vadd.f32 %v9448, %v9654
      %v9703 = vadd.f32 %v9449, %v9659
      %v9704 = vadd.f32 %v9450, %v9662
      %v9705 = vadd.f32 %v9451, %v9667
      %v9706 = vadd.f32 %v9452, %v9670
      %v9707 = vadd.f32 %v9453, %v9675
      %v9708 = vadd.f32 %v9454, %v9678
      %v9709 = vadd.f32 %v9455, %v9683
      %v9710 = vadd.f32 %v9456, %v9686
      %v9711 = vadd.f32 %v9457, %v9691
      %v9712 = vadd.f32 %v9458, %v9694
      %v9713 = vld [vmem:[%s8] sm:$0x1]
      %v9715 = vlaneseq
      %v9716 = vshrl.u32 %v9715, 7
      %v9717 = vsub.s32 0, %v9716
      %v9718 = vrot.slane %v9713, %v9717
      %v9720 = vmul.f32 %v9697, %v9718
      %v9721 = vmul.f32 %v9698, %v9718
      %v9722 = vmul.f32 %v9699, %v9718
      %v9723 = vmul.f32 %v9700, %v9718
      %v9724 = vmul.f32 %v9701, %v9718
      %v9725 = vmul.f32 %v9702, %v9718
      %v9726 = vmul.f32 %v9703, %v9718
      %v9727 = vmul.f32 %v9704, %v9718
      %v9728 = vmul.f32 %v9705, %v9718
      %v9729 = vmul.f32 %v9706, %v9718
      %v9730 = vmul.f32 %v9707, %v9718
      %v9731 = vmul.f32 %v9708, %v9718
      %v9732 = vmul.f32 %v9709, %v9718
      %v9733 = vmul.f32 %v9710, %v9718
      %v9734 = vmul.f32 %v9711, %v9718
      %v9735 = vmul.f32 %v9712, %v9718
      %v9736 = vld [vmem:[%s9] sm:$0x1]
      %v9738 = vlaneseq
      %v9739 = vshrl.u32 %v9738, 7
      %v9740 = vsub.s32 0, %v9739
      %v9741 = vrot.slane %v9736, %v9740
      %v9743 = vadd.f32 %v9720, %v9741
      %v9744 = vadd.f32 %v9721, %v9741
      %v9745 = vadd.f32 %v9722, %v9741
      %v9746 = vadd.f32 %v9723, %v9741
      %v9747 = vadd.f32 %v9724, %v9741
      %v9748 = vadd.f32 %v9725, %v9741
      %v9749 = vadd.f32 %v9726, %v9741
      %v9750 = vadd.f32 %v9727, %v9741
      %v9751 = vadd.f32 %v9728, %v9741
      %v9752 = vadd.f32 %v9729, %v9741
      %v9753 = vadd.f32 %v9730, %v9741
      %v9754 = vadd.f32 %v9731, %v9741
      %v9755 = vadd.f32 %v9732, %v9741
      %v9756 = vadd.f32 %v9733, %v9741
      %v9757 = vadd.f32 %v9734, %v9741
      %v9758 = vadd.f32 %v9735, %v9741
      %v9759 = vmax.f32 %v9743, 0.0
      %v9760 = vmax.f32 %v9744, 0.0
      %v9761 = vmax.f32 %v9745, 0.0
      %v9762 = vmax.f32 %v9746, 0.0
      %v9763 = vmax.f32 %v9747, 0.0
      %v9764 = vmax.f32 %v9748, 0.0
      %v9765 = vmax.f32 %v9749, 0.0
      %v9766 = vmax.f32 %v9750, 0.0
      %v9767 = vmax.f32 %v9751, 0.0
      %v9768 = vmax.f32 %v9752, 0.0
      %v9769 = vmax.f32 %v9753, 0.0
      %v9770 = vmax.f32 %v9754, 0.0
      %v9771 = vmax.f32 %v9755, 0.0
      %v9772 = vmax.f32 %v9756, 0.0
      %v9773 = vmax.f32 %v9757, 0.0
      %v9774 = vmax.f32 %v9758, 0.0
      %9775 = vst.msk [vmem:[%s359] sm:$0xff] %vm405, %v9759
      %9776 = vst.msk [vmem:[%s359 + $0x8] sm:$0xff] %vm405, %v9760
      %9777 = vst.msk [vmem:[%s359 + $0x10] sm:$0xff] %vm405, %v9761
      %9778 = vst.msk [vmem:[%s359 + $0x18] sm:$0xff] %vm405, %v9762
      %9779 = vst.msk [vmem:[%s359 + $0x20] sm:$0xff] %vm405, %v9763
      %9780 = vst.msk [vmem:[%s359 + $0x28] sm:$0xff] %vm405, %v9764
      %9781 = vst.msk [vmem:[%s359 + $0x30] sm:$0xff] %vm405, %v9765
      %9782 = vst.msk [vmem:[%s359 + $0x38] sm:$0xff] %vm405, %v9766
      %9783 = vst.msk [vmem:[%s359 + $0x40] sm:$0xff] %vm405, %v9767
      %9784 = vst.msk [vmem:[%s359 + $0x48] sm:$0xff] %vm405, %v9768
      %9785 = vst.msk [vmem:[%s359 + $0x50] sm:$0xff] %vm405, %v9769
      %9786 = vst.msk [vmem:[%s359 + $0x58] sm:$0xff] %vm405, %v9770
      %9787 = vst.msk [vmem:[%s359 + $0x60] sm:$0xff] %vm405, %v9771
      %9788 = vst.msk [vmem:[%s359 + $0x68] sm:$0xff] %vm405, %v9772
      %9789 = vst.msk [vmem:[%s359 + $0x70] sm:$0xff] %vm405, %v9773
      %9790 = vst.msk [vmem:[%s359 + $0x78] sm:$0xff] %vm405, %v9774
      %p9791 = scmp.lt.s32.totalorder %s21, 1
      %s9792 = scalar_select %p9791, %s21, 1
      %s9793 = smul.addr %s9792, 16
      %s9794 = smul.addr %s9793, 8
      %s9795 = scalar_lea.vmem %s10, %s9794
      // Predicated region
      $region61: #{downsample_layer_forward.1} parent=59 // pred_check
        %p9796 = pneg %p254
      $region62: #{downsample_layer_forward.1} parent=59 // pred_check_branch
        %9798 = sbr.rel (%p9796) target = $region64
      $region63: #{downsample_layer_forward.1} parent=59 // pred_region
        _
      $region64: #{downsample_layer_forward.1} parent=59 // pred_fallthru
        _
    $region60: #{downsample_layer_forward.1} parent=5 // pred_fallthru
      _
    %p9799 = scmp.le.s32.totalorder 2, %s16
    // Predicated region
    $region65: #{downsample_layer_forward.1} parent=5 // pred_check
      %p9800 = pneg %p9799
    $region66: #{downsample_layer_forward.1} parent=5 // pred_check_branch
      %9802 = sbr.rel (%p9800) target = $region68
    $region67: #{downsample_layer_forward.1} parent=5 // pred_region
      %s9803 = ssub.s32 %s16, 2
      // Predicated region
      $region69: #{downsample_layer_forward.1} parent=67 // pred_check
        %p9804 = pneg %p260
      $region70: #{downsample_layer_forward.1} parent=67 // pred_check_branch
        %9806 = sbr.rel (%p9804) target = $region72
      $region71: #{downsample_layer_forward.1} parent=67 // pred_region
        %p9807 = scmp.lt.s32.totalorder %s22, 1
        %s9808 = scalar_select %p9807, %s22, 1
        %s9809 = smul.addr %s9808, 16
        %s9810 = smul.addr %s9809, 8
        %s9811 = scalar_lea.vmem %s10, %s9810
      $region72: #{downsample_layer_forward.1} parent=67 // pred_fallthru
        _
    $region68: #{downsample_layer_forward.1} parent=5 // pred_fallthru
      _
  $region6: #{downsample_layer_forward.1} parent=0 // loop_footer
    %s20 = sadd.s32 1, %s16
  $region7: #{downsample_layer_forward.1} parent=0 // loop_footer_branch
    %15 = sbr.rel target = $region3
  $region8: #{downsample_layer_forward.1} parent=0 // loop_exit
    _

</llo_original>
